<compile_context>
chip_gen: v7x
topology: tpu7x:2x2x1
jax: 0.10.0
libtpu: 0.0.40
codegen_flags: <defaults>
</compile_context>

<pallas_src>
import functools
import math

import jax
import jax.numpy as jnp
import numpy as np
from jax.experimental import pallas as pl
from jax.experimental.pallas import tpu as pltpu


_COMPILER_PARAMS = pltpu.CompilerParams(
    dimension_semantics=("arbitrary",),
    vmem_limit_bytes=48 * 1024 * 1024,
)

# 4x4 / 2x2 pyramid levels go to plain XLA (perf review, v5e item).
_PALLAS_MIN_PIXELS = 64

UNET_DEPTH = 4
UNET_CHANS = [7, 14, 28, 56]   # in_channels=7, gain=2


# ----------------------------------------------------------------------------
# Small helpers
# ----------------------------------------------------------------------------
def _spec(shape):
    n = len(shape)
    return pl.BlockSpec(shape, lambda *_, n=n: (0,) * n)


def _pcall(kernel, args, out_shape, out_dtype):
    return pl.pallas_call(
        kernel,
        out_shape=jax.ShapeDtypeStruct(out_shape, out_dtype),
        grid=(1,),
        in_specs=[_spec(tuple(a.shape)) for a in args],
        out_specs=_spec(tuple(out_shape)),
        compiler_params=_COMPILER_PARAMS,
    )(*args)


def _geom(H, W):
    """Flat padded-row geometry: Wp, number of padded pixels, lane guard pad."""
    Wp = W + 2
    HpWp = (H + 2) * Wp
    pad = Wp + 1
    return Wp, HpWp, pad


@functools.lru_cache(maxsize=None)
def _valid_mask_np(H, W):
    Wp, HpWp, _ = _geom(H, W)
    k = np.arange(HpWp)
    r, c = k // Wp, k % Wp
    m = ((r >= 1) & (r <= H) & (c >= 1) & (c <= W)).astype(np.float32)
    return m.reshape(1, HpWp)


def _valid_mask(H, W):
    return jnp.asarray(_valid_mask_np(H, W))


def _to_ext(x_chw):
    """(C, H, W) -> (C, L) bf16 flat padded-row layout with lane guard zeros."""
    C, H, W = x_chw.shape
    _, HpWp, pad = _geom(H, W)
    xp = jnp.pad(x_chw, ((0, 0), (1, 1), (1, 1))).reshape(C, HpWp)
    return jnp.pad(xp, ((0, 0), (pad, pad))).astype(jnp.bfloat16)


def _from_flat(y_flat, H, W):
    """(C, (H+2)*(W+2)) -> (C, H, W), dropping the zeroed border ring."""
    C = y_flat.shape[0]
    return y_flat.reshape(C, H + 2, W + 2)[:, 1:H + 1, 1:W + 1]


def _elu(x):
    # PyTorch nn.ELU(alpha=1): x if x>0 else exp(x)-1  (overflow-safe, f32 math)
    return jnp.where(x > 0, x, jnp.exp(jnp.minimum(x, 0.0)) - 1.0)


# ----------------------------------------------------------------------------
# In-kernel 3x3 conv: 9 accumulated MXU dots on lane slices (lane-dense output)
# ----------------------------------------------------------------------------
def _conv9(x_ext, w_ref, H, W):
    """x_ext: (Cin, L) bf16 value; w_ref: (9, Cout, Cin) bf16 ref.

    Returns the raw (Cout, HpWp) f32 accumulation (no bias / activation)."""
    Wp, HpWp, pad = _geom(H, W)
    acc = None
    t = 0
    for dy in (-1, 0, 1):
        for dx in (-1, 0, 1):
            off = pad + dy * Wp + dx
            d = jnp.dot(w_ref[t], x_ext[:, off:off + HpWp],
                        preferred_element_type=jnp.float32)
            acc = d if acc is None else acc + d
            t += 1
    return acc


# ----------------------------------------------------------------------------
# Pallas kernels
# ----------------------------------------------------------------------------
def _conv_kernel(x_ref, m_ref, w_ref, b_ref, o_ref, *, H, W):
    """Single 3x3 conv + bias + ELU, zero-border output (Cout, HpWp)."""
    valid = m_ref[...] > 0.5
    acc = _conv9(x_ref[...], w_ref, H, W) + b_ref[...]
    o_ref[...] = jnp.where(valid, _elu(acc), 0.0).astype(o_ref.dtype)


def _dec_kernel(u_ref, s_ref, m_ref, wu_ref, ws_ref, b_ref, o_ref, *, H, W):
    """UNet decoder level: conv(up, W_up) + conv(skip, W_skip) + b -> ELU."""
    valid = m_ref[...] > 0.5
    acc = (_conv9(u_ref[...], wu_ref, H, W)
           + _conv9(s_ref[...], ws_ref, H, W) + b_ref[...])
    o_ref[...] = jnp.where(valid, _elu(acc), 0.0).astype(o_ref.dtype)


def _front_kernel(x_ref, m_ref, w1_ref, b1_ref, w2_ref, b2_ref, ws_ref, bs_ref,
                  we_ref, be_ref, o_ref, *, H, W):
    """Fused res_block (conv1+ELU, conv2 + 1x1 skip + add + ELU) + UNet enc0 conv.

    All intermediates stay in VMEM; chaining re-embeds the masked conv output
    back into the flat padded-row layout with a lane concat of zeros."""
    Wp, HpWp, pad = _geom(H, W)
    valid = m_ref[...] > 0.5
    x = x_ref[...]                                            # (5, L) bf16

    def extend(y_f32):                                        # (C, HpWp) -> (C, L) bf16
        z = jnp.zeros((y_f32.shape[0], pad), jnp.float32)
        return jnp.concatenate([z, y_f32, z], axis=-1).astype(jnp.bfloat16)

    # res_block conv1 + ELU
    h1 = jnp.where(valid, _elu(_conv9(x, w1_ref, H, W) + b1_ref[...]), 0.0)
    # res_block conv2 + 1x1 skip on the input + add + ELU
    a2 = _conv9(extend(h1), w2_ref, H, W) + b2_ref[...]
    skip = jnp.dot(ws_ref[...], x[:, pad:pad + HpWp],
                   preferred_element_type=jnp.float32) + bs_ref[...]
    r = jnp.where(valid, _elu(a2 + skip), 0.0)
    # UNet encoder level 0 conv + ELU
    e0 = jnp.where(valid, _elu(_conv9(extend(r), we_ref, H, W) + be_ref[...]), 0.0)
    o_ref[...] = e0.astype(o_ref.dtype)


def _cell_edge_kernel(feat_ref, oh1_ref, inv1_ref, oh2_ref, inv2_ref,
                      c1w1_ref, c1b1_ref, c1w2_ref, c1b2_ref,
                      c2w1_ref, c2b1_ref, c2w2_ref, c2b2_ref,
                      selu_ref, selv_ref,
                      w1e_ref, w1uv_ref, eb1_ref, ew2_ref, eb2_ref,
                      w3_ref, b3_ref, o_ref):
    """Fused cell accumulation (both mask levels) + MyNN + residual + bound
    gathers + EdgeFeatNodeFeatModule (both symmetric paths) + hidden_3."""
    feat = feat_ref[...]                                           # (npix, C) bf16

    def cell_block(oh_ref, inv_ref, w1_ref, b1_ref, w2_ref, b2_ref):
        # TODO(synk): Cell12AccModule undefined; stand-in = [per-cell sum, mean].
        s = jnp.dot(oh_ref[...], feat, preferred_element_type=jnp.float32)
        f = jnp.concatenate([s, s * inv_ref[...]], axis=-1)        # (n, 2C) f32
        h = _elu(jnp.dot(f.astype(jnp.bfloat16), w1_ref[...],
                         preferred_element_type=jnp.float32) + b1_ref[...])
        y = _elu(jnp.dot(h.astype(jnp.bfloat16), w2_ref[...],
                         preferred_element_type=jnp.float32) + b2_ref[...])
        return y + f                                               # MyNN(f) + f

    f1 = cell_block(oh1_ref, inv1_ref, c1w1_ref, c1b1_ref, c1w2_ref, c1b2_ref)
    f2 = cell_block(oh2_ref, inv2_ref, c2w1_ref, c2b1_ref, c2w2_ref, c2b2_ref)

    # gather of the two endpoint cell-2 features via one-hot selection matmuls
    f2b = f2.astype(jnp.bfloat16)
    fu = jnp.dot(selu_ref[...], f2b, preferred_element_type=jnp.float32)
    fv = jnp.dot(selv_ref[...], f2b, preferred_element_type=jnp.float32)

    nh = ew2_ref.shape[0]
    shared = jnp.dot(f1.astype(jnp.bfloat16), w1e_ref[...],
                     preferred_element_type=jnp.float32) + eb1_ref[...]
    hu = jnp.dot(fu.astype(jnp.bfloat16), w1uv_ref[...],
                 preferred_element_type=jnp.float32)               # [fu@W1u | fu@W1v]
    hv = jnp.dot(fv.astype(jnp.bfloat16), w1uv_ref[...],
                 preferred_element_type=jnp.float32)               # [fv@W1u | fv@W1v]
    pa = _elu(shared + hu[:, :nh] + hv[:, nh:])    # cat([f_e, f_u, f_v]) @ W1 + b1
    pb = _elu(shared + hv[:, :nh] + hu[:, nh:])    # cat([f_e, f_v, f_u]) @ W1 + b1
    pa = _elu(jnp.dot(pa.astype(jnp.bfloat16), ew2_ref[...],
                      preferred_element_type=jnp.float32) + eb2_ref[...])
    pb = _elu(jnp.dot(pb.astype(jnp.bfloat16), ew2_ref[...],
                      preferred_element_type=jnp.float32) + eb2_ref[...])
    res = (pa + pb).astype(jnp.bfloat16)
    o_ref[...] = (jnp.dot(res, w3_ref[...], preferred_element_type=jnp.float32)
                  + b3_ref[...]).astype(o_ref.dtype)


# ----------------------------------------------------------------------------
# Pallas call wrappers
# ----------------------------------------------------------------------------
def pallas_front(p_res, w_enc0, b_enc0, x_chw):
    _, H, W = x_chw.shape
    _, HpWp, _ = _geom(H, W)
    args = (_to_ext(x_chw), _valid_mask(H, W),
            p_res["w1"], p_res["b1"], p_res["w2"], p_res["b2"],
            p_res["ws"], p_res["bs"], w_enc0, b_enc0)
    out = _pcall(functools.partial(_front_kernel, H=H, W=W), args,
                 (int(w_enc0.shape[1]), HpWp), jnp.bfloat16)
    return _from_flat(out, H, W)


def pallas_conv(x_chw, w9, b):
    _, H, W = x_chw.shape
    _, HpWp, _ = _geom(H, W)
    args = (_to_ext(x_chw), _valid_mask(H, W), w9, b)
    out = _pcall(functools.partial(_conv_kernel, H=H, W=W), args,
                 (int(w9.shape[1]), HpWp), jnp.bfloat16)
    return _from_flat(out, H, W)


def pallas_dec(up_chw, skip_chw, wu9, ws9, b):
    _, H, W = up_chw.shape
    _, HpWp, _ = _geom(H, W)
    args = (_to_ext(up_chw), _to_ext(skip_chw), _valid_mask(H, W), wu9, ws9, b)
    out = _pcall(functools.partial(_dec_kernel, H=H, W=W), args,
                 (int(wu9.shape[1]), HpWp), jnp.bfloat16)
    return _from_flat(out, H, W)


def pallas_cell_edge(feat_chw, mask1, mask2, sizes1, sizes2, bounds, params):
    C, H, W = feat_chw.shape
    npix = H * W
    feat = jnp.transpose(feat_chw.reshape(C, npix)).astype(jnp.bfloat16)   # (npix, C)

    def onehot(mask, n):
        lab = jnp.arange(1, n + 1, dtype=jnp.int32)[:, None]               # (n, 1)
        return (mask.reshape(1, npix).astype(jnp.int32) == lab).astype(jnp.bfloat16)

    def inv_sizes(sz):
        s = sz.astype(jnp.float32).reshape(-1, 1)
        # exact divide (review correctness note); size==0 cells get mean 0
        return jnp.where(s > 0, 1.0 / jnp.maximum(s, 1.0), 0.0)

    n1, n2 = int(sizes1.shape[0]), int(sizes2.shape[0])
    oh1, oh2 = onehot(mask1, n1), onehot(mask2, n2)
    inv1, inv2 = inv_sizes(sizes1), inv_sizes(sizes2)

    # one-hot selection of cell-2 endpoints (invalid / zero bounds -> zero row)
    b = bounds.astype(jnp.int32)
    ids = jnp.arange(1, n2 + 1, dtype=jnp.int32)[None, :]
    sel_u = (b[:, 0:1] == ids).astype(jnp.bfloat16)
    sel_v = (b[:, 1:2] == ids).astype(jnp.bfloat16)
    n_e = int(sel_u.shape[0])
    assert n_e == n1, "one edge prediction per level-1 cell expected"

    p1, p2, pe = params["nn_cell_1"], params["nn_cell_2"], params["edge_hidden"]
    args = (feat, oh1, inv1, oh2, inv2,
            p1["w1"], p1["b1"], p1["w2"], p1["b2"],
            p2["w1"], p2["b1"], p2["w2"], p2["b2"],
            sel_u, sel_v,
            pe["w1e"], pe["w1uv"], pe["b1"], pe["w2"], pe["b2"],
            params["w3"], params["b3"])
    return _pcall(_cell_edge_kernel, args, (n_e, 2), jnp.float32)


# ----------------------------------------------------------------------------
# Plain-XLA glue: pooling / upsampling and the tiny 4x4 / 2x2 pyramid levels
# ----------------------------------------------------------------------------
def maxpool2x2(x_chw):
    C, H, W = x_chw.shape
    return x_chw.reshape(C, H // 2, 2, W // 2, 2).max(axis=(2, 4))


def upsample2x(x_chw):
    return jnp.repeat(jnp.repeat(x_chw, 2, axis=1), 2, axis=2)


def _xla_conv_raw(x_chw, w9, b):
    cout, cin = int(w9.shape[1]), int(w9.shape[2])
    w = jnp.transpose(w9.astype(jnp.float32), (1, 2, 0)).reshape(cout, cin, 3, 3)
    y = jax.lax.conv_general_dilated(
        x_chw[None].astype(jnp.float32), w, (1, 1), ((1, 1), (1, 1)),
        dimension_numbers=("NCHW", "OIHW", "NCHW"))[0]
    return y + b.astype(jnp.float32)[:, :, None]


def xla_conv(x_chw, w9, b):
    return _elu(_xla_conv_raw(x_chw, w9, b)).astype(jnp.bfloat16)


def xla_dec(up_chw, skip_chw, wu9, ws9, b):
    y = _xla_conv_raw(up_chw, wu9, jnp.zeros_like(b)) + _xla_conv_raw(skip_chw, ws9, b)
    return _elu(y).astype(jnp.bfloat16)


def apply_conv(x_chw, w9, b):
    _, H, W = x_chw.shape
    if H * W >= _PALLAS_MIN_PIXELS:
        return pallas_conv(x_chw, w9, b)
    return xla_conv(x_chw, w9, b)


def apply_dec(up_chw, skip_chw, wu9, ws9, b):
    _, H, W = up_chw.shape
    if H * W >= _PALLAS_MIN_PIXELS:
        return pallas_dec(up_chw, skip_chw, wu9, ws9, b)
    return xla_dec(up_chw, skip_chw, wu9, ws9, b)


# ----------------------------------------------------------------------------
# Parameters (deterministic synthetic init; bf16 weights, f32 biases)
# ----------------------------------------------------------------------------
_PKEY = jax.random.PRNGKey(42)
_PCOUNT = [0]


def _init(shape, fan_in):
    _PCOUNT[0] += 1
    k = jax.random.fold_in(_PKEY, _PCOUNT[0])
    return jax.random.normal(k, shape, jnp.float32) * (1.0 / math.sqrt(fan_in))


def _conv_w(cin, cout, fan_in=None):
    """Conv weight stored as (9, Cout, Cin), tap-major t = kh*3 + kw.

    NOTE: real torch Conv2d weights (Cout, Cin, 3, 3) must be permuted
    (2, 3, 0, 1) and reshaped to (9, Cout, Cin) to match this layout."""
    fan = 9 * cin if fan_in is None else fan_in
    w = _init((3, 3, cin, cout), fan).reshape(9, cin, cout)
    return jnp.transpose(w, (0, 2, 1)).astype(jnp.bfloat16)


def _cbias(cout):
    return jnp.zeros((cout, 1), jnp.float32)


def _bias(cout):
    return jnp.zeros((1, cout), jnp.float32)


def make_params():
    p = {}
    # TODO(synk): ResBlock undefined; stand-in = conv3x3->ELU->conv3x3 + 1x1 skip,
    #             ELU on the sum.
    p["res_block"] = {
        "w1": _conv_w(5, 7), "b1": _cbias(7),
        "w2": _conv_w(7, 7), "b2": _cbias(7),
        "ws": _init((7, 5), 5).astype(jnp.bfloat16), "bs": _cbias(7),
    }

    # TODO(synk): ResBlockUnet undefined; stand-in = conv/pool encoder +
    #             nearest-upsample decoder with split (W_up, W_skip) weights.
    enc_w, enc_b, dec_wu, dec_ws, dec_b = [], [], [], [], []
    prev = 7
    for i in range(UNET_DEPTH):
        enc_w.append(_conv_w(prev, UNET_CHANS[i]))
        enc_b.append(_cbias(UNET_CHANS[i]))
        prev = UNET_CHANS[i]
    for i in range(UNET_DEPTH - 1):
        cu, cs, co = UNET_CHANS[i + 1], UNET_CHANS[i], UNET_CHANS[i]
        fan = 9 * (cu + cs)
        dec_wu.append(_conv_w(cu, co, fan_in=fan))
        dec_ws.append(_conv_w(cs, co, fan_in=fan))
        dec_b.append(_cbias(co))
    p["unet"] = {"enc_w": enc_w, "enc_b": enc_b,
                 "dec_wu": dec_wu, "dec_ws": dec_ws, "dec_b": dec_b}

    c_acc = 2 * UNET_CHANS[0]          # Cell12Acc stand-in out_channels = 14

    def mynn_params(cin, hidden_gain=2):
        h = cin * hidden_gain
        return {"w1": _init((cin, h), cin).astype(jnp.bfloat16), "b1": _bias(h),
                "w2": _init((h, cin), h).astype(jnp.bfloat16), "b2": _bias(cin)}

    p["nn_cell_1"] = mynn_params(c_acc)
    p["nn_cell_2"] = mynn_params(c_acc)

    n_in = 3 * c_acc                   # 42
    n_hidden = 2 * n_in                # 84
    p["edge_hidden"] = {
        # hidden_1 weight row-split: W_e shared between both symmetric paths,
        # [W_u | W_v] concatenated so each path needs only one extra dot.
        "w1e": _init((c_acc, n_hidden), n_in).astype(jnp.bfloat16),
        "w1uv": _init((c_acc, 2 * n_hidden), n_in).astype(jnp.bfloat16),
        "b1": _bias(n_hidden),
        "w2": _init((n_hidden, n_hidden), n_hidden).astype(jnp.bfloat16),
        "b2": _bias(n_hidden),
    }
    p["w3"] = _init((n_hidden, 2), n_hidden).astype(jnp.bfloat16)
    p["b3"] = _bias(2)
    # lifted_edges_op / lifted_edge_pred / j_pool / j_pool_nn / j3 / nn_j3 are only
    # used inside `if False:` blocks in ConvNet.forward -> no parameters needed.
    return p


# ----------------------------------------------------------------------------
# ConvNet forward
# ----------------------------------------------------------------------------
def convnet_forward(params, padded_image, padded_cell_masks, cell_0_bounds,
                    cell_1_bounds, cell_1_sizes, cell_2_sizes):
    del cell_0_bounds  # passed to edge_hidden in PyTorch but never used there
    mask1 = padded_cell_masks[0, 1]                       # (H, W) int labels
    mask2 = padded_cell_masks[0, 2]
    is_boundary = jnp.clip(mask1, 0, 1).astype(jnp.float32) - 0.5
    x = jnp.concatenate([padded_image[0].astype(jnp.float32),
                         is_boundary[None]], axis=0)      # (5, H, W) f32

    pu = params["unet"]
    # Kernel 1: res_block (2 convs + 1x1 skip) + UNet encoder level 0, fused.
    enc0 = pallas_front(params["res_block"], pu["enc_w"][0], pu["enc_b"][0], x)
    skips = [enc0]
    cur = maxpool2x2(enc0)
    for i in range(1, UNET_DEPTH):
        cur = apply_conv(cur, pu["enc_w"][i], pu["enc_b"][i])
        if i + 1 < UNET_DEPTH:
            skips.append(cur)
            cur = maxpool2x2(cur)
    for i in range(UNET_DEPTH - 2, -1, -1):
        up = upsample2x(cur)
        cur = apply_dec(up, skips[i], pu["dec_wu"][i], pu["dec_ws"][i],
                        pu["dec_b"][i])
    feat = cur                                            # (7, H, W) bf16

    # Fused: per-cell accumulation (both levels) + MyNNs + residuals + bound
    # gathers + EdgeFeatNodeFeatModule + hidden_3, one pallas_call.
    return pallas_cell_edge(feat, mask1, mask2, cell_1_sizes, cell_2_sizes,
                            cell_1_bounds, params)


# ----------------------------------------------------------------------------
if __name__ == "__main__":
    H = W = 16
    key = jax.random.PRNGKey(0)
    padded_image = jax.random.normal(key, (1, 4, H, W), jnp.float32)

    # 2x2 grid of regions (cell-2) with boundary strips (cell-1) between them.
    mask2 = jnp.zeros((H, W), jnp.int32)
    mask2 = mask2.at[0:8, 0:8].set(1).at[0:8, 8:16].set(2)
    mask2 = mask2.at[8:16, 0:8].set(3).at[8:16, 8:16].set(4)

    mask1 = jnp.zeros((H, W), jnp.int32)
    mask1 = mask1.at[0:8, 7:9].set(1).at[8:16, 7:9].set(2)
    mask1 = mask1.at[7:9, 0:8].set(3).at[7:9, 8:16].set(4)

    padded_cell_masks = jnp.stack(
        [jnp.zeros((H, W), jnp.int32), mask1, mask2], axis=0)[None]   # (1, 3, H, W)

    cell_1_bounds = jnp.array([[1, 2], [3, 4], [1, 3], [2, 4]], jnp.int32)  # 1-based
    cell_0_bounds = jnp.zeros((2, 3), jnp.int32)
    cell_1_sizes = jnp.array([jnp.sum(mask1 == i + 1) for i in range(4)], jnp.int32)
    cell_2_sizes = jnp.array([jnp.sum(mask2 == i + 1) for i in range(4)], jnp.int32)

    params = make_params()
    fwd = jax.jit(convnet_forward)
    pred = fwd(params, padded_image, padded_cell_masks, cell_0_bounds,
               cell_1_bounds, cell_1_sizes, cell_2_sizes)
    pred = jax.block_until_ready(pred)
    assert pred.shape == (4, 2) and pred.dtype == jnp.float32
    assert bool(jnp.all(jnp.isfinite(pred)))
    print("KERNEL_OK")
</pallas_src>

<mosaic_0001>
module attributes {stable_mosaic.version = 11 : i64} {
  func.func @_front_kernel(%arg0: i32, %arg1: memref<5x362xbf16, #tpu.memory_space<vmem>>, %arg2: memref<1x324xf32, #tpu.memory_space<vmem>>, %arg3: memref<9x7x5xbf16, #tpu.memory_space<vmem>>, %arg4: memref<7x1xf32, #tpu.memory_space<vmem>>, %arg5: memref<9x7x7xbf16, #tpu.memory_space<vmem>>, %arg6: memref<7x1xf32, #tpu.memory_space<vmem>>, %arg7: memref<7x5xbf16, #tpu.memory_space<vmem>>, %arg8: memref<7x1xf32, #tpu.memory_space<vmem>>, %arg9: memref<9x7x7xbf16, #tpu.memory_space<vmem>>, %arg10: memref<7x1xf32, #tpu.memory_space<vmem>>, %arg11: memref<7x324xbf16, #tpu.memory_space<vmem>>) attributes {dimension_semantics = [#tpu.dimension_semantics<arbitrary>], iteration_bounds = array<i64: 1>, scalar_prefetch = 0 : i64, scratch_operands = 0 : i64, tpu.core_type = #tpu.core_type<tc>, window_params = [{pipeline_mode = #tpu.pipeline_mode<synchronous>, transform_indices = @transform_0, window_bounds = array<i64: 5, 362>}, {pipeline_mode = #tpu.pipeline_mode<synchronous>, transform_indices = @transform_1, window_bounds = array<i64: 1, 324>}, {pipeline_mode = #tpu.pipeline_mode<synchronous>, transform_indices = @transform_2, window_bounds = array<i64: 9, 7, 5>}, {pipeline_mode = #tpu.pipeline_mode<synchronous>, transform_indices = @transform_3, window_bounds = array<i64: 7, 1>}, {pipeline_mode = #tpu.pipeline_mode<synchronous>, transform_indices = @transform_4, window_bounds = array<i64: 9, 7, 7>}, {pipeline_mode = #tpu.pipeline_mode<synchronous>, transform_indices = @transform_5, window_bounds = array<i64: 7, 1>}, {pipeline_mode = #tpu.pipeline_mode<synchronous>, transform_indices = @transform_6, window_bounds = array<i64: 7, 5>}, {pipeline_mode = #tpu.pipeline_mode<synchronous>, transform_indices = @transform_7, window_bounds = array<i64: 7, 1>}, {pipeline_mode = #tpu.pipeline_mode<synchronous>, transform_indices = @transform_8, window_bounds = array<i64: 9, 7, 7>}, {pipeline_mode = #tpu.pipeline_mode<synchronous>, transform_indices = @transform_9, window_bounds = array<i64: 7, 1>}, {pipeline_mode = #tpu.pipeline_mode<synchronous>, transform_indices = @transform_10, window_bounds = array<i64: 7, 324>}]} {
    %c0 = arith.constant 0 : index
    %c0_0 = arith.constant 0 : index
    %0 = vector.load %arg2[%c0, %c0_0] : memref<1x324xf32, #tpu.memory_space<vmem>>, vector<1x324xf32>
    %cst = arith.constant 5.000000e-01 : f32
    %1 = vector.broadcast %cst : f32 to vector<1x324xf32>
    %2 = arith.cmpf ogt, %0, %1 : vector<1x324xf32>
    %c0_1 = arith.constant 0 : index
    %c0_2 = arith.constant 0 : index
    %3 = vector.load %arg1[%c0_1, %c0_2] : memref<5x362xbf16, #tpu.memory_space<vmem>>, vector<5x362xbf16>
    %c0_3 = arith.constant 0 : index
    %c0_4 = arith.constant 0 : index
    %c0_5 = arith.constant 0 : index
    %4 = vector.load %arg3[%c0_3, %c0_4, %c0_5] : memref<9x7x5xbf16, #tpu.memory_space<vmem>>, vector<1x7x5xbf16>
    %5 = vector.shape_cast %4 : vector<1x7x5xbf16> to vector<7x5xbf16>
    %6 = vector.extract_strided_slice %3 {offsets = [0, 0], sizes = [5, 324], strides = [1, 1]} : vector<5x362xbf16> to vector<5x324xbf16>
    %cst_6 = arith.constant dense<0.000000e+00> : vector<7x324xf32>
    %7 = tpu.matmul %5, %6, %cst_6 {dimension_numbers = #tpu.dot_dimension_numbers<[1], [0], [0], [1], [0, 0, 1, 1], [], []>} : vector<7x5xbf16>, vector<5x324xbf16>, vector<7x324xf32> -> vector<7x324xf32>
    %c1 = arith.constant 1 : index
    %c0_7 = arith.constant 0 : index
    %c0_8 = arith.constant 0 : index
    %8 = vector.load %arg3[%c1, %c0_7, %c0_8] : memref<9x7x5xbf16, #tpu.memory_space<vmem>>, vector<1x7x5xbf16>
    %9 = vector.shape_cast %8 : vector<1x7x5xbf16> to vector<7x5xbf16>
    %10 = vector.extract_strided_slice %3 {offsets = [0, 1], sizes = [5, 324], strides = [1, 1]} : vector<5x362xbf16> to vector<5x324xbf16>
    %cst_9 = arith.constant dense<0.000000e+00> : vector<7x324xf32>
    %11 = tpu.matmul %9, %10, %cst_9 {dimension_numbers = #tpu.dot_dimension_numbers<[1], [0], [0], [1], [0, 0, 1, 1], [], []>} : vector<7x5xbf16>, vector<5x324xbf16>, vector<7x324xf32> -> vector<7x324xf32>
    %12 = arith.addf %7, %11 : vector<7x324xf32>
    %c2 = arith.constant 2 : index
    %c0_10 = arith.constant 0 : index
    %c0_11 = arith.constant 0 : index
    %13 = vector.load %arg3[%c2, %c0_10, %c0_11] : memref<9x7x5xbf16, #tpu.memory_space<vmem>>, vector<1x7x5xbf16>
    %14 = vector.shape_cast %13 : vector<1x7x5xbf16> to vector<7x5xbf16>
    %15 = vector.extract_strided_slice %3 {offsets = [0, 2], sizes = [5, 324], strides = [1, 1]} : vector<5x362xbf16> to vector<5x324xbf16>
    %cst_12 = arith.constant dense<0.000000e+00> : vector<7x324xf32>
    %16 = tpu.matmul %14, %15, %cst_12 {dimension_numbers = #tpu.dot_dimension_numbers<[1], [0], [0], [1], [0, 0, 1, 1], [], []>} : vector<7x5xbf16>, vector<5x324xbf16>, vector<7x324xf32> -> vector<7x324xf32>
    %17 = arith.addf %12, %16 : vector<7x324xf32>
    %c3 = arith.constant 3 : index
    %c0_13 = arith.constant 0 : index
    %c0_14 = arith.constant 0 : index
    %18 = vector.load %arg3[%c3, %c0_13, %c0_14] : memref<9x7x5xbf16, #tpu.memory_space<vmem>>, vector<1x7x5xbf16>
    %19 = vector.shape_cast %18 : vector<1x7x5xbf16> to vector<7x5xbf16>
    %20 = vector.extract_strided_slice %3 {offsets = [0, 18], sizes = [5, 324], strides = [1, 1]} : vector<5x362xbf16> to vector<5x324xbf16>
    %cst_15 = arith.constant dense<0.000000e+00> : vector<7x324xf32>
    %21 = tpu.matmul %19, %20, %cst_15 {dimension_numbers = #tpu.dot_dimension_numbers<[1], [0], [0], [1], [0, 0, 1, 1], [], []>} : vector<7x5xbf16>, vector<5x324xbf16>, vector<7x324xf32> -> vector<7x324xf32>
    %22 = arith.addf %17, %21 : vector<7x324xf32>
    %c4 = arith.constant 4 : index
    %c0_16 = arith.constant 0 : index
    %c0_17 = arith.constant 0 : index
    %23 = vector.load %arg3[%c4, %c0_16, %c0_17] : memref<9x7x5xbf16, #tpu.memory_space<vmem>>, vector<1x7x5xbf16>
    %24 = vector.shape_cast %23 : vector<1x7x5xbf16> to vector<7x5xbf16>
    %25 = vector.extract_strided_slice %3 {offsets = [0, 19], sizes = [5, 324], strides = [1, 1]} : vector<5x362xbf16> to vector<5x324xbf16>
    %cst_18 = arith.constant dense<0.000000e+00> : vector<7x324xf32>
    %26 = tpu.matmul %24, %25, %cst_18 {dimension_numbers = #tpu.dot_dimension_numbers<[1], [0], [0], [1], [0, 0, 1, 1], [], []>} : vector<7x5xbf16>, vector<5x324xbf16>, vector<7x324xf32> -> vector<7x324xf32>
    %27 = arith.addf %22, %26 : vector<7x324xf32>
    %c5 = arith.constant 5 : index
    %c0_19 = arith.constant 0 : index
    %c0_20 = arith.constant 0 : index
    %28 = vector.load %arg3[%c5, %c0_19, %c0_20] : memref<9x7x5xbf16, #tpu.memory_space<vmem>>, vector<1x7x5xbf16>
    %29 = vector.shape_cast %28 : vector<1x7x5xbf16> to vector<7x5xbf16>
    %30 = vector.extract_strided_slice %3 {offsets = [0, 20], sizes = [5, 324], strides = [1, 1]} : vector<5x362xbf16> to vector<5x324xbf16>
    %cst_21 = arith.constant dense<0.000000e+00> : vector<7x324xf32>
    %31 = tpu.matmul %29, %30, %cst_21 {dimension_numbers = #tpu.dot_dimension_numbers<[1], [0], [0], [1], [0, 0, 1, 1], [], []>} : vector<7x5xbf16>, vector<5x324xbf16>, vector<7x324xf32> -> vector<7x324xf32>
    %32 = arith.addf %27, %31 : vector<7x324xf32>
    %c6 = arith.constant 6 : index
    %c0_22 = arith.constant 0 : index
    %c0_23 = arith.constant 0 : index
    %33 = vector.load %arg3[%c6, %c0_22, %c0_23] : memref<9x7x5xbf16, #tpu.memory_space<vmem>>, vector<1x7x5xbf16>
    %34 = vector.shape_cast %33 : vector<1x7x5xbf16> to vector<7x5xbf16>
    %35 = vector.extract_strided_slice %3 {offsets = [0, 36], sizes = [5, 324], strides = [1, 1]} : vector<5x362xbf16> to vector<5x324xbf16>
    %cst_24 = arith.constant dense<0.000000e+00> : vector<7x324xf32>
    %36 = tpu.matmul %34, %35, %cst_24 {dimension_numbers = #tpu.dot_dimension_numbers<[1], [0], [0], [1], [0, 0, 1, 1], [], []>} : vector<7x5xbf16>, vector<5x324xbf16>, vector<7x324xf32> -> vector<7x324xf32>
    %37 = arith.addf %32, %36 : vector<7x324xf32>
    %c7 = arith.constant 7 : index
    %c0_25 = arith.constant 0 : index
    %c0_26 = arith.constant 0 : index
    %38 = vector.load %arg3[%c7, %c0_25, %c0_26] : memref<9x7x5xbf16, #tpu.memory_space<vmem>>, vector<1x7x5xbf16>
    %39 = vector.shape_cast %38 : vector<1x7x5xbf16> to vector<7x5xbf16>
    %40 = vector.extract_strided_slice %3 {offsets = [0, 37], sizes = [5, 324], strides = [1, 1]} : vector<5x362xbf16> to vector<5x324xbf16>
    %cst_27 = arith.constant dense<0.000000e+00> : vector<7x324xf32>
    %41 = tpu.matmul %39, %40, %cst_27 {dimension_numbers = #tpu.dot_dimension_numbers<[1], [0], [0], [1], [0, 0, 1, 1], [], []>} : vector<7x5xbf16>, vector<5x324xbf16>, vector<7x324xf32> -> vector<7x324xf32>
    %42 = arith.addf %37, %41 : vector<7x324xf32>
    %c8 = arith.constant 8 : index
    %c0_28 = arith.constant 0 : index
    %c0_29 = arith.constant 0 : index
    %43 = vector.load %arg3[%c8, %c0_28, %c0_29] : memref<9x7x5xbf16, #tpu.memory_space<vmem>>, vector<1x7x5xbf16>
    %44 = vector.shape_cast %43 : vector<1x7x5xbf16> to vector<7x5xbf16>
    %45 = vector.extract_strided_slice %3 {offsets = [0, 38], sizes = [5, 324], strides = [1, 1]} : vector<5x362xbf16> to vector<5x324xbf16>
    %cst_30 = arith.constant dense<0.000000e+00> : vector<7x324xf32>
    %46 = tpu.matmul %44, %45, %cst_30 {dimension_numbers = #tpu.dot_dimension_numbers<[1], [0], [0], [1], [0, 0, 1, 1], [], []>} : vector<7x5xbf16>, vector<5x324xbf16>, vector<7x324xf32> -> vector<7x324xf32>
    %47 = arith.addf %42, %46 : vector<7x324xf32>
    %c0_31 = arith.constant 0 : index
    %c0_32 = arith.constant 0 : index
    %48 = vector.load %arg4[%c0_31, %c0_32] : memref<7x1xf32, #tpu.memory_space<vmem>>, vector<7x1xf32>
    %49 = vector.broadcast %48 : vector<7x1xf32> to vector<7x324xf32>
    %50 = arith.addf %47, %49 : vector<7x324xf32>
    %cst_33 = arith.constant 0.000000e+00 : f32
    %51 = vector.broadcast %cst_33 : f32 to vector<7x324xf32>
    %52 = arith.cmpf ogt, %50, %51 : vector<7x324xf32>
    %cst_34 = arith.constant 0.000000e+00 : f32
    %53 = vector.broadcast %cst_34 : f32 to vector<7x324xf32>
    %54 = arith.minimumf %50, %53 : vector<7x324xf32>
    %55 = math.exp %54 : vector<7x324xf32>
    %cst_35 = arith.constant 1.000000e+00 : f32
    %56 = vector.broadcast %cst_35 : f32 to vector<7x324xf32>
    %57 = arith.subf %55, %56 : vector<7x324xf32>
    %58 = arith.select %52, %50, %57 : vector<7x324xi1>, vector<7x324xf32>
    %cst_36 = arith.constant 0.000000e+00 : f32
    %59 = vector.shape_cast %2 : vector<1x324xi1> to vector<1x324xi1>
    %60 = vector.broadcast %59 : vector<1x324xi1> to vector<7x324xi1>
    %61 = vector.broadcast %cst_36 : f32 to vector<7x324xf32>
    %62 = arith.select %60, %58, %61 : vector<7x324xi1>, vector<7x324xf32>
    %cst_37 = arith.constant 0.000000e+00 : f32
    %63 = vector.broadcast %cst_37 : f32 to vector<7x19xf32>
    %64 = tpu.concatenate %63, %62, %63 in 1 : vector<7x19xf32>, vector<7x324xf32>, vector<7x19xf32> -> vector<7x362xf32>
    %65 = arith.truncf %64 : vector<7x362xf32> to vector<7x362xbf16>
    %c0_38 = arith.constant 0 : index
    %c0_39 = arith.constant 0 : index
    %c0_40 = arith.constant 0 : index
    %66 = vector.load %arg5[%c0_38, %c0_39, %c0_40] : memref<9x7x7xbf16, #tpu.memory_space<vmem>>, vector<1x7x7xbf16>
    %67 = vector.shape_cast %66 : vector<1x7x7xbf16> to vector<7x7xbf16>
    %68 = vector.extract_strided_slice %65 {offsets = [0, 0], sizes = [7, 324], strides = [1, 1]} : vector<7x362xbf16> to vector<7x324xbf16>
    %cst_41 = arith.constant dense<0.000000e+00> : vector<7x324xf32>
    %69 = tpu.matmul %67, %68, %cst_41 {dimension_numbers = #tpu.dot_dimension_numbers<[1], [0], [0], [1], [0, 0, 1, 1], [], []>} : vector<7x7xbf16>, vector<7x324xbf16>, vector<7x324xf32> -> vector<7x324xf32>
    %c1_42 = arith.constant 1 : index
    %c0_43 = arith.constant 0 : index
    %c0_44 = arith.constant 0 : index
    %70 = vector.load %arg5[%c1_42, %c0_43, %c0_44] : memref<9x7x7xbf16, #tpu.memory_space<vmem>>, vector<1x7x7xbf16>
    %71 = vector.shape_cast %70 : vector<1x7x7xbf16> to vector<7x7xbf16>
    %72 = vector.extract_strided_slice %65 {offsets = [0, 1], sizes = [7, 324], strides = [1, 1]} : vector<7x362xbf16> to vector<7x324xbf16>
    %cst_45 = arith.constant dense<0.000000e+00> : vector<7x324xf32>
    %73 = tpu.matmul %71, %72, %cst_45 {dimension_numbers = #tpu.dot_dimension_numbers<[1], [0], [0], [1], [0, 0, 1, 1], [], []>} : vector<7x7xbf16>, vector<7x324xbf16>, vector<7x324xf32> -> vector<7x324xf32>
    %74 = arith.addf %69, %73 : vector<7x324xf32>
    %c2_46 = arith.constant 2 : index
    %c0_47 = arith.constant 0 : index
    %c0_48 = arith.constant 0 : index
    %75 = vector.load %arg5[%c2_46, %c0_47, %c0_48] : memref<9x7x7xbf16, #tpu.memory_space<vmem>>, vector<1x7x7xbf16>
    %76 = vector.shape_cast %75 : vector<1x7x7xbf16> to vector<7x7xbf16>
    %77 = vector.extract_strided_slice %65 {offsets = [0, 2], sizes = [7, 324], strides = [1, 1]} : vector<7x362xbf16> to vector<7x324xbf16>
    %cst_49 = arith.constant dense<0.000000e+00> : vector<7x324xf32>
    %78 = tpu.matmul %76, %77, %cst_49 {dimension_numbers = #tpu.dot_dimension_numbers<[1], [0], [0], [1], [0, 0, 1, 1], [], []>} : vector<7x7xbf16>, vector<7x324xbf16>, vector<7x324xf32> -> vector<7x324xf32>
    %79 = arith.addf %74, %78 : vector<7x324xf32>
    %c3_50 = arith.constant 3 : index
    %c0_51 = arith.constant 0 : index
    %c0_52 = arith.constant 0 : index
    %80 = vector.load %arg5[%c3_50, %c0_51, %c0_52] : memref<9x7x7xbf16, #tpu.memory_space<vmem>>, vector<1x7x7xbf16>
    %81 = vector.shape_cast %80 : vector<1x7x7xbf16> to vector<7x7xbf16>
    %82 = vector.extract_strided_slice %65 {offsets = [0, 18], sizes = [7, 324], strides = [1, 1]} : vector<7x362xbf16> to vector<7x324xbf16>
    %cst_53 = arith.constant dense<0.000000e+00> : vector<7x324xf32>
    %83 = tpu.matmul %81, %82, %cst_53 {dimension_numbers = #tpu.dot_dimension_numbers<[1], [0], [0], [1], [0, 0, 1, 1], [], []>} : vector<7x7xbf16>, vector<7x324xbf16>, vector<7x324xf32> -> vector<7x324xf32>
    %84 = arith.addf %79, %83 : vector<7x324xf32>
    %c4_54 = arith.constant 4 : index
    %c0_55 = arith.constant 0 : index
    %c0_56 = arith.constant 0 : index
    %85 = vector.load %arg5[%c4_54, %c0_55, %c0_56] : memref<9x7x7xbf16, #tpu.memory_space<vmem>>, vector<1x7x7xbf16>
    %86 = vector.shape_cast %85 : vector<1x7x7xbf16> to vector<7x7xbf16>
    %87 = vector.extract_strided_slice %65 {offsets = [0, 19], sizes = [7, 324], strides = [1, 1]} : vector<7x362xbf16> to vector<7x324xbf16>
    %cst_57 = arith.constant dense<0.000000e+00> : vector<7x324xf32>
    %88 = tpu.matmul %86, %87, %cst_57 {dimension_numbers = #tpu.dot_dimension_numbers<[1], [0], [0], [1], [0, 0, 1, 1], [], []>} : vector<7x7xbf16>, vector<7x324xbf16>, vector<7x324xf32> -> vector<7x324xf32>
    %89 = arith.addf %84, %88 : vector<7x324xf32>
    %c5_58 = arith.constant 5 : index
    %c0_59 = arith.constant 0 : index
    %c0_60 = arith.constant 0 : index
    %90 = vector.load %arg5[%c5_58, %c0_59, %c0_60] : memref<9x7x7xbf16, #tpu.memory_space<vmem>>, vector<1x7x7xbf16>
    %91 = vector.shape_cast %90 : vector<1x7x7xbf16> to vector<7x7xbf16>
    %92 = vector.extract_strided_slice %65 {offsets = [0, 20], sizes = [7, 324], strides = [1, 1]} : vector<7x362xbf16> to vector<7x324xbf16>
    %cst_61 = arith.constant dense<0.000000e+00> : vector<7x324xf32>
    %93 = tpu.matmul %91, %92, %cst_61 {dimension_numbers = #tpu.dot_dimension_numbers<[1], [0], [0], [1], [0, 0, 1, 1], [], []>} : vector<7x7xbf16>, vector<7x324xbf16>, vector<7x324xf32> -> vector<7x324xf32>
    %94 = arith.addf %89, %93 : vector<7x324xf32>
    %c6_62 = arith.constant 6 : index
    %c0_63 = arith.constant 0 : index
    %c0_64 = arith.constant 0 : index
    %95 = vector.load %arg5[%c6_62, %c0_63, %c0_64] : memref<9x7x7xbf16, #tpu.memory_space<vmem>>, vector<1x7x7xbf16>
    %96 = vector.shape_cast %95 : vector<1x7x7xbf16> to vector<7x7xbf16>
    %97 = vector.extract_strided_slice %65 {offsets = [0, 36], sizes = [7, 324], strides = [1, 1]} : vector<7x362xbf16> to vector<7x324xbf16>
    %cst_65 = arith.constant dense<0.000000e+00> : vector<7x324xf32>
    %98 = tpu.matmul %96, %97, %cst_65 {dimension_numbers = #tpu.dot_dimension_numbers<[1], [0], [0], [1], [0, 0, 1, 1], [], []>} : vector<7x7xbf16>, vector<7x324xbf16>, vector<7x324xf32> -> vector<7x324xf32>
    %99 = arith.addf %94, %98 : vector<7x324xf32>
    %c7_66 = arith.constant 7 : index
    %c0_67 = arith.constant 0 : index
    %c0_68 = arith.constant 0 : index
    %100 = vector.load %arg5[%c7_66, %c0_67, %c0_68] : memref<9x7x7xbf16, #tpu.memory_space<vmem>>, vector<1x7x7xbf16>
    %101 = vector.shape_cast %100 : vector<1x7x7xbf16> to vector<7x7xbf16>
    %102 = vector.extract_strided_slice %65 {offsets = [0, 37], sizes = [7, 324], strides = [1, 1]} : vector<7x362xbf16> to vector<7x324xbf16>
    %cst_69 = arith.constant dense<0.000000e+00> : vector<7x324xf32>
    %103 = tpu.matmul %101, %102, %cst_69 {dimension_numbers = #tpu.dot_dimension_numbers<[1], [0], [0], [1], [0, 0, 1, 1], [], []>} : vector<7x7xbf16>, vector<7x324xbf16>, vector<7x324xf32> -> vector<7x324xf32>
    %104 = arith.addf %99, %103 : vector<7x324xf32>
    %c8_70 = arith.constant 8 : index
    %c0_71 = arith.constant 0 : index
    %c0_72 = arith.constant 0 : index
    %105 = vector.load %arg5[%c8_70, %c0_71, %c0_72] : memref<9x7x7xbf16, #tpu.memory_space<vmem>>, vector<1x7x7xbf16>
    %106 = vector.shape_cast %105 : vector<1x7x7xbf16> to vector<7x7xbf16>
    %107 = vector.extract_strided_slice %65 {offsets = [0, 38], sizes = [7, 324], strides = [1, 1]} : vector<7x362xbf16> to vector<7x324xbf16>
    %cst_73 = arith.constant dense<0.000000e+00> : vector<7x324xf32>
    %108 = tpu.matmul %106, %107, %cst_73 {dimension_numbers = #tpu.dot_dimension_numbers<[1], [0], [0], [1], [0, 0, 1, 1], [], []>} : vector<7x7xbf16>, vector<7x324xbf16>, vector<7x324xf32> -> vector<7x324xf32>
    %109 = arith.addf %104, %108 : vector<7x324xf32>
    %c0_74 = arith.constant 0 : index
    %c0_75 = arith.constant 0 : index
    %110 = vector.load %arg6[%c0_74, %c0_75] : memref<7x1xf32, #tpu.memory_space<vmem>>, vector<7x1xf32>
    %111 = vector.broadcast %110 : vector<7x1xf32> to vector<7x324xf32>
    %112 = arith.addf %109, %111 : vector<7x324xf32>
    %c0_76 = arith.constant 0 : index
    %c0_77 = arith.constant 0 : index
    %113 = vector.load %arg7[%c0_76, %c0_77] : memref<7x5xbf16, #tpu.memory_space<vmem>>, vector<7x5xbf16>
    %114 = vector.extract_strided_slice %3 {offsets = [0, 19], sizes = [5, 324], strides = [1, 1]} : vector<5x362xbf16> to vector<5x324xbf16>
    %cst_78 = arith.constant dense<0.000000e+00> : vector<7x324xf32>
    %115 = tpu.matmul %113, %114, %cst_78 {dimension_numbers = #tpu.dot_dimension_numbers<[1], [0], [0], [1], [0, 0, 1, 1], [], []>} : vector<7x5xbf16>, vector<5x324xbf16>, vector<7x324xf32> -> vector<7x324xf32>
    %c0_79 = arith.constant 0 : index
    %c0_80 = arith.constant 0 : index
    %116 = vector.load %arg8[%c0_79, %c0_80] : memref<7x1xf32, #tpu.memory_space<vmem>>, vector<7x1xf32>
    %117 = vector.broadcast %116 : vector<7x1xf32> to vector<7x324xf32>
    %118 = arith.addf %115, %117 : vector<7x324xf32>
    %119 = arith.addf %112, %118 : vector<7x324xf32>
    %cst_81 = arith.constant 0.000000e+00 : f32
    %120 = vector.broadcast %cst_81 : f32 to vector<7x324xf32>
    %121 = arith.cmpf ogt, %119, %120 : vector<7x324xf32>
    %cst_82 = arith.constant 0.000000e+00 : f32
    %122 = vector.broadcast %cst_82 : f32 to vector<7x324xf32>
    %123 = arith.minimumf %119, %122 : vector<7x324xf32>
    %124 = math.exp %123 : vector<7x324xf32>
    %cst_83 = arith.constant 1.000000e+00 : f32
    %125 = vector.broadcast %cst_83 : f32 to vector<7x324xf32>
    %126 = arith.subf %124, %125 : vector<7x324xf32>
    %127 = arith.select %121, %119, %126 : vector<7x324xi1>, vector<7x324xf32>
    %cst_84 = arith.constant 0.000000e+00 : f32
    %128 = vector.shape_cast %2 : vector<1x324xi1> to vector<1x324xi1>
    %129 = vector.broadcast %128 : vector<1x324xi1> to vector<7x324xi1>
    %130 = vector.broadcast %cst_84 : f32 to vector<7x324xf32>
    %131 = arith.select %129, %127, %130 : vector<7x324xi1>, vector<7x324xf32>
    %cst_85 = arith.constant 0.000000e+00 : f32
    %132 = vector.broadcast %cst_85 : f32 to vector<7x19xf32>
    %133 = tpu.concatenate %132, %131, %132 in 1 : vector<7x19xf32>, vector<7x324xf32>, vector<7x19xf32> -> vector<7x362xf32>
    %134 = arith.truncf %133 : vector<7x362xf32> to vector<7x362xbf16>
    %c0_86 = arith.constant 0 : index
    %c0_87 = arith.constant 0 : index
    %c0_88 = arith.constant 0 : index
    %135 = vector.load %arg9[%c0_86, %c0_87, %c0_88] : memref<9x7x7xbf16, #tpu.memory_space<vmem>>, vector<1x7x7xbf16>
    %136 = vector.shape_cast %135 : vector<1x7x7xbf16> to vector<7x7xbf16>
    %137 = vector.extract_strided_slice %134 {offsets = [0, 0], sizes = [7, 324], strides = [1, 1]} : vector<7x362xbf16> to vector<7x324xbf16>
    %cst_89 = arith.constant dense<0.000000e+00> : vector<7x324xf32>
    %138 = tpu.matmul %136, %137, %cst_89 {dimension_numbers = #tpu.dot_dimension_numbers<[1], [0], [0], [1], [0, 0, 1, 1], [], []>} : vector<7x7xbf16>, vector<7x324xbf16>, vector<7x324xf32> -> vector<7x324xf32>
    %c1_90 = arith.constant 1 : index
    %c0_91 = arith.constant 0 : index
    %c0_92 = arith.constant 0 : index
    %139 = vector.load %arg9[%c1_90, %c0_91, %c0_92] : memref<9x7x7xbf16, #tpu.memory_space<vmem>>, vector<1x7x7xbf16>
    %140 = vector.shape_cast %139 : vector<1x7x7xbf16> to vector<7x7xbf16>
    %141 = vector.extract_strided_slice %134 {offsets = [0, 1], sizes = [7, 324], strides = [1, 1]} : vector<7x362xbf16> to vector<7x324xbf16>
    %cst_93 = arith.constant dense<0.000000e+00> : vector<7x324xf32>
    %142 = tpu.matmul %140, %141, %cst_93 {dimension_numbers = #tpu.dot_dimension_numbers<[1], [0], [0], [1], [0, 0, 1, 1], [], []>} : vector<7x7xbf16>, vector<7x324xbf16>, vector<7x324xf32> -> vector<7x324xf32>
    %143 = arith.addf %138, %142 : vector<7x324xf32>
    %c2_94 = arith.constant 2 : index
    %c0_95 = arith.constant 0 : index
    %c0_96 = arith.constant 0 : index
    %144 = vector.load %arg9[%c2_94, %c0_95, %c0_96] : memref<9x7x7xbf16, #tpu.memory_space<vmem>>, vector<1x7x7xbf16>
    %145 = vector.shape_cast %144 : vector<1x7x7xbf16> to vector<7x7xbf16>
    %146 = vector.extract_strided_slice %134 {offsets = [0, 2], sizes = [7, 324], strides = [1, 1]} : vector<7x362xbf16> to vector<7x324xbf16>
    %cst_97 = arith.constant dense<0.000000e+00> : vector<7x324xf32>
    %147 = tpu.matmul %145, %146, %cst_97 {dimension_numbers = #tpu.dot_dimension_numbers<[1], [0], [0], [1], [0, 0, 1, 1], [], []>} : vector<7x7xbf16>, vector<7x324xbf16>, vector<7x324xf32> -> vector<7x324xf32>
    %148 = arith.addf %143, %147 : vector<7x324xf32>
    %c3_98 = arith.constant 3 : index
    %c0_99 = arith.constant 0 : index
    %c0_100 = arith.constant 0 : index
    %149 = vector.load %arg9[%c3_98, %c0_99, %c0_100] : memref<9x7x7xbf16, #tpu.memory_space<vmem>>, vector<1x7x7xbf16>
    %150 = vector.shape_cast %149 : vector<1x7x7xbf16> to vector<7x7xbf16>
    %151 = vector.extract_strided_slice %134 {offsets = [0, 18], sizes = [7, 324], strides = [1, 1]} : vector<7x362xbf16> to vector<7x324xbf16>
    %cst_101 = arith.constant dense<0.000000e+00> : vector<7x324xf32>
    %152 = tpu.matmul %150, %151, %cst_101 {dimension_numbers = #tpu.dot_dimension_numbers<[1], [0], [0], [1], [0, 0, 1, 1], [], []>} : vector<7x7xbf16>, vector<7x324xbf16>, vector<7x324xf32> -> vector<7x324xf32>
    %153 = arith.addf %148, %152 : vector<7x324xf32>
    %c4_102 = arith.constant 4 : index
    %c0_103 = arith.constant 0 : index
    %c0_104 = arith.constant 0 : index
    %154 = vector.load %arg9[%c4_102, %c0_103, %c0_104] : memref<9x7x7xbf16, #tpu.memory_space<vmem>>, vector<1x7x7xbf16>
    %155 = vector.shape_cast %154 : vector<1x7x7xbf16> to vector<7x7xbf16>
    %156 = vector.extract_strided_slice %134 {offsets = [0, 19], sizes = [7, 324], strides = [1, 1]} : vector<7x362xbf16> to vector<7x324xbf16>
    %cst_105 = arith.constant dense<0.000000e+00> : vector<7x324xf32>
    %157 = tpu.matmul %155, %156, %cst_105 {dimension_numbers = #tpu.dot_dimension_numbers<[1], [0], [0], [1], [0, 0, 1, 1], [], []>} : vector<7x7xbf16>, vector<7x324xbf16>, vector<7x324xf32> -> vector<7x324xf32>
    %158 = arith.addf %153, %157 : vector<7x324xf32>
    %c5_106 = arith.constant 5 : index
    %c0_107 = arith.constant 0 : index
    %c0_108 = arith.constant 0 : index
    %159 = vector.load %arg9[%c5_106, %c0_107, %c0_108] : memref<9x7x7xbf16, #tpu.memory_space<vmem>>, vector<1x7x7xbf16>
    %160 = vector.shape_cast %159 : vector<1x7x7xbf16> to vector<7x7xbf16>
    %161 = vector.extract_strided_slice %134 {offsets = [0, 20], sizes = [7, 324], strides = [1, 1]} : vector<7x362xbf16> to vector<7x324xbf16>
    %cst_109 = arith.constant dense<0.000000e+00> : vector<7x324xf32>
    %162 = tpu.matmul %160, %161, %cst_109 {dimension_numbers = #tpu.dot_dimension_numbers<[1], [0], [0], [1], [0, 0, 1, 1], [], []>} : vector<7x7xbf16>, vector<7x324xbf16>, vector<7x324xf32> -> vector<7x324xf32>
    %163 = arith.addf %158, %162 : vector<7x324xf32>
    %c6_110 = arith.constant 6 : index
    %c0_111 = arith.constant 0 : index
    %c0_112 = arith.constant 0 : index
    %164 = vector.load %arg9[%c6_110, %c0_111, %c0_112] : memref<9x7x7xbf16, #tpu.memory_space<vmem>>, vector<1x7x7xbf16>
    %165 = vector.shape_cast %164 : vector<1x7x7xbf16> to vector<7x7xbf16>
    %166 = vector.extract_strided_slice %134 {offsets = [0, 36], sizes = [7, 324], strides = [1, 1]} : vector<7x362xbf16> to vector<7x324xbf16>
    %cst_113 = arith.constant dense<0.000000e+00> : vector<7x324xf32>
    %167 = tpu.matmul %165, %166, %cst_113 {dimension_numbers = #tpu.dot_dimension_numbers<[1], [0], [0], [1], [0, 0, 1, 1], [], []>} : vector<7x7xbf16>, vector<7x324xbf16>, vector<7x324xf32> -> vector<7x324xf32>
    %168 = arith.addf %163, %167 : vector<7x324xf32>
    %c7_114 = arith.constant 7 : index
    %c0_115 = arith.constant 0 : index
    %c0_116 = arith.constant 0 : index
    %169 = vector.load %arg9[%c7_114, %c0_115, %c0_116] : memref<9x7x7xbf16, #tpu.memory_space<vmem>>, vector<1x7x7xbf16>
    %170 = vector.shape_cast %169 : vector<1x7x7xbf16> to vector<7x7xbf16>
    %171 = vector.extract_strided_slice %134 {offsets = [0, 37], sizes = [7, 324], strides = [1, 1]} : vector<7x362xbf16> to vector<7x324xbf16>
    %cst_117 = arith.constant dense<0.000000e+00> : vector<7x324xf32>
    %172 = tpu.matmul %170, %171, %cst_117 {dimension_numbers = #tpu.dot_dimension_numbers<[1], [0], [0], [1], [0, 0, 1, 1], [], []>} : vector<7x7xbf16>, vector<7x324xbf16>, vector<7x324xf32> -> vector<7x324xf32>
    %173 = arith.addf %168, %172 : vector<7x324xf32>
    %c8_118 = arith.constant 8 : index
    %c0_119 = arith.constant 0 : index
    %c0_120 = arith.constant 0 : index
    %174 = vector.load %arg9[%c8_118, %c0_119, %c0_120] : memref<9x7x7xbf16, #tpu.memory_space<vmem>>, vector<1x7x7xbf16>
    %175 = vector.shape_cast %174 : vector<1x7x7xbf16> to vector<7x7xbf16>
    %176 = vector.extract_strided_slice %134 {offsets = [0, 38], sizes = [7, 324], strides = [1, 1]} : vector<7x362xbf16> to vector<7x324xbf16>
    %cst_121 = arith.constant dense<0.000000e+00> : vector<7x324xf32>
    %177 = tpu.matmul %175, %176, %cst_121 {dimension_numbers = #tpu.dot_dimension_numbers<[1], [0], [0], [1], [0, 0, 1, 1], [], []>} : vector<7x7xbf16>, vector<7x324xbf16>, vector<7x324xf32> -> vector<7x324xf32>
    %178 = arith.addf %173, %177 : vector<7x324xf32>
    %c0_122 = arith.constant 0 : index
    %c0_123 = arith.constant 0 : index
    %179 = vector.load %arg10[%c0_122, %c0_123] : memref<7x1xf32, #tpu.memory_space<vmem>>, vector<7x1xf32>
    %180 = vector.broadcast %179 : vector<7x1xf32> to vector<7x324xf32>
    %181 = arith.addf %178, %180 : vector<7x324xf32>
    %cst_124 = arith.constant 0.000000e+00 : f32
    %182 = vector.broadcast %cst_124 : f32 to vector<7x324xf32>
    %183 = arith.cmpf ogt, %181, %182 : vector<7x324xf32>
    %cst_125 = arith.constant 0.000000e+00 : f32
    %184 = vector.broadcast %cst_125 : f32 to vector<7x324xf32>
    %185 = arith.minimumf %181, %184 : vector<7x324xf32>
    %186 = math.exp %185 : vector<7x324xf32>
    %cst_126 = arith.constant 1.000000e+00 : f32
    %187 = vector.broadcast %cst_126 : f32 to vector<7x324xf32>
    %188 = arith.subf %186, %187 : vector<7x324xf32>
    %189 = arith.select %183, %181, %188 : vector<7x324xi1>, vector<7x324xf32>
    %cst_127 = arith.constant 0.000000e+00 : f32
    %190 = vector.shape_cast %2 : vector<1x324xi1> to vector<1x324xi1>
    %191 = vector.broadcast %190 : vector<1x324xi1> to vector<7x324xi1>
    %192 = vector.broadcast %cst_127 : f32 to vector<7x324xf32>
    %193 = arith.select %191, %189, %192 : vector<7x324xi1>, vector<7x324xf32>
    %194 = arith.truncf %193 : vector<7x324xf32> to vector<7x324xbf16>
    %c0_128 = arith.constant 0 : index
    %c0_129 = arith.constant 0 : index
    %195 = vector.load %arg11[%c0_128, %c0_129] : memref<7x324xbf16, #tpu.memory_space<vmem>>, vector<7x324xbf16>
    tpu.vector_store %arg11[%c0_128, %c0_129], %194 {strides = array<i32>} : memref<7x324xbf16, #tpu.memory_space<vmem>>, vector<7x324xbf16>,
    return
  }
  func.func @transform_0(%arg0: i32) -> (i32, i32) {
    %c0_i32 = arith.constant 0 : i32
    %c0_i32_0 = arith.constant 0 : i32
    %c0_i32_1 = arith.constant 0 : i32
    return %c0_i32, %c0_i32_0 : i32, i32
  }
  func.func @transform_1(%arg0: i32) -> (i32, i32) {
    %c0_i32 = arith.constant 0 : i32
    %c0_i32_0 = arith.constant 0 : i32
    %c0_i32_1 = arith.constant 0 : i32
    return %c0_i32, %c0_i32_0 : i32, i32
  }
  func.func @transform_2(%arg0: i32) -> (i32, i32, i32) {
    %c0_i32 = arith.constant 0 : i32
    %c0_i32_0 = arith.constant 0 : i32
    %c0_i32_1 = arith.constant 0 : i32
    %c0_i32_2 = arith.constant 0 : i32
    return %c0_i32, %c0_i32_0, %c0_i32_1 : i32, i32, i32
  }
  func.func @transform_3(%arg0: i32) -> (i32, i32) {
    %c0_i32 = arith.constant 0 : i32
    %c0_i32_0 = arith.constant 0 : i32
    %c0_i32_1 = arith.constant 0 : i32
    return %c0_i32, %c0_i32_0 : i32, i32
  }
  func.func @transform_4(%arg0: i32) -> (i32, i32, i32) {
    %c0_i32 = arith.constant 0 : i32
    %c0_i32_0 = arith.constant 0 : i32
    %c0_i32_1 = arith.constant 0 : i32
    %c0_i32_2 = arith.constant 0 : i32
    return %c0_i32, %c0_i32_0, %c0_i32_1 : i32, i32, i32
  }
  func.func @transform_5(%arg0: i32) -> (i32, i32) {
    %c0_i32 = arith.constant 0 : i32
    %c0_i32_0 = arith.constant 0 : i32
    %c0_i32_1 = arith.constant 0 : i32
    return %c0_i32, %c0_i32_0 : i32, i32
  }
  func.func @transform_6(%arg0: i32) -> (i32, i32) {
    %c0_i32 = arith.constant 0 : i32
    %c0_i32_0 = arith.constant 0 : i32
    %c0_i32_1 = arith.constant 0 : i32
    return %c0_i32, %c0_i32_0 : i32, i32
  }
  func.func @transform_7(%arg0: i32) -> (i32, i32) {
    %c0_i32 = arith.constant 0 : i32
    %c0_i32_0 = arith.constant 0 : i32
    %c0_i32_1 = arith.constant 0 : i32
    return %c0_i32, %c0_i32_0 : i32, i32
  }
  func.func @transform_8(%arg0: i32) -> (i32, i32, i32) {
    %c0_i32 = arith.constant 0 : i32
    %c0_i32_0 = arith.constant 0 : i32
    %c0_i32_1 = arith.constant 0 : i32
    %c0_i32_2 = arith.constant 0 : i32
    return %c0_i32, %c0_i32_0, %c0_i32_1 : i32, i32, i32
  }
  func.func @transform_9(%arg0: i32) -> (i32, i32) {
    %c0_i32 = arith.constant 0 : i32
    %c0_i32_0 = arith.constant 0 : i32
    %c0_i32_1 = arith.constant 0 : i32
    return %c0_i32, %c0_i32_0 : i32, i32
  }
  func.func @transform_10(%arg0: i32) -> (i32, i32) {
    %c0_i32 = arith.constant 0 : i32
    %c0_i32_0 = arith.constant 0 : i32
    %c0_i32_1 = arith.constant 0 : i32
    return %c0_i32, %c0_i32_0 : i32, i32
  }
}

module attributes {stable_mosaic.version = 11 : i64} {
  func.func @_conv_kernel(%arg0: i32, %arg1: memref<7x122xbf16, #tpu.memory_space<vmem>>, %arg2: memref<1x100xf32, #tpu.memory_space<vmem>>, %arg3: memref<9x14x7xbf16, #tpu.memory_space<vmem>>, %arg4: memref<14x1xf32, #tpu.memory_space<vmem>>, %arg5: memref<14x100xbf16, #tpu.memory_space<vmem>>) attributes {dimension_semantics = [#tpu.dimension_semantics<arbitrary>], iteration_bounds = array<i64: 1>, scalar_prefetch = 0 : i64, scratch_operands = 0 : i64, tpu.core_type = #tpu.core_type<tc>, window_params = [{pipeline_mode = #tpu.pipeline_mode<synchronous>, transform_indices = @transform_0, window_bounds = array<i64: 7, 122>}, {pipeline_mode = #tpu.pipeline_mode<synchronous>, transform_indices = @transform_1, window_bounds = array<i64: 1, 100>}, {pipeline_mode = #tpu.pipeline_mode<synchronous>, transform_indices = @transform_2, window_bounds = array<i64: 9, 14, 7>}, {pipeline_mode = #tpu.pipeline_mode<synchronous>, transform_indices = @transform_3, window_bounds = array<i64: 14, 1>}, {pipeline_mode = #tpu.pipeline_mode<synchronous>, transform_indices = @transform_4, window_bounds = array<i64: 14, 100>}]} {
    %c0 = arith.constant 0 : index
    %c0_0 = arith.constant 0 : index
    %0 = vector.load %arg2[%c0, %c0_0] : memref<1x100xf32, #tpu.memory_space<vmem>>, vector<1x100xf32>
    %cst = arith.constant 5.000000e-01 : f32
    %1 = vector.broadcast %cst : f32 to vector<1x100xf32>
    %2 = arith.cmpf ogt, %0, %1 : vector<1x100xf32>
    %c0_1 = arith.constant 0 : index
    %c0_2 = arith.constant 0 : index
    %3 = vector.load %arg1[%c0_1, %c0_2] : memref<7x122xbf16, #tpu.memory_space<vmem>>, vector<7x122xbf16>
    %c0_3 = arith.constant 0 : index
    %c0_4 = arith.constant 0 : index
    %c0_5 = arith.constant 0 : index
    %4 = vector.load %arg3[%c0_3, %c0_4, %c0_5] : memref<9x14x7xbf16, #tpu.memory_space<vmem>>, vector<1x14x7xbf16>
    %5 = vector.shape_cast %4 : vector<1x14x7xbf16> to vector<14x7xbf16>
    %6 = vector.extract_strided_slice %3 {offsets = [0, 0], sizes = [7, 100], strides = [1, 1]} : vector<7x122xbf16> to vector<7x100xbf16>
    %cst_6 = arith.constant dense<0.000000e+00> : vector<14x100xf32>
    %7 = tpu.matmul %5, %6, %cst_6 {dimension_numbers = #tpu.dot_dimension_numbers<[1], [0], [0], [1], [0, 0, 1, 1], [], []>} : vector<14x7xbf16>, vector<7x100xbf16>, vector<14x100xf32> -> vector<14x100xf32>
    %c1 = arith.constant 1 : index
    %c0_7 = arith.constant 0 : index
    %c0_8 = arith.constant 0 : index
    %8 = vector.load %arg3[%c1, %c0_7, %c0_8] : memref<9x14x7xbf16, #tpu.memory_space<vmem>>, vector<1x14x7xbf16>
    %9 = vector.shape_cast %8 : vector<1x14x7xbf16> to vector<14x7xbf16>
    %10 = vector.extract_strided_slice %3 {offsets = [0, 1], sizes = [7, 100], strides = [1, 1]} : vector<7x122xbf16> to vector<7x100xbf16>
    %cst_9 = arith.constant dense<0.000000e+00> : vector<14x100xf32>
    %11 = tpu.matmul %9, %10, %cst_9 {dimension_numbers = #tpu.dot_dimension_numbers<[1], [0], [0], [1], [0, 0, 1, 1], [], []>} : vector<14x7xbf16>, vector<7x100xbf16>, vector<14x100xf32> -> vector<14x100xf32>
    %12 = arith.addf %7, %11 : vector<14x100xf32>
    %c2 = arith.constant 2 : index
    %c0_10 = arith.constant 0 : index
    %c0_11 = arith.constant 0 : index
    %13 = vector.load %arg3[%c2, %c0_10, %c0_11] : memref<9x14x7xbf16, #tpu.memory_space<vmem>>, vector<1x14x7xbf16>
    %14 = vector.shape_cast %13 : vector<1x14x7xbf16> to vector<14x7xbf16>
    %15 = vector.extract_strided_slice %3 {offsets = [0, 2], sizes = [7, 100], strides = [1, 1]} : vector<7x122xbf16> to vector<7x100xbf16>
    %cst_12 = arith.constant dense<0.000000e+00> : vector<14x100xf32>
    %16 = tpu.matmul %14, %15, %cst_12 {dimension_numbers = #tpu.dot_dimension_numbers<[1], [0], [0], [1], [0, 0, 1, 1], [], []>} : vector<14x7xbf16>, vector<7x100xbf16>, vector<14x100xf32> -> vector<14x100xf32>
    %17 = arith.addf %12, %16 : vector<14x100xf32>
    %c3 = arith.constant 3 : index
    %c0_13 = arith.constant 0 : index
    %c0_14 = arith.constant 0 : index
    %18 = vector.load %arg3[%c3, %c0_13, %c0_14] : memref<9x14x7xbf16, #tpu.memory_space<vmem>>, vector<1x14x7xbf16>
    %19 = vector.shape_cast %18 : vector<1x14x7xbf16> to vector<14x7xbf16>
    %20 = vector.extract_strided_slice %3 {offsets = [0, 10], sizes = [7, 100], strides = [1, 1]} : vector<7x122xbf16> to vector<7x100xbf16>
    %cst_15 = arith.constant dense<0.000000e+00> : vector<14x100xf32>
    %21 = tpu.matmul %19, %20, %cst_15 {dimension_numbers = #tpu.dot_dimension_numbers<[1], [0], [0], [1], [0, 0, 1, 1], [], []>} : vector<14x7xbf16>, vector<7x100xbf16>, vector<14x100xf32> -> vector<14x100xf32>
    %22 = arith.addf %17, %21 : vector<14x100xf32>
    %c4 = arith.constant 4 : index
    %c0_16 = arith.constant 0 : index
    %c0_17 = arith.constant 0 : index
    %23 = vector.load %arg3[%c4, %c0_16, %c0_17] : memref<9x14x7xbf16, #tpu.memory_space<vmem>>, vector<1x14x7xbf16>
    %24 = vector.shape_cast %23 : vector<1x14x7xbf16> to vector<14x7xbf16>
    %25 = vector.extract_strided_slice %3 {offsets = [0, 11], sizes = [7, 100], strides = [1, 1]} : vector<7x122xbf16> to vector<7x100xbf16>
    %cst_18 = arith.constant dense<0.000000e+00> : vector<14x100xf32>
    %26 = tpu.matmul %24, %25, %cst_18 {dimension_numbers = #tpu.dot_dimension_numbers<[1], [0], [0], [1], [0, 0, 1, 1], [], []>} : vector<14x7xbf16>, vector<7x100xbf16>, vector<14x100xf32> -> vector<14x100xf32>
    %27 = arith.addf %22, %26 : vector<14x100xf32>
    %c5 = arith.constant 5 : index
    %c0_19 = arith.constant 0 : index
    %c0_20 = arith.constant 0 : index
    %28 = vector.load %arg3[%c5, %c0_19, %c0_20] : memref<9x14x7xbf16, #tpu.memory_space<vmem>>, vector<1x14x7xbf16>
    %29 = vector.shape_cast %28 : vector<1x14x7xbf16> to vector<14x7xbf16>
    %30 = vector.extract_strided_slice %3 {offsets = [0, 12], sizes = [7, 100], strides = [1, 1]} : vector<7x122xbf16> to vector<7x100xbf16>
    %cst_21 = arith.constant dense<0.000000e+00> : vector<14x100xf32>
    %31 = tpu.matmul %29, %30, %cst_21 {dimension_numbers = #tpu.dot_dimension_numbers<[1], [0], [0], [1], [0, 0, 1, 1], [], []>} : vector<14x7xbf16>, vector<7x100xbf16>, vector<14x100xf32> -> vector<14x100xf32>
    %32 = arith.addf %27, %31 : vector<14x100xf32>
    %c6 = arith.constant 6 : index
    %c0_22 = arith.constant 0 : index
    %c0_23 = arith.constant 0 : index
    %33 = vector.load %arg3[%c6, %c0_22, %c0_23] : memref<9x14x7xbf16, #tpu.memory_space<vmem>>, vector<1x14x7xbf16>
    %34 = vector.shape_cast %33 : vector<1x14x7xbf16> to vector<14x7xbf16>
    %35 = vector.extract_strided_slice %3 {offsets = [0, 20], sizes = [7, 100], strides = [1, 1]} : vector<7x122xbf16> to vector<7x100xbf16>
    %cst_24 = arith.constant dense<0.000000e+00> : vector<14x100xf32>
    %36 = tpu.matmul %34, %35, %cst_24 {dimension_numbers = #tpu.dot_dimension_numbers<[1], [0], [0], [1], [0, 0, 1, 1], [], []>} : vector<14x7xbf16>, vector<7x100xbf16>, vector<14x100xf32> -> vector<14x100xf32>
    %37 = arith.addf %32, %36 : vector<14x100xf32>
    %c7 = arith.constant 7 : index
    %c0_25 = arith.constant 0 : index
    %c0_26 = arith.constant 0 : index
    %38 = vector.load %arg3[%c7, %c0_25, %c0_26] : memref<9x14x7xbf16, #tpu.memory_space<vmem>>, vector<1x14x7xbf16>
    %39 = vector.shape_cast %38 : vector<1x14x7xbf16> to vector<14x7xbf16>
    %40 = vector.extract_strided_slice %3 {offsets = [0, 21], sizes = [7, 100], strides = [1, 1]} : vector<7x122xbf16> to vector<7x100xbf16>
    %cst_27 = arith.constant dense<0.000000e+00> : vector<14x100xf32>
    %41 = tpu.matmul %39, %40, %cst_27 {dimension_numbers = #tpu.dot_dimension_numbers<[1], [0], [0], [1], [0, 0, 1, 1], [], []>} : vector<14x7xbf16>, vector<7x100xbf16>, vector<14x100xf32> -> vector<14x100xf32>
    %42 = arith.addf %37, %41 : vector<14x100xf32>
    %c8 = arith.constant 8 : index
    %c0_28 = arith.constant 0 : index
    %c0_29 = arith.constant 0 : index
    %43 = vector.load %arg3[%c8, %c0_28, %c0_29] : memref<9x14x7xbf16, #tpu.memory_space<vmem>>, vector<1x14x7xbf16>
    %44 = vector.shape_cast %43 : vector<1x14x7xbf16> to vector<14x7xbf16>
    %45 = vector.extract_strided_slice %3 {offsets = [0, 22], sizes = [7, 100], strides = [1, 1]} : vector<7x122xbf16> to vector<7x100xbf16>
    %cst_30 = arith.constant dense<0.000000e+00> : vector<14x100xf32>
    %46 = tpu.matmul %44, %45, %cst_30 {dimension_numbers = #tpu.dot_dimension_numbers<[1], [0], [0], [1], [0, 0, 1, 1], [], []>} : vector<14x7xbf16>, vector<7x100xbf16>, vector<14x100xf32> -> vector<14x100xf32>
    %47 = arith.addf %42, %46 : vector<14x100xf32>
    %c0_31 = arith.constant 0 : index
    %c0_32 = arith.constant 0 : index
    %48 = vector.load %arg4[%c0_31, %c0_32] : memref<14x1xf32, #tpu.memory_space<vmem>>, vector<14x1xf32>
    %49 = vector.broadcast %48 : vector<14x1xf32> to vector<14x100xf32>
    %50 = arith.addf %47, %49 : vector<14x100xf32>
    %cst_33 = arith.constant 0.000000e+00 : f32
    %51 = vector.broadcast %cst_33 : f32 to vector<14x100xf32>
    %52 = arith.cmpf ogt, %50, %51 : vector<14x100xf32>
    %cst_34 = arith.constant 0.000000e+00 : f32
    %53 = vector.broadcast %cst_34 : f32 to vector<14x100xf32>
    %54 = arith.minimumf %50, %53 : vector<14x100xf32>
    %55 = math.exp %54 : vector<14x100xf32>
    %cst_35 = arith.constant 1.000000e+00 : f32
    %56 = vector.broadcast %cst_35 : f32 to vector<14x100xf32>
    %57 = arith.subf %55, %56 : vector<14x100xf32>
    %58 = arith.select %52, %50, %57 : vector<14x100xi1>, vector<14x100xf32>
    %cst_36 = arith.constant 0.000000e+00 : f32
    %59 = vector.shape_cast %2 : vector<1x100xi1> to vector<1x100xi1>
    %60 = vector.broadcast %59 : vector<1x100xi1> to vector<14x100xi1>
    %61 = vector.broadcast %cst_36 : f32 to vector<14x100xf32>
    %62 = arith.select %60, %58, %61 : vector<14x100xi1>, vector<14x100xf32>
    %63 = arith.truncf %62 : vector<14x100xf32> to vector<14x100xbf16>
    %c0_37 = arith.constant 0 : index
    %c0_38 = arith.constant 0 : index
    %64 = vector.load %arg5[%c0_37, %c0_38] : memref<14x100xbf16, #tpu.memory_space<vmem>>, vector<14x100xbf16>
    tpu.vector_store %arg5[%c0_37, %c0_38], %63 {strides = array<i32>} : memref<14x100xbf16, #tpu.memory_space<vmem>>, vector<14x100xbf16>,
    return
  }
  func.func @transform_0(%arg0: i32) -> (i32, i32) {
    %c0_i32 = arith.constant 0 : i32
    %c0_i32_0 = arith.constant 0 : i32
    %c0_i32_1 = arith.constant 0 : i32
    return %c0_i32, %c0_i32_0 : i32, i32
  }
  func.func @transform_1(%arg0: i32) -> (i32, i32) {
    %c0_i32 = arith.constant 0 : i32
    %c0_i32_0 = arith.constant 0 : i32
    %c0_i32_1 = arith.constant 0 : i32
    return %c0_i32, %c0_i32_0 : i32, i32
  }
  func.func @transform_2(%arg0: i32) -> (i32, i32, i32) {
    %c0_i32 = arith.constant 0 : i32
    %c0_i32_0 = arith.constant 0 : i32
    %c0_i32_1 = arith.constant 0 : i32
    %c0_i32_2 = arith.constant 0 : i32
    return %c0_i32, %c0_i32_0, %c0_i32_1 : i32, i32, i32
  }
  func.func @transform_3(%arg0: i32) -> (i32, i32) {
    %c0_i32 = arith.constant 0 : i32
    %c0_i32_0 = arith.constant 0 : i32
    %c0_i32_1 = arith.constant 0 : i32
    return %c0_i32, %c0_i32_0 : i32, i32
  }
  func.func @transform_4(%arg0: i32) -> (i32, i32) {
    %c0_i32 = arith.constant 0 : i32
    %c0_i32_0 = arith.constant 0 : i32
    %c0_i32_1 = arith.constant 0 : i32
    return %c0_i32, %c0_i32_0 : i32, i32
  }
}

module attributes {stable_mosaic.version = 11 : i64} {
  func.func @_dec_kernel(%arg0: i32, %arg1: memref<28x122xbf16, #tpu.memory_space<vmem>>, %arg2: memref<14x122xbf16, #tpu.memory_space<vmem>>, %arg3: memref<1x100xf32, #tpu.memory_space<vmem>>, %arg4: memref<9x14x28xbf16, #tpu.memory_space<vmem>>, %arg5: memref<9x14x14xbf16, #tpu.memory_space<vmem>>, %arg6: memref<14x1xf32, #tpu.memory_space<vmem>>, %arg7: memref<14x100xbf16, #tpu.memory_space<vmem>>) attributes {dimension_semantics = [#tpu.dimension_semantics<arbitrary>], iteration_bounds = array<i64: 1>, scalar_prefetch = 0 : i64, scratch_operands = 0 : i64, tpu.core_type = #tpu.core_type<tc>, window_params = [{pipeline_mode = #tpu.pipeline_mode<synchronous>, transform_indices = @transform_0, window_bounds = array<i64: 28, 122>}, {pipeline_mode = #tpu.pipeline_mode<synchronous>, transform_indices = @transform_1, window_bounds = array<i64: 14, 122>}, {pipeline_mode = #tpu.pipeline_mode<synchronous>, transform_indices = @transform_2, window_bounds = array<i64: 1, 100>}, {pipeline_mode = #tpu.pipeline_mode<synchronous>, transform_indices = @transform_3, window_bounds = array<i64: 9, 14, 28>}, {pipeline_mode = #tpu.pipeline_mode<synchronous>, transform_indices = @transform_4, window_bounds = array<i64: 9, 14, 14>}, {pipeline_mode = #tpu.pipeline_mode<synchronous>, transform_indices = @transform_5, window_bounds = array<i64: 14, 1>}, {pipeline_mode = #tpu.pipeline_mode<synchronous>, transform_indices = @transform_6, window_bounds = array<i64: 14, 100>}]} {
    %c0 = arith.constant 0 : index
    %c0_0 = arith.constant 0 : index
    %0 = vector.load %arg3[%c0, %c0_0] : memref<1x100xf32, #tpu.memory_space<vmem>>, vector<1x100xf32>
    %cst = arith.constant 5.000000e-01 : f32
    %1 = vector.broadcast %cst : f32 to vector<1x100xf32>
    %2 = arith.cmpf ogt, %0, %1 : vector<1x100xf32>
    %c0_1 = arith.constant 0 : index
    %c0_2 = arith.constant 0 : index
    %3 = vector.load %arg1[%c0_1, %c0_2] : memref<28x122xbf16, #tpu.memory_space<vmem>>, vector<28x122xbf16>
    %c0_3 = arith.constant 0 : index
    %c0_4 = arith.constant 0 : index
    %c0_5 = arith.constant 0 : index
    %4 = vector.load %arg4[%c0_3, %c0_4, %c0_5] : memref<9x14x28xbf16, #tpu.memory_space<vmem>>, vector<1x14x28xbf16>
    %5 = vector.shape_cast %4 : vector<1x14x28xbf16> to vector<14x28xbf16>
    %6 = vector.extract_strided_slice %3 {offsets = [0, 0], sizes = [28, 100], strides = [1, 1]} : vector<28x122xbf16> to vector<28x100xbf16>
    %cst_6 = arith.constant dense<0.000000e+00> : vector<14x100xf32>
    %7 = tpu.matmul %5, %6, %cst_6 {dimension_numbers = #tpu.dot_dimension_numbers<[1], [0], [0], [1], [0, 0, 1, 1], [], []>} : vector<14x28xbf16>, vector<28x100xbf16>, vector<14x100xf32> -> vector<14x100xf32>
    %c1 = arith.constant 1 : index
    %c0_7 = arith.constant 0 : index
    %c0_8 = arith.constant 0 : index
    %8 = vector.load %arg4[%c1, %c0_7, %c0_8] : memref<9x14x28xbf16, #tpu.memory_space<vmem>>, vector<1x14x28xbf16>
    %9 = vector.shape_cast %8 : vector<1x14x28xbf16> to vector<14x28xbf16>
    %10 = vector.extract_strided_slice %3 {offsets = [0, 1], sizes = [28, 100], strides = [1, 1]} : vector<28x122xbf16> to vector<28x100xbf16>
    %cst_9 = arith.constant dense<0.000000e+00> : vector<14x100xf32>
    %11 = tpu.matmul %9, %10, %cst_9 {dimension_numbers = #tpu.dot_dimension_numbers<[1], [0], [0], [1], [0, 0, 1, 1], [], []>} : vector<14x28xbf16>, vector<28x100xbf16>, vector<14x100xf32> -> vector<14x100xf32>
    %12 = arith.addf %7, %11 : vector<14x100xf32>
    %c2 = arith.constant 2 : index
    %c0_10 = arith.constant 0 : index
    %c0_11 = arith.constant 0 : index
    %13 = vector.load %arg4[%c2, %c0_10, %c0_11] : memref<9x14x28xbf16, #tpu.memory_space<vmem>>, vector<1x14x28xbf16>
    %14 = vector.shape_cast %13 : vector<1x14x28xbf16> to vector<14x28xbf16>
    %15 = vector.extract_strided_slice %3 {offsets = [0, 2], sizes = [28, 100], strides = [1, 1]} : vector<28x122xbf16> to vector<28x100xbf16>
    %cst_12 = arith.constant dense<0.000000e+00> : vector<14x100xf32>
    %16 = tpu.matmul %14, %15, %cst_12 {dimension_numbers = #tpu.dot_dimension_numbers<[1], [0], [0], [1], [0, 0, 1, 1], [], []>} : vector<14x28xbf16>, vector<28x100xbf16>, vector<14x100xf32> -> vector<14x100xf32>
    %17 = arith.addf %12, %16 : vector<14x100xf32>
    %c3 = arith.constant 3 : index
    %c0_13 = arith.constant 0 : index
    %c0_14 = arith.constant 0 : index
    %18 = vector.load %arg4[%c3, %c0_13, %c0_14] : memref<9x14x28xbf16, #tpu.memory_space<vmem>>, vector<1x14x28xbf16>
    %19 = vector.shape_cast %18 : vector<1x14x28xbf16> to vector<14x28xbf16>
    %20 = vector.extract_strided_slice %3 {offsets = [0, 10], sizes = [28, 100], strides = [1, 1]} : vector<28x122xbf16> to vector<28x100xbf16>
    %cst_15 = arith.constant dense<0.000000e+00> : vector<14x100xf32>
    %21 = tpu.matmul %19, %20, %cst_15 {dimension_numbers = #tpu.dot_dimension_numbers<[1], [0], [0], [1], [0, 0, 1, 1], [], []>} : vector<14x28xbf16>, vector<28x100xbf16>, vector<14x100xf32> -> vector<14x100xf32>
    %22 = arith.addf %17, %21 : vector<14x100xf32>
    %c4 = arith.constant 4 : index
    %c0_16 = arith.constant 0 : index
    %c0_17 = arith.constant 0 : index
    %23 = vector.load %arg4[%c4, %c0_16, %c0_17] : memref<9x14x28xbf16, #tpu.memory_space<vmem>>, vector<1x14x28xbf16>
    %24 = vector.shape_cast %23 : vector<1x14x28xbf16> to vector<14x28xbf16>
    %25 = vector.extract_strided_slice %3 {offsets = [0, 11], sizes = [28, 100], strides = [1, 1]} : vector<28x122xbf16> to vector<28x100xbf16>
    %cst_18 = arith.constant dense<0.000000e+00> : vector<14x100xf32>
    %26 = tpu.matmul %24, %25, %cst_18 {dimension_numbers = #tpu.dot_dimension_numbers<[1], [0], [0], [1], [0, 0, 1, 1], [], []>} : vector<14x28xbf16>, vector<28x100xbf16>, vector<14x100xf32> -> vector<14x100xf32>
    %27 = arith.addf %22, %26 : vector<14x100xf32>
    %c5 = arith.constant 5 : index
    %c0_19 = arith.constant 0 : index
    %c0_20 = arith.constant 0 : index
    %28 = vector.load %arg4[%c5, %c0_19, %c0_20] : memref<9x14x28xbf16, #tpu.memory_space<vmem>>, vector<1x14x28xbf16>
    %29 = vector.shape_cast %28 : vector<1x14x28xbf16> to vector<14x28xbf16>
    %30 = vector.extract_strided_slice %3 {offsets = [0, 12], sizes = [28, 100], strides = [1, 1]} : vector<28x122xbf16> to vector<28x100xbf16>
    %cst_21 = arith.constant dense<0.000000e+00> : vector<14x100xf32>
    %31 = tpu.matmul %29, %30, %cst_21 {dimension_numbers = #tpu.dot_dimension_numbers<[1], [0], [0], [1], [0, 0, 1, 1], [], []>} : vector<14x28xbf16>, vector<28x100xbf16>, vector<14x100xf32> -> vector<14x100xf32>
    %32 = arith.addf %27, %31 : vector<14x100xf32>
    %c6 = arith.constant 6 : index
    %c0_22 = arith.constant 0 : index
    %c0_23 = arith.constant 0 : index
    %33 = vector.load %arg4[%c6, %c0_22, %c0_23] : memref<9x14x28xbf16, #tpu.memory_space<vmem>>, vector<1x14x28xbf16>
    %34 = vector.shape_cast %33 : vector<1x14x28xbf16> to vector<14x28xbf16>
    %35 = vector.extract_strided_slice %3 {offsets = [0, 20], sizes = [28, 100], strides = [1, 1]} : vector<28x122xbf16> to vector<28x100xbf16>
    %cst_24 = arith.constant dense<0.000000e+00> : vector<14x100xf32>
    %36 = tpu.matmul %34, %35, %cst_24 {dimension_numbers = #tpu.dot_dimension_numbers<[1], [0], [0], [1], [0, 0, 1, 1], [], []>} : vector<14x28xbf16>, vector<28x100xbf16>, vector<14x100xf32> -> vector<14x100xf32>
    %37 = arith.addf %32, %36 : vector<14x100xf32>
    %c7 = arith.constant 7 : index
    %c0_25 = arith.constant 0 : index
    %c0_26 = arith.constant 0 : index
    %38 = vector.load %arg4[%c7, %c0_25, %c0_26] : memref<9x14x28xbf16, #tpu.memory_space<vmem>>, vector<1x14x28xbf16>
    %39 = vector.shape_cast %38 : vector<1x14x28xbf16> to vector<14x28xbf16>
    %40 = vector.extract_strided_slice %3 {offsets = [0, 21], sizes = [28, 100], strides = [1, 1]} : vector<28x122xbf16> to vector<28x100xbf16>
    %cst_27 = arith.constant dense<0.000000e+00> : vector<14x100xf32>
    %41 = tpu.matmul %39, %40, %cst_27 {dimension_numbers = #tpu.dot_dimension_numbers<[1], [0], [0], [1], [0, 0, 1, 1], [], []>} : vector<14x28xbf16>, vector<28x100xbf16>, vector<14x100xf32> -> vector<14x100xf32>
    %42 = arith.addf %37, %41 : vector<14x100xf32>
    %c8 = arith.constant 8 : index
    %c0_28 = arith.constant 0 : index
    %c0_29 = arith.constant 0 : index
    %43 = vector.load %arg4[%c8, %c0_28, %c0_29] : memref<9x14x28xbf16, #tpu.memory_space<vmem>>, vector<1x14x28xbf16>
    %44 = vector.shape_cast %43 : vector<1x14x28xbf16> to vector<14x28xbf16>
    %45 = vector.extract_strided_slice %3 {offsets = [0, 22], sizes = [28, 100], strides = [1, 1]} : vector<28x122xbf16> to vector<28x100xbf16>
    %cst_30 = arith.constant dense<0.000000e+00> : vector<14x100xf32>
    %46 = tpu.matmul %44, %45, %cst_30 {dimension_numbers = #tpu.dot_dimension_numbers<[1], [0], [0], [1], [0, 0, 1, 1], [], []>} : vector<14x28xbf16>, vector<28x100xbf16>, vector<14x100xf32> -> vector<14x100xf32>
    %47 = arith.addf %42, %46 : vector<14x100xf32>
    %c0_31 = arith.constant 0 : index
    %c0_32 = arith.constant 0 : index
    %48 = vector.load %arg2[%c0_31, %c0_32] : memref<14x122xbf16, #tpu.memory_space<vmem>>, vector<14x122xbf16>
    %c0_33 = arith.constant 0 : index
    %c0_34 = arith.constant 0 : index
    %c0_35 = arith.constant 0 : index
    %49 = vector.load %arg5[%c0_33, %c0_34, %c0_35] : memref<9x14x14xbf16, #tpu.memory_space<vmem>>, vector<1x14x14xbf16>
    %50 = vector.shape_cast %49 : vector<1x14x14xbf16> to vector<14x14xbf16>
    %51 = vector.extract_strided_slice %48 {offsets = [0, 0], sizes = [14, 100], strides = [1, 1]} : vector<14x122xbf16> to vector<14x100xbf16>
    %cst_36 = arith.constant dense<0.000000e+00> : vector<14x100xf32>
    %52 = tpu.matmul %50, %51, %cst_36 {dimension_numbers = #tpu.dot_dimension_numbers<[1], [0], [0], [1], [0, 0, 1, 1], [], []>} : vector<14x14xbf16>, vector<14x100xbf16>, vector<14x100xf32> -> vector<14x100xf32>
    %c1_37 = arith.constant 1 : index
    %c0_38 = arith.constant 0 : index
    %c0_39 = arith.constant 0 : index
    %53 = vector.load %arg5[%c1_37, %c0_38, %c0_39] : memref<9x14x14xbf16, #tpu.memory_space<vmem>>, vector<1x14x14xbf16>
    %54 = vector.shape_cast %53 : vector<1x14x14xbf16> to vector<14x14xbf16>
    %55 = vector.extract_strided_slice %48 {offsets = [0, 1], sizes = [14, 100], strides = [1, 1]} : vector<14x122xbf16> to vector<14x100xbf16>
    %cst_40 = arith.constant dense<0.000000e+00> : vector<14x100xf32>
    %56 = tpu.matmul %54, %55, %cst_40 {dimension_numbers = #tpu.dot_dimension_numbers<[1], [0], [0], [1], [0, 0, 1, 1], [], []>} : vector<14x14xbf16>, vector<14x100xbf16>, vector<14x100xf32> -> vector<14x100xf32>
    %57 = arith.addf %52, %56 : vector<14x100xf32>
    %c2_41 = arith.constant 2 : index
    %c0_42 = arith.constant 0 : index
    %c0_43 = arith.constant 0 : index
    %58 = vector.load %arg5[%c2_41, %c0_42, %c0_43] : memref<9x14x14xbf16, #tpu.memory_space<vmem>>, vector<1x14x14xbf16>
    %59 = vector.shape_cast %58 : vector<1x14x14xbf16> to vector<14x14xbf16>
    %60 = vector.extract_strided_slice %48 {offsets = [0, 2], sizes = [14, 100], strides = [1, 1]} : vector<14x122xbf16> to vector<14x100xbf16>
    %cst_44 = arith.constant dense<0.000000e+00> : vector<14x100xf32>
    %61 = tpu.matmul %59, %60, %cst_44 {dimension_numbers = #tpu.dot_dimension_numbers<[1], [0], [0], [1], [0, 0, 1, 1], [], []>} : vector<14x14xbf16>, vector<14x100xbf16>, vector<14x100xf32> -> vector<14x100xf32>
    %62 = arith.addf %57, %61 : vector<14x100xf32>
    %c3_45 = arith.constant 3 : index
    %c0_46 = arith.constant 0 : index
    %c0_47 = arith.constant 0 : index
    %63 = vector.load %arg5[%c3_45, %c0_46, %c0_47] : memref<9x14x14xbf16, #tpu.memory_space<vmem>>, vector<1x14x14xbf16>
    %64 = vector.shape_cast %63 : vector<1x14x14xbf16> to vector<14x14xbf16>
    %65 = vector.extract_strided_slice %48 {offsets = [0, 10], sizes = [14, 100], strides = [1, 1]} : vector<14x122xbf16> to vector<14x100xbf16>
    %cst_48 = arith.constant dense<0.000000e+00> : vector<14x100xf32>
    %66 = tpu.matmul %64, %65, %cst_48 {dimension_numbers = #tpu.dot_dimension_numbers<[1], [0], [0], [1], [0, 0, 1, 1], [], []>} : vector<14x14xbf16>, vector<14x100xbf16>, vector<14x100xf32> -> vector<14x100xf32>
    %67 = arith.addf %62, %66 : vector<14x100xf32>
    %c4_49 = arith.constant 4 : index
    %c0_50 = arith.constant 0 : index
    %c0_51 = arith.constant 0 : index
    %68 = vector.load %arg5[%c4_49, %c0_50, %c0_51] : memref<9x14x14xbf16, #tpu.memory_space<vmem>>, vector<1x14x14xbf16>
    %69 = vector.shape_cast %68 : vector<1x14x14xbf16> to vector<14x14xbf16>
    %70 = vector.extract_strided_slice %48 {offsets = [0, 11], sizes = [14, 100], strides = [1, 1]} : vector<14x122xbf16> to vector<14x100xbf16>
    %cst_52 = arith.constant dense<0.000000e+00> : vector<14x100xf32>
    %71 = tpu.matmul %69, %70, %cst_52 {dimension_numbers = #tpu.dot_dimension_numbers<[1], [0], [0], [1], [0, 0, 1, 1], [], []>} : vector<14x14xbf16>, vector<14x100xbf16>, vector<14x100xf32> -> vector<14x100xf32>
    %72 = arith.addf %67, %71 : vector<14x100xf32>
    %c5_53 = arith.constant 5 : index
    %c0_54 = arith.constant 0 : index
    %c0_55 = arith.constant 0 : index
    %73 = vector.load %arg5[%c5_53, %c0_54, %c0_55] : memref<9x14x14xbf16, #tpu.memory_space<vmem>>, vector<1x14x14xbf16>
    %74 = vector.shape_cast %73 : vector<1x14x14xbf16> to vector<14x14xbf16>
    %75 = vector.extract_strided_slice %48 {offsets = [0, 12], sizes = [14, 100], strides = [1, 1]} : vector<14x122xbf16> to vector<14x100xbf16>
    %cst_56 = arith.constant dense<0.000000e+00> : vector<14x100xf32>
    %76 = tpu.matmul %74, %75, %cst_56 {dimension_numbers = #tpu.dot_dimension_numbers<[1], [0], [0], [1], [0, 0, 1, 1], [], []>} : vector<14x14xbf16>, vector<14x100xbf16>, vector<14x100xf32> -> vector<14x100xf32>
    %77 = arith.addf %72, %76 : vector<14x100xf32>
    %c6_57 = arith.constant 6 : index
    %c0_58 = arith.constant 0 : index
    %c0_59 = arith.constant 0 : index
    %78 = vector.load %arg5[%c6_57, %c0_58, %c0_59] : memref<9x14x14xbf16, #tpu.memory_space<vmem>>, vector<1x14x14xbf16>
    %79 = vector.shape_cast %78 : vector<1x14x14xbf16> to vector<14x14xbf16>
    %80 = vector.extract_strided_slice %48 {offsets = [0, 20], sizes = [14, 100], strides = [1, 1]} : vector<14x122xbf16> to vector<14x100xbf16>
    %cst_60 = arith.constant dense<0.000000e+00> : vector<14x100xf32>
    %81 = tpu.matmul %79, %80, %cst_60 {dimension_numbers = #tpu.dot_dimension_numbers<[1], [0], [0], [1], [0, 0, 1, 1], [], []>} : vector<14x14xbf16>, vector<14x100xbf16>, vector<14x100xf32> -> vector<14x100xf32>
    %82 = arith.addf %77, %81 : vector<14x100xf32>
    %c7_61 = arith.constant 7 : index
    %c0_62 = arith.constant 0 : index
    %c0_63 = arith.constant 0 : index
    %83 = vector.load %arg5[%c7_61, %c0_62, %c0_63] : memref<9x14x14xbf16, #tpu.memory_space<vmem>>, vector<1x14x14xbf16>
    %84 = vector.shape_cast %83 : vector<1x14x14xbf16> to vector<14x14xbf16>
    %85 = vector.extract_strided_slice %48 {offsets = [0, 21], sizes = [14, 100], strides = [1, 1]} : vector<14x122xbf16> to vector<14x100xbf16>
    %cst_64 = arith.constant dense<0.000000e+00> : vector<14x100xf32>
    %86 = tpu.matmul %84, %85, %cst_64 {dimension_numbers = #tpu.dot_dimension_numbers<[1], [0], [0], [1], [0, 0, 1, 1], [], []>} : vector<14x14xbf16>, vector<14x100xbf16>, vector<14x100xf32> -> vector<14x100xf32>
    %87 = arith.addf %82, %86 : vector<14x100xf32>
    %c8_65 = arith.constant 8 : index
    %c0_66 = arith.constant 0 : index
    %c0_67 = arith.constant 0 : index
    %88 = vector.load %arg5[%c8_65, %c0_66, %c0_67] : memref<9x14x14xbf16, #tpu.memory_space<vmem>>, vector<1x14x14xbf16>
    %89 = vector.shape_cast %88 : vector<1x14x14xbf16> to vector<14x14xbf16>
    %90 = vector.extract_strided_slice %48 {offsets = [0, 22], sizes = [14, 100], strides = [1, 1]} : vector<14x122xbf16> to vector<14x100xbf16>
    %cst_68 = arith.constant dense<0.000000e+00> : vector<14x100xf32>
    %91 = tpu.matmul %89, %90, %cst_68 {dimension_numbers = #tpu.dot_dimension_numbers<[1], [0], [0], [1], [0, 0, 1, 1], [], []>} : vector<14x14xbf16>, vector<14x100xbf16>, vector<14x100xf32> -> vector<14x100xf32>
    %92 = arith.addf %87, %91 : vector<14x100xf32>
    %93 = arith.addf %47, %92 : vector<14x100xf32>
    %c0_69 = arith.constant 0 : index
    %c0_70 = arith.constant 0 : index
    %94 = vector.load %arg6[%c0_69, %c0_70] : memref<14x1xf32, #tpu.memory_space<vmem>>, vector<14x1xf32>
    %95 = vector.broadcast %94 : vector<14x1xf32> to vector<14x100xf32>
    %96 = arith.addf %93, %95 : vector<14x100xf32>
    %cst_71 = arith.constant 0.000000e+00 : f32
    %97 = vector.broadcast %cst_71 : f32 to vector<14x100xf32>
    %98 = arith.cmpf ogt, %96, %97 : vector<14x100xf32>
    %cst_72 = arith.constant 0.000000e+00 : f32
    %99 = vector.broadcast %cst_72 : f32 to vector<14x100xf32>
    %100 = arith.minimumf %96, %99 : vector<14x100xf32>
    %101 = math.exp %100 : vector<14x100xf32>
    %cst_73 = arith.constant 1.000000e+00 : f32
    %102 = vector.broadcast %cst_73 : f32 to vector<14x100xf32>
    %103 = arith.subf %101, %102 : vector<14x100xf32>
    %104 = arith.select %98, %96, %103 : vector<14x100xi1>, vector<14x100xf32>
    %cst_74 = arith.constant 0.000000e+00 : f32
    %105 = vector.shape_cast %2 : vector<1x100xi1> to vector<1x100xi1>
    %106 = vector.broadcast %105 : vector<1x100xi1> to vector<14x100xi1>
    %107 = vector.broadcast %cst_74 : f32 to vector<14x100xf32>
    %108 = arith.select %106, %104, %107 : vector<14x100xi1>, vector<14x100xf32>
    %109 = arith.truncf %108 : vector<14x100xf32> to vector<14x100xbf16>
    %c0_75 = arith.constant 0 : index
    %c0_76 = arith.constant 0 : index
    %110 = vector.load %arg7[%c0_75, %c0_76] : memref<14x100xbf16, #tpu.memory_space<vmem>>, vector<14x100xbf16>
    tpu.vector_store %arg7[%c0_75, %c0_76], %109 {strides = array<i32>} : memref<14x100xbf16, #tpu.memory_space<vmem>>, vector<14x100xbf16>,
    return
  }
  func.func @transform_0(%arg0: i32) -> (i32, i32) {
    %c0_i32 = arith.constant 0 : i32
    %c0_i32_0 = arith.constant 0 : i32
    %c0_i32_1 = arith.constant 0 : i32
    return %c0_i32, %c0_i32_0 : i32, i32
  }
  func.func @transform_1(%arg0: i32) -> (i32, i32) {
    %c0_i32 = arith.constant 0 : i32
    %c0_i32_0 = arith.constant 0 : i32
    %c0_i32_1 = arith.constant 0 : i32
    return %c0_i32, %c0_i32_0 : i32, i32
  }
  func.func @transform_2(%arg0: i32) -> (i32, i32) {
    %c0_i32 = arith.constant 0 : i32
    %c0_i32_0 = arith.constant 0 : i32
    %c0_i32_1 = arith.constant 0 : i32
    return %c0_i32, %c0_i32_0 : i32, i32
  }
  func.func @transform_3(%arg0: i32) -> (i32, i32, i32) {
    %c0_i32 = arith.constant 0 : i32
    %c0_i32_0 = arith.constant 0 : i32
    %c0_i32_1 = arith.constant 0 : i32
    %c0_i32_2 = arith.constant 0 : i32
    return %c0_i32, %c0_i32_0, %c0_i32_1 : i32, i32, i32
  }
  func.func @transform_4(%arg0: i32) -> (i32, i32, i32) {
    %c0_i32 = arith.constant 0 : i32
    %c0_i32_0 = arith.constant 0 : i32
    %c0_i32_1 = arith.constant 0 : i32
    %c0_i32_2 = arith.constant 0 : i32
    return %c0_i32, %c0_i32_0, %c0_i32_1 : i32, i32, i32
  }
  func.func @transform_5(%arg0: i32) -> (i32, i32) {
    %c0_i32 = arith.constant 0 : i32
    %c0_i32_0 = arith.constant 0 : i32
    %c0_i32_1 = arith.constant 0 : i32
    return %c0_i32, %c0_i32_0 : i32, i32
  }
  func.func @transform_6(%arg0: i32) -> (i32, i32) {
    %c0_i32 = arith.constant 0 : i32
    %c0_i32_0 = arith.constant 0 : i32
    %c0_i32_1 = arith.constant 0 : i32
    return %c0_i32, %c0_i32_0 : i32, i32
  }
}

module attributes {stable_mosaic.version = 11 : i64} {
  func.func @_dec_kernel(%arg0: i32, %arg1: memref<14x362xbf16, #tpu.memory_space<vmem>>, %arg2: memref<7x362xbf16, #tpu.memory_space<vmem>>, %arg3: memref<1x324xf32, #tpu.memory_space<vmem>>, %arg4: memref<9x7x14xbf16, #tpu.memory_space<vmem>>, %arg5: memref<9x7x7xbf16, #tpu.memory_space<vmem>>, %arg6: memref<7x1xf32, #tpu.memory_space<vmem>>, %arg7: memref<7x324xbf16, #tpu.memory_space<vmem>>) attributes {dimension_semantics = [#tpu.dimension_semantics<arbitrary>], iteration_bounds = array<i64: 1>, scalar_prefetch = 0 : i64, scratch_operands = 0 : i64, tpu.core_type = #tpu.core_type<tc>, window_params = [{pipeline_mode = #tpu.pipeline_mode<synchronous>, transform_indices = @transform_0, window_bounds = array<i64: 14, 362>}, {pipeline_mode = #tpu.pipeline_mode<synchronous>, transform_indices = @transform_1, window_bounds = array<i64: 7, 362>}, {pipeline_mode = #tpu.pipeline_mode<synchronous>, transform_indices = @transform_2, window_bounds = array<i64: 1, 324>}, {pipeline_mode = #tpu.pipeline_mode<synchronous>, transform_indices = @transform_3, window_bounds = array<i64: 9, 7, 14>}, {pipeline_mode = #tpu.pipeline_mode<synchronous>, transform_indices = @transform_4, window_bounds = array<i64: 9, 7, 7>}, {pipeline_mode = #tpu.pipeline_mode<synchronous>, transform_indices = @transform_5, window_bounds = array<i64: 7, 1>}, {pipeline_mode = #tpu.pipeline_mode<synchronous>, transform_indices = @transform_6, window_bounds = array<i64: 7, 324>}]} {
    %c0 = arith.constant 0 : index
    %c0_0 = arith.constant 0 : index
    %0 = vector.load %arg3[%c0, %c0_0] : memref<1x324xf32, #tpu.memory_space<vmem>>, vector<1x324xf32>
    %cst = arith.constant 5.000000e-01 : f32
    %1 = vector.broadcast %cst : f32 to vector<1x324xf32>
    %2 = arith.cmpf ogt, %0, %1 : vector<1x324xf32>
    %c0_1 = arith.constant 0 : index
    %c0_2 = arith.constant 0 : index
    %3 = vector.load %arg1[%c0_1, %c0_2] : memref<14x362xbf16, #tpu.memory_space<vmem>>, vector<14x362xbf16>
    %c0_3 = arith.constant 0 : index
    %c0_4 = arith.constant 0 : index
    %c0_5 = arith.constant 0 : index
    %4 = vector.load %arg4[%c0_3, %c0_4, %c0_5] : memref<9x7x14xbf16, #tpu.memory_space<vmem>>, vector<1x7x14xbf16>
    %5 = vector.shape_cast %4 : vector<1x7x14xbf16> to vector<7x14xbf16>
    %6 = vector.extract_strided_slice %3 {offsets = [0, 0], sizes = [14, 324], strides = [1, 1]} : vector<14x362xbf16> to vector<14x324xbf16>
    %cst_6 = arith.constant dense<0.000000e+00> : vector<7x324xf32>
    %7 = tpu.matmul %5, %6, %cst_6 {dimension_numbers = #tpu.dot_dimension_numbers<[1], [0], [0], [1], [0, 0, 1, 1], [], []>} : vector<7x14xbf16>, vector<14x324xbf16>, vector<7x324xf32> -> vector<7x324xf32>
    %c1 = arith.constant 1 : index
    %c0_7 = arith.constant 0 : index
    %c0_8 = arith.constant 0 : index
    %8 = vector.load %arg4[%c1, %c0_7, %c0_8] : memref<9x7x14xbf16, #tpu.memory_space<vmem>>, vector<1x7x14xbf16>
    %9 = vector.shape_cast %8 : vector<1x7x14xbf16> to vector<7x14xbf16>
    %10 = vector.extract_strided_slice %3 {offsets = [0, 1], sizes = [14, 324], strides = [1, 1]} : vector<14x362xbf16> to vector<14x324xbf16>
    %cst_9 = arith.constant dense<0.000000e+00> : vector<7x324xf32>
    %11 = tpu.matmul %9, %10, %cst_9 {dimension_numbers = #tpu.dot_dimension_numbers<[1], [0], [0], [1], [0, 0, 1, 1], [], []>} : vector<7x14xbf16>, vector<14x324xbf16>, vector<7x324xf32> -> vector<7x324xf32>
    %12 = arith.addf %7, %11 : vector<7x324xf32>
    %c2 = arith.constant 2 : index
    %c0_10 = arith.constant 0 : index
    %c0_11 = arith.constant 0 : index
    %13 = vector.load %arg4[%c2, %c0_10, %c0_11] : memref<9x7x14xbf16, #tpu.memory_space<vmem>>, vector<1x7x14xbf16>
    %14 = vector.shape_cast %13 : vector<1x7x14xbf16> to vector<7x14xbf16>
    %15 = vector.extract_strided_slice %3 {offsets = [0, 2], sizes = [14, 324], strides = [1, 1]} : vector<14x362xbf16> to vector<14x324xbf16>
    %cst_12 = arith.constant dense<0.000000e+00> : vector<7x324xf32>
    %16 = tpu.matmul %14, %15, %cst_12 {dimension_numbers = #tpu.dot_dimension_numbers<[1], [0], [0], [1], [0, 0, 1, 1], [], []>} : vector<7x14xbf16>, vector<14x324xbf16>, vector<7x324xf32> -> vector<7x324xf32>
    %17 = arith.addf %12, %16 : vector<7x324xf32>
    %c3 = arith.constant 3 : index
    %c0_13 = arith.constant 0 : index
    %c0_14 = arith.constant 0 : index
    %18 = vector.load %arg4[%c3, %c0_13, %c0_14] : memref<9x7x14xbf16, #tpu.memory_space<vmem>>, vector<1x7x14xbf16>
    %19 = vector.shape_cast %18 : vector<1x7x14xbf16> to vector<7x14xbf16>
    %20 = vector.extract_strided_slice %3 {offsets = [0, 18], sizes = [14, 324], strides = [1, 1]} : vector<14x362xbf16> to vector<14x324xbf16>
    %cst_15 = arith.constant dense<0.000000e+00> : vector<7x324xf32>
    %21 = tpu.matmul %19, %20, %cst_15 {dimension_numbers = #tpu.dot_dimension_numbers<[1], [0], [0], [1], [0, 0, 1, 1], [], []>} : vector<7x14xbf16>, vector<14x324xbf16>, vector<7x324xf32> -> vector<7x324xf32>
    %22 = arith.addf %17, %21 : vector<7x324xf32>
    %c4 = arith.constant 4 : index
    %c0_16 = arith.constant 0 : index
    %c0_17 = arith.constant 0 : index
    %23 = vector.load %arg4[%c4, %c0_16, %c0_17] : memref<9x7x14xbf16, #tpu.memory_space<vmem>>, vector<1x7x14xbf16>
    %24 = vector.shape_cast %23 : vector<1x7x14xbf16> to vector<7x14xbf16>
    %25 = vector.extract_strided_slice %3 {offsets = [0, 19], sizes = [14, 324], strides = [1, 1]} : vector<14x362xbf16> to vector<14x324xbf16>
    %cst_18 = arith.constant dense<0.000000e+00> : vector<7x324xf32>
    %26 = tpu.matmul %24, %25, %cst_18 {dimension_numbers = #tpu.dot_dimension_numbers<[1], [0], [0], [1], [0, 0, 1, 1], [], []>} : vector<7x14xbf16>, vector<14x324xbf16>, vector<7x324xf32> -> vector<7x324xf32>
    %27 = arith.addf %22, %26 : vector<7x324xf32>
    %c5 = arith.constant 5 : index
    %c0_19 = arith.constant 0 : index
    %c0_20 = arith.constant 0 : index
    %28 = vector.load %arg4[%c5, %c0_19, %c0_20] : memref<9x7x14xbf16, #tpu.memory_space<vmem>>, vector<1x7x14xbf16>
    %29 = vector.shape_cast %28 : vector<1x7x14xbf16> to vector<7x14xbf16>
    %30 = vector.extract_strided_slice %3 {offsets = [0, 20], sizes = [14, 324], strides = [1, 1]} : vector<14x362xbf16> to vector<14x324xbf16>
    %cst_21 = arith.constant dense<0.000000e+00> : vector<7x324xf32>
    %31 = tpu.matmul %29, %30, %cst_21 {dimension_numbers = #tpu.dot_dimension_numbers<[1], [0], [0], [1], [0, 0, 1, 1], [], []>} : vector<7x14xbf16>, vector<14x324xbf16>, vector<7x324xf32> -> vector<7x324xf32>
    %32 = arith.addf %27, %31 : vector<7x324xf32>
    %c6 = arith.constant 6 : index
    %c0_22 = arith.constant 0 : index
    %c0_23 = arith.constant 0 : index
    %33 = vector.load %arg4[%c6, %c0_22, %c0_23] : memref<9x7x14xbf16, #tpu.memory_space<vmem>>, vector<1x7x14xbf16>
    %34 = vector.shape_cast %33 : vector<1x7x14xbf16> to vector<7x14xbf16>
    %35 = vector.extract_strided_slice %3 {offsets = [0, 36], sizes = [14, 324], strides = [1, 1]} : vector<14x362xbf16> to vector<14x324xbf16>
    %cst_24 = arith.constant dense<0.000000e+00> : vector<7x324xf32>
    %36 = tpu.matmul %34, %35, %cst_24 {dimension_numbers = #tpu.dot_dimension_numbers<[1], [0], [0], [1], [0, 0, 1, 1], [], []>} : vector<7x14xbf16>, vector<14x324xbf16>, vector<7x324xf32> -> vector<7x324xf32>
    %37 = arith.addf %32, %36 : vector<7x324xf32>
    %c7 = arith.constant 7 : index
    %c0_25 = arith.constant 0 : index
    %c0_26 = arith.constant 0 : index
    %38 = vector.load %arg4[%c7, %c0_25, %c0_26] : memref<9x7x14xbf16, #tpu.memory_space<vmem>>, vector<1x7x14xbf16>
    %39 = vector.shape_cast %38 : vector<1x7x14xbf16> to vector<7x14xbf16>
    %40 = vector.extract_strided_slice %3 {offsets = [0, 37], sizes = [14, 324], strides = [1, 1]} : vector<14x362xbf16> to vector<14x324xbf16>
    %cst_27 = arith.constant dense<0.000000e+00> : vector<7x324xf32>
    %41 = tpu.matmul %39, %40, %cst_27 {dimension_numbers = #tpu.dot_dimension_numbers<[1], [0], [0], [1], [0, 0, 1, 1], [], []>} : vector<7x14xbf16>, vector<14x324xbf16>, vector<7x324xf32> -> vector<7x324xf32>
    %42 = arith.addf %37, %41 : vector<7x324xf32>
    %c8 = arith.constant 8 : index
    %c0_28 = arith.constant 0 : index
    %c0_29 = arith.constant 0 : index
    %43 = vector.load %arg4[%c8, %c0_28, %c0_29] : memref<9x7x14xbf16, #tpu.memory_space<vmem>>, vector<1x7x14xbf16>
    %44 = vector.shape_cast %43 : vector<1x7x14xbf16> to vector<7x14xbf16>
    %45 = vector.extract_strided_slice %3 {offsets = [0, 38], sizes = [14, 324], strides = [1, 1]} : vector<14x362xbf16> to vector<14x324xbf16>
    %cst_30 = arith.constant dense<0.000000e+00> : vector<7x324xf32>
    %46 = tpu.matmul %44, %45, %cst_30 {dimension_numbers = #tpu.dot_dimension_numbers<[1], [0], [0], [1], [0, 0, 1, 1], [], []>} : vector<7x14xbf16>, vector<14x324xbf16>, vector<7x324xf32> -> vector<7x324xf32>
    %47 = arith.addf %42, %46 : vector<7x324xf32>
    %c0_31 = arith.constant 0 : index
    %c0_32 = arith.constant 0 : index
    %48 = vector.load %arg2[%c0_31, %c0_32] : memref<7x362xbf16, #tpu.memory_space<vmem>>, vector<7x362xbf16>
    %c0_33 = arith.constant 0 : index
    %c0_34 = arith.constant 0 : index
    %c0_35 = arith.constant 0 : index
    %49 = vector.load %arg5[%c0_33, %c0_34, %c0_35] : memref<9x7x7xbf16, #tpu.memory_space<vmem>>, vector<1x7x7xbf16>
    %50 = vector.shape_cast %49 : vector<1x7x7xbf16> to vector<7x7xbf16>
    %51 = vector.extract_strided_slice %48 {offsets = [0, 0], sizes = [7, 324], strides = [1, 1]} : vector<7x362xbf16> to vector<7x324xbf16>
    %cst_36 = arith.constant dense<0.000000e+00> : vector<7x324xf32>
    %52 = tpu.matmul %50, %51, %cst_36 {dimension_numbers = #tpu.dot_dimension_numbers<[1], [0], [0], [1], [0, 0, 1, 1], [], []>} : vector<7x7xbf16>, vector<7x324xbf16>, vector<7x324xf32> -> vector<7x324xf32>
    %c1_37 = arith.constant 1 : index
    %c0_38 = arith.constant 0 : index
    %c0_39 = arith.constant 0 : index
    %53 = vector.load %arg5[%c1_37, %c0_38, %c0_39] : memref<9x7x7xbf16, #tpu.memory_space<vmem>>, vector<1x7x7xbf16>
    %54 = vector.shape_cast %53 : vector<1x7x7xbf16> to vector<7x7xbf16>
    %55 = vector.extract_strided_slice %48 {offsets = [0, 1], sizes = [7, 324], strides = [1, 1]} : vector<7x362xbf16> to vector<7x324xbf16>
    %cst_40 = arith.constant dense<0.000000e+00> : vector<7x324xf32>
    %56 = tpu.matmul %54, %55, %cst_40 {dimension_numbers = #tpu.dot_dimension_numbers<[1], [0], [0], [1], [0, 0, 1, 1], [], []>} : vector<7x7xbf16>, vector<7x324xbf16>, vector<7x324xf32> -> vector<7x324xf32>
    %57 = arith.addf %52, %56 : vector<7x324xf32>
    %c2_41 = arith.constant 2 : index
    %c0_42 = arith.constant 0 : index
    %c0_43 = arith.constant 0 : index
    %58 = vector.load %arg5[%c2_41, %c0_42, %c0_43] : memref<9x7x7xbf16, #tpu.memory_space<vmem>>, vector<1x7x7xbf16>
    %59 = vector.shape_cast %58 : vector<1x7x7xbf16> to vector<7x7xbf16>
    %60 = vector.extract_strided_slice %48 {offsets = [0, 2], sizes = [7, 324], strides = [1, 1]} : vector<7x362xbf16> to vector<7x324xbf16>
    %cst_44 = arith.constant dense<0.000000e+00> : vector<7x324xf32>
    %61 = tpu.matmul %59, %60, %cst_44 {dimension_numbers = #tpu.dot_dimension_numbers<[1], [0], [0], [1], [0, 0, 1, 1], [], []>} : vector<7x7xbf16>, vector<7x324xbf16>, vector<7x324xf32> -> vector<7x324xf32>
    %62 = arith.addf %57, %61 : vector<7x324xf32>
    %c3_45 = arith.constant 3 : index
    %c0_46 = arith.constant 0 : index
    %c0_47 = arith.constant 0 : index
    %63 = vector.load %arg5[%c3_45, %c0_46, %c0_47] : memref<9x7x7xbf16, #tpu.memory_space<vmem>>, vector<1x7x7xbf16>
    %64 = vector.shape_cast %63 : vector<1x7x7xbf16> to vector<7x7xbf16>
    %65 = vector.extract_strided_slice %48 {offsets = [0, 18], sizes = [7, 324], strides = [1, 1]} : vector<7x362xbf16> to vector<7x324xbf16>
    %cst_48 = arith.constant dense<0.000000e+00> : vector<7x324xf32>
    %66 = tpu.matmul %64, %65, %cst_48 {dimension_numbers = #tpu.dot_dimension_numbers<[1], [0], [0], [1], [0, 0, 1, 1], [], []>} : vector<7x7xbf16>, vector<7x324xbf16>, vector<7x324xf32> -> vector<7x324xf32>
    %67 = arith.addf %62, %66 : vector<7x324xf32>
    %c4_49 = arith.constant 4 : index
    %c0_50 = arith.constant 0 : index
    %c0_51 = arith.constant 0 : index
    %68 = vector.load %arg5[%c4_49, %c0_50, %c0_51] : memref<9x7x7xbf16, #tpu.memory_space<vmem>>, vector<1x7x7xbf16>
    %69 = vector.shape_cast %68 : vector<1x7x7xbf16> to vector<7x7xbf16>
    %70 = vector.extract_strided_slice %48 {offsets = [0, 19], sizes = [7, 324], strides = [1, 1]} : vector<7x362xbf16> to vector<7x324xbf16>
    %cst_52 = arith.constant dense<0.000000e+00> : vector<7x324xf32>
    %71 = tpu.matmul %69, %70, %cst_52 {dimension_numbers = #tpu.dot_dimension_numbers<[1], [0], [0], [1], [0, 0, 1, 1], [], []>} : vector<7x7xbf16>, vector<7x324xbf16>, vector<7x324xf32> -> vector<7x324xf32>
    %72 = arith.addf %67, %71 : vector<7x324xf32>
    %c5_53 = arith.constant 5 : index
    %c0_54 = arith.constant 0 : index
    %c0_55 = arith.constant 0 : index
    %73 = vector.load %arg5[%c5_53, %c0_54, %c0_55] : memref<9x7x7xbf16, #tpu.memory_space<vmem>>, vector<1x7x7xbf16>
    %74 = vector.shape_cast %73 : vector<1x7x7xbf16> to vector<7x7xbf16>
    %75 = vector.extract_strided_slice %48 {offsets = [0, 20], sizes = [7, 324], strides = [1, 1]} : vector<7x362xbf16> to vector<7x324xbf16>
    %cst_56 = arith.constant dense<0.000000e+00> : vector<7x324xf32>
    %76 = tpu.matmul %74, %75, %cst_56 {dimension_numbers = #tpu.dot_dimension_numbers<[1], [0], [0], [1], [0, 0, 1, 1], [], []>} : vector<7x7xbf16>, vector<7x324xbf16>, vector<7x324xf32> -> vector<7x324xf32>
    %77 = arith.addf %72, %76 : vector<7x324xf32>
    %c6_57 = arith.constant 6 : index
    %c0_58 = arith.constant 0 : index
    %c0_59 = arith.constant 0 : index
    %78 = vector.load %arg5[%c6_57, %c0_58, %c0_59] : memref<9x7x7xbf16, #tpu.memory_space<vmem>>, vector<1x7x7xbf16>
    %79 = vector.shape_cast %78 : vector<1x7x7xbf16> to vector<7x7xbf16>
    %80 = vector.extract_strided_slice %48 {offsets = [0, 36], sizes = [7, 324], strides = [1, 1]} : vector<7x362xbf16> to vector<7x324xbf16>
    %cst_60 = arith.constant dense<0.000000e+00> : vector<7x324xf32>
    %81 = tpu.matmul %79, %80, %cst_60 {dimension_numbers = #tpu.dot_dimension_numbers<[1], [0], [0], [1], [0, 0, 1, 1], [], []>} : vector<7x7xbf16>, vector<7x324xbf16>, vector<7x324xf32> -> vector<7x324xf32>
    %82 = arith.addf %77, %81 : vector<7x324xf32>
    %c7_61 = arith.constant 7 : index
    %c0_62 = arith.constant 0 : index
    %c0_63 = arith.constant 0 : index
    %83 = vector.load %arg5[%c7_61, %c0_62, %c0_63] : memref<9x7x7xbf16, #tpu.memory_space<vmem>>, vector<1x7x7xbf16>
    %84 = vector.shape_cast %83 : vector<1x7x7xbf16> to vector<7x7xbf16>
    %85 = vector.extract_strided_slice %48 {offsets = [0, 37], sizes = [7, 324], strides = [1, 1]} : vector<7x362xbf16> to vector<7x324xbf16>
    %cst_64 = arith.constant dense<0.000000e+00> : vector<7x324xf32>
    %86 = tpu.matmul %84, %85, %cst_64 {dimension_numbers = #tpu.dot_dimension_numbers<[1], [0], [0], [1], [0, 0, 1, 1], [], []>} : vector<7x7xbf16>, vector<7x324xbf16>, vector<7x324xf32> -> vector<7x324xf32>
    %87 = arith.addf %82, %86 : vector<7x324xf32>
    %c8_65 = arith.constant 8 : index
    %c0_66 = arith.constant 0 : index
    %c0_67 = arith.constant 0 : index
    %88 = vector.load %arg5[%c8_65, %c0_66, %c0_67] : memref<9x7x7xbf16, #tpu.memory_space<vmem>>, vector<1x7x7xbf16>
    %89 = vector.shape_cast %88 : vector<1x7x7xbf16> to vector<7x7xbf16>
    %90 = vector.extract_strided_slice %48 {offsets = [0, 38], sizes = [7, 324], strides = [1, 1]} : vector<7x362xbf16> to vector<7x324xbf16>
    %cst_68 = arith.constant dense<0.000000e+00> : vector<7x324xf32>
    %91 = tpu.matmul %89, %90, %cst_68 {dimension_numbers = #tpu.dot_dimension_numbers<[1], [0], [0], [1], [0, 0, 1, 1], [], []>} : vector<7x7xbf16>, vector<7x324xbf16>, vector<7x324xf32> -> vector<7x324xf32>
    %92 = arith.addf %87, %91 : vector<7x324xf32>
    %93 = arith.addf %47, %92 : vector<7x324xf32>
    %c0_69 = arith.constant 0 : index
    %c0_70 = arith.constant 0 : index
    %94 = vector.load %arg6[%c0_69, %c0_70] : memref<7x1xf32, #tpu.memory_space<vmem>>, vector<7x1xf32>
    %95 = vector.broadcast %94 : vector<7x1xf32> to vector<7x324xf32>
    %96 = arith.addf %93, %95 : vector<7x324xf32>
    %cst_71 = arith.constant 0.000000e+00 : f32
    %97 = vector.broadcast %cst_71 : f32 to vector<7x324xf32>
    %98 = arith.cmpf ogt, %96, %97 : vector<7x324xf32>
    %cst_72 = arith.constant 0.000000e+00 : f32
    %99 = vector.broadcast %cst_72 : f32 to vector<7x324xf32>
    %100 = arith.minimumf %96, %99 : vector<7x324xf32>
    %101 = math.exp %100 : vector<7x324xf32>
    %cst_73 = arith.constant 1.000000e+00 : f32
    %102 = vector.broadcast %cst_73 : f32 to vector<7x324xf32>
    %103 = arith.subf %101, %102 : vector<7x324xf32>
    %104 = arith.select %98, %96, %103 : vector<7x324xi1>, vector<7x324xf32>
    %cst_74 = arith.constant 0.000000e+00 : f32
    %105 = vector.shape_cast %2 : vector<1x324xi1> to vector<1x324xi1>
    %106 = vector.broadcast %105 : vector<1x324xi1> to vector<7x324xi1>
    %107 = vector.broadcast %cst_74 : f32 to vector<7x324xf32>
    %108 = arith.select %106, %104, %107 : vector<7x324xi1>, vector<7x324xf32>
    %109 = arith.truncf %108 : vector<7x324xf32> to vector<7x324xbf16>
    %c0_75 = arith.constant 0 : index
    %c0_76 = arith.constant 0 : index
    %110 = vector.load %arg7[%c0_75, %c0_76] : memref<7x324xbf16, #tpu.memory_space<vmem>>, vector<7x324xbf16>
    tpu.vector_store %arg7[%c0_75, %c0_76], %109 {strides = array<i32>} : memref<7x324xbf16, #tpu.memory_space<vmem>>, vector<7x324xbf16>,
    return
  }
  func.func @transform_0(%arg0: i32) -> (i32, i32) {
    %c0_i32 = arith.constant 0 : i32
    %c0_i32_0 = arith.constant 0 : i32
    %c0_i32_1 = arith.constant 0 : i32
    return %c0_i32, %c0_i32_0 : i32, i32
  }
  func.func @transform_1(%arg0: i32) -> (i32, i32) {
    %c0_i32 = arith.constant 0 : i32
    %c0_i32_0 = arith.constant 0 : i32
    %c0_i32_1 = arith.constant 0 : i32
    return %c0_i32, %c0_i32_0 : i32, i32
  }
  func.func @transform_2(%arg0: i32) -> (i32, i32) {
    %c0_i32 = arith.constant 0 : i32
    %c0_i32_0 = arith.constant 0 : i32
    %c0_i32_1 = arith.constant 0 : i32
    return %c0_i32, %c0_i32_0 : i32, i32
  }
  func.func @transform_3(%arg0: i32) -> (i32, i32, i32) {
    %c0_i32 = arith.constant 0 : i32
    %c0_i32_0 = arith.constant 0 : i32
    %c0_i32_1 = arith.constant 0 : i32
    %c0_i32_2 = arith.constant 0 : i32
    return %c0_i32, %c0_i32_0, %c0_i32_1 : i32, i32, i32
  }
  func.func @transform_4(%arg0: i32) -> (i32, i32, i32) {
    %c0_i32 = arith.constant 0 : i32
    %c0_i32_0 = arith.constant 0 : i32
    %c0_i32_1 = arith.constant 0 : i32
    %c0_i32_2 = arith.constant 0 : i32
    return %c0_i32, %c0_i32_0, %c0_i32_1 : i32, i32, i32
  }
  func.func @transform_5(%arg0: i32) -> (i32, i32) {
    %c0_i32 = arith.constant 0 : i32
    %c0_i32_0 = arith.constant 0 : i32
    %c0_i32_1 = arith.constant 0 : i32
    return %c0_i32, %c0_i32_0 : i32, i32
  }
  func.func @transform_6(%arg0: i32) -> (i32, i32) {
    %c0_i32 = arith.constant 0 : i32
    %c0_i32_0 = arith.constant 0 : i32
    %c0_i32_1 = arith.constant 0 : i32
    return %c0_i32, %c0_i32_0 : i32, i32
  }
}

module attributes {stable_mosaic.version = 11 : i64} {
  func.func @_cell_edge_kernel(%arg0: i32, %arg1: memref<256x7xbf16, #tpu.memory_space<vmem>>, %arg2: memref<4x256xbf16, #tpu.memory_space<vmem>>, %arg3: memref<4x1xf32, #tpu.memory_space<vmem>>, %arg4: memref<4x256xbf16, #tpu.memory_space<vmem>>, %arg5: memref<4x1xf32, #tpu.memory_space<vmem>>, %arg6: memref<14x28xbf16, #tpu.memory_space<vmem>>, %arg7: memref<1x28xf32, #tpu.memory_space<vmem>>, %arg8: memref<28x14xbf16, #tpu.memory_space<vmem>>, %arg9: memref<1x14xf32, #tpu.memory_space<vmem>>, %arg10: memref<14x28xbf16, #tpu.memory_space<vmem>>, %arg11: memref<1x28xf32, #tpu.memory_space<vmem>>, %arg12: memref<28x14xbf16, #tpu.memory_space<vmem>>, %arg13: memref<1x14xf32, #tpu.memory_space<vmem>>, %arg14: memref<4x4xbf16, #tpu.memory_space<vmem>>, %arg15: memref<4x4xbf16, #tpu.memory_space<vmem>>, %arg16: memref<14x84xbf16, #tpu.memory_space<vmem>>, %arg17: memref<14x168xbf16, #tpu.memory_space<vmem>>, %arg18: memref<1x84xf32, #tpu.memory_space<vmem>>, %arg19: memref<84x84xbf16, #tpu.memory_space<vmem>>, %arg20: memref<1x84xf32, #tpu.memory_space<vmem>>, %arg21: memref<84x2xbf16, #tpu.memory_space<vmem>>, %arg22: memref<1x2xf32, #tpu.memory_space<vmem>>, %arg23: memref<4x2xf32, #tpu.memory_space<vmem>>) attributes {dimension_semantics = [#tpu.dimension_semantics<arbitrary>], iteration_bounds = array<i64: 1>, scalar_prefetch = 0 : i64, scratch_operands = 0 : i64, tpu.core_type = #tpu.core_type<tc>, window_params = [{pipeline_mode = #tpu.pipeline_mode<synchronous>, transform_indices = @transform_0, window_bounds = array<i64: 256, 7>}, {pipeline_mode = #tpu.pipeline_mode<synchronous>, transform_indices = @transform_1, window_bounds = array<i64: 4, 256>}, {pipeline_mode = #tpu.pipeline_mode<synchronous>, transform_indices = @transform_2, window_bounds = array<i64: 4, 1>}, {pipeline_mode = #tpu.pipeline_mode<synchronous>, transform_indices = @transform_3, window_bounds = array<i64: 4, 256>}, {pipeline_mode = #tpu.pipeline_mode<synchronous>, transform_indices = @transform_4, window_bounds = array<i64: 4, 1>}, {pipeline_mode = #tpu.pipeline_mode<synchronous>, transform_indices = @transform_5, window_bounds = array<i64: 14, 28>}, {pipeline_mode = #tpu.pipeline_mode<synchronous>, transform_indices = @transform_6, window_bounds = array<i64: 1, 28>}, {pipeline_mode = #tpu.pipeline_mode<synchronous>, transform_indices = @transform_7, window_bounds = array<i64: 28, 14>}, {pipeline_mode = #tpu.pipeline_mode<synchronous>, transform_indices = @transform_8, window_bounds = array<i64: 1, 14>}, {pipeline_mode = #tpu.pipeline_mode<synchronous>, transform_indices = @transform_9, window_bounds = array<i64: 14, 28>}, {pipeline_mode = #tpu.pipeline_mode<synchronous>, transform_indices = @transform_10, window_bounds = array<i64: 1, 28>}, {pipeline_mode = #tpu.pipeline_mode<synchronous>, transform_indices = @transform_11, window_bounds = array<i64: 28, 14>}, {pipeline_mode = #tpu.pipeline_mode<synchronous>, transform_indices = @transform_12, window_bounds = array<i64: 1, 14>}, {pipeline_mode = #tpu.pipeline_mode<synchronous>, transform_indices = @transform_13, window_bounds = array<i64: 4, 4>}, {pipeline_mode = #tpu.pipeline_mode<synchronous>, transform_indices = @transform_14, window_bounds = array<i64: 4, 4>}, {pipeline_mode = #tpu.pipeline_mode<synchronous>, transform_indices = @transform_15, window_bounds = array<i64: 14, 84>}, {pipeline_mode = #tpu.pipeline_mode<synchronous>, transform_indices = @transform_16, window_bounds = array<i64: 14, 168>}, {pipeline_mode = #tpu.pipeline_mode<synchronous>, transform_indices = @transform_17, window_bounds = array<i64: 1, 84>}, {pipeline_mode = #tpu.pipeline_mode<synchronous>, transform_indices = @transform_18, window_bounds = array<i64: 84, 84>}, {pipeline_mode = #tpu.pipeline_mode<synchronous>, transform_indices = @transform_19, window_bounds = array<i64: 1, 84>}, {pipeline_mode = #tpu.pipeline_mode<synchronous>, transform_indices = @transform_20, window_bounds = array<i64: 84, 2>}, {pipeline_mode = #tpu.pipeline_mode<synchronous>, transform_indices = @transform_21, window_bounds = array<i64: 1, 2>}, {pipeline_mode = #tpu.pipeline_mode<synchronous>, transform_indices = @transform_22, window_bounds = array<i64: 4, 2>}]} {
    %c0 = arith.constant 0 : index
    %c0_0 = arith.constant 0 : index
    %0 = vector.load %arg1[%c0, %c0_0] : memref<256x7xbf16, #tpu.memory_space<vmem>>, vector<256x7xbf16>
    %c0_1 = arith.constant 0 : index
    %c0_2 = arith.constant 0 : index
    %1 = vector.load %arg2[%c0_1, %c0_2] : memref<4x256xbf16, #tpu.memory_space<vmem>>, vector<4x256xbf16>
    %cst = arith.constant dense<0.000000e+00> : vector<4x7xf32>
    %2 = tpu.matmul %1, %0, %cst {dimension_numbers = #tpu.dot_dimension_numbers<[1], [0], [0], [1], [0, 0, 1, 1], [], []>} : vector<4x256xbf16>, vector<256x7xbf16>, vector<4x7xf32> -> vector<4x7xf32>
    %c0_3 = arith.constant 0 : index
    %c0_4 = arith.constant 0 : index
    %3 = vector.load %arg3[%c0_3, %c0_4] : memref<4x1xf32, #tpu.memory_space<vmem>>, vector<4x1xf32>
    %4 = vector.broadcast %3 : vector<4x1xf32> to vector<4x7xf32>
    %5 = arith.mulf %2, %4 : vector<4x7xf32>
    %6 = tpu.concatenate %2, %5 in 1 : vector<4x7xf32>, vector<4x7xf32> -> vector<4x14xf32>
    %7 = arith.truncf %6 : vector<4x14xf32> to vector<4x14xbf16>
    %c0_5 = arith.constant 0 : index
    %c0_6 = arith.constant 0 : index
    %8 = vector.load %arg6[%c0_5, %c0_6] : memref<14x28xbf16, #tpu.memory_space<vmem>>, vector<14x28xbf16>
    %cst_7 = arith.constant dense<0.000000e+00> : vector<4x28xf32>
    %9 = tpu.matmul %7, %8, %cst_7 {dimension_numbers = #tpu.dot_dimension_numbers<[1], [0], [0], [1], [0, 0, 1, 1], [], []>} : vector<4x14xbf16>, vector<14x28xbf16>, vector<4x28xf32> -> vector<4x28xf32>
    %c0_8 = arith.constant 0 : index
    %c0_9 = arith.constant 0 : index
    %10 = vector.load %arg7[%c0_8, %c0_9] : memref<1x28xf32, #tpu.memory_space<vmem>>, vector<1x28xf32>
    %11 = vector.broadcast %10 : vector<1x28xf32> to vector<4x28xf32>
    %12 = arith.addf %9, %11 : vector<4x28xf32>
    %cst_10 = arith.constant 0.000000e+00 : f32
    %13 = vector.broadcast %cst_10 : f32 to vector<4x28xf32>
    %14 = arith.cmpf ogt, %12, %13 : vector<4x28xf32>
    %cst_11 = arith.constant 0.000000e+00 : f32
    %15 = vector.broadcast %cst_11 : f32 to vector<4x28xf32>
    %16 = arith.minimumf %12, %15 : vector<4x28xf32>
    %17 = math.exp %16 : vector<4x28xf32>
    %cst_12 = arith.constant 1.000000e+00 : f32
    %18 = vector.broadcast %cst_12 : f32 to vector<4x28xf32>
    %19 = arith.subf %17, %18 : vector<4x28xf32>
    %20 = arith.select %14, %12, %19 : vector<4x28xi1>, vector<4x28xf32>
    %21 = arith.truncf %20 : vector<4x28xf32> to vector<4x28xbf16>
    %c0_13 = arith.constant 0 : index
    %c0_14 = arith.constant 0 : index
    %22 = vector.load %arg8[%c0_13, %c0_14] : memref<28x14xbf16, #tpu.memory_space<vmem>>, vector<28x14xbf16>
    %cst_15 = arith.constant dense<0.000000e+00> : vector<4x14xf32>
    %23 = tpu.matmul %21, %22, %cst_15 {dimension_numbers = #tpu.dot_dimension_numbers<[1], [0], [0], [1], [0, 0, 1, 1], [], []>} : vector<4x28xbf16>, vector<28x14xbf16>, vector<4x14xf32> -> vector<4x14xf32>
    %c0_16 = arith.constant 0 : index
    %c0_17 = arith.constant 0 : index
    %24 = vector.load %arg9[%c0_16, %c0_17] : memref<1x14xf32, #tpu.memory_space<vmem>>, vector<1x14xf32>
    %25 = vector.broadcast %24 : vector<1x14xf32> to vector<4x14xf32>
    %26 = arith.addf %23, %25 : vector<4x14xf32>
    %cst_18 = arith.constant 0.000000e+00 : f32
    %27 = vector.broadcast %cst_18 : f32 to vector<4x14xf32>
    %28 = arith.cmpf ogt, %26, %27 : vector<4x14xf32>
    %cst_19 = arith.constant 0.000000e+00 : f32
    %29 = vector.broadcast %cst_19 : f32 to vector<4x14xf32>
    %30 = arith.minimumf %26, %29 : vector<4x14xf32>
    %31 = math.exp %30 : vector<4x14xf32>
    %cst_20 = arith.constant 1.000000e+00 : f32
    %32 = vector.broadcast %cst_20 : f32 to vector<4x14xf32>
    %33 = arith.subf %31, %32 : vector<4x14xf32>
    %34 = arith.select %28, %26, %33 : vector<4x14xi1>, vector<4x14xf32>
    %35 = arith.addf %34, %6 : vector<4x14xf32>
    %c0_21 = arith.constant 0 : index
    %c0_22 = arith.constant 0 : index
    %36 = vector.load %arg4[%c0_21, %c0_22] : memref<4x256xbf16, #tpu.memory_space<vmem>>, vector<4x256xbf16>
    %cst_23 = arith.constant dense<0.000000e+00> : vector<4x7xf32>
    %37 = tpu.matmul %36, %0, %cst_23 {dimension_numbers = #tpu.dot_dimension_numbers<[1], [0], [0], [1], [0, 0, 1, 1], [], []>} : vector<4x256xbf16>, vector<256x7xbf16>, vector<4x7xf32> -> vector<4x7xf32>
    %c0_24 = arith.constant 0 : index
    %c0_25 = arith.constant 0 : index
    %38 = vector.load %arg5[%c0_24, %c0_25] : memref<4x1xf32, #tpu.memory_space<vmem>>, vector<4x1xf32>
    %39 = vector.broadcast %38 : vector<4x1xf32> to vector<4x7xf32>
    %40 = arith.mulf %37, %39 : vector<4x7xf32>
    %41 = tpu.concatenate %37, %40 in 1 : vector<4x7xf32>, vector<4x7xf32> -> vector<4x14xf32>
    %42 = arith.truncf %41 : vector<4x14xf32> to vector<4x14xbf16>
    %c0_26 = arith.constant 0 : index
    %c0_27 = arith.constant 0 : index
    %43 = vector.load %arg10[%c0_26, %c0_27] : memref<14x28xbf16, #tpu.memory_space<vmem>>, vector<14x28xbf16>
    %cst_28 = arith.constant dense<0.000000e+00> : vector<4x28xf32>
    %44 = tpu.matmul %42, %43, %cst_28 {dimension_numbers = #tpu.dot_dimension_numbers<[1], [0], [0], [1], [0, 0, 1, 1], [], []>} : vector<4x14xbf16>, vector<14x28xbf16>, vector<4x28xf32> -> vector<4x28xf32>
    %c0_29 = arith.constant 0 : index
    %c0_30 = arith.constant 0 : index
    %45 = vector.load %arg11[%c0_29, %c0_30] : memref<1x28xf32, #tpu.memory_space<vmem>>, vector<1x28xf32>
    %46 = vector.broadcast %45 : vector<1x28xf32> to vector<4x28xf32>
    %47 = arith.addf %44, %46 : vector<4x28xf32>
    %cst_31 = arith.constant 0.000000e+00 : f32
    %48 = vector.broadcast %cst_31 : f32 to vector<4x28xf32>
    %49 = arith.cmpf ogt, %47, %48 : vector<4x28xf32>
    %cst_32 = arith.constant 0.000000e+00 : f32
    %50 = vector.broadcast %cst_32 : f32 to vector<4x28xf32>
    %51 = arith.minimumf %47, %50 : vector<4x28xf32>
    %52 = math.exp %51 : vector<4x28xf32>
    %cst_33 = arith.constant 1.000000e+00 : f32
    %53 = vector.broadcast %cst_33 : f32 to vector<4x28xf32>
    %54 = arith.subf %52, %53 : vector<4x28xf32>
    %55 = arith.select %49, %47, %54 : vector<4x28xi1>, vector<4x28xf32>
    %56 = arith.truncf %55 : vector<4x28xf32> to vector<4x28xbf16>
    %c0_34 = arith.constant 0 : index
    %c0_35 = arith.constant 0 : index
    %57 = vector.load %arg12[%c0_34, %c0_35] : memref<28x14xbf16, #tpu.memory_space<vmem>>, vector<28x14xbf16>
    %cst_36 = arith.constant dense<0.000000e+00> : vector<4x14xf32>
    %58 = tpu.matmul %56, %57, %cst_36 {dimension_numbers = #tpu.dot_dimension_numbers<[1], [0], [0], [1], [0, 0, 1, 1], [], []>} : vector<4x28xbf16>, vector<28x14xbf16>, vector<4x14xf32> -> vector<4x14xf32>
    %c0_37 = arith.constant 0 : index
    %c0_38 = arith.constant 0 : index
    %59 = vector.load %arg13[%c0_37, %c0_38] : memref<1x14xf32, #tpu.memory_space<vmem>>, vector<1x14xf32>
    %60 = vector.broadcast %59 : vector<1x14xf32> to vector<4x14xf32>
    %61 = arith.addf %58, %60 : vector<4x14xf32>
    %cst_39 = arith.constant 0.000000e+00 : f32
    %62 = vector.broadcast %cst_39 : f32 to vector<4x14xf32>
    %63 = arith.cmpf ogt, %61, %62 : vector<4x14xf32>
    %cst_40 = arith.constant 0.000000e+00 : f32
    %64 = vector.broadcast %cst_40 : f32 to vector<4x14xf32>
    %65 = arith.minimumf %61, %64 : vector<4x14xf32>
    %66 = math.exp %65 : vector<4x14xf32>
    %cst_41 = arith.constant 1.000000e+00 : f32
    %67 = vector.broadcast %cst_41 : f32 to vector<4x14xf32>
    %68 = arith.subf %66, %67 : vector<4x14xf32>
    %69 = arith.select %63, %61, %68 : vector<4x14xi1>, vector<4x14xf32>
    %70 = arith.addf %69, %41 : vector<4x14xf32>
    %71 = arith.truncf %70 : vector<4x14xf32> to vector<4x14xbf16>
    %c0_42 = arith.constant 0 : index
    %c0_43 = arith.constant 0 : index
    %72 = vector.load %arg14[%c0_42, %c0_43] : memref<4x4xbf16, #tpu.memory_space<vmem>>, vector<4x4xbf16>
    %cst_44 = arith.constant dense<0.000000e+00> : vector<4x14xf32>
    %73 = tpu.matmul %72, %71, %cst_44 {dimension_numbers = #tpu.dot_dimension_numbers<[1], [0], [0], [1], [0, 0, 1, 1], [], []>} : vector<4x4xbf16>, vector<4x14xbf16>, vector<4x14xf32> -> vector<4x14xf32>
    %c0_45 = arith.constant 0 : index
    %c0_46 = arith.constant 0 : index
    %74 = vector.load %arg15[%c0_45, %c0_46] : memref<4x4xbf16, #tpu.memory_space<vmem>>, vector<4x4xbf16>
    %cst_47 = arith.constant dense<0.000000e+00> : vector<4x14xf32>
    %75 = tpu.matmul %74, %71, %cst_47 {dimension_numbers = #tpu.dot_dimension_numbers<[1], [0], [0], [1], [0, 0, 1, 1], [], []>} : vector<4x4xbf16>, vector<4x14xbf16>, vector<4x14xf32> -> vector<4x14xf32>
    %76 = arith.truncf %35 : vector<4x14xf32> to vector<4x14xbf16>
    %c0_48 = arith.constant 0 : index
    %c0_49 = arith.constant 0 : index
    %77 = vector.load %arg16[%c0_48, %c0_49] : memref<14x84xbf16, #tpu.memory_space<vmem>>, vector<14x84xbf16>
    %cst_50 = arith.constant dense<0.000000e+00> : vector<4x84xf32>
    %78 = tpu.matmul %76, %77, %cst_50 {dimension_numbers = #tpu.dot_dimension_numbers<[1], [0], [0], [1], [0, 0, 1, 1], [], []>} : vector<4x14xbf16>, vector<14x84xbf16>, vector<4x84xf32> -> vector<4x84xf32>
    %c0_51 = arith.constant 0 : index
    %c0_52 = arith.constant 0 : index
    %79 = vector.load %arg18[%c0_51, %c0_52] : memref<1x84xf32, #tpu.memory_space<vmem>>, vector<1x84xf32>
    %80 = vector.broadcast %79 : vector<1x84xf32> to vector<4x84xf32>
    %81 = arith.addf %78, %80 : vector<4x84xf32>
    %82 = arith.truncf %73 : vector<4x14xf32> to vector<4x14xbf16>
    %c0_53 = arith.constant 0 : index
    %c0_54 = arith.constant 0 : index
    %83 = vector.load %arg17[%c0_53, %c0_54] : memref<14x168xbf16, #tpu.memory_space<vmem>>, vector<14x168xbf16>
    %cst_55 = arith.constant dense<0.000000e+00> : vector<4x168xf32>
    %84 = tpu.matmul %82, %83, %cst_55 {dimension_numbers = #tpu.dot_dimension_numbers<[1], [0], [0], [1], [0, 0, 1, 1], [], []>} : vector<4x14xbf16>, vector<14x168xbf16>, vector<4x168xf32> -> vector<4x168xf32>
    %85 = arith.truncf %75 : vector<4x14xf32> to vector<4x14xbf16>
    %c0_56 = arith.constant 0 : index
    %c0_57 = arith.constant 0 : index
    %86 = vector.load %arg17[%c0_56, %c0_57] : memref<14x168xbf16, #tpu.memory_space<vmem>>, vector<14x168xbf16>
    %cst_58 = arith.constant dense<0.000000e+00> : vector<4x168xf32>
    %87 = tpu.matmul %85, %86, %cst_58 {dimension_numbers = #tpu.dot_dimension_numbers<[1], [0], [0], [1], [0, 0, 1, 1], [], []>} : vector<4x14xbf16>, vector<14x168xbf16>, vector<4x168xf32> -> vector<4x168xf32>
    %88 = vector.extract_strided_slice %84 {offsets = [0, 0], sizes = [4, 84], strides = [1, 1]} : vector<4x168xf32> to vector<4x84xf32>
    %89 = arith.addf %81, %88 : vector<4x84xf32>
    %90 = vector.extract_strided_slice %87 {offsets = [0, 84], sizes = [4, 84], strides = [1, 1]} : vector<4x168xf32> to vector<4x84xf32>
    %91 = arith.addf %89, %90 : vector<4x84xf32>
    %cst_59 = arith.constant 0.000000e+00 : f32
    %92 = vector.broadcast %cst_59 : f32 to vector<4x84xf32>
    %93 = arith.cmpf ogt, %91, %92 : vector<4x84xf32>
    %cst_60 = arith.constant 0.000000e+00 : f32
    %94 = vector.broadcast %cst_60 : f32 to vector<4x84xf32>
    %95 = arith.minimumf %91, %94 : vector<4x84xf32>
    %96 = math.exp %95 : vector<4x84xf32>
    %cst_61 = arith.constant 1.000000e+00 : f32
    %97 = vector.broadcast %cst_61 : f32 to vector<4x84xf32>
    %98 = arith.subf %96, %97 : vector<4x84xf32>
    %99 = arith.select %93, %91, %98 : vector<4x84xi1>, vector<4x84xf32>
    %100 = vector.extract_strided_slice %87 {offsets = [0, 0], sizes = [4, 84], strides = [1, 1]} : vector<4x168xf32> to vector<4x84xf32>
    %101 = arith.addf %81, %100 : vector<4x84xf32>
    %102 = vector.extract_strided_slice %84 {offsets = [0, 84], sizes = [4, 84], strides = [1, 1]} : vector<4x168xf32> to vector<4x84xf32>
    %103 = arith.addf %101, %102 : vector<4x84xf32>
    %cst_62 = arith.constant 0.000000e+00 : f32
    %104 = vector.broadcast %cst_62 : f32 to vector<4x84xf32>
    %105 = arith.cmpf ogt, %103, %104 : vector<4x84xf32>
    %cst_63 = arith.constant 0.000000e+00 : f32
    %106 = vector.broadcast %cst_63 : f32 to vector<4x84xf32>
    %107 = arith.minimumf %103, %106 : vector<4x84xf32>
    %108 = math.exp %107 : vector<4x84xf32>
    %cst_64 = arith.constant 1.000000e+00 : f32
    %109 = vector.broadcast %cst_64 : f32 to vector<4x84xf32>
    %110 = arith.subf %108, %109 : vector<4x84xf32>
    %111 = arith.select %105, %103, %110 : vector<4x84xi1>, vector<4x84xf32>
    %112 = arith.truncf %99 : vector<4x84xf32> to vector<4x84xbf16>
    %c0_65 = arith.constant 0 : index
    %c0_66 = arith.constant 0 : index
    %113 = vector.load %arg19[%c0_65, %c0_66] : memref<84x84xbf16, #tpu.memory_space<vmem>>, vector<84x84xbf16>
    %cst_67 = arith.constant dense<0.000000e+00> : vector<4x84xf32>
    %114 = tpu.matmul %112, %113, %cst_67 {dimension_numbers = #tpu.dot_dimension_numbers<[1], [0], [0], [1], [0, 0, 1, 1], [], []>} : vector<4x84xbf16>, vector<84x84xbf16>, vector<4x84xf32> -> vector<4x84xf32>
    %c0_68 = arith.constant 0 : index
    %c0_69 = arith.constant 0 : index
    %115 = vector.load %arg20[%c0_68, %c0_69] : memref<1x84xf32, #tpu.memory_space<vmem>>, vector<1x84xf32>
    %116 = vector.broadcast %115 : vector<1x84xf32> to vector<4x84xf32>
    %117 = arith.addf %114, %116 : vector<4x84xf32>
    %cst_70 = arith.constant 0.000000e+00 : f32
    %118 = vector.broadcast %cst_70 : f32 to vector<4x84xf32>
    %119 = arith.cmpf ogt, %117, %118 : vector<4x84xf32>
    %cst_71 = arith.constant 0.000000e+00 : f32
    %120 = vector.broadcast %cst_71 : f32 to vector<4x84xf32>
    %121 = arith.minimumf %117, %120 : vector<4x84xf32>
    %122 = math.exp %121 : vector<4x84xf32>
    %cst_72 = arith.constant 1.000000e+00 : f32
    %123 = vector.broadcast %cst_72 : f32 to vector<4x84xf32>
    %124 = arith.subf %122, %123 : vector<4x84xf32>
    %125 = arith.select %119, %117, %124 : vector<4x84xi1>, vector<4x84xf32>
    %126 = arith.truncf %111 : vector<4x84xf32> to vector<4x84xbf16>
    %c0_73 = arith.constant 0 : index
    %c0_74 = arith.constant 0 : index
    %127 = vector.load %arg19[%c0_73, %c0_74] : memref<84x84xbf16, #tpu.memory_space<vmem>>, vector<84x84xbf16>
    %cst_75 = arith.constant dense<0.000000e+00> : vector<4x84xf32>
    %128 = tpu.matmul %126, %127, %cst_75 {dimension_numbers = #tpu.dot_dimension_numbers<[1], [0], [0], [1], [0, 0, 1, 1], [], []>} : vector<4x84xbf16>, vector<84x84xbf16>, vector<4x84xf32> -> vector<4x84xf32>
    %c0_76 = arith.constant 0 : index
    %c0_77 = arith.constant 0 : index
    %129 = vector.load %arg20[%c0_76, %c0_77] : memref<1x84xf32, #tpu.memory_space<vmem>>, vector<1x84xf32>
    %130 = vector.broadcast %129 : vector<1x84xf32> to vector<4x84xf32>
    %131 = arith.addf %128, %130 : vector<4x84xf32>
    %cst_78 = arith.constant 0.000000e+00 : f32
    %132 = vector.broadcast %cst_78 : f32 to vector<4x84xf32>
    %133 = arith.cmpf ogt, %131, %132 : vector<4x84xf32>
    %cst_79 = arith.constant 0.000000e+00 : f32
    %134 = vector.broadcast %cst_79 : f32 to vector<4x84xf32>
    %135 = arith.minimumf %131, %134 : vector<4x84xf32>
    %136 = math.exp %135 : vector<4x84xf32>
    %cst_80 = arith.constant 1.000000e+00 : f32
    %137 = vector.broadcast %cst_80 : f32 to vector<4x84xf32>
    %138 = arith.subf %136, %137 : vector<4x84xf32>
    %139 = arith.select %133, %131, %138 : vector<4x84xi1>, vector<4x84xf32>
    %140 = arith.addf %125, %139 : vector<4x84xf32>
    %141 = arith.truncf %140 : vector<4x84xf32> to vector<4x84xbf16>
    %c0_81 = arith.constant 0 : index
    %c0_82 = arith.constant 0 : index
    %142 = vector.load %arg21[%c0_81, %c0_82] : memref<84x2xbf16, #tpu.memory_space<vmem>>, vector<84x2xbf16>
    %cst_83 = arith.constant dense<0.000000e+00> : vector<4x2xf32>
    %143 = tpu.matmul %141, %142, %cst_83 {dimension_numbers = #tpu.dot_dimension_numbers<[1], [0], [0], [1], [0, 0, 1, 1], [], []>} : vector<4x84xbf16>, vector<84x2xbf16>, vector<4x2xf32> -> vector<4x2xf32>
    %c0_84 = arith.constant 0 : index
    %c0_85 = arith.constant 0 : index
    %144 = vector.load %arg22[%c0_84, %c0_85] : memref<1x2xf32, #tpu.memory_space<vmem>>, vector<1x2xf32>
    %145 = vector.broadcast %144 : vector<1x2xf32> to vector<4x2xf32>
    %146 = arith.addf %143, %145 : vector<4x2xf32>
    %c0_86 = arith.constant 0 : index
    %c0_87 = arith.constant 0 : index
    %147 = vector.load %arg23[%c0_86, %c0_87] : memref<4x2xf32, #tpu.memory_space<vmem>>, vector<4x2xf32>
    tpu.vector_store %arg23[%c0_86, %c0_87], %146 {strides = array<i32>} : memref<4x2xf32, #tpu.memory_space<vmem>>, vector<4x2xf32>,
    return
  }
  func.func @transform_0(%arg0: i32) -> (i32, i32) {
    %c0_i32 = arith.constant 0 : i32
    %c0_i32_0 = arith.constant 0 : i32
    %c0_i32_1 = arith.constant 0 : i32
    return %c0_i32, %c0_i32_0 : i32, i32
  }
  func.func @transform_1(%arg0: i32) -> (i32, i32) {
    %c0_i32 = arith.constant 0 : i32
    %c0_i32_0 = arith.constant 0 : i32
    %c0_i32_1 = arith.constant 0 : i32
    return %c0_i32, %c0_i32_0 : i32, i32
  }
  func.func @transform_2(%arg0: i32) -> (i32, i32) {
    %c0_i32 = arith.constant 0 : i32
    %c0_i32_0 = arith.constant 0 : i32
    %c0_i32_1 = arith.constant 0 : i32
    return %c0_i32, %c0_i32_0 : i32, i32
  }
  func.func @transform_3(%arg0: i32) -> (i32, i32) {
    %c0_i32 = arith.constant 0 : i32
    %c0_i32_0 = arith.constant 0 : i32
    %c0_i32_1 = arith.constant 0 : i32
    return %c0_i32, %c0_i32_0 : i32, i32
  }
  func.func @transform_4(%arg0: i32) -> (i32, i32) {
    %c0_i32 = arith.constant 0 : i32
    %c0_i32_0 = arith.constant 0 : i32
    %c0_i32_1 = arith.constant 0 : i32
    return %c0_i32, %c0_i32_0 : i32, i32
  }
  func.func @transform_5(%arg0: i32) -> (i32, i32) {
    %c0_i32 = arith.constant 0 : i32
    %c0_i32_0 = arith.constant 0 : i32
    %c0_i32_1 = arith.constant 0 : i32
    return %c0_i32, %c0_i32_0 : i32, i32
  }
  func.func @transform_6(%arg0: i32) -> (i32, i32) {
    %c0_i32 = arith.constant 0 : i32
    %c0_i32_0 = arith.constant 0 : i32
    %c0_i32_1 = arith.constant 0 : i32
    return %c0_i32, %c0_i32_0 : i32, i32
  }
  func.func @transform_7(%arg0: i32) -> (i32, i32) {
    %c0_i32 = arith.constant 0 : i32
    %c0_i32_0 = arith.constant 0 : i32
    %c0_i32_1 = arith.constant 0 : i32
    return %c0_i32, %c0_i32_0 : i32, i32
  }
  func.func @transform_8(%arg0: i32) -> (i32, i32) {
    %c0_i32 = arith.constant 0 : i32
    %c0_i32_0 = arith.constant 0 : i32
    %c0_i32_1 = arith.constant 0 : i32
    return %c0_i32, %c0_i32_0 : i32, i32
  }
  func.func @transform_9(%arg0: i32) -> (i32, i32) {
    %c0_i32 = arith.constant 0 : i32
    %c0_i32_0 = arith.constant 0 : i32
    %c0_i32_1 = arith.constant 0 : i32
    return %c0_i32, %c0_i32_0 : i32, i32
  }
  func.func @transform_10(%arg0: i32) -> (i32, i32) {
    %c0_i32 = arith.constant 0 : i32
    %c0_i32_0 = arith.constant 0 : i32
    %c0_i32_1 = arith.constant 0 : i32
    return %c0_i32, %c0_i32_0 : i32, i32
  }
  func.func @transform_11(%arg0: i32) -> (i32, i32) {
    %c0_i32 = arith.constant 0 : i32
    %c0_i32_0 = arith.constant 0 : i32
    %c0_i32_1 = arith.constant 0 : i32
    return %c0_i32, %c0_i32_0 : i32, i32
  }
  func.func @transform_12(%arg0: i32) -> (i32, i32) {
    %c0_i32 = arith.constant 0 : i32
    %c0_i32_0 = arith.constant 0 : i32
    %c0_i32_1 = arith.constant 0 : i32
    return %c0_i32, %c0_i32_0 : i32, i32
  }
  func.func @transform_13(%arg0: i32) -> (i32, i32) {
    %c0_i32 = arith.constant 0 : i32
    %c0_i32_0 = arith.constant 0 : i32
    %c0_i32_1 = arith.constant 0 : i32
    return %c0_i32, %c0_i32_0 : i32, i32
  }
  func.func @transform_14(%arg0: i32) -> (i32, i32) {
    %c0_i32 = arith.constant 0 : i32
    %c0_i32_0 = arith.constant 0 : i32
    %c0_i32_1 = arith.constant 0 : i32
    return %c0_i32, %c0_i32_0 : i32, i32
  }
  func.func @transform_15(%arg0: i32) -> (i32, i32) {
    %c0_i32 = arith.constant 0 : i32
    %c0_i32_0 = arith.constant 0 : i32
    %c0_i32_1 = arith.constant 0 : i32
    return %c0_i32, %c0_i32_0 : i32, i32
  }
  func.func @transform_16(%arg0: i32) -> (i32, i32) {
    %c0_i32 = arith.constant 0 : i32
    %c0_i32_0 = arith.constant 0 : i32
    %c0_i32_1 = arith.constant 0 : i32
    return %c0_i32, %c0_i32_0 : i32, i32
  }
  func.func @transform_17(%arg0: i32) -> (i32, i32) {
    %c0_i32 = arith.constant 0 : i32
    %c0_i32_0 = arith.constant 0 : i32
    %c0_i32_1 = arith.constant 0 : i32
    return %c0_i32, %c0_i32_0 : i32, i32
  }
  func.func @transform_18(%arg0: i32) -> (i32, i32) {
    %c0_i32 = arith.constant 0 : i32
    %c0_i32_0 = arith.constant 0 : i32
    %c0_i32_1 = arith.constant 0 : i32
    return %c0_i32, %c0_i32_0 : i32, i32
  }
  func.func @transform_19(%arg0: i32) -> (i32, i32) {
    %c0_i32 = arith.constant 0 : i32
    %c0_i32_0 = arith.constant 0 : i32
    %c0_i32_1 = arith.constant 0 : i32
    return %c0_i32, %c0_i32_0 : i32, i32
  }
  func.func @transform_20(%arg0: i32) -> (i32, i32) {
    %c0_i32 = arith.constant 0 : i32
    %c0_i32_0 = arith.constant 0 : i32
    %c0_i32_1 = arith.constant 0 : i32
    return %c0_i32, %c0_i32_0 : i32, i32
  }
  func.func @transform_21(%arg0: i32) -> (i32, i32) {
    %c0_i32 = arith.constant 0 : i32
    %c0_i32_0 = arith.constant 0 : i32
    %c0_i32_1 = arith.constant 0 : i32
    return %c0_i32, %c0_i32_0 : i32, i32
  }
  func.func @transform_22(%arg0: i32) -> (i32, i32) {
    %c0_i32 = arith.constant 0 : i32
    %c0_i32_0 = arith.constant 0 : i32
    %c0_i32_1 = arith.constant 0 : i32
    return %c0_i32, %c0_i32_0 : i32, i32
  }
}

</mosaic_0001>

<llo_original>
// kernel: reverse
$region0: #{reverse}
  #allocation0 [shape = 's32[1]{0}', space=sflag, size = 0x4, scoped, tag = 'scoped memory for reverse']
  %s0 = inlined_call_operand.vmem [shape: bf16[56,28,3,3], index: 0, kind: input, shape index: {}]
  %s1 = inlined_call_operand.vmem [shape: bf16[56,28,3,3], index: 1, kind: output, shape index: {}]
  %s2 = scalar_lea.vmem %s0, 128
  %v3 = vld [vmem:[%s2] sm:$0xf]
  %v4 = vunpack.c.l.bf16 %v3
  %v5 = vunpack.c.h.bf16 %v3
  %v6 = vpack.c.bf16 0.0, %v4
  %7 = vst [vmem:[%s1] sm:$0xf] %v6
  %s8 = scalar_lea.vmem %s0, 80
  %v9 = vld [vmem:[%s8] sm:$0xf]
  %v10 = vunpack.c.l.bf16 %v9
  %v11 = vunpack.c.h.bf16 %v9
  %s12 = scalar_lea.vmem %s1, 48
  %v13 = vpack.c.bf16 0.0, %v10
  %14 = vst [vmem:[%s12] sm:$0xf] %v13
  %s15 = scalar_lea.vmem %s0, 32
  %v16 = vld [vmem:[%s15] sm:$0xf]
  %v17 = vunpack.c.l.bf16 %v16
  %v18 = vunpack.c.h.bf16 %v16
  %s19 = scalar_lea.vmem %s1, 96
  %v20 = vpack.c.bf16 0.0, %v17
  %21 = vst [vmem:[%s19] sm:$0xf] %v20
  %s22 = scalar_lea.vmem %s0, 112
  %v23 = vld [vmem:[%s22] sm:$0xf]
  %v24 = vunpack.c.l.bf16 %v23
  %v25 = vunpack.c.h.bf16 %v23
  %s26 = scalar_lea.vmem %s1, 16
  %v27 = vpack.c.bf16 0.0, %v24
  %28 = vst [vmem:[%s26] sm:$0xf] %v27
  %s29 = scalar_lea.vmem %s0, 64
  %v30 = vld [vmem:[%s29] sm:$0xf]
  %v31 = vunpack.c.l.bf16 %v30
  %v32 = vunpack.c.h.bf16 %v30
  %s33 = scalar_lea.vmem %s1, 64
  %v34 = vpack.c.bf16 0.0, %v31
  %35 = vst [vmem:[%s33] sm:$0xf] %v34
  %s36 = scalar_lea.vmem %s0, 16
  %v37 = vld [vmem:[%s36] sm:$0xf]
  %v38 = vunpack.c.l.bf16 %v37
  %v39 = vunpack.c.h.bf16 %v37
  %s40 = scalar_lea.vmem %s1, 112
  %v41 = vpack.c.bf16 0.0, %v38
  %42 = vst [vmem:[%s40] sm:$0xf] %v41
  %s43 = scalar_lea.vmem %s0, 96
  %v44 = vld [vmem:[%s43] sm:$0xf]
  %v45 = vunpack.c.l.bf16 %v44
  %v46 = vunpack.c.h.bf16 %v44
  %s47 = scalar_lea.vmem %s1, 32
  %v48 = vpack.c.bf16 0.0, %v45
  %49 = vst [vmem:[%s47] sm:$0xf] %v48
  %s50 = scalar_lea.vmem %s0, 48
  %v51 = vld [vmem:[%s50] sm:$0xf]
  %v52 = vunpack.c.l.bf16 %v51
  %v53 = vunpack.c.h.bf16 %v51
  %s54 = scalar_lea.vmem %s1, 80
  %v55 = vpack.c.bf16 0.0, %v52
  %56 = vst [vmem:[%s54] sm:$0xf] %v55
  %v57 = vld [vmem:[%s0] sm:$0xf]
  %v58 = vunpack.c.l.bf16 %v57
  %v59 = vunpack.c.h.bf16 %v57
  %s60 = scalar_lea.vmem %s1, 128
  %v61 = vpack.c.bf16 0.0, %v58
  %62 = vst [vmem:[%s60] sm:$0xf] %v61
  %s63 = scalar_lea.vmem %s0, 132
  %v64 = vld [vmem:[%s63] sm:$0xf]
  %v65 = vunpack.c.l.bf16 %v64
  %v66 = vunpack.c.h.bf16 %v64
  %s67 = scalar_lea.vmem %s1, 4
  %v68 = vpack.c.bf16 0.0, %v65
  %69 = vst [vmem:[%s67] sm:$0xf] %v68
  %s70 = scalar_lea.vmem %s0, 84
  %v71 = vld [vmem:[%s70] sm:$0xf]
  %v72 = vunpack.c.l.bf16 %v71
  %v73 = vunpack.c.h.bf16 %v71
  %s74 = scalar_lea.vmem %s1, 52
  %v75 = vpack.c.bf16 0.0, %v72
  %76 = vst [vmem:[%s74] sm:$0xf] %v75
  %s77 = scalar_lea.vmem %s0, 36
  %v78 = vld [vmem:[%s77] sm:$0xf]
  %v79 = vunpack.c.l.bf16 %v78
  %v80 = vunpack.c.h.bf16 %v78
  %s81 = scalar_lea.vmem %s1, 100
  %v82 = vpack.c.bf16 0.0, %v79
  %83 = vst [vmem:[%s81] sm:$0xf] %v82
  %s84 = scalar_lea.vmem %s0, 116
  %v85 = vld [vmem:[%s84] sm:$0xf]
  %v86 = vunpack.c.l.bf16 %v85
  %v87 = vunpack.c.h.bf16 %v85
  %s88 = scalar_lea.vmem %s1, 20
  %v89 = vpack.c.bf16 0.0, %v86
  %90 = vst [vmem:[%s88] sm:$0xf] %v89
  %s91 = scalar_lea.vmem %s0, 68
  %v92 = vld [vmem:[%s91] sm:$0xf]
  %v93 = vunpack.c.l.bf16 %v92
  %v94 = vunpack.c.h.bf16 %v92
  %s95 = scalar_lea.vmem %s1, 68
  %v96 = vpack.c.bf16 0.0, %v93
  %97 = vst [vmem:[%s95] sm:$0xf] %v96
  %s98 = scalar_lea.vmem %s0, 20
  %v99 = vld [vmem:[%s98] sm:$0xf]
  %v100 = vunpack.c.l.bf16 %v99
  %v101 = vunpack.c.h.bf16 %v99
  %s102 = scalar_lea.vmem %s1, 116
  %v103 = vpack.c.bf16 0.0, %v100
  %104 = vst [vmem:[%s102] sm:$0xf] %v103
  %s105 = scalar_lea.vmem %s0, 100
  %v106 = vld [vmem:[%s105] sm:$0xf]
  %v107 = vunpack.c.l.bf16 %v106
  %v108 = vunpack.c.h.bf16 %v106
  %s109 = scalar_lea.vmem %s1, 36
  %v110 = vpack.c.bf16 0.0, %v107
  %111 = vst [vmem:[%s109] sm:$0xf] %v110
  %s112 = scalar_lea.vmem %s0, 52
  %v113 = vld [vmem:[%s112] sm:$0xf]
  %v114 = vunpack.c.l.bf16 %v113
  %v115 = vunpack.c.h.bf16 %v113
  %s116 = scalar_lea.vmem %s1, 84
  %v117 = vpack.c.bf16 0.0, %v114
  %118 = vst [vmem:[%s116] sm:$0xf] %v117
  %s119 = scalar_lea.vmem %s0, 4
  %v120 = vld [vmem:[%s119] sm:$0xf]
  %v121 = vunpack.c.l.bf16 %v120
  %v122 = vunpack.c.h.bf16 %v120
  %s123 = scalar_lea.vmem %s1, 132
  %v124 = vpack.c.bf16 0.0, %v121
  %125 = vst [vmem:[%s123] sm:$0xf] %v124
  %s126 = scalar_lea.vmem %s0, 136
  %v127 = vld [vmem:[%s126] sm:$0xf]
  %v128 = vunpack.c.l.bf16 %v127
  %v129 = vunpack.c.h.bf16 %v127
  %s130 = scalar_lea.vmem %s1, 8
  %v131 = vpack.c.bf16 0.0, %v128
  %132 = vst [vmem:[%s130] sm:$0xf] %v131
  %s133 = scalar_lea.vmem %s0, 88
  %v134 = vld [vmem:[%s133] sm:$0xf]
  %v135 = vunpack.c.l.bf16 %v134
  %v136 = vunpack.c.h.bf16 %v134
  %s137 = scalar_lea.vmem %s1, 56
  %v138 = vpack.c.bf16 0.0, %v135
  %139 = vst [vmem:[%s137] sm:$0xf] %v138
  %s140 = scalar_lea.vmem %s0, 40
  %v141 = vld [vmem:[%s140] sm:$0xf]
  %v142 = vunpack.c.l.bf16 %v141
  %v143 = vunpack.c.h.bf16 %v141
  %s144 = scalar_lea.vmem %s1, 104
  %v145 = vpack.c.bf16 0.0, %v142
  %146 = vst [vmem:[%s144] sm:$0xf] %v145
  %s147 = scalar_lea.vmem %s0, 120
  %v148 = vld [vmem:[%s147] sm:$0xf]
  %v149 = vunpack.c.l.bf16 %v148
  %v150 = vunpack.c.h.bf16 %v148
  %s151 = scalar_lea.vmem %s1, 24
  %v152 = vpack.c.bf16 0.0, %v149
  %153 = vst [vmem:[%s151] sm:$0xf] %v152
  %s154 = scalar_lea.vmem %s0, 72
  %v155 = vld [vmem:[%s154] sm:$0xf]
  %v156 = vunpack.c.l.bf16 %v155
  %v157 = vunpack.c.h.bf16 %v155
  %s158 = scalar_lea.vmem %s1, 72
  %v159 = vpack.c.bf16 0.0, %v156
  %160 = vst [vmem:[%s158] sm:$0xf] %v159
  %s161 = scalar_lea.vmem %s0, 24
  %v162 = vld [vmem:[%s161] sm:$0xf]
  %v163 = vunpack.c.l.bf16 %v162
  %v164 = vunpack.c.h.bf16 %v162
  %s165 = scalar_lea.vmem %s1, 120
  %v166 = vpack.c.bf16 0.0, %v163
  %167 = vst [vmem:[%s165] sm:$0xf] %v166
  %s168 = scalar_lea.vmem %s0, 104
  %v169 = vld [vmem:[%s168] sm:$0xf]
  %v170 = vunpack.c.l.bf16 %v169
  %v171 = vunpack.c.h.bf16 %v169
  %s172 = scalar_lea.vmem %s1, 40
  %v173 = vpack.c.bf16 0.0, %v170
  %174 = vst [vmem:[%s172] sm:$0xf] %v173
  %s175 = scalar_lea.vmem %s0, 56
  %v176 = vld [vmem:[%s175] sm:$0xf]
  %v177 = vunpack.c.l.bf16 %v176
  %v178 = vunpack.c.h.bf16 %v176
  %s179 = scalar_lea.vmem %s1, 88
  %v180 = vpack.c.bf16 0.0, %v177
  %181 = vst [vmem:[%s179] sm:$0xf] %v180
  %s182 = scalar_lea.vmem %s0, 8
  %v183 = vld [vmem:[%s182] sm:$0xf]
  %v184 = vunpack.c.l.bf16 %v183
  %v185 = vunpack.c.h.bf16 %v183
  %s186 = scalar_lea.vmem %s1, 136
  %v187 = vpack.c.bf16 0.0, %v184
  %188 = vst [vmem:[%s186] sm:$0xf] %v187
  %s189 = scalar_lea.vmem %s0, 140
  %v190 = vld [vmem:[%s189] sm:$0xf]
  %v191 = vunpack.c.l.bf16 %v190
  %v192 = vunpack.c.h.bf16 %v190
  %s193 = scalar_lea.vmem %s1, 12
  %v194 = vpack.c.bf16 0.0, %v191
  %195 = vst [vmem:[%s193] sm:$0xf] %v194
  %s196 = scalar_lea.vmem %s0, 92
  %v197 = vld [vmem:[%s196] sm:$0xf]
  %v198 = vunpack.c.l.bf16 %v197
  %v199 = vunpack.c.h.bf16 %v197
  %s200 = scalar_lea.vmem %s1, 60
  %v201 = vpack.c.bf16 0.0, %v198
  %202 = vst [vmem:[%s200] sm:$0xf] %v201
  %s203 = scalar_lea.vmem %s0, 44
  %v204 = vld [vmem:[%s203] sm:$0xf]
  %v205 = vunpack.c.l.bf16 %v204
  %v206 = vunpack.c.h.bf16 %v204
  %s207 = scalar_lea.vmem %s1, 108
  %v208 = vpack.c.bf16 0.0, %v205
  %209 = vst [vmem:[%s207] sm:$0xf] %v208
  %s210 = scalar_lea.vmem %s0, 124
  %v211 = vld [vmem:[%s210] sm:$0xf]
  %v212 = vunpack.c.l.bf16 %v211
  %v213 = vunpack.c.h.bf16 %v211
  %s214 = scalar_lea.vmem %s1, 28
  %v215 = vpack.c.bf16 0.0, %v212
  %216 = vst [vmem:[%s214] sm:$0xf] %v215
  %s217 = scalar_lea.vmem %s0, 76
  %v218 = vld [vmem:[%s217] sm:$0xf]
  %v219 = vunpack.c.l.bf16 %v218
  %v220 = vunpack.c.h.bf16 %v218
  %s221 = scalar_lea.vmem %s1, 76
  %v222 = vpack.c.bf16 0.0, %v219
  %223 = vst [vmem:[%s221] sm:$0xf] %v222
  %s224 = scalar_lea.vmem %s0, 28
  %v225 = vld [vmem:[%s224] sm:$0xf]
  %v226 = vunpack.c.l.bf16 %v225
  %v227 = vunpack.c.h.bf16 %v225
  %s228 = scalar_lea.vmem %s1, 124
  %v229 = vpack.c.bf16 0.0, %v226
  %230 = vst [vmem:[%s228] sm:$0xf] %v229
  %s231 = scalar_lea.vmem %s0, 108
  %v232 = vld [vmem:[%s231] sm:$0xf]
  %v233 = vunpack.c.l.bf16 %v232
  %v234 = vunpack.c.h.bf16 %v232
  %s235 = scalar_lea.vmem %s1, 44
  %v236 = vpack.c.bf16 0.0, %v233
  %237 = vst [vmem:[%s235] sm:$0xf] %v236
  %s238 = scalar_lea.vmem %s0, 60
  %v239 = vld [vmem:[%s238] sm:$0xf]
  %v240 = vunpack.c.l.bf16 %v239
  %v241 = vunpack.c.h.bf16 %v239
  %s242 = scalar_lea.vmem %s1, 92
  %v243 = vpack.c.bf16 0.0, %v240
  %244 = vst [vmem:[%s242] sm:$0xf] %v243
  %s245 = scalar_lea.vmem %s0, 12
  %v246 = vld [vmem:[%s245] sm:$0xf]
  %v247 = vunpack.c.l.bf16 %v246
  %v248 = vunpack.c.h.bf16 %v246
  %s249 = scalar_lea.vmem %s1, 140
  %v250 = vpack.c.bf16 0.0, %v247
  %251 = vst [vmem:[%s249] sm:$0xf] %v250

// kernel: convnet_forward.6
$region0: #{convnet_forward.6}
  #allocation0 [shape = 'u32[]', space=smem, size = 0x4, offset = 0x4, fixed_abs, tag = 'smem constant byte address 0x4 - core index']
  #allocation1 [shape = 'u32[144,128]{1,0:T(1,128)}', space=vmem, size = 0x12000, scoped, tag = 'internal scratch']
  %s0 = inlined_call_operand.vmem [shape: bf16[7,122], index: 0, kind: input, shape index: {}]
  %s1 = inlined_call_operand.vmem [shape: f32[1,100], index: 1, kind: input, shape index: {}]
  %s2 = inlined_call_operand.vmem [shape: bf16[9,14,7], index: 2, kind: input, shape index: {}]
  %s3 = inlined_call_operand.vmem [shape: f32[14,1], index: 3, kind: input, shape index: {}]
  %s4 = inlined_call_operand.vmem [shape: bf16[14,100], index: 4, kind: output, shape index: {}]
  %s5 = sld [smem:[#allocation0]]
  $region26: #{convnet_forward.6} parent=0
    _
  %s7 = ssub.s32 1, %s5
  %s8 = scalar_select 0, %s7, %s5
  // Predicated region
  $region2: #{convnet_forward.6} parent=0 // pred_check
    _
  $region3: #{convnet_forward.6} parent=0 // pred_check_branch
    %10 = sbr.rel (0) target = $region5
  $region4: #{convnet_forward.6} parent=0 // pred_region
    _
  $region5: #{convnet_forward.6} parent=0 // pred_fallthru
    _
  // Predicated region
  $region6: #{convnet_forward.6} parent=0 // pred_check
    _
  $region7: #{convnet_forward.6} parent=0 // pred_check_branch
    %12 = sbr.rel (0) target = $region9
  $region8: #{convnet_forward.6} parent=0 // pred_region
    _
  $region9: #{convnet_forward.6} parent=0 // pred_fallthru
    _
  // Predicated region
  $region10: #{convnet_forward.6} parent=0 // pred_check
    _
  $region11: #{convnet_forward.6} parent=0 // pred_check_branch
    %14 = sbr.rel (0) target = $region13
  $region12: #{convnet_forward.6} parent=0 // pred_region
    _
  $region13: #{convnet_forward.6} parent=0 // pred_fallthru
    _
  // Predicated region
  $region14: #{convnet_forward.6} parent=0 // pred_check
    _
  $region15: #{convnet_forward.6} parent=0 // pred_check_branch
    %16 = sbr.rel (0) target = $region17
  $region16: #{convnet_forward.6} parent=0 // pred_region
    _
  $region17: #{convnet_forward.6} parent=0 // pred_fallthru
    _
  %v18 = vld [vmem:[%s1] sm:$0x1]
  %vm19 = vcmp.gt.f32.partialorder %v18, 0.5
  %v20 = vld [vmem:[%s0] sm:$0xf]
  %v21 = vld [vmem:[%s2] sm:$0xf]
  %v22 = vld [vmem:[%s2 + $0x4] sm:$0x7]
  %s23 = scalar_lea.vmem %s2, 8
  %v24 = vld [vmem:[%s23] sm:$0xf]
  %v25 = vld [vmem:[%s23 + $0x4] sm:$0x7]
  %v28 = vunpack.c.l.b16 %v24
  %v29 = vunpack.c.l.b16 %v25
  %v30 = vpack.c.b16 %v29, %v28
  %v32 = vunpack.c.l.b16 %v20
  %v33 = vpack.c.b16 %v32, %v32
  %34 = vrot.lane.b32.xlu0 %v33, 127
  %v35 = vpop.permute.xlu0 %34
  %vm36 = vcmask 56320
  %v38 = vsel %vm36, %v30, 0
  %vm40 = vcmask 1042432
  %vm41 = vcmask 1043456
  %v42 = vsel %vm40, 4294967295, 65535
  %v43 = vsel %vm41, %v42, 0
  %v45 = vand.u32 %v35, %v43
  %47 = vmatprep.subr.bf16.mxu0 0
  %48 = vmatpush1.bf16.msra.mxu0 %v45
  %49 = vmatprep.subr.bf16.mxu0 0
  %50 = vmatpush1.bf16.msra.mxu0 0
  %51 = vmatprep.subr.bf16.mxu0 0
  %52 = vmatpush1.bf16.msra.mxu0 0
  %53 = vmatprep.subr.bf16.mxu0 0
  %54 = vmatpush1.bf16.msra.mxu0 0
  %55 = vmatprep.subr.bf16.mxu0 0
  %56 = vmatpush1.bf16.msra.mxu0 0
  %57 = vmatprep.subr.bf16.mxu0 0
  %58 = vmatpush1.bf16.msra.mxu0 0
  %59 = vmatprep.subr.bf16.mxu0 0
  %60 = vmatpush1.bf16.msra.mxu0 0
  %61 = vmatprep.subr.bf16.mxu0 0
  %62 = vmatpush1.bf16.msra.mxu0 0
  %63 = vmatprep.subr.bf16.mxu0 0
  %64 = vmatpush1.bf16.msra.mxu0 0
  %65 = vmatprep.subr.bf16.mxu0 0
  %66 = vmatpush1.bf16.msra.mxu0 0
  %67 = vmatprep.subr.bf16.mxu0 0
  %68 = vmatpush1.bf16.msra.mxu0 0
  %69 = vmatprep.subr.bf16.mxu0 0
  %70 = vmatpush1.bf16.msra.mxu0 0
  %71 = vmatprep.subr.bf16.mxu0 0
  %72 = vmatpush1.bf16.msra.mxu0 0
  %73 = vmatprep.subr.bf16.mxu0 0
  %74 = vmatpush1.bf16.msra.mxu0 0
  %75 = vmatprep.subr.bf16.mxu0 0
  %76 = vmatpush1.bf16.msra.mxu0 0
  %77 = vmatprep.subr.bf16.mxu0 0
  %78 = vmatpush1.bf16.msra.mxu0 0
  %79 = vmatprep.mubr.bf16.mxu0 0
  %80 = vmatmul.mubr.bf16.gmra.mrb[0].mxu0 %v38
  %v81 = vpop.f32.mrb[0].mxu0
  %v82 = vadd.f32 0.0, %v81
  %v83 = vpop.f32.mrb[0].mxu0
  %v84 = vpop.f32.mrb[0].mxu0
  %v85 = vadd.f32 0.0, %v84
  %v86 = vpop.f32.mrb[0].mxu0
  %87 = vdwg.mxu0
  %v90 = vunpack.c.l.b16 %v21
  %v91 = vunpack.c.l.b16 %v22
  %v92 = vpack.c.b16 %v91, %v90
  %v94 = vsel %vm36, %v92, 0
  %v97 = vand.u32 %v20, %v43
  %99 = vmatprep.subr.bf16.mxu0 0
  %100 = vmatpush1.bf16.msra.mxu0 %v97
  %101 = vmatprep.subr.bf16.mxu0 0
  %102 = vmatpush1.bf16.msra.mxu0 0
  %103 = vmatprep.subr.bf16.mxu0 0
  %104 = vmatpush1.bf16.msra.mxu0 0
  %105 = vmatprep.subr.bf16.mxu0 0
  %106 = vmatpush1.bf16.msra.mxu0 0
  %107 = vmatprep.subr.bf16.mxu0 0
  %108 = vmatpush1.bf16.msra.mxu0 0
  %109 = vmatprep.subr.bf16.mxu0 0
  %110 = vmatpush1.bf16.msra.mxu0 0
  %111 = vmatprep.subr.bf16.mxu0 0
  %112 = vmatpush1.bf16.msra.mxu0 0
  %113 = vmatprep.subr.bf16.mxu0 0
  %114 = vmatpush1.bf16.msra.mxu0 0
  %115 = vmatprep.subr.bf16.mxu0 0
  %116 = vmatpush1.bf16.msra.mxu0 0
  %117 = vmatprep.subr.bf16.mxu0 0
  %118 = vmatpush1.bf16.msra.mxu0 0
  %119 = vmatprep.subr.bf16.mxu0 0
  %120 = vmatpush1.bf16.msra.mxu0 0
  %121 = vmatprep.subr.bf16.mxu0 0
  %122 = vmatpush1.bf16.msra.mxu0 0
  %123 = vmatprep.subr.bf16.mxu0 0
  %124 = vmatpush1.bf16.msra.mxu0 0
  %125 = vmatprep.subr.bf16.mxu0 0
  %126 = vmatpush1.bf16.msra.mxu0 0
  %127 = vmatprep.subr.bf16.mxu0 0
  %128 = vmatpush1.bf16.msra.mxu0 0
  %129 = vmatprep.subr.bf16.mxu0 0
  %130 = vmatpush1.bf16.msra.mxu0 0
  %131 = vmatprep.mubr.bf16.mxu0 0
  %132 = vmatmul.mubr.bf16.gmra.mrb[0].mxu0 %v94
  %v133 = vpop.f32.mrb[0].mxu0
  %v134 = vadd.f32 %v82, %v133
  %v135 = vpop.f32.mrb[0].mxu0
  %v136 = vpop.f32.mrb[0].mxu0
  %v137 = vadd.f32 %v85, %v136
  %v138 = vpop.f32.mrb[0].mxu0
  %139 = vdwg.mxu0
  %s140 = scalar_lea.vmem %s2, 16
  %v141 = vld [vmem:[%s140] sm:$0xf]
  %v142 = vld [vmem:[%s140 + $0x4] sm:$0x7]
  %v145 = vunpack.c.l.b16 %v141
  %v146 = vunpack.c.l.b16 %v142
  %v147 = vpack.c.b16 %v146, %v145
  %148 = vrot.lane.b32.xlu0 %v33, 126
  %v149 = vpop.permute.xlu0 %148
  %v151 = vsel %vm36, %v147, 0
  %v154 = vand.u32 %v149, %v43
  %156 = vmatprep.subr.bf16.mxu0 0
  %157 = vmatpush1.bf16.msra.mxu0 %v154
  %158 = vmatprep.subr.bf16.mxu0 0
  %159 = vmatpush1.bf16.msra.mxu0 0
  %160 = vmatprep.subr.bf16.mxu0 0
  %161 = vmatpush1.bf16.msra.mxu0 0
  %162 = vmatprep.subr.bf16.mxu0 0
  %163 = vmatpush1.bf16.msra.mxu0 0
  %164 = vmatprep.subr.bf16.mxu0 0
  %165 = vmatpush1.bf16.msra.mxu0 0
  %166 = vmatprep.subr.bf16.mxu0 0
  %167 = vmatpush1.bf16.msra.mxu0 0
  %168 = vmatprep.subr.bf16.mxu0 0
  %169 = vmatpush1.bf16.msra.mxu0 0
  %170 = vmatprep.subr.bf16.mxu0 0
  %171 = vmatpush1.bf16.msra.mxu0 0
  %172 = vmatprep.subr.bf16.mxu0 0
  %173 = vmatpush1.bf16.msra.mxu0 0
  %174 = vmatprep.subr.bf16.mxu0 0
  %175 = vmatpush1.bf16.msra.mxu0 0
  %176 = vmatprep.subr.bf16.mxu0 0
  %177 = vmatpush1.bf16.msra.mxu0 0
  %178 = vmatprep.subr.bf16.mxu0 0
  %179 = vmatpush1.bf16.msra.mxu0 0
  %180 = vmatprep.subr.bf16.mxu0 0
  %181 = vmatpush1.bf16.msra.mxu0 0
  %182 = vmatprep.subr.bf16.mxu0 0
  %183 = vmatpush1.bf16.msra.mxu0 0
  %184 = vmatprep.subr.bf16.mxu0 0
  %185 = vmatpush1.bf16.msra.mxu0 0
  %186 = vmatprep.subr.bf16.mxu0 0
  %187 = vmatpush1.bf16.msra.mxu0 0
  %188 = vmatprep.mubr.bf16.mxu0 0
  %189 = vmatmul.mubr.bf16.gmra.mrb[0].mxu0 %v151
  %v190 = vpop.f32.mrb[0].mxu0
  %v191 = vadd.f32 0.0, %v190
  %v192 = vpop.f32.mrb[0].mxu0
  %v193 = vpop.f32.mrb[0].mxu0
  %v194 = vadd.f32 0.0, %v193
  %v195 = vpop.f32.mrb[0].mxu0
  %196 = vdwg.mxu0
  %v197 = vadd.f32 %v134, %v191
  %v198 = vadd.f32 %v137, %v194
  %s199 = scalar_lea.vmem %s2, 24
  %v200 = vld [vmem:[%s199] sm:$0xf]
  %v201 = vld [vmem:[%s199 + $0x4] sm:$0x7]
  %v204 = vunpack.c.l.b16 %v200
  %v205 = vunpack.c.l.b16 %v201
  %v206 = vpack.c.b16 %v205, %v204
  %207 = vrot.lane.b32.xlu0 %v33, 118
  %v208 = vpop.permute.xlu0 %207
  %v210 = vsel %vm36, %v206, 0
  %v213 = vand.u32 %v208, %v43
  %215 = vmatprep.subr.bf16.mxu0 0
  %216 = vmatpush1.bf16.msra.mxu0 %v213
  %217 = vmatprep.subr.bf16.mxu0 0
  %218 = vmatpush1.bf16.msra.mxu0 0
  %219 = vmatprep.subr.bf16.mxu0 0
  %220 = vmatpush1.bf16.msra.mxu0 0
  %221 = vmatprep.subr.bf16.mxu0 0
  %222 = vmatpush1.bf16.msra.mxu0 0
  %223 = vmatprep.subr.bf16.mxu0 0
  %224 = vmatpush1.bf16.msra.mxu0 0
  %225 = vmatprep.subr.bf16.mxu0 0
  %226 = vmatpush1.bf16.msra.mxu0 0
  %227 = vmatprep.subr.bf16.mxu0 0
  %228 = vmatpush1.bf16.msra.mxu0 0
  %229 = vmatprep.subr.bf16.mxu0 0
  %230 = vmatpush1.bf16.msra.mxu0 0
  %231 = vmatprep.subr.bf16.mxu0 0
  %232 = vmatpush1.bf16.msra.mxu0 0
  %233 = vmatprep.subr.bf16.mxu0 0
  %234 = vmatpush1.bf16.msra.mxu0 0
  %235 = vmatprep.subr.bf16.mxu0 0
  %236 = vmatpush1.bf16.msra.mxu0 0
  %237 = vmatprep.subr.bf16.mxu0 0
  %238 = vmatpush1.bf16.msra.mxu0 0
  %239 = vmatprep.subr.bf16.mxu0 0
  %240 = vmatpush1.bf16.msra.mxu0 0
  %241 = vmatprep.subr.bf16.mxu0 0
  %242 = vmatpush1.bf16.msra.mxu0 0
  %243 = vmatprep.subr.bf16.mxu0 0
  %244 = vmatpush1.bf16.msra.mxu0 0
  %245 = vmatprep.subr.bf16.mxu0 0
  %246 = vmatpush1.bf16.msra.mxu0 0
  %247 = vmatprep.mubr.bf16.mxu0 0
  %248 = vmatmul.mubr.bf16.gmra.mrb[0].mxu0 %v210
  %v249 = vpop.f32.mrb[0].mxu0
  %v250 = vadd.f32 0.0, %v249
  %v251 = vpop.f32.mrb[0].mxu0
  %v252 = vpop.f32.mrb[0].mxu0
  %v253 = vadd.f32 0.0, %v252
  %v254 = vpop.f32.mrb[0].mxu0
  %255 = vdwg.mxu0
  %v256 = vadd.f32 %v197, %v250
  %v257 = vadd.f32 %v198, %v253
  %s258 = scalar_lea.vmem %s2, 32
  %v259 = vld [vmem:[%s258] sm:$0xf]
  %v260 = vld [vmem:[%s258 + $0x4] sm:$0x7]
  %v263 = vunpack.c.l.b16 %v259
  %v264 = vunpack.c.l.b16 %v260
  %v265 = vpack.c.b16 %v264, %v263
  %266 = vrot.lane.b32.xlu0 %v33, 117
  %v267 = vpop.permute.xlu0 %266
  %v269 = vsel %vm36, %v265, 0
  %v272 = vand.u32 %v267, %v43
  %274 = vmatprep.subr.bf16.mxu0 0
  %275 = vmatpush1.bf16.msra.mxu0 %v272
  %276 = vmatprep.subr.bf16.mxu0 0
  %277 = vmatpush1.bf16.msra.mxu0 0
  %278 = vmatprep.subr.bf16.mxu0 0
  %279 = vmatpush1.bf16.msra.mxu0 0
  %280 = vmatprep.subr.bf16.mxu0 0
  %281 = vmatpush1.bf16.msra.mxu0 0
  %282 = vmatprep.subr.bf16.mxu0 0
  %283 = vmatpush1.bf16.msra.mxu0 0
  %284 = vmatprep.subr.bf16.mxu0 0
  %285 = vmatpush1.bf16.msra.mxu0 0
  %286 = vmatprep.subr.bf16.mxu0 0
  %287 = vmatpush1.bf16.msra.mxu0 0
  %288 = vmatprep.subr.bf16.mxu0 0
  %289 = vmatpush1.bf16.msra.mxu0 0
  %290 = vmatprep.subr.bf16.mxu0 0
  %291 = vmatpush1.bf16.msra.mxu0 0
  %292 = vmatprep.subr.bf16.mxu0 0
  %293 = vmatpush1.bf16.msra.mxu0 0
  %294 = vmatprep.subr.bf16.mxu0 0
  %295 = vmatpush1.bf16.msra.mxu0 0
  %296 = vmatprep.subr.bf16.mxu0 0
  %297 = vmatpush1.bf16.msra.mxu0 0
  %298 = vmatprep.subr.bf16.mxu0 0
  %299 = vmatpush1.bf16.msra.mxu0 0
  %300 = vmatprep.subr.bf16.mxu0 0
  %301 = vmatpush1.bf16.msra.mxu0 0
  %302 = vmatprep.subr.bf16.mxu0 0
  %303 = vmatpush1.bf16.msra.mxu0 0
  %304 = vmatprep.subr.bf16.mxu0 0
  %305 = vmatpush1.bf16.msra.mxu0 0
  %306 = vmatprep.mubr.bf16.mxu0 0
  %307 = vmatmul.mubr.bf16.gmra.mrb[0].mxu0 %v269
  %v308 = vpop.f32.mrb[0].mxu0
  %v309 = vadd.f32 0.0, %v308
  %v310 = vpop.f32.mrb[0].mxu0
  %v311 = vpop.f32.mrb[0].mxu0
  %v312 = vadd.f32 0.0, %v311
  %v313 = vpop.f32.mrb[0].mxu0
  %314 = vdwg.mxu0
  %v315 = vadd.f32 %v256, %v309
  %v316 = vadd.f32 %v257, %v312
  %s317 = scalar_lea.vmem %s2, 40
  %v318 = vld [vmem:[%s317] sm:$0xf]
  %v319 = vld [vmem:[%s317 + $0x4] sm:$0x7]
  %v322 = vunpack.c.l.b16 %v318
  %v323 = vunpack.c.l.b16 %v319
  %v324 = vpack.c.b16 %v323, %v322
  %325 = vrot.lane.b32.xlu0 %v33, 116
  %v326 = vpop.permute.xlu0 %325
  %v328 = vsel %vm36, %v324, 0
  %v331 = vand.u32 %v326, %v43
  %333 = vmatprep.subr.bf16.mxu0 0
  %334 = vmatpush1.bf16.msra.mxu0 %v331
  %335 = vmatprep.subr.bf16.mxu0 0
  %336 = vmatpush1.bf16.msra.mxu0 0
  %337 = vmatprep.subr.bf16.mxu0 0
  %338 = vmatpush1.bf16.msra.mxu0 0
  %339 = vmatprep.subr.bf16.mxu0 0
  %340 = vmatpush1.bf16.msra.mxu0 0
  %341 = vmatprep.subr.bf16.mxu0 0
  %342 = vmatpush1.bf16.msra.mxu0 0
  %343 = vmatprep.subr.bf16.mxu0 0
  %344 = vmatpush1.bf16.msra.mxu0 0
  %345 = vmatprep.subr.bf16.mxu0 0
  %346 = vmatpush1.bf16.msra.mxu0 0
  %347 = vmatprep.subr.bf16.mxu0 0
  %348 = vmatpush1.bf16.msra.mxu0 0
  %349 = vmatprep.subr.bf16.mxu0 0
  %350 = vmatpush1.bf16.msra.mxu0 0
  %351 = vmatprep.subr.bf16.mxu0 0
  %352 = vmatpush1.bf16.msra.mxu0 0
  %353 = vmatprep.subr.bf16.mxu0 0
  %354 = vmatpush1.bf16.msra.mxu0 0
  %355 = vmatprep.subr.bf16.mxu0 0
  %356 = vmatpush1.bf16.msra.mxu0 0
  %357 = vmatprep.subr.bf16.mxu0 0
  %358 = vmatpush1.bf16.msra.mxu0 0
  %359 = vmatprep.subr.bf16.mxu0 0
  %360 = vmatpush1.bf16.msra.mxu0 0
  %361 = vmatprep.subr.bf16.mxu0 0
  %362 = vmatpush1.bf16.msra.mxu0 0
  %363 = vmatprep.subr.bf16.mxu0 0
  %364 = vmatpush1.bf16.msra.mxu0 0
  %365 = vmatprep.mubr.bf16.mxu0 0
  %366 = vmatmul.mubr.bf16.gmra.mrb[0].mxu0 %v328
  %v367 = vpop.f32.mrb[0].mxu0
  %v368 = vadd.f32 0.0, %v367
  %v369 = vpop.f32.mrb[0].mxu0
  %v370 = vpop.f32.mrb[0].mxu0
  %v371 = vadd.f32 0.0, %v370
  %v372 = vpop.f32.mrb[0].mxu0
  %373 = vdwg.mxu0
  %v374 = vadd.f32 %v315, %v368
  %v375 = vadd.f32 %v316, %v371
  %s376 = scalar_lea.vmem %s2, 48
  %v377 = vld [vmem:[%s376] sm:$0xf]
  %v378 = vld [vmem:[%s376 + $0x4] sm:$0x7]
  %v381 = vunpack.c.l.b16 %v377
  %v382 = vunpack.c.l.b16 %v378
  %v383 = vpack.c.b16 %v382, %v381
  %384 = vrot.lane.b32.xlu0 %v33, 108
  %v385 = vpop.permute.xlu0 %384
  %v387 = vsel %vm36, %v383, 0
  %v390 = vand.u32 %v385, %v43
  %392 = vmatprep.subr.bf16.mxu0 0
  %393 = vmatpush1.bf16.msra.mxu0 %v390
  %394 = vmatprep.subr.bf16.mxu0 0
  %395 = vmatpush1.bf16.msra.mxu0 0
  %396 = vmatprep.subr.bf16.mxu0 0
  %397 = vmatpush1.bf16.msra.mxu0 0
  %398 = vmatprep.subr.bf16.mxu0 0
  %399 = vmatpush1.bf16.msra.mxu0 0
  %400 = vmatprep.subr.bf16.mxu0 0
  %401 = vmatpush1.bf16.msra.mxu0 0
  %402 = vmatprep.subr.bf16.mxu0 0
  %403 = vmatpush1.bf16.msra.mxu0 0
  %404 = vmatprep.subr.bf16.mxu0 0
  %405 = vmatpush1.bf16.msra.mxu0 0
  %406 = vmatprep.subr.bf16.mxu0 0
  %407 = vmatpush1.bf16.msra.mxu0 0
  %408 = vmatprep.subr.bf16.mxu0 0
  %409 = vmatpush1.bf16.msra.mxu0 0
  %410 = vmatprep.subr.bf16.mxu0 0
  %411 = vmatpush1.bf16.msra.mxu0 0
  %412 = vmatprep.subr.bf16.mxu0 0
  %413 = vmatpush1.bf16.msra.mxu0 0
  %414 = vmatprep.subr.bf16.mxu0 0
  %415 = vmatpush1.bf16.msra.mxu0 0
  %416 = vmatprep.subr.bf16.mxu0 0
  %417 = vmatpush1.bf16.msra.mxu0 0
  %418 = vmatprep.subr.bf16.mxu0 0
  %419 = vmatpush1.bf16.msra.mxu0 0
  %420 = vmatprep.subr.bf16.mxu0 0
  %421 = vmatpush1.bf16.msra.mxu0 0
  %422 = vmatprep.subr.bf16.mxu0 0
  %423 = vmatpush1.bf16.msra.mxu0 0
  %424 = vmatprep.mubr.bf16.mxu0 0
  %425 = vmatmul.mubr.bf16.gmra.mrb[0].mxu0 %v387
  %v426 = vpop.f32.mrb[0].mxu0
  %v427 = vadd.f32 0.0, %v426
  %v428 = vpop.f32.mrb[0].mxu0
  %v429 = vpop.f32.mrb[0].mxu0
  %v430 = vadd.f32 0.0, %v429
  %v431 = vpop.f32.mrb[0].mxu0
  %432 = vdwg.mxu0
  %v433 = vadd.f32 %v374, %v427
  %v434 = vadd.f32 %v375, %v430
  %s435 = scalar_lea.vmem %s2, 56
  %v436 = vld [vmem:[%s435] sm:$0xf]
  %v437 = vld [vmem:[%s435 + $0x4] sm:$0x7]
  %v440 = vunpack.c.l.b16 %v436
  %v441 = vunpack.c.l.b16 %v437
  %v442 = vpack.c.b16 %v441, %v440
  %443 = vrot.lane.b32.xlu0 %v33, 107
  %v444 = vpop.permute.xlu0 %443
  %v446 = vsel %vm36, %v442, 0
  %v449 = vand.u32 %v444, %v43
  %451 = vmatprep.subr.bf16.mxu0 0
  %452 = vmatpush1.bf16.msra.mxu0 %v449
  %453 = vmatprep.subr.bf16.mxu0 0
  %454 = vmatpush1.bf16.msra.mxu0 0
  %455 = vmatprep.subr.bf16.mxu0 0
  %456 = vmatpush1.bf16.msra.mxu0 0
  %457 = vmatprep.subr.bf16.mxu0 0
  %458 = vmatpush1.bf16.msra.mxu0 0
  %459 = vmatprep.subr.bf16.mxu0 0
  %460 = vmatpush1.bf16.msra.mxu0 0
  %461 = vmatprep.subr.bf16.mxu0 0
  %462 = vmatpush1.bf16.msra.mxu0 0
  %463 = vmatprep.subr.bf16.mxu0 0
  %464 = vmatpush1.bf16.msra.mxu0 0
  %465 = vmatprep.subr.bf16.mxu0 0
  %466 = vmatpush1.bf16.msra.mxu0 0
  %467 = vmatprep.subr.bf16.mxu0 0
  %468 = vmatpush1.bf16.msra.mxu0 0
  %469 = vmatprep.subr.bf16.mxu0 0
  %470 = vmatpush1.bf16.msra.mxu0 0
  %471 = vmatprep.subr.bf16.mxu0 0
  %472 = vmatpush1.bf16.msra.mxu0 0
  %473 = vmatprep.subr.bf16.mxu0 0
  %474 = vmatpush1.bf16.msra.mxu0 0
  %475 = vmatprep.subr.bf16.mxu0 0
  %476 = vmatpush1.bf16.msra.mxu0 0
  %477 = vmatprep.subr.bf16.mxu0 0
  %478 = vmatpush1.bf16.msra.mxu0 0
  %479 = vmatprep.subr.bf16.mxu0 0
  %480 = vmatpush1.bf16.msra.mxu0 0
  %481 = vmatprep.subr.bf16.mxu0 0
  %482 = vmatpush1.bf16.msra.mxu0 0
  %483 = vmatprep.mubr.bf16.mxu0 0
  %484 = vmatmul.mubr.bf16.gmra.mrb[0].mxu0 %v446
  %v485 = vpop.f32.mrb[0].mxu0
  %v486 = vadd.f32 0.0, %v485
  %v487 = vpop.f32.mrb[0].mxu0
  %v488 = vpop.f32.mrb[0].mxu0
  %v489 = vadd.f32 0.0, %v488
  %v490 = vpop.f32.mrb[0].mxu0
  %491 = vdwg.mxu0
  %v492 = vadd.f32 %v433, %v486
  %v493 = vadd.f32 %v434, %v489
  %s494 = scalar_lea.vmem %s2, 64
  %v495 = vld [vmem:[%s494] sm:$0xf]
  %v496 = vld [vmem:[%s494 + $0x4] sm:$0x7]
  %v499 = vunpack.c.l.b16 %v495
  %v500 = vunpack.c.l.b16 %v496
  %v501 = vpack.c.b16 %v500, %v499
  %502 = vrot.lane.b32.xlu0 %v33, 106
  %v503 = vpop.permute.xlu0 %502
  %v505 = vsel %vm36, %v501, 0
  %v508 = vand.u32 %v503, %v43
  %510 = vmatprep.subr.bf16.mxu0 0
  %511 = vmatpush1.bf16.msra.mxu0 %v508
  %512 = vmatprep.subr.bf16.mxu0 0
  %513 = vmatpush1.bf16.msra.mxu0 0
  %514 = vmatprep.subr.bf16.mxu0 0
  %515 = vmatpush1.bf16.msra.mxu0 0
  %516 = vmatprep.subr.bf16.mxu0 0
  %517 = vmatpush1.bf16.msra.mxu0 0
  %518 = vmatprep.subr.bf16.mxu0 0
  %519 = vmatpush1.bf16.msra.mxu0 0
  %520 = vmatprep.subr.bf16.mxu0 0
  %521 = vmatpush1.bf16.msra.mxu0 0
  %522 = vmatprep.subr.bf16.mxu0 0
  %523 = vmatpush1.bf16.msra.mxu0 0
  %524 = vmatprep.subr.bf16.mxu0 0
  %525 = vmatpush1.bf16.msra.mxu0 0
  %526 = vmatprep.subr.bf16.mxu0 0
  %527 = vmatpush1.bf16.msra.mxu0 0
  %528 = vmatprep.subr.bf16.mxu0 0
  %529 = vmatpush1.bf16.msra.mxu0 0
  %530 = vmatprep.subr.bf16.mxu0 0
  %531 = vmatpush1.bf16.msra.mxu0 0
  %532 = vmatprep.subr.bf16.mxu0 0
  %533 = vmatpush1.bf16.msra.mxu0 0
  %534 = vmatprep.subr.bf16.mxu0 0
  %535 = vmatpush1.bf16.msra.mxu0 0
  %536 = vmatprep.subr.bf16.mxu0 0
  %537 = vmatpush1.bf16.msra.mxu0 0
  %538 = vmatprep.subr.bf16.mxu0 0
  %539 = vmatpush1.bf16.msra.mxu0 0
  %540 = vmatprep.subr.bf16.mxu0 0
  %541 = vmatpush1.bf16.msra.mxu0 0
  %542 = vmatprep.mubr.bf16.mxu0 0
  %543 = vmatmul.mubr.bf16.gmra.mrb[0].mxu0 %v505
  %v544 = vpop.f32.mrb[0].mxu0
  %v545 = vadd.f32 0.0, %v544
  %v546 = vpop.f32.mrb[0].mxu0
  %v547 = vpop.f32.mrb[0].mxu0
  %v548 = vadd.f32 0.0, %v547
  %v549 = vpop.f32.mrb[0].mxu0
  %550 = vdwg.mxu0
  %v551 = vadd.f32 %v492, %v545
  %v552 = vadd.f32 %v493, %v548
  %v553 = vld [vmem:[%s3] sm:$0xff]
  %v554 = vld [vmem:[%s3 + $0x8] sm:$0x3f]
  %556 = vset.pattern.permute.xlu0 0
  %557 = vperm.xlu0 %556, %v553
  %v558 = vpop.permute.xlu0 %557
  %561 = vset.pattern.permute.xlu0 0
  %562 = vperm.xlu0 %561, %v554
  %v563 = vpop.permute.xlu0 %562
  %v565 = vadd.f32 %v551, %v558
  %v566 = vadd.f32 %v552, %v563
  %vm567 = vcmp.gt.f32.partialorder %v565, 0.0
  %vm568 = vcmp.gt.f32.partialorder %v566, 0.0
  %v569 = vmin.f32 %v565, 0.0
  %v570 = vmin.f32 %v566, 0.0
  %v571 = vmul.f32 %v569, 1.442695
  %v572 = vpow.pop %v571
  %v573 = vmul.f32 %v570, 1.442695
  %v574 = vpow.pop %v573
  %v575 = vsub.f32 %v572, 1.0
  %v576 = vsub.f32 %v574, 1.0
  %v577 = vsel %vm567, %v565, %v575
  %v578 = vsel %vm568, %v566, %v576
  %v579 = vsel %vm19, 1, 0
  %v580 = vlaneseq
  %v581 = vshrl.u32 %v580, 7
  %v582 = vsub.s32 0, %v581
  %v583 = vrot.slane %v579, %v582
  %vm584 = vcmp.eq.s32.totalorder %v583, 1
  %v585 = vsel %vm584, %v577, 0.0
  %v586 = vsel %vm584, %v578, 0.0
  %v587 = vpack.c.bf16 %v586, %v585
  %v589 = vunpack.c.l.b16 %v587
  %v590 = vunpack.c.h.b16 %v587
  %v591 = vpack.c.b16 %v589, %v589
  %v592 = vpack.c.b16 %v590, %v590
  %vm595 = vcmask 814080
  %596 = vst.msk [vmem:[%s4] sm:$0xf] %vm595, %v591
  %vm597 = vcmask 813056
  %598 = vst.msk [vmem:[%s4 + $0x4] sm:$0x7] %vm597, %v592
  // Predicated region
  $region18: #{convnet_forward.6} parent=0 // pred_check
    _
  $region19: #{convnet_forward.6} parent=0 // pred_check_branch
    %600 = sbr.rel (0) target = $region21
  $region20: #{convnet_forward.6} parent=0 // pred_region
    _
  $region21: #{convnet_forward.6} parent=0 // pred_fallthru
    _
  // Predicated region
  $region22: #{convnet_forward.6} parent=0 // pred_check
    _
  $region23: #{convnet_forward.6} parent=0 // pred_check_branch
    %602 = sbr.rel (0) target = $region25
  $region24: #{convnet_forward.6} parent=0 // pred_region
    _
  $region25: #{convnet_forward.6} parent=0 // pred_fallthru
    _

// kernel: convnet_forward.5
$region0: #{convnet_forward.5}
  #allocation0 [shape = 'u32[]', space=smem, size = 0x4, offset = 0x4, fixed_abs, tag = 'smem constant byte address 0x4 - core index']
  #allocation1 [shape = 'u32[144,128]{1,0:T(1,128)}', space=vmem, size = 0x12000, scoped, tag = 'internal scratch']
  %s0 = inlined_call_operand.vmem [shape: bf16[5,362], index: 0, kind: input, shape index: {}]
  %s1 = inlined_call_operand.vmem [shape: f32[1,324], index: 1, kind: input, shape index: {}]
  %s2 = inlined_call_operand.vmem [shape: bf16[9,7,5], index: 2, kind: input, shape index: {}]
  %s3 = inlined_call_operand.vmem [shape: f32[7,1], index: 3, kind: input, shape index: {}]
  %s4 = inlined_call_operand.vmem [shape: bf16[9,7,7], index: 4, kind: input, shape index: {}]
  %s5 = inlined_call_operand.vmem [shape: f32[7,1], index: 5, kind: input, shape index: {}]
  %s6 = inlined_call_operand.vmem [shape: bf16[7,5], index: 6, kind: input, shape index: {}]
  %s7 = inlined_call_operand.vmem [shape: f32[7,1], index: 7, kind: input, shape index: {}]
  %s8 = inlined_call_operand.vmem [shape: bf16[9,7,7], index: 8, kind: input, shape index: {}]
  %s9 = inlined_call_operand.vmem [shape: f32[7,1], index: 9, kind: input, shape index: {}]
  %s10 = inlined_call_operand.vmem [shape: bf16[7,324], index: 10, kind: output, shape index: {}]
  %s11 = sld [smem:[#allocation0]]
  $region50: #{convnet_forward.5} parent=0
    _
  %s13 = ssub.s32 1, %s11
  %s14 = scalar_select 0, %s13, %s11
  // Predicated region
  $region2: #{convnet_forward.5} parent=0 // pred_check
    _
  $region3: #{convnet_forward.5} parent=0 // pred_check_branch
    %16 = sbr.rel (0) target = $region5
  $region4: #{convnet_forward.5} parent=0 // pred_region
    _
  $region5: #{convnet_forward.5} parent=0 // pred_fallthru
    _
  // Predicated region
  $region6: #{convnet_forward.5} parent=0 // pred_check
    _
  $region7: #{convnet_forward.5} parent=0 // pred_check_branch
    %18 = sbr.rel (0) target = $region9
  $region8: #{convnet_forward.5} parent=0 // pred_region
    _
  $region9: #{convnet_forward.5} parent=0 // pred_fallthru
    _
  // Predicated region
  $region10: #{convnet_forward.5} parent=0 // pred_check
    _
  $region11: #{convnet_forward.5} parent=0 // pred_check_branch
    %20 = sbr.rel (0) target = $region13
  $region12: #{convnet_forward.5} parent=0 // pred_region
    _
  $region13: #{convnet_forward.5} parent=0 // pred_fallthru
    _
  // Predicated region
  $region14: #{convnet_forward.5} parent=0 // pred_check
    _
  $region15: #{convnet_forward.5} parent=0 // pred_check_branch
    %22 = sbr.rel (0) target = $region17
  $region16: #{convnet_forward.5} parent=0 // pred_region
    _
  $region17: #{convnet_forward.5} parent=0 // pred_fallthru
    _
  // Predicated region
  $region18: #{convnet_forward.5} parent=0 // pred_check
    _
  $region19: #{convnet_forward.5} parent=0 // pred_check_branch
    %24 = sbr.rel (0) target = $region21
  $region20: #{convnet_forward.5} parent=0 // pred_region
    _
  $region21: #{convnet_forward.5} parent=0 // pred_fallthru
    _
  // Predicated region
  $region22: #{convnet_forward.5} parent=0 // pred_check
    _
  $region23: #{convnet_forward.5} parent=0 // pred_check_branch
    %26 = sbr.rel (0) target = $region25
  $region24: #{convnet_forward.5} parent=0 // pred_region
    _
  $region25: #{convnet_forward.5} parent=0 // pred_fallthru
    _
  // Predicated region
  $region26: #{convnet_forward.5} parent=0 // pred_check
    _
  $region27: #{convnet_forward.5} parent=0 // pred_check_branch
    %28 = sbr.rel (0) target = $region29
  $region28: #{convnet_forward.5} parent=0 // pred_region
    _
  $region29: #{convnet_forward.5} parent=0 // pred_fallthru
    _
  // Predicated region
  $region30: #{convnet_forward.5} parent=0 // pred_check
    _
  $region31: #{convnet_forward.5} parent=0 // pred_check_branch
    %30 = sbr.rel (0) target = $region33
  $region32: #{convnet_forward.5} parent=0 // pred_region
    _
  $region33: #{convnet_forward.5} parent=0 // pred_fallthru
    _
  // Predicated region
  $region34: #{convnet_forward.5} parent=0 // pred_check
    _
  $region35: #{convnet_forward.5} parent=0 // pred_check_branch
    %32 = sbr.rel (0) target = $region37
  $region36: #{convnet_forward.5} parent=0 // pred_region
    _
  $region37: #{convnet_forward.5} parent=0 // pred_fallthru
    _
  // Predicated region
  $region38: #{convnet_forward.5} parent=0 // pred_check
    _
  $region39: #{convnet_forward.5} parent=0 // pred_check_branch
    %34 = sbr.rel (0) target = $region41
  $region40: #{convnet_forward.5} parent=0 // pred_region
    _
  $region41: #{convnet_forward.5} parent=0 // pred_fallthru
    _
  %v36 = vld [vmem:[%s1] sm:$0x7]
  %vm37 = vcmp.gt.f32.partialorder %v36, 0.5
  %v38 = vld [vmem:[%s0] sm:$0x77]
  %v39 = vld [vmem:[%s0 + $0x8] sm:$0x7]
  %v40 = vld [vmem:[%s2] sm:$0xf]
  %s41 = scalar_lea.vmem %s2, 4
  %v42 = vld [vmem:[%s41] sm:$0xf]
  %v45 = vunpack.c.l.b16 %v38
  %v46 = vunpack.c.h.b16 %v38
  %v47 = vunpack.c.l.b16 %v39
  %v48 = vpack.c.b16 %v45, %v45
  %v49 = vpack.c.b16 %v46, %v46
  %v50 = vpack.c.b16 %v47, %v47
  %51 = vrot.lane.b32.xlu0 %v48, 127
  %v52 = vpop.permute.xlu0 %51
  %53 = vrot.lane.b32.xlu0 %v49, 127
  %v54 = vpop.permute.xlu0 %53
  %55 = vrot.lane.b32.xlu0 %v50, 127
  %v56 = vpop.permute.xlu0 %55
  %vm57 = vcmask 1039360
  %v58 = vsel %vm57, %v52, %v54
  %v59 = vsel %vm57, %v54, %v56
  %vm60 = vcmask 39936
  %v62 = vsel %vm60, %v42, 0
  %vm64 = vcmask 1041408
  %vm65 = vcmask 1042432
  %v66 = vsel %vm64, 4294967295, 65535
  %v67 = vsel %vm65, %v66, 0
  %v69 = vand.u32 %v58, %v67
  %v72 = vand.u32 %v59, %v67
  %v75 = vand.u32 %v56, %v67
  %77 = vmatprep.subr.bf16.mxu0 %v72
  %78 = vmatpush1.bf16.msra.mxu0 %v69
  %79 = vmatprep.subr.bf16.mxu0 0
  %80 = vmatpush1.bf16.msra.mxu0 0
  %81 = vmatprep.subr.bf16.mxu0 0
  %82 = vmatpush1.bf16.msra.mxu0 0
  %83 = vmatprep.subr.bf16.mxu0 0
  %84 = vmatpush1.bf16.msra.mxu0 0
  %85 = vmatprep.subr.bf16.mxu0 0
  %86 = vmatpush1.bf16.msra.mxu0 0
  %87 = vmatprep.subr.bf16.mxu0 0
  %88 = vmatpush1.bf16.msra.mxu0 0
  %89 = vmatprep.subr.bf16.mxu0 0
  %90 = vmatpush1.bf16.msra.mxu0 0
  %91 = vmatprep.subr.bf16.mxu0 0
  %92 = vmatpush1.bf16.msra.mxu0 0
  %93 = vmatprep.subr.bf16.mxu0 0
  %94 = vmatpush1.bf16.msra.mxu0 0
  %95 = vmatprep.subr.bf16.mxu0 0
  %96 = vmatpush1.bf16.msra.mxu0 0
  %97 = vmatprep.subr.bf16.mxu0 0
  %98 = vmatpush1.bf16.msra.mxu0 0
  %99 = vmatprep.subr.bf16.mxu0 0
  %100 = vmatpush1.bf16.msra.mxu0 0
  %101 = vmatprep.subr.bf16.mxu0 0
  %102 = vmatpush1.bf16.msra.mxu0 0
  %103 = vmatprep.subr.bf16.mxu0 0
  %104 = vmatpush1.bf16.msra.mxu0 0
  %105 = vmatprep.subr.bf16.mxu0 0
  %106 = vmatpush1.bf16.msra.mxu0 0
  %107 = vmatprep.subr.bf16.mxu0 0
  %108 = vmatpush1.bf16.msra.mxu0 0
  %109 = vmatprep.mubr.bf16.mxu0 0
  %110 = vmatmul.mubr.bf16.gmra.mrb[0].mxu0 %v62
  %v111 = vpop.f32.mrb[0].mxu0
  %v112 = vadd.f32 0.0, %v111
  %v113 = vpop.f32.mrb[0].mxu0
  %v114 = vadd.f32 0.0, %v113
  %v115 = vpop.f32.mrb[0].mxu0
  %v116 = vpop.f32.mrb[0].mxu0
  %117 = vdwg.mxu0
  %118 = vmatprep.subr.bf16.mxu0 0
  %119 = vmatpush1.bf16.msra.mxu0 %v75
  %120 = vmatprep.subr.bf16.mxu0 0
  %121 = vmatpush1.bf16.msra.mxu0 0
  %122 = vmatprep.subr.bf16.mxu0 0
  %123 = vmatpush1.bf16.msra.mxu0 0
  %124 = vmatprep.subr.bf16.mxu0 0
  %125 = vmatpush1.bf16.msra.mxu0 0
  %126 = vmatprep.subr.bf16.mxu0 0
  %127 = vmatpush1.bf16.msra.mxu0 0
  %128 = vmatprep.subr.bf16.mxu0 0
  %129 = vmatpush1.bf16.msra.mxu0 0
  %130 = vmatprep.subr.bf16.mxu0 0
  %131 = vmatpush1.bf16.msra.mxu0 0
  %132 = vmatprep.subr.bf16.mxu0 0
  %133 = vmatpush1.bf16.msra.mxu0 0
  %134 = vmatprep.subr.bf16.mxu0 0
  %135 = vmatpush1.bf16.msra.mxu0 0
  %136 = vmatprep.subr.bf16.mxu0 0
  %137 = vmatpush1.bf16.msra.mxu0 0
  %138 = vmatprep.subr.bf16.mxu0 0
  %139 = vmatpush1.bf16.msra.mxu0 0
  %140 = vmatprep.subr.bf16.mxu0 0
  %141 = vmatpush1.bf16.msra.mxu0 0
  %142 = vmatprep.subr.bf16.mxu0 0
  %143 = vmatpush1.bf16.msra.mxu0 0
  %144 = vmatprep.subr.bf16.mxu0 0
  %145 = vmatpush1.bf16.msra.mxu0 0
  %146 = vmatprep.subr.bf16.mxu0 0
  %147 = vmatpush1.bf16.msra.mxu0 0
  %148 = vmatprep.subr.bf16.mxu0 0
  %149 = vmatpush1.bf16.msra.mxu0 0
  %150 = vmatprep.mubr.bf16.mxu0 0
  %151 = vmatmul.mubr.bf16.gmra.mrb[0].mxu0 %v62
  %v152 = vpop.f32.mrb[0].mxu0
  %v153 = vadd.f32 0.0, %v152
  %v154 = vpop.f32.mrb[0].mxu0
  %v155 = vpop.f32.mrb[0].mxu0
  %v156 = vpop.f32.mrb[0].mxu0
  %157 = vdwg.mxu0
  %v159 = vsel %vm60, %v40, 0
  %v162 = vand.u32 %v48, %v67
  %v165 = vand.u32 %v49, %v67
  %v168 = vand.u32 %v50, %v67
  %170 = vmatprep.subr.bf16.mxu0 %v165
  %171 = vmatpush1.bf16.msra.mxu0 %v162
  %172 = vmatprep.subr.bf16.mxu0 0
  %173 = vmatpush1.bf16.msra.mxu0 0
  %174 = vmatprep.subr.bf16.mxu0 0
  %175 = vmatpush1.bf16.msra.mxu0 0
  %176 = vmatprep.subr.bf16.mxu0 0
  %177 = vmatpush1.bf16.msra.mxu0 0
  %178 = vmatprep.subr.bf16.mxu0 0
  %179 = vmatpush1.bf16.msra.mxu0 0
  %180 = vmatprep.subr.bf16.mxu0 0
  %181 = vmatpush1.bf16.msra.mxu0 0
  %182 = vmatprep.subr.bf16.mxu0 0
  %183 = vmatpush1.bf16.msra.mxu0 0
  %184 = vmatprep.subr.bf16.mxu0 0
  %185 = vmatpush1.bf16.msra.mxu0 0
  %186 = vmatprep.subr.bf16.mxu0 0
  %187 = vmatpush1.bf16.msra.mxu0 0
  %188 = vmatprep.subr.bf16.mxu0 0
  %189 = vmatpush1.bf16.msra.mxu0 0
  %190 = vmatprep.subr.bf16.mxu0 0
  %191 = vmatpush1.bf16.msra.mxu0 0
  %192 = vmatprep.subr.bf16.mxu0 0
  %193 = vmatpush1.bf16.msra.mxu0 0
  %194 = vmatprep.subr.bf16.mxu0 0
  %195 = vmatpush1.bf16.msra.mxu0 0
  %196 = vmatprep.subr.bf16.mxu0 0
  %197 = vmatpush1.bf16.msra.mxu0 0
  %198 = vmatprep.subr.bf16.mxu0 0
  %199 = vmatpush1.bf16.msra.mxu0 0
  %200 = vmatprep.subr.bf16.mxu0 0
  %201 = vmatpush1.bf16.msra.mxu0 0
  %202 = vmatprep.mubr.bf16.mxu0 0
  %203 = vmatmul.mubr.bf16.gmra.mrb[0].mxu0 %v159
  %v204 = vpop.f32.mrb[0].mxu0
  %v205 = vadd.f32 %v112, %v204
  %v206 = vpop.f32.mrb[0].mxu0
  %v207 = vadd.f32 %v114, %v206
  %v208 = vpop.f32.mrb[0].mxu0
  %v209 = vpop.f32.mrb[0].mxu0
  %210 = vdwg.mxu0
  %211 = vmatprep.subr.bf16.mxu0 0
  %212 = vmatpush1.bf16.msra.mxu0 %v168
  %213 = vmatprep.subr.bf16.mxu0 0
  %214 = vmatpush1.bf16.msra.mxu0 0
  %215 = vmatprep.subr.bf16.mxu0 0
  %216 = vmatpush1.bf16.msra.mxu0 0
  %217 = vmatprep.subr.bf16.mxu0 0
  %218 = vmatpush1.bf16.msra.mxu0 0
  %219 = vmatprep.subr.bf16.mxu0 0
  %220 = vmatpush1.bf16.msra.mxu0 0
  %221 = vmatprep.subr.bf16.mxu0 0
  %222 = vmatpush1.bf16.msra.mxu0 0
  %223 = vmatprep.subr.bf16.mxu0 0
  %224 = vmatpush1.bf16.msra.mxu0 0
  %225 = vmatprep.subr.bf16.mxu0 0
  %226 = vmatpush1.bf16.msra.mxu0 0
  %227 = vmatprep.subr.bf16.mxu0 0
  %228 = vmatpush1.bf16.msra.mxu0 0
  %229 = vmatprep.subr.bf16.mxu0 0
  %230 = vmatpush1.bf16.msra.mxu0 0
  %231 = vmatprep.subr.bf16.mxu0 0
  %232 = vmatpush1.bf16.msra.mxu0 0
  %233 = vmatprep.subr.bf16.mxu0 0
  %234 = vmatpush1.bf16.msra.mxu0 0
  %235 = vmatprep.subr.bf16.mxu0 0
  %236 = vmatpush1.bf16.msra.mxu0 0
  %237 = vmatprep.subr.bf16.mxu0 0
  %238 = vmatpush1.bf16.msra.mxu0 0
  %239 = vmatprep.subr.bf16.mxu0 0
  %240 = vmatpush1.bf16.msra.mxu0 0
  %241 = vmatprep.subr.bf16.mxu0 0
  %242 = vmatpush1.bf16.msra.mxu0 0
  %243 = vmatprep.mubr.bf16.mxu0 0
  %244 = vmatmul.mubr.bf16.gmra.mrb[0].mxu0 %v159
  %v245 = vpop.f32.mrb[0].mxu0
  %v246 = vadd.f32 %v153, %v245
  %v247 = vpop.f32.mrb[0].mxu0
  %v248 = vpop.f32.mrb[0].mxu0
  %v249 = vpop.f32.mrb[0].mxu0
  %250 = vdwg.mxu0
  %s251 = scalar_lea.vmem %s2, 8
  %v252 = vld [vmem:[%s251] sm:$0xf]
  %253 = vrot.lane.b32.xlu0 %v48, 126
  %v254 = vpop.permute.xlu0 %253
  %255 = vrot.lane.b32.xlu0 %v49, 126
  %v256 = vpop.permute.xlu0 %255
  %257 = vrot.lane.b32.xlu0 %v50, 126
  %v258 = vpop.permute.xlu0 %257
  %vm259 = vcmask 1031168
  %v260 = vsel %vm259, %v254, %v256
  %v261 = vsel %vm259, %v256, %v258
  %v263 = vsel %vm60, %v252, 0
  %v266 = vand.u32 %v260, %v67
  %v269 = vand.u32 %v261, %v67
  %v272 = vand.u32 %v258, %v67
  %274 = vmatprep.subr.bf16.mxu0 %v269
  %275 = vmatpush1.bf16.msra.mxu0 %v266
  %276 = vmatprep.subr.bf16.mxu0 0
  %277 = vmatpush1.bf16.msra.mxu0 0
  %278 = vmatprep.subr.bf16.mxu0 0
  %279 = vmatpush1.bf16.msra.mxu0 0
  %280 = vmatprep.subr.bf16.mxu0 0
  %281 = vmatpush1.bf16.msra.mxu0 0
  %282 = vmatprep.subr.bf16.mxu0 0
  %283 = vmatpush1.bf16.msra.mxu0 0
  %284 = vmatprep.subr.bf16.mxu0 0
  %285 = vmatpush1.bf16.msra.mxu0 0
  %286 = vmatprep.subr.bf16.mxu0 0
  %287 = vmatpush1.bf16.msra.mxu0 0
  %288 = vmatprep.subr.bf16.mxu0 0
  %289 = vmatpush1.bf16.msra.mxu0 0
  %290 = vmatprep.subr.bf16.mxu0 0
  %291 = vmatpush1.bf16.msra.mxu0 0
  %292 = vmatprep.subr.bf16.mxu0 0
  %293 = vmatpush1.bf16.msra.mxu0 0
  %294 = vmatprep.subr.bf16.mxu0 0
  %295 = vmatpush1.bf16.msra.mxu0 0
  %296 = vmatprep.subr.bf16.mxu0 0
  %297 = vmatpush1.bf16.msra.mxu0 0
  %298 = vmatprep.subr.bf16.mxu0 0
  %299 = vmatpush1.bf16.msra.mxu0 0
  %300 = vmatprep.subr.bf16.mxu0 0
  %301 = vmatpush1.bf16.msra.mxu0 0
  %302 = vmatprep.subr.bf16.mxu0 0
  %303 = vmatpush1.bf16.msra.mxu0 0
  %304 = vmatprep.subr.bf16.mxu0 0
  %305 = vmatpush1.bf16.msra.mxu0 0
  %306 = vmatprep.mubr.bf16.mxu0 0
  %307 = vmatmul.mubr.bf16.gmra.mrb[0].mxu0 %v263
  %v308 = vpop.f32.mrb[0].mxu0
  %v309 = vadd.f32 0.0, %v308
  %v310 = vpop.f32.mrb[0].mxu0
  %v311 = vadd.f32 0.0, %v310
  %v312 = vpop.f32.mrb[0].mxu0
  %v313 = vpop.f32.mrb[0].mxu0
  %314 = vdwg.mxu0
  %315 = vmatprep.subr.bf16.mxu0 0
  %316 = vmatpush1.bf16.msra.mxu0 %v272
  %317 = vmatprep.subr.bf16.mxu0 0
  %318 = vmatpush1.bf16.msra.mxu0 0
  %319 = vmatprep.subr.bf16.mxu0 0
  %320 = vmatpush1.bf16.msra.mxu0 0
  %321 = vmatprep.subr.bf16.mxu0 0
  %322 = vmatpush1.bf16.msra.mxu0 0
  %323 = vmatprep.subr.bf16.mxu0 0
  %324 = vmatpush1.bf16.msra.mxu0 0
  %325 = vmatprep.subr.bf16.mxu0 0
  %326 = vmatpush1.bf16.msra.mxu0 0
  %327 = vmatprep.subr.bf16.mxu0 0
  %328 = vmatpush1.bf16.msra.mxu0 0
  %329 = vmatprep.subr.bf16.mxu0 0
  %330 = vmatpush1.bf16.msra.mxu0 0
  %331 = vmatprep.subr.bf16.mxu0 0
  %332 = vmatpush1.bf16.msra.mxu0 0
  %333 = vmatprep.subr.bf16.mxu0 0
  %334 = vmatpush1.bf16.msra.mxu0 0
  %335 = vmatprep.subr.bf16.mxu0 0
  %336 = vmatpush1.bf16.msra.mxu0 0
  %337 = vmatprep.subr.bf16.mxu0 0
  %338 = vmatpush1.bf16.msra.mxu0 0
  %339 = vmatprep.subr.bf16.mxu0 0
  %340 = vmatpush1.bf16.msra.mxu0 0
  %341 = vmatprep.subr.bf16.mxu0 0
  %342 = vmatpush1.bf16.msra.mxu0 0
  %343 = vmatprep.subr.bf16.mxu0 0
  %344 = vmatpush1.bf16.msra.mxu0 0
  %345 = vmatprep.subr.bf16.mxu0 0
  %346 = vmatpush1.bf16.msra.mxu0 0
  %347 = vmatprep.mubr.bf16.mxu0 0
  %348 = vmatmul.mubr.bf16.gmra.mrb[0].mxu0 %v263
  %v349 = vpop.f32.mrb[0].mxu0
  %v350 = vadd.f32 0.0, %v349
  %v351 = vpop.f32.mrb[0].mxu0
  %v352 = vpop.f32.mrb[0].mxu0
  %v353 = vpop.f32.mrb[0].mxu0
  %354 = vdwg.mxu0
  %v355 = vadd.f32 %v205, %v309
  %v356 = vadd.f32 %v207, %v311
  %v357 = vadd.f32 %v246, %v350
  %s358 = scalar_lea.vmem %s2, 12
  %v359 = vld [vmem:[%s358] sm:$0xf]
  %360 = vrot.lane.b32.xlu0 %v48, 110
  %v361 = vpop.permute.xlu0 %360
  %362 = vrot.lane.b32.xlu0 %v49, 110
  %v363 = vpop.permute.xlu0 %362
  %364 = vrot.lane.b32.xlu0 %v50, 110
  %v365 = vpop.permute.xlu0 %364
  %vm366 = vcmask 900096
  %v367 = vsel %vm366, %v361, %v363
  %v368 = vsel %vm366, %v363, %v365
  %v370 = vsel %vm60, %v359, 0
  %v373 = vand.u32 %v367, %v67
  %v376 = vand.u32 %v368, %v67
  %v379 = vand.u32 %v365, %v67
  %381 = vmatprep.subr.bf16.mxu0 %v376
  %382 = vmatpush1.bf16.msra.mxu0 %v373
  %383 = vmatprep.subr.bf16.mxu0 0
  %384 = vmatpush1.bf16.msra.mxu0 0
  %385 = vmatprep.subr.bf16.mxu0 0
  %386 = vmatpush1.bf16.msra.mxu0 0
  %387 = vmatprep.subr.bf16.mxu0 0
  %388 = vmatpush1.bf16.msra.mxu0 0
  %389 = vmatprep.subr.bf16.mxu0 0
  %390 = vmatpush1.bf16.msra.mxu0 0
  %391 = vmatprep.subr.bf16.mxu0 0
  %392 = vmatpush1.bf16.msra.mxu0 0
  %393 = vmatprep.subr.bf16.mxu0 0
  %394 = vmatpush1.bf16.msra.mxu0 0
  %395 = vmatprep.subr.bf16.mxu0 0
  %396 = vmatpush1.bf16.msra.mxu0 0
  %397 = vmatprep.subr.bf16.mxu0 0
  %398 = vmatpush1.bf16.msra.mxu0 0
  %399 = vmatprep.subr.bf16.mxu0 0
  %400 = vmatpush1.bf16.msra.mxu0 0
  %401 = vmatprep.subr.bf16.mxu0 0
  %402 = vmatpush1.bf16.msra.mxu0 0
  %403 = vmatprep.subr.bf16.mxu0 0
  %404 = vmatpush1.bf16.msra.mxu0 0
  %405 = vmatprep.subr.bf16.mxu0 0
  %406 = vmatpush1.bf16.msra.mxu0 0
  %407 = vmatprep.subr.bf16.mxu0 0
  %408 = vmatpush1.bf16.msra.mxu0 0
  %409 = vmatprep.subr.bf16.mxu0 0
  %410 = vmatpush1.bf16.msra.mxu0 0
  %411 = vmatprep.subr.bf16.mxu0 0
  %412 = vmatpush1.bf16.msra.mxu0 0
  %413 = vmatprep.mubr.bf16.mxu0 0
  %414 = vmatmul.mubr.bf16.gmra.mrb[0].mxu0 %v370
  %v415 = vpop.f32.mrb[0].mxu0
  %v416 = vadd.f32 0.0, %v415
  %v417 = vpop.f32.mrb[0].mxu0
  %v418 = vadd.f32 0.0, %v417
  %v419 = vpop.f32.mrb[0].mxu0
  %v420 = vpop.f32.mrb[0].mxu0
  %421 = vdwg.mxu0
  %422 = vmatprep.subr.bf16.mxu0 0
  %423 = vmatpush1.bf16.msra.mxu0 %v379
  %424 = vmatprep.subr.bf16.mxu0 0
  %425 = vmatpush1.bf16.msra.mxu0 0
  %426 = vmatprep.subr.bf16.mxu0 0
  %427 = vmatpush1.bf16.msra.mxu0 0
  %428 = vmatprep.subr.bf16.mxu0 0
  %429 = vmatpush1.bf16.msra.mxu0 0
  %430 = vmatprep.subr.bf16.mxu0 0
  %431 = vmatpush1.bf16.msra.mxu0 0
  %432 = vmatprep.subr.bf16.mxu0 0
  %433 = vmatpush1.bf16.msra.mxu0 0
  %434 = vmatprep.subr.bf16.mxu0 0
  %435 = vmatpush1.bf16.msra.mxu0 0
  %436 = vmatprep.subr.bf16.mxu0 0
  %437 = vmatpush1.bf16.msra.mxu0 0
  %438 = vmatprep.subr.bf16.mxu0 0
  %439 = vmatpush1.bf16.msra.mxu0 0
  %440 = vmatprep.subr.bf16.mxu0 0
  %441 = vmatpush1.bf16.msra.mxu0 0
  %442 = vmatprep.subr.bf16.mxu0 0
  %443 = vmatpush1.bf16.msra.mxu0 0
  %444 = vmatprep.subr.bf16.mxu0 0
  %445 = vmatpush1.bf16.msra.mxu0 0
  %446 = vmatprep.subr.bf16.mxu0 0
  %447 = vmatpush1.bf16.msra.mxu0 0
  %448 = vmatprep.subr.bf16.mxu0 0
  %449 = vmatpush1.bf16.msra.mxu0 0
  %450 = vmatprep.subr.bf16.mxu0 0
  %451 = vmatpush1.bf16.msra.mxu0 0
  %452 = vmatprep.subr.bf16.mxu0 0
  %453 = vmatpush1.bf16.msra.mxu0 0
  %454 = vmatprep.mubr.bf16.mxu0 0
  %455 = vmatmul.mubr.bf16.gmra.mrb[0].mxu0 %v370
  %v456 = vpop.f32.mrb[0].mxu0
  %v457 = vadd.f32 0.0, %v456
  %v458 = vpop.f32.mrb[0].mxu0
  %v459 = vpop.f32.mrb[0].mxu0
  %v460 = vpop.f32.mrb[0].mxu0
  %461 = vdwg.mxu0
  %v462 = vadd.f32 %v355, %v416
  %v463 = vadd.f32 %v356, %v418
  %v464 = vadd.f32 %v357, %v457
  %s465 = scalar_lea.vmem %s2, 16
  %v466 = vld [vmem:[%s465] sm:$0xf]
  %467 = vrot.lane.b32.xlu0 %v48, 109
  %v468 = vpop.permute.xlu0 %467
  %469 = vrot.lane.b32.xlu0 %v49, 109
  %v470 = vpop.permute.xlu0 %469
  %471 = vrot.lane.b32.xlu0 %v50, 109
  %v472 = vpop.permute.xlu0 %471
  %vm473 = vcmask 891904
  %v474 = vsel %vm473, %v468, %v470
  %v475 = vsel %vm473, %v470, %v472
  %v477 = vsel %vm60, %v466, 0
  %v480 = vand.u32 %v474, %v67
  %v483 = vand.u32 %v475, %v67
  %v486 = vand.u32 %v472, %v67
  %488 = vmatprep.subr.bf16.mxu0 %v483
  %489 = vmatpush1.bf16.msra.mxu0 %v480
  %490 = vmatprep.subr.bf16.mxu0 0
  %491 = vmatpush1.bf16.msra.mxu0 0
  %492 = vmatprep.subr.bf16.mxu0 0
  %493 = vmatpush1.bf16.msra.mxu0 0
  %494 = vmatprep.subr.bf16.mxu0 0
  %495 = vmatpush1.bf16.msra.mxu0 0
  %496 = vmatprep.subr.bf16.mxu0 0
  %497 = vmatpush1.bf16.msra.mxu0 0
  %498 = vmatprep.subr.bf16.mxu0 0
  %499 = vmatpush1.bf16.msra.mxu0 0
  %500 = vmatprep.subr.bf16.mxu0 0
  %501 = vmatpush1.bf16.msra.mxu0 0
  %502 = vmatprep.subr.bf16.mxu0 0
  %503 = vmatpush1.bf16.msra.mxu0 0
  %504 = vmatprep.subr.bf16.mxu0 0
  %505 = vmatpush1.bf16.msra.mxu0 0
  %506 = vmatprep.subr.bf16.mxu0 0
  %507 = vmatpush1.bf16.msra.mxu0 0
  %508 = vmatprep.subr.bf16.mxu0 0
  %509 = vmatpush1.bf16.msra.mxu0 0
  %510 = vmatprep.subr.bf16.mxu0 0
  %511 = vmatpush1.bf16.msra.mxu0 0
  %512 = vmatprep.subr.bf16.mxu0 0
  %513 = vmatpush1.bf16.msra.mxu0 0
  %514 = vmatprep.subr.bf16.mxu0 0
  %515 = vmatpush1.bf16.msra.mxu0 0
  %516 = vmatprep.subr.bf16.mxu0 0
  %517 = vmatpush1.bf16.msra.mxu0 0
  %518 = vmatprep.subr.bf16.mxu0 0
  %519 = vmatpush1.bf16.msra.mxu0 0
  %520 = vmatprep.mubr.bf16.mxu0 0
  %521 = vmatmul.mubr.bf16.gmra.mrb[0].mxu0 %v477
  %v522 = vpop.f32.mrb[0].mxu0
  %v523 = vadd.f32 0.0, %v522
  %v524 = vpop.f32.mrb[0].mxu0
  %v525 = vadd.f32 0.0, %v524
  %v526 = vpop.f32.mrb[0].mxu0
  %v527 = vpop.f32.mrb[0].mxu0
  %528 = vdwg.mxu0
  %529 = vmatprep.subr.bf16.mxu0 0
  %530 = vmatpush1.bf16.msra.mxu0 %v486
  %531 = vmatprep.subr.bf16.mxu0 0
  %532 = vmatpush1.bf16.msra.mxu0 0
  %533 = vmatprep.subr.bf16.mxu0 0
  %534 = vmatpush1.bf16.msra.mxu0 0
  %535 = vmatprep.subr.bf16.mxu0 0
  %536 = vmatpush1.bf16.msra.mxu0 0
  %537 = vmatprep.subr.bf16.mxu0 0
  %538 = vmatpush1.bf16.msra.mxu0 0
  %539 = vmatprep.subr.bf16.mxu0 0
  %540 = vmatpush1.bf16.msra.mxu0 0
  %541 = vmatprep.subr.bf16.mxu0 0
  %542 = vmatpush1.bf16.msra.mxu0 0
  %543 = vmatprep.subr.bf16.mxu0 0
  %544 = vmatpush1.bf16.msra.mxu0 0
  %545 = vmatprep.subr.bf16.mxu0 0
  %546 = vmatpush1.bf16.msra.mxu0 0
  %547 = vmatprep.subr.bf16.mxu0 0
  %548 = vmatpush1.bf16.msra.mxu0 0
  %549 = vmatprep.subr.bf16.mxu0 0
  %550 = vmatpush1.bf16.msra.mxu0 0
  %551 = vmatprep.subr.bf16.mxu0 0
  %552 = vmatpush1.bf16.msra.mxu0 0
  %553 = vmatprep.subr.bf16.mxu0 0
  %554 = vmatpush1.bf16.msra.mxu0 0
  %555 = vmatprep.subr.bf16.mxu0 0
  %556 = vmatpush1.bf16.msra.mxu0 0
  %557 = vmatprep.subr.bf16.mxu0 0
  %558 = vmatpush1.bf16.msra.mxu0 0
  %559 = vmatprep.subr.bf16.mxu0 0
  %560 = vmatpush1.bf16.msra.mxu0 0
  %561 = vmatprep.mubr.bf16.mxu0 0
  %562 = vmatmul.mubr.bf16.gmra.mrb[0].mxu0 %v477
  %v563 = vpop.f32.mrb[0].mxu0
  %v564 = vadd.f32 0.0, %v563
  %v565 = vpop.f32.mrb[0].mxu0
  %v566 = vpop.f32.mrb[0].mxu0
  %v567 = vpop.f32.mrb[0].mxu0
  %568 = vdwg.mxu0
  %v569 = vadd.f32 %v462, %v523
  %v570 = vadd.f32 %v463, %v525
  %v571 = vadd.f32 %v464, %v564
  %s572 = scalar_lea.vmem %s2, 20
  %v573 = vld [vmem:[%s572] sm:$0xf]
  %574 = vrot.lane.b32.xlu0 %v48, 108
  %v575 = vpop.permute.xlu0 %574
  %576 = vrot.lane.b32.xlu0 %v49, 108
  %v577 = vpop.permute.xlu0 %576
  %578 = vrot.lane.b32.xlu0 %v50, 108
  %v579 = vpop.permute.xlu0 %578
  %vm580 = vcmask 883712
  %v581 = vsel %vm580, %v575, %v577
  %v582 = vsel %vm580, %v577, %v579
  %v584 = vsel %vm60, %v573, 0
  %v587 = vand.u32 %v581, %v67
  %v590 = vand.u32 %v582, %v67
  %v593 = vand.u32 %v579, %v67
  %595 = vmatprep.subr.bf16.mxu0 %v590
  %596 = vmatpush1.bf16.msra.mxu0 %v587
  %597 = vmatprep.subr.bf16.mxu0 0
  %598 = vmatpush1.bf16.msra.mxu0 0
  %599 = vmatprep.subr.bf16.mxu0 0
  %600 = vmatpush1.bf16.msra.mxu0 0
  %601 = vmatprep.subr.bf16.mxu0 0
  %602 = vmatpush1.bf16.msra.mxu0 0
  %603 = vmatprep.subr.bf16.mxu0 0
  %604 = vmatpush1.bf16.msra.mxu0 0
  %605 = vmatprep.subr.bf16.mxu0 0
  %606 = vmatpush1.bf16.msra.mxu0 0
  %607 = vmatprep.subr.bf16.mxu0 0
  %608 = vmatpush1.bf16.msra.mxu0 0
  %609 = vmatprep.subr.bf16.mxu0 0
  %610 = vmatpush1.bf16.msra.mxu0 0
  %611 = vmatprep.subr.bf16.mxu0 0
  %612 = vmatpush1.bf16.msra.mxu0 0
  %613 = vmatprep.subr.bf16.mxu0 0
  %614 = vmatpush1.bf16.msra.mxu0 0
  %615 = vmatprep.subr.bf16.mxu0 0
  %616 = vmatpush1.bf16.msra.mxu0 0
  %617 = vmatprep.subr.bf16.mxu0 0
  %618 = vmatpush1.bf16.msra.mxu0 0
  %619 = vmatprep.subr.bf16.mxu0 0
  %620 = vmatpush1.bf16.msra.mxu0 0
  %621 = vmatprep.subr.bf16.mxu0 0
  %622 = vmatpush1.bf16.msra.mxu0 0
  %623 = vmatprep.subr.bf16.mxu0 0
  %624 = vmatpush1.bf16.msra.mxu0 0
  %625 = vmatprep.subr.bf16.mxu0 0
  %626 = vmatpush1.bf16.msra.mxu0 0
  %627 = vmatprep.mubr.bf16.mxu0 0
  %628 = vmatmul.mubr.bf16.gmra.mrb[0].mxu0 %v584
  %v629 = vpop.f32.mrb[0].mxu0
  %v630 = vadd.f32 0.0, %v629
  %v631 = vpop.f32.mrb[0].mxu0
  %v632 = vadd.f32 0.0, %v631
  %v633 = vpop.f32.mrb[0].mxu0
  %v634 = vpop.f32.mrb[0].mxu0
  %635 = vdwg.mxu0
  %636 = vmatprep.subr.bf16.mxu0 0
  %637 = vmatpush1.bf16.msra.mxu0 %v593
  %638 = vmatprep.subr.bf16.mxu0 0
  %639 = vmatpush1.bf16.msra.mxu0 0
  %640 = vmatprep.subr.bf16.mxu0 0
  %641 = vmatpush1.bf16.msra.mxu0 0
  %642 = vmatprep.subr.bf16.mxu0 0
  %643 = vmatpush1.bf16.msra.mxu0 0
  %644 = vmatprep.subr.bf16.mxu0 0
  %645 = vmatpush1.bf16.msra.mxu0 0
  %646 = vmatprep.subr.bf16.mxu0 0
  %647 = vmatpush1.bf16.msra.mxu0 0
  %648 = vmatprep.subr.bf16.mxu0 0
  %649 = vmatpush1.bf16.msra.mxu0 0
  %650 = vmatprep.subr.bf16.mxu0 0
  %651 = vmatpush1.bf16.msra.mxu0 0
  %652 = vmatprep.subr.bf16.mxu0 0
  %653 = vmatpush1.bf16.msra.mxu0 0
  %654 = vmatprep.subr.bf16.mxu0 0
  %655 = vmatpush1.bf16.msra.mxu0 0
  %656 = vmatprep.subr.bf16.mxu0 0
  %657 = vmatpush1.bf16.msra.mxu0 0
  %658 = vmatprep.subr.bf16.mxu0 0
  %659 = vmatpush1.bf16.msra.mxu0 0
  %660 = vmatprep.subr.bf16.mxu0 0
  %661 = vmatpush1.bf16.msra.mxu0 0
  %662 = vmatprep.subr.bf16.mxu0 0
  %663 = vmatpush1.bf16.msra.mxu0 0
  %664 = vmatprep.subr.bf16.mxu0 0
  %665 = vmatpush1.bf16.msra.mxu0 0
  %666 = vmatprep.subr.bf16.mxu0 0
  %667 = vmatpush1.bf16.msra.mxu0 0
  %668 = vmatprep.mubr.bf16.mxu0 0
  %669 = vmatmul.mubr.bf16.gmra.mrb[0].mxu0 %v584
  %v670 = vpop.f32.mrb[0].mxu0
  %v671 = vadd.f32 0.0, %v670
  %v672 = vpop.f32.mrb[0].mxu0
  %v673 = vpop.f32.mrb[0].mxu0
  %v674 = vpop.f32.mrb[0].mxu0
  %675 = vdwg.mxu0
  %v676 = vadd.f32 %v569, %v630
  %v677 = vadd.f32 %v570, %v632
  %v678 = vadd.f32 %v571, %v671
  %s679 = scalar_lea.vmem %s2, 24
  %v680 = vld [vmem:[%s679] sm:$0xf]
  %681 = vrot.lane.b32.xlu0 %v48, 92
  %v682 = vpop.permute.xlu0 %681
  %683 = vrot.lane.b32.xlu0 %v49, 92
  %v684 = vpop.permute.xlu0 %683
  %685 = vrot.lane.b32.xlu0 %v50, 92
  %v686 = vpop.permute.xlu0 %685
  %vm687 = vcmask 752640
  %v688 = vsel %vm687, %v682, %v684
  %v689 = vsel %vm687, %v684, %v686
  %v691 = vsel %vm60, %v680, 0
  %v694 = vand.u32 %v688, %v67
  %v697 = vand.u32 %v689, %v67
  %v700 = vand.u32 %v686, %v67
  %702 = vmatprep.subr.bf16.mxu0 %v697
  %703 = vmatpush1.bf16.msra.mxu0 %v694
  %704 = vmatprep.subr.bf16.mxu0 0
  %705 = vmatpush1.bf16.msra.mxu0 0
  %706 = vmatprep.subr.bf16.mxu0 0
  %707 = vmatpush1.bf16.msra.mxu0 0
  %708 = vmatprep.subr.bf16.mxu0 0
  %709 = vmatpush1.bf16.msra.mxu0 0
  %710 = vmatprep.subr.bf16.mxu0 0
  %711 = vmatpush1.bf16.msra.mxu0 0
  %712 = vmatprep.subr.bf16.mxu0 0
  %713 = vmatpush1.bf16.msra.mxu0 0
  %714 = vmatprep.subr.bf16.mxu0 0
  %715 = vmatpush1.bf16.msra.mxu0 0
  %716 = vmatprep.subr.bf16.mxu0 0
  %717 = vmatpush1.bf16.msra.mxu0 0
  %718 = vmatprep.subr.bf16.mxu0 0
  %719 = vmatpush1.bf16.msra.mxu0 0
  %720 = vmatprep.subr.bf16.mxu0 0
  %721 = vmatpush1.bf16.msra.mxu0 0
  %722 = vmatprep.subr.bf16.mxu0 0
  %723 = vmatpush1.bf16.msra.mxu0 0
  %724 = vmatprep.subr.bf16.mxu0 0
  %725 = vmatpush1.bf16.msra.mxu0 0
  %726 = vmatprep.subr.bf16.mxu0 0
  %727 = vmatpush1.bf16.msra.mxu0 0
  %728 = vmatprep.subr.bf16.mxu0 0
  %729 = vmatpush1.bf16.msra.mxu0 0
  %730 = vmatprep.subr.bf16.mxu0 0
  %731 = vmatpush1.bf16.msra.mxu0 0
  %732 = vmatprep.subr.bf16.mxu0 0
  %733 = vmatpush1.bf16.msra.mxu0 0
  %734 = vmatprep.mubr.bf16.mxu0 0
  %735 = vmatmul.mubr.bf16.gmra.mrb[0].mxu0 %v691
  %v736 = vpop.f32.mrb[0].mxu0
  %v737 = vadd.f32 0.0, %v736
  %v738 = vpop.f32.mrb[0].mxu0
  %v739 = vadd.f32 0.0, %v738
  %v740 = vpop.f32.mrb[0].mxu0
  %v741 = vpop.f32.mrb[0].mxu0
  %742 = vdwg.mxu0
  %743 = vmatprep.subr.bf16.mxu0 0
  %744 = vmatpush1.bf16.msra.mxu0 %v700
  %745 = vmatprep.subr.bf16.mxu0 0
  %746 = vmatpush1.bf16.msra.mxu0 0
  %747 = vmatprep.subr.bf16.mxu0 0
  %748 = vmatpush1.bf16.msra.mxu0 0
  %749 = vmatprep.subr.bf16.mxu0 0
  %750 = vmatpush1.bf16.msra.mxu0 0
  %751 = vmatprep.subr.bf16.mxu0 0
  %752 = vmatpush1.bf16.msra.mxu0 0
  %753 = vmatprep.subr.bf16.mxu0 0
  %754 = vmatpush1.bf16.msra.mxu0 0
  %755 = vmatprep.subr.bf16.mxu0 0
  %756 = vmatpush1.bf16.msra.mxu0 0
  %757 = vmatprep.subr.bf16.mxu0 0
  %758 = vmatpush1.bf16.msra.mxu0 0
  %759 = vmatprep.subr.bf16.mxu0 0
  %760 = vmatpush1.bf16.msra.mxu0 0
  %761 = vmatprep.subr.bf16.mxu0 0
  %762 = vmatpush1.bf16.msra.mxu0 0
  %763 = vmatprep.subr.bf16.mxu0 0
  %764 = vmatpush1.bf16.msra.mxu0 0
  %765 = vmatprep.subr.bf16.mxu0 0
  %766 = vmatpush1.bf16.msra.mxu0 0
  %767 = vmatprep.subr.bf16.mxu0 0
  %768 = vmatpush1.bf16.msra.mxu0 0
  %769 = vmatprep.subr.bf16.mxu0 0
  %770 = vmatpush1.bf16.msra.mxu0 0
  %771 = vmatprep.subr.bf16.mxu0 0
  %772 = vmatpush1.bf16.msra.mxu0 0
  %773 = vmatprep.subr.bf16.mxu0 0
  %774 = vmatpush1.bf16.msra.mxu0 0
  %775 = vmatprep.mubr.bf16.mxu0 0
  %776 = vmatmul.mubr.bf16.gmra.mrb[0].mxu0 %v691
  %v777 = vpop.f32.mrb[0].mxu0
  %v778 = vadd.f32 0.0, %v777
  %v779 = vpop.f32.mrb[0].mxu0
  %v780 = vpop.f32.mrb[0].mxu0
  %v781 = vpop.f32.mrb[0].mxu0
  %782 = vdwg.mxu0
  %v783 = vadd.f32 %v676, %v737
  %v784 = vadd.f32 %v677, %v739
  %v785 = vadd.f32 %v678, %v778
  %s786 = scalar_lea.vmem %s2, 28
  %v787 = vld [vmem:[%s786] sm:$0xf]
  %788 = vrot.lane.b32.xlu0 %v48, 91
  %v789 = vpop.permute.xlu0 %788
  %790 = vrot.lane.b32.xlu0 %v49, 91
  %v791 = vpop.permute.xlu0 %790
  %792 = vrot.lane.b32.xlu0 %v50, 91
  %v793 = vpop.permute.xlu0 %792
  %vm794 = vcmask 744448
  %v795 = vsel %vm794, %v789, %v791
  %v796 = vsel %vm794, %v791, %v793
  %v798 = vsel %vm60, %v787, 0
  %v801 = vand.u32 %v795, %v67
  %v804 = vand.u32 %v796, %v67
  %v807 = vand.u32 %v793, %v67
  %809 = vmatprep.subr.bf16.mxu0 %v804
  %810 = vmatpush1.bf16.msra.mxu0 %v801
  %811 = vmatprep.subr.bf16.mxu0 0
  %812 = vmatpush1.bf16.msra.mxu0 0
  %813 = vmatprep.subr.bf16.mxu0 0
  %814 = vmatpush1.bf16.msra.mxu0 0
  %815 = vmatprep.subr.bf16.mxu0 0
  %816 = vmatpush1.bf16.msra.mxu0 0
  %817 = vmatprep.subr.bf16.mxu0 0
  %818 = vmatpush1.bf16.msra.mxu0 0
  %819 = vmatprep.subr.bf16.mxu0 0
  %820 = vmatpush1.bf16.msra.mxu0 0
  %821 = vmatprep.subr.bf16.mxu0 0
  %822 = vmatpush1.bf16.msra.mxu0 0
  %823 = vmatprep.subr.bf16.mxu0 0
  %824 = vmatpush1.bf16.msra.mxu0 0
  %825 = vmatprep.subr.bf16.mxu0 0
  %826 = vmatpush1.bf16.msra.mxu0 0
  %827 = vmatprep.subr.bf16.mxu0 0
  %828 = vmatpush1.bf16.msra.mxu0 0
  %829 = vmatprep.subr.bf16.mxu0 0
  %830 = vmatpush1.bf16.msra.mxu0 0
  %831 = vmatprep.subr.bf16.mxu0 0
  %832 = vmatpush1.bf16.msra.mxu0 0
  %833 = vmatprep.subr.bf16.mxu0 0
  %834 = vmatpush1.bf16.msra.mxu0 0
  %835 = vmatprep.subr.bf16.mxu0 0
  %836 = vmatpush1.bf16.msra.mxu0 0
  %837 = vmatprep.subr.bf16.mxu0 0
  %838 = vmatpush1.bf16.msra.mxu0 0
  %839 = vmatprep.subr.bf16.mxu0 0
  %840 = vmatpush1.bf16.msra.mxu0 0
  %841 = vmatprep.mubr.bf16.mxu0 0
  %842 = vmatmul.mubr.bf16.gmra.mrb[0].mxu0 %v798
  %v843 = vpop.f32.mrb[0].mxu0
  %v844 = vadd.f32 0.0, %v843
  %v845 = vpop.f32.mrb[0].mxu0
  %v846 = vadd.f32 0.0, %v845
  %v847 = vpop.f32.mrb[0].mxu0
  %v848 = vpop.f32.mrb[0].mxu0
  %849 = vdwg.mxu0
  %850 = vmatprep.subr.bf16.mxu0 0
  %851 = vmatpush1.bf16.msra.mxu0 %v807
  %852 = vmatprep.subr.bf16.mxu0 0
  %853 = vmatpush1.bf16.msra.mxu0 0
  %854 = vmatprep.subr.bf16.mxu0 0
  %855 = vmatpush1.bf16.msra.mxu0 0
  %856 = vmatprep.subr.bf16.mxu0 0
  %857 = vmatpush1.bf16.msra.mxu0 0
  %858 = vmatprep.subr.bf16.mxu0 0
  %859 = vmatpush1.bf16.msra.mxu0 0
  %860 = vmatprep.subr.bf16.mxu0 0
  %861 = vmatpush1.bf16.msra.mxu0 0
  %862 = vmatprep.subr.bf16.mxu0 0
  %863 = vmatpush1.bf16.msra.mxu0 0
  %864 = vmatprep.subr.bf16.mxu0 0
  %865 = vmatpush1.bf16.msra.mxu0 0
  %866 = vmatprep.subr.bf16.mxu0 0
  %867 = vmatpush1.bf16.msra.mxu0 0
  %868 = vmatprep.subr.bf16.mxu0 0
  %869 = vmatpush1.bf16.msra.mxu0 0
  %870 = vmatprep.subr.bf16.mxu0 0
  %871 = vmatpush1.bf16.msra.mxu0 0
  %872 = vmatprep.subr.bf16.mxu0 0
  %873 = vmatpush1.bf16.msra.mxu0 0
  %874 = vmatprep.subr.bf16.mxu0 0
  %875 = vmatpush1.bf16.msra.mxu0 0
  %876 = vmatprep.subr.bf16.mxu0 0
  %877 = vmatpush1.bf16.msra.mxu0 0
  %878 = vmatprep.subr.bf16.mxu0 0
  %879 = vmatpush1.bf16.msra.mxu0 0
  %880 = vmatprep.subr.bf16.mxu0 0
  %881 = vmatpush1.bf16.msra.mxu0 0
  %882 = vmatprep.mubr.bf16.mxu0 0
  %883 = vmatmul.mubr.bf16.gmra.mrb[0].mxu0 %v798
  %v884 = vpop.f32.mrb[0].mxu0
  %v885 = vadd.f32 0.0, %v884
  %v886 = vpop.f32.mrb[0].mxu0
  %v887 = vpop.f32.mrb[0].mxu0
  %v888 = vpop.f32.mrb[0].mxu0
  %889 = vdwg.mxu0
  %v890 = vadd.f32 %v783, %v844
  %v891 = vadd.f32 %v784, %v846
  %v892 = vadd.f32 %v785, %v885
  %s893 = scalar_lea.vmem %s2, 32
  %v894 = vld [vmem:[%s893] sm:$0xf]
  %895 = vrot.lane.b32.xlu0 %v48, 90
  %v896 = vpop.permute.xlu0 %895
  %897 = vrot.lane.b32.xlu0 %v49, 90
  %v898 = vpop.permute.xlu0 %897
  %899 = vrot.lane.b32.xlu0 %v50, 90
  %v900 = vpop.permute.xlu0 %899
  %vm901 = vcmask 736256
  %v902 = vsel %vm901, %v896, %v898
  %v903 = vsel %vm901, %v898, %v900
  %v905 = vsel %vm60, %v894, 0
  %v908 = vand.u32 %v902, %v67
  %v911 = vand.u32 %v903, %v67
  %v914 = vand.u32 %v900, %v67
  %916 = vmatprep.subr.bf16.mxu0 %v911
  %917 = vmatpush1.bf16.msra.mxu0 %v908
  %918 = vmatprep.subr.bf16.mxu0 0
  %919 = vmatpush1.bf16.msra.mxu0 0
  %920 = vmatprep.subr.bf16.mxu0 0
  %921 = vmatpush1.bf16.msra.mxu0 0
  %922 = vmatprep.subr.bf16.mxu0 0
  %923 = vmatpush1.bf16.msra.mxu0 0
  %924 = vmatprep.subr.bf16.mxu0 0
  %925 = vmatpush1.bf16.msra.mxu0 0
  %926 = vmatprep.subr.bf16.mxu0 0
  %927 = vmatpush1.bf16.msra.mxu0 0
  %928 = vmatprep.subr.bf16.mxu0 0
  %929 = vmatpush1.bf16.msra.mxu0 0
  %930 = vmatprep.subr.bf16.mxu0 0
  %931 = vmatpush1.bf16.msra.mxu0 0
  %932 = vmatprep.subr.bf16.mxu0 0
  %933 = vmatpush1.bf16.msra.mxu0 0
  %934 = vmatprep.subr.bf16.mxu0 0
  %935 = vmatpush1.bf16.msra.mxu0 0
  %936 = vmatprep.subr.bf16.mxu0 0
  %937 = vmatpush1.bf16.msra.mxu0 0
  %938 = vmatprep.subr.bf16.mxu0 0
  %939 = vmatpush1.bf16.msra.mxu0 0
  %940 = vmatprep.subr.bf16.mxu0 0
  %941 = vmatpush1.bf16.msra.mxu0 0
  %942 = vmatprep.subr.bf16.mxu0 0
  %943 = vmatpush1.bf16.msra.mxu0 0
  %944 = vmatprep.subr.bf16.mxu0 0
  %945 = vmatpush1.bf16.msra.mxu0 0
  %946 = vmatprep.subr.bf16.mxu0 0
  %947 = vmatpush1.bf16.msra.mxu0 0
  %948 = vmatprep.mubr.bf16.mxu0 0
  %949 = vmatmul.mubr.bf16.gmra.mrb[0].mxu0 %v905
  %v950 = vpop.f32.mrb[0].mxu0
  %v951 = vadd.f32 0.0, %v950
  %v952 = vpop.f32.mrb[0].mxu0
  %v953 = vadd.f32 0.0, %v952
  %v954 = vpop.f32.mrb[0].mxu0
  %v955 = vpop.f32.mrb[0].mxu0
  %956 = vdwg.mxu0
  %957 = vmatprep.subr.bf16.mxu0 0
  %958 = vmatpush1.bf16.msra.mxu0 %v914
  %959 = vmatprep.subr.bf16.mxu0 0
  %960 = vmatpush1.bf16.msra.mxu0 0
  %961 = vmatprep.subr.bf16.mxu0 0
  %962 = vmatpush1.bf16.msra.mxu0 0
  %963 = vmatprep.subr.bf16.mxu0 0
  %964 = vmatpush1.bf16.msra.mxu0 0
  %965 = vmatprep.subr.bf16.mxu0 0
  %966 = vmatpush1.bf16.msra.mxu0 0
  %967 = vmatprep.subr.bf16.mxu0 0
  %968 = vmatpush1.bf16.msra.mxu0 0
  %969 = vmatprep.subr.bf16.mxu0 0
  %970 = vmatpush1.bf16.msra.mxu0 0
  %971 = vmatprep.subr.bf16.mxu0 0
  %972 = vmatpush1.bf16.msra.mxu0 0
  %973 = vmatprep.subr.bf16.mxu0 0
  %974 = vmatpush1.bf16.msra.mxu0 0
  %975 = vmatprep.subr.bf16.mxu0 0
  %976 = vmatpush1.bf16.msra.mxu0 0
  %977 = vmatprep.subr.bf16.mxu0 0
  %978 = vmatpush1.bf16.msra.mxu0 0
  %979 = vmatprep.subr.bf16.mxu0 0
  %980 = vmatpush1.bf16.msra.mxu0 0
  %981 = vmatprep.subr.bf16.mxu0 0
  %982 = vmatpush1.bf16.msra.mxu0 0
  %983 = vmatprep.subr.bf16.mxu0 0
  %984 = vmatpush1.bf16.msra.mxu0 0
  %985 = vmatprep.subr.bf16.mxu0 0
  %986 = vmatpush1.bf16.msra.mxu0 0
  %987 = vmatprep.subr.bf16.mxu0 0
  %988 = vmatpush1.bf16.msra.mxu0 0
  %989 = vmatprep.mubr.bf16.mxu0 0
  %990 = vmatmul.mubr.bf16.gmra.mrb[0].mxu0 %v905
  %v991 = vpop.f32.mrb[0].mxu0
  %v992 = vadd.f32 0.0, %v991
  %v993 = vpop.f32.mrb[0].mxu0
  %v994 = vpop.f32.mrb[0].mxu0
  %v995 = vpop.f32.mrb[0].mxu0
  %996 = vdwg.mxu0
  %v997 = vadd.f32 %v890, %v951
  %v998 = vadd.f32 %v891, %v953
  %v999 = vadd.f32 %v892, %v992
  %v1000 = vld [vmem:[%s3] sm:$0x7f]
  %1002 = vset.pattern.permute.xlu0 0
  %1003 = vperm.xlu0 %1002, %v1000
  %v1004 = vpop.permute.xlu0 %1003
  %v1006 = vadd.f32 %v997, %v1004
  %v1007 = vadd.f32 %v998, %v1004
  %v1008 = vadd.f32 %v999, %v1004
  %vm1009 = vcmp.gt.f32.partialorder %v1006, 0.0
  %vm1010 = vcmp.gt.f32.partialorder %v1007, 0.0
  %vm1011 = vcmp.gt.f32.partialorder %v1008, 0.0
  %v1012 = vmin.f32 %v1006, 0.0
  %v1013 = vmin.f32 %v1007, 0.0
  %v1014 = vmin.f32 %v1008, 0.0
  %v1015 = vmul.f32 %v1012, 1.442695
  %v1016 = vpow.pop %v1015
  %v1017 = vmul.f32 %v1013, 1.442695
  %v1018 = vpow.pop %v1017
  %v1019 = vmul.f32 %v1014, 1.442695
  %v1020 = vpow.pop %v1019
  %v1021 = vsub.f32 %v1016, 1.0
  %v1022 = vsub.f32 %v1018, 1.0
  %v1023 = vsub.f32 %v1020, 1.0
  %v1024 = vsel %vm1009, %v1006, %v1021
  %v1025 = vsel %vm1010, %v1007, %v1022
  %v1026 = vsel %vm1011, %v1008, %v1023
  %v1027 = vsel %vm37, 1, 0
  %v1028 = vlaneseq
  %v1029 = vshrl.u32 %v1028, 7
  %v1030 = vsub.s32 0, %v1029
  %v1031 = vrot.slane %v1027, %v1030
  %v1032 = vlaneseq
  %v1033 = vshrl.u32 %v1032, 7
  %v1034 = vsub.s32 1, %v1033
  %v1035 = vrot.slane %v1027, %v1034
  %v1036 = vlaneseq
  %v1037 = vshrl.u32 %v1036, 7
  %v1038 = vsub.s32 2, %v1037
  %v1039 = vrot.slane %v1027, %v1038
  %vm1040 = vcmp.eq.s32.totalorder %v1031, 1
  %vm1041 = vcmp.eq.s32.totalorder %v1035, 1
  %vm1042 = vcmp.eq.s32.totalorder %v1039, 1
  %v1043 = vsel %vm1040, %v1024, 0.0
  %v1044 = vsel %vm1041, %v1025, 0.0
  %v1045 = vsel %vm1042, %v1026, 0.0
  %1049 = vrot.lane.b32.xlu0 %v1043, 19
  %v1050 = vpop.permute.xlu0 %1049
  %1051 = vrot.lane.b32.xlu0 %v1044, 19
  %v1052 = vpop.permute.xlu0 %1051
  %1053 = vrot.lane.b32.xlu0 %v1045, 19
  %v1054 = vpop.permute.xlu0 %1053
  %vm1055 = vcmask 154624
  %v1056 = vsel %vm1055, %v1050, %v1052
  %v1057 = vsel %vm1055, %v1052, %v1054
  %v1061 = vsel %vm1055, 0.0, %v1050
  %vm1062 = vcmask 711680
  %v1063 = vsel %vm1062, %v1057, 0.0
  %v1064 = vpack.c.bf16 %v1061, %v1061
  %v1065 = vpack.c.bf16 %v1056, %v1056
  %v1066 = vpack.c.bf16 %v1063, %v1063
  %v1067 = vld [vmem:[%s4] sm:$0xf]
  %s1068 = scalar_lea.vmem %s4, 4
  %v1069 = vld [vmem:[%s1068] sm:$0xf]
  %1073 = vrot.lane.b32.xlu0 %v1064, 127
  %v1074 = vpop.permute.xlu0 %1073
  %1075 = vrot.lane.b32.xlu0 %v1065, 127
  %v1076 = vpop.permute.xlu0 %1075
  %1077 = vrot.lane.b32.xlu0 %v1066, 127
  %v1078 = vpop.permute.xlu0 %1077
  %v1079 = vsel %vm57, %v1074, %v1076
  %v1080 = vsel %vm57, %v1076, %v1078
  %vm1081 = vcmask 56320
  %v1083 = vsel %vm1081, %v1069, 0
  %vm1085 = vcmask 1043456
  %v1086 = vsel %vm65, 4294967295, 65535
  %v1087 = vsel %vm1085, %v1086, 0
  %v1089 = vand.u32 %v1079, %v1087
  %v1092 = vand.u32 %v1080, %v1087
  %v1095 = vand.u32 %v1078, %v1087
  %1097 = vmatprep.subr.bf16.mxu0 %v1092
  %1098 = vmatpush1.bf16.msra.mxu0 %v1089
  %1099 = vmatprep.subr.bf16.mxu0 0
  %1100 = vmatpush1.bf16.msra.mxu0 0
  %1101 = vmatprep.subr.bf16.mxu0 0
  %1102 = vmatpush1.bf16.msra.mxu0 0
  %1103 = vmatprep.subr.bf16.mxu0 0
  %1104 = vmatpush1.bf16.msra.mxu0 0
  %1105 = vmatprep.subr.bf16.mxu0 0
  %1106 = vmatpush1.bf16.msra.mxu0 0
  %1107 = vmatprep.subr.bf16.mxu0 0
  %1108 = vmatpush1.bf16.msra.mxu0 0
  %1109 = vmatprep.subr.bf16.mxu0 0
  %1110 = vmatpush1.bf16.msra.mxu0 0
  %1111 = vmatprep.subr.bf16.mxu0 0
  %1112 = vmatpush1.bf16.msra.mxu0 0
  %1113 = vmatprep.subr.bf16.mxu0 0
  %1114 = vmatpush1.bf16.msra.mxu0 0
  %1115 = vmatprep.subr.bf16.mxu0 0
  %1116 = vmatpush1.bf16.msra.mxu0 0
  %1117 = vmatprep.subr.bf16.mxu0 0
  %1118 = vmatpush1.bf16.msra.mxu0 0
  %1119 = vmatprep.subr.bf16.mxu0 0
  %1120 = vmatpush1.bf16.msra.mxu0 0
  %1121 = vmatprep.subr.bf16.mxu0 0
  %1122 = vmatpush1.bf16.msra.mxu0 0
  %1123 = vmatprep.subr.bf16.mxu0 0
  %1124 = vmatpush1.bf16.msra.mxu0 0
  %1125 = vmatprep.subr.bf16.mxu0 0
  %1126 = vmatpush1.bf16.msra.mxu0 0
  %1127 = vmatprep.subr.bf16.mxu0 0
  %1128 = vmatpush1.bf16.msra.mxu0 0
  %1129 = vmatprep.mubr.bf16.mxu0 0
  %1130 = vmatmul.mubr.bf16.gmra.mrb[0].mxu0 %v1083
  %v1131 = vpop.f32.mrb[0].mxu0
  %v1132 = vadd.f32 0.0, %v1131
  %v1133 = vpop.f32.mrb[0].mxu0
  %v1134 = vadd.f32 0.0, %v1133
  %v1135 = vpop.f32.mrb[0].mxu0
  %v1136 = vpop.f32.mrb[0].mxu0
  %1137 = vdwg.mxu0
  %1138 = vmatprep.subr.bf16.mxu0 0
  %1139 = vmatpush1.bf16.msra.mxu0 %v1095
  %1140 = vmatprep.subr.bf16.mxu0 0
  %1141 = vmatpush1.bf16.msra.mxu0 0
  %1142 = vmatprep.subr.bf16.mxu0 0
  %1143 = vmatpush1.bf16.msra.mxu0 0
  %1144 = vmatprep.subr.bf16.mxu0 0
  %1145 = vmatpush1.bf16.msra.mxu0 0
  %1146 = vmatprep.subr.bf16.mxu0 0
  %1147 = vmatpush1.bf16.msra.mxu0 0
  %1148 = vmatprep.subr.bf16.mxu0 0
  %1149 = vmatpush1.bf16.msra.mxu0 0
  %1150 = vmatprep.subr.bf16.mxu0 0
  %1151 = vmatpush1.bf16.msra.mxu0 0
  %1152 = vmatprep.subr.bf16.mxu0 0
  %1153 = vmatpush1.bf16.msra.mxu0 0
  %1154 = vmatprep.subr.bf16.mxu0 0
  %1155 = vmatpush1.bf16.msra.mxu0 0
  %1156 = vmatprep.subr.bf16.mxu0 0
  %1157 = vmatpush1.bf16.msra.mxu0 0
  %1158 = vmatprep.subr.bf16.mxu0 0
  %1159 = vmatpush1.bf16.msra.mxu0 0
  %1160 = vmatprep.subr.bf16.mxu0 0
  %1161 = vmatpush1.bf16.msra.mxu0 0
  %1162 = vmatprep.subr.bf16.mxu0 0
  %1163 = vmatpush1.bf16.msra.mxu0 0
  %1164 = vmatprep.subr.bf16.mxu0 0
  %1165 = vmatpush1.bf16.msra.mxu0 0
  %1166 = vmatprep.subr.bf16.mxu0 0
  %1167 = vmatpush1.bf16.msra.mxu0 0
  %1168 = vmatprep.subr.bf16.mxu0 0
  %1169 = vmatpush1.bf16.msra.mxu0 0
  %1170 = vmatprep.mubr.bf16.mxu0 0
  %1171 = vmatmul.mubr.bf16.gmra.mrb[0].mxu0 %v1083
  %v1172 = vpop.f32.mrb[0].mxu0
  %v1173 = vadd.f32 0.0, %v1172
  %v1174 = vpop.f32.mrb[0].mxu0
  %v1175 = vpop.f32.mrb[0].mxu0
  %v1176 = vpop.f32.mrb[0].mxu0
  %1177 = vdwg.mxu0
  %v1179 = vsel %vm1081, %v1067, 0
  %v1182 = vand.u32 %v1064, %v1087
  %v1185 = vand.u32 %v1065, %v1087
  %v1188 = vand.u32 %v1066, %v1087
  %1190 = vmatprep.subr.bf16.mxu0 %v1185
  %1191 = vmatpush1.bf16.msra.mxu0 %v1182
  %1192 = vmatprep.subr.bf16.mxu0 0
  %1193 = vmatpush1.bf16.msra.mxu0 0
  %1194 = vmatprep.subr.bf16.mxu0 0
  %1195 = vmatpush1.bf16.msra.mxu0 0
  %1196 = vmatprep.subr.bf16.mxu0 0
  %1197 = vmatpush1.bf16.msra.mxu0 0
  %1198 = vmatprep.subr.bf16.mxu0 0
  %1199 = vmatpush1.bf16.msra.mxu0 0
  %1200 = vmatprep.subr.bf16.mxu0 0
  %1201 = vmatpush1.bf16.msra.mxu0 0
  %1202 = vmatprep.subr.bf16.mxu0 0
  %1203 = vmatpush1.bf16.msra.mxu0 0
  %1204 = vmatprep.subr.bf16.mxu0 0
  %1205 = vmatpush1.bf16.msra.mxu0 0
  %1206 = vmatprep.subr.bf16.mxu0 0
  %1207 = vmatpush1.bf16.msra.mxu0 0
  %1208 = vmatprep.subr.bf16.mxu0 0
  %1209 = vmatpush1.bf16.msra.mxu0 0
  %1210 = vmatprep.subr.bf16.mxu0 0
  %1211 = vmatpush1.bf16.msra.mxu0 0
  %1212 = vmatprep.subr.bf16.mxu0 0
  %1213 = vmatpush1.bf16.msra.mxu0 0
  %1214 = vmatprep.subr.bf16.mxu0 0
  %1215 = vmatpush1.bf16.msra.mxu0 0
  %1216 = vmatprep.subr.bf16.mxu0 0
  %1217 = vmatpush1.bf16.msra.mxu0 0
  %1218 = vmatprep.subr.bf16.mxu0 0
  %1219 = vmatpush1.bf16.msra.mxu0 0
  %1220 = vmatprep.subr.bf16.mxu0 0
  %1221 = vmatpush1.bf16.msra.mxu0 0
  %1222 = vmatprep.mubr.bf16.mxu0 0
  %1223 = vmatmul.mubr.bf16.gmra.mrb[0].mxu0 %v1179
  %v1224 = vpop.f32.mrb[0].mxu0
  %v1225 = vadd.f32 %v1132, %v1224
  %v1226 = vpop.f32.mrb[0].mxu0
  %v1227 = vadd.f32 %v1134, %v1226
  %v1228 = vpop.f32.mrb[0].mxu0
  %v1229 = vpop.f32.mrb[0].mxu0
  %1230 = vdwg.mxu0
  %1231 = vmatprep.subr.bf16.mxu0 0
  %1232 = vmatpush1.bf16.msra.mxu0 %v1188
  %1233 = vmatprep.subr.bf16.mxu0 0
  %1234 = vmatpush1.bf16.msra.mxu0 0
  %1235 = vmatprep.subr.bf16.mxu0 0
  %1236 = vmatpush1.bf16.msra.mxu0 0
  %1237 = vmatprep.subr.bf16.mxu0 0
  %1238 = vmatpush1.bf16.msra.mxu0 0
  %1239 = vmatprep.subr.bf16.mxu0 0
  %1240 = vmatpush1.bf16.msra.mxu0 0
  %1241 = vmatprep.subr.bf16.mxu0 0
  %1242 = vmatpush1.bf16.msra.mxu0 0
  %1243 = vmatprep.subr.bf16.mxu0 0
  %1244 = vmatpush1.bf16.msra.mxu0 0
  %1245 = vmatprep.subr.bf16.mxu0 0
  %1246 = vmatpush1.bf16.msra.mxu0 0
  %1247 = vmatprep.subr.bf16.mxu0 0
  %1248 = vmatpush1.bf16.msra.mxu0 0
  %1249 = vmatprep.subr.bf16.mxu0 0
  %1250 = vmatpush1.bf16.msra.mxu0 0
  %1251 = vmatprep.subr.bf16.mxu0 0
  %1252 = vmatpush1.bf16.msra.mxu0 0
  %1253 = vmatprep.subr.bf16.mxu0 0
  %1254 = vmatpush1.bf16.msra.mxu0 0
  %1255 = vmatprep.subr.bf16.mxu0 0
  %1256 = vmatpush1.bf16.msra.mxu0 0
  %1257 = vmatprep.subr.bf16.mxu0 0
  %1258 = vmatpush1.bf16.msra.mxu0 0
  %1259 = vmatprep.subr.bf16.mxu0 0
  %1260 = vmatpush1.bf16.msra.mxu0 0
  %1261 = vmatprep.subr.bf16.mxu0 0
  %1262 = vmatpush1.bf16.msra.mxu0 0
  %1263 = vmatprep.mubr.bf16.mxu0 0
  %1264 = vmatmul.mubr.bf16.gmra.mrb[0].mxu0 %v1179
  %v1265 = vpop.f32.mrb[0].mxu0
  %v1266 = vadd.f32 %v1173, %v1265
  %v1267 = vpop.f32.mrb[0].mxu0
  %v1268 = vpop.f32.mrb[0].mxu0
  %v1269 = vpop.f32.mrb[0].mxu0
  %1270 = vdwg.mxu0
  %s1271 = scalar_lea.vmem %s4, 8
  %v1272 = vld [vmem:[%s1271] sm:$0xf]
  %1273 = vrot.lane.b32.xlu0 %v1064, 126
  %v1274 = vpop.permute.xlu0 %1273
  %1275 = vrot.lane.b32.xlu0 %v1065, 126
  %v1276 = vpop.permute.xlu0 %1275
  %1277 = vrot.lane.b32.xlu0 %v1066, 126
  %v1278 = vpop.permute.xlu0 %1277
  %v1279 = vsel %vm259, %v1274, %v1276
  %v1280 = vsel %vm259, %v1276, %v1278
  %v1282 = vsel %vm1081, %v1272, 0
  %v1285 = vand.u32 %v1279, %v1087
  %v1288 = vand.u32 %v1280, %v1087
  %v1291 = vand.u32 %v1278, %v1087
  %1293 = vmatprep.subr.bf16.mxu0 %v1288
  %1294 = vmatpush1.bf16.msra.mxu0 %v1285
  %1295 = vmatprep.subr.bf16.mxu0 0
  %1296 = vmatpush1.bf16.msra.mxu0 0
  %1297 = vmatprep.subr.bf16.mxu0 0
  %1298 = vmatpush1.bf16.msra.mxu0 0
  %1299 = vmatprep.subr.bf16.mxu0 0
  %1300 = vmatpush1.bf16.msra.mxu0 0
  %1301 = vmatprep.subr.bf16.mxu0 0
  %1302 = vmatpush1.bf16.msra.mxu0 0
  %1303 = vmatprep.subr.bf16.mxu0 0
  %1304 = vmatpush1.bf16.msra.mxu0 0
  %1305 = vmatprep.subr.bf16.mxu0 0
  %1306 = vmatpush1.bf16.msra.mxu0 0
  %1307 = vmatprep.subr.bf16.mxu0 0
  %1308 = vmatpush1.bf16.msra.mxu0 0
  %1309 = vmatprep.subr.bf16.mxu0 0
  %1310 = vmatpush1.bf16.msra.mxu0 0
  %1311 = vmatprep.subr.bf16.mxu0 0
  %1312 = vmatpush1.bf16.msra.mxu0 0
  %1313 = vmatprep.subr.bf16.mxu0 0
  %1314 = vmatpush1.bf16.msra.mxu0 0
  %1315 = vmatprep.subr.bf16.mxu0 0
  %1316 = vmatpush1.bf16.msra.mxu0 0
  %1317 = vmatprep.subr.bf16.mxu0 0
  %1318 = vmatpush1.bf16.msra.mxu0 0
  %1319 = vmatprep.subr.bf16.mxu0 0
  %1320 = vmatpush1.bf16.msra.mxu0 0
  %1321 = vmatprep.subr.bf16.mxu0 0
  %1322 = vmatpush1.bf16.msra.mxu0 0
  %1323 = vmatprep.subr.bf16.mxu0 0
  %1324 = vmatpush1.bf16.msra.mxu0 0
  %1325 = vmatprep.mubr.bf16.mxu0 0
  %1326 = vmatmul.mubr.bf16.gmra.mrb[0].mxu0 %v1282
  %v1327 = vpop.f32.mrb[0].mxu0
  %v1328 = vadd.f32 0.0, %v1327
  %v1329 = vpop.f32.mrb[0].mxu0
  %v1330 = vadd.f32 0.0, %v1329
  %v1331 = vpop.f32.mrb[0].mxu0
  %v1332 = vpop.f32.mrb[0].mxu0
  %1333 = vdwg.mxu0
  %1334 = vmatprep.subr.bf16.mxu0 0
  %1335 = vmatpush1.bf16.msra.mxu0 %v1291
  %1336 = vmatprep.subr.bf16.mxu0 0
  %1337 = vmatpush1.bf16.msra.mxu0 0
  %1338 = vmatprep.subr.bf16.mxu0 0
  %1339 = vmatpush1.bf16.msra.mxu0 0
  %1340 = vmatprep.subr.bf16.mxu0 0
  %1341 = vmatpush1.bf16.msra.mxu0 0
  %1342 = vmatprep.subr.bf16.mxu0 0
  %1343 = vmatpush1.bf16.msra.mxu0 0
  %1344 = vmatprep.subr.bf16.mxu0 0
  %1345 = vmatpush1.bf16.msra.mxu0 0
  %1346 = vmatprep.subr.bf16.mxu0 0
  %1347 = vmatpush1.bf16.msra.mxu0 0
  %1348 = vmatprep.subr.bf16.mxu0 0
  %1349 = vmatpush1.bf16.msra.mxu0 0
  %1350 = vmatprep.subr.bf16.mxu0 0
  %1351 = vmatpush1.bf16.msra.mxu0 0
  %1352 = vmatprep.subr.bf16.mxu0 0
  %1353 = vmatpush1.bf16.msra.mxu0 0
  %1354 = vmatprep.subr.bf16.mxu0 0
  %1355 = vmatpush1.bf16.msra.mxu0 0
  %1356 = vmatprep.subr.bf16.mxu0 0
  %1357 = vmatpush1.bf16.msra.mxu0 0
  %1358 = vmatprep.subr.bf16.mxu0 0
  %1359 = vmatpush1.bf16.msra.mxu0 0
  %1360 = vmatprep.subr.bf16.mxu0 0
  %1361 = vmatpush1.bf16.msra.mxu0 0
  %1362 = vmatprep.subr.bf16.mxu0 0
  %1363 = vmatpush1.bf16.msra.mxu0 0
  %1364 = vmatprep.subr.bf16.mxu0 0
  %1365 = vmatpush1.bf16.msra.mxu0 0
  %1366 = vmatprep.mubr.bf16.mxu0 0
  %1367 = vmatmul.mubr.bf16.gmra.mrb[0].mxu0 %v1282
  %v1368 = vpop.f32.mrb[0].mxu0
  %v1369 = vadd.f32 0.0, %v1368
  %v1370 = vpop.f32.mrb[0].mxu0
  %v1371 = vpop.f32.mrb[0].mxu0
  %v1372 = vpop.f32.mrb[0].mxu0
  %1373 = vdwg.mxu0
  %v1374 = vadd.f32 %v1225, %v1328
  %v1375 = vadd.f32 %v1227, %v1330
  %v1376 = vadd.f32 %v1266, %v1369
  %s1377 = scalar_lea.vmem %s4, 12
  %v1378 = vld [vmem:[%s1377] sm:$0xf]
  %1379 = vrot.lane.b32.xlu0 %v1064, 110
  %v1380 = vpop.permute.xlu0 %1379
  %1381 = vrot.lane.b32.xlu0 %v1065, 110
  %v1382 = vpop.permute.xlu0 %1381
  %1383 = vrot.lane.b32.xlu0 %v1066, 110
  %v1384 = vpop.permute.xlu0 %1383
  %v1385 = vsel %vm366, %v1380, %v1382
  %v1386 = vsel %vm366, %v1382, %v1384
  %v1388 = vsel %vm1081, %v1378, 0
  %v1391 = vand.u32 %v1385, %v1087
  %v1394 = vand.u32 %v1386, %v1087
  %v1397 = vand.u32 %v1384, %v1087
  %1399 = vmatprep.subr.bf16.mxu0 %v1394
  %1400 = vmatpush1.bf16.msra.mxu0 %v1391
  %1401 = vmatprep.subr.bf16.mxu0 0
  %1402 = vmatpush1.bf16.msra.mxu0 0
  %1403 = vmatprep.subr.bf16.mxu0 0
  %1404 = vmatpush1.bf16.msra.mxu0 0
  %1405 = vmatprep.subr.bf16.mxu0 0
  %1406 = vmatpush1.bf16.msra.mxu0 0
  %1407 = vmatprep.subr.bf16.mxu0 0
  %1408 = vmatpush1.bf16.msra.mxu0 0
  %1409 = vmatprep.subr.bf16.mxu0 0
  %1410 = vmatpush1.bf16.msra.mxu0 0
  %1411 = vmatprep.subr.bf16.mxu0 0
  %1412 = vmatpush1.bf16.msra.mxu0 0
  %1413 = vmatprep.subr.bf16.mxu0 0
  %1414 = vmatpush1.bf16.msra.mxu0 0
  %1415 = vmatprep.subr.bf16.mxu0 0
  %1416 = vmatpush1.bf16.msra.mxu0 0
  %1417 = vmatprep.subr.bf16.mxu0 0
  %1418 = vmatpush1.bf16.msra.mxu0 0
  %1419 = vmatprep.subr.bf16.mxu0 0
  %1420 = vmatpush1.bf16.msra.mxu0 0
  %1421 = vmatprep.subr.bf16.mxu0 0
  %1422 = vmatpush1.bf16.msra.mxu0 0
  %1423 = vmatprep.subr.bf16.mxu0 0
  %1424 = vmatpush1.bf16.msra.mxu0 0
  %1425 = vmatprep.subr.bf16.mxu0 0
  %1426 = vmatpush1.bf16.msra.mxu0 0
  %1427 = vmatprep.subr.bf16.mxu0 0
  %1428 = vmatpush1.bf16.msra.mxu0 0
  %1429 = vmatprep.subr.bf16.mxu0 0
  %1430 = vmatpush1.bf16.msra.mxu0 0
  %1431 = vmatprep.mubr.bf16.mxu0 0
  %1432 = vmatmul.mubr.bf16.gmra.mrb[0].mxu0 %v1388
  %v1433 = vpop.f32.mrb[0].mxu0
  %v1434 = vadd.f32 0.0, %v1433
  %v1435 = vpop.f32.mrb[0].mxu0
  %v1436 = vadd.f32 0.0, %v1435
  %v1437 = vpop.f32.mrb[0].mxu0
  %v1438 = vpop.f32.mrb[0].mxu0
  %1439 = vdwg.mxu0
  %1440 = vmatprep.subr.bf16.mxu0 0
  %1441 = vmatpush1.bf16.msra.mxu0 %v1397
  %1442 = vmatprep.subr.bf16.mxu0 0
  %1443 = vmatpush1.bf16.msra.mxu0 0
  %1444 = vmatprep.subr.bf16.mxu0 0
  %1445 = vmatpush1.bf16.msra.mxu0 0
  %1446 = vmatprep.subr.bf16.mxu0 0
  %1447 = vmatpush1.bf16.msra.mxu0 0
  %1448 = vmatprep.subr.bf16.mxu0 0
  %1449 = vmatpush1.bf16.msra.mxu0 0
  %1450 = vmatprep.subr.bf16.mxu0 0
  %1451 = vmatpush1.bf16.msra.mxu0 0
  %1452 = vmatprep.subr.bf16.mxu0 0
  %1453 = vmatpush1.bf16.msra.mxu0 0
  %1454 = vmatprep.subr.bf16.mxu0 0
  %1455 = vmatpush1.bf16.msra.mxu0 0
  %1456 = vmatprep.subr.bf16.mxu0 0
  %1457 = vmatpush1.bf16.msra.mxu0 0
  %1458 = vmatprep.subr.bf16.mxu0 0
  %1459 = vmatpush1.bf16.msra.mxu0 0
  %1460 = vmatprep.subr.bf16.mxu0 0
  %1461 = vmatpush1.bf16.msra.mxu0 0
  %1462 = vmatprep.subr.bf16.mxu0 0
  %1463 = vmatpush1.bf16.msra.mxu0 0
  %1464 = vmatprep.subr.bf16.mxu0 0
  %1465 = vmatpush1.bf16.msra.mxu0 0
  %1466 = vmatprep.subr.bf16.mxu0 0
  %1467 = vmatpush1.bf16.msra.mxu0 0
  %1468 = vmatprep.subr.bf16.mxu0 0
  %1469 = vmatpush1.bf16.msra.mxu0 0
  %1470 = vmatprep.subr.bf16.mxu0 0
  %1471 = vmatpush1.bf16.msra.mxu0 0
  %1472 = vmatprep.mubr.bf16.mxu0 0
  %1473 = vmatmul.mubr.bf16.gmra.mrb[0].mxu0 %v1388
  %v1474 = vpop.f32.mrb[0].mxu0
  %v1475 = vadd.f32 0.0, %v1474
  %v1476 = vpop.f32.mrb[0].mxu0
  %v1477 = vpop.f32.mrb[0].mxu0
  %v1478 = vpop.f32.mrb[0].mxu0
  %1479 = vdwg.mxu0
  %v1480 = vadd.f32 %v1374, %v1434
  %v1481 = vadd.f32 %v1375, %v1436
  %v1482 = vadd.f32 %v1376, %v1475
  %s1483 = scalar_lea.vmem %s4, 16
  %v1484 = vld [vmem:[%s1483] sm:$0xf]
  %1485 = vrot.lane.b32.xlu0 %v1064, 109
  %v1486 = vpop.permute.xlu0 %1485
  %1487 = vrot.lane.b32.xlu0 %v1065, 109
  %v1488 = vpop.permute.xlu0 %1487
  %1489 = vrot.lane.b32.xlu0 %v1066, 109
  %v1490 = vpop.permute.xlu0 %1489
  %v1491 = vsel %vm473, %v1486, %v1488
  %v1492 = vsel %vm473, %v1488, %v1490
  %v1494 = vsel %vm1081, %v1484, 0
  %v1497 = vand.u32 %v1491, %v1087
  %v1500 = vand.u32 %v1492, %v1087
  %v1503 = vand.u32 %v1490, %v1087
  %1505 = vmatprep.subr.bf16.mxu0 %v1500
  %1506 = vmatpush1.bf16.msra.mxu0 %v1497
  %1507 = vmatprep.subr.bf16.mxu0 0
  %1508 = vmatpush1.bf16.msra.mxu0 0
  %1509 = vmatprep.subr.bf16.mxu0 0
  %1510 = vmatpush1.bf16.msra.mxu0 0
  %1511 = vmatprep.subr.bf16.mxu0 0
  %1512 = vmatpush1.bf16.msra.mxu0 0
  %1513 = vmatprep.subr.bf16.mxu0 0
  %1514 = vmatpush1.bf16.msra.mxu0 0
  %1515 = vmatprep.subr.bf16.mxu0 0
  %1516 = vmatpush1.bf16.msra.mxu0 0
  %1517 = vmatprep.subr.bf16.mxu0 0
  %1518 = vmatpush1.bf16.msra.mxu0 0
  %1519 = vmatprep.subr.bf16.mxu0 0
  %1520 = vmatpush1.bf16.msra.mxu0 0
  %1521 = vmatprep.subr.bf16.mxu0 0
  %1522 = vmatpush1.bf16.msra.mxu0 0
  %1523 = vmatprep.subr.bf16.mxu0 0
  %1524 = vmatpush1.bf16.msra.mxu0 0
  %1525 = vmatprep.subr.bf16.mxu0 0
  %1526 = vmatpush1.bf16.msra.mxu0 0
  %1527 = vmatprep.subr.bf16.mxu0 0
  %1528 = vmatpush1.bf16.msra.mxu0 0
  %1529 = vmatprep.subr.bf16.mxu0 0
  %1530 = vmatpush1.bf16.msra.mxu0 0
  %1531 = vmatprep.subr.bf16.mxu0 0
  %1532 = vmatpush1.bf16.msra.mxu0 0
  %1533 = vmatprep.subr.bf16.mxu0 0
  %1534 = vmatpush1.bf16.msra.mxu0 0
  %1535 = vmatprep.subr.bf16.mxu0 0
  %1536 = vmatpush1.bf16.msra.mxu0 0
  %1537 = vmatprep.mubr.bf16.mxu0 0
  %1538 = vmatmul.mubr.bf16.gmra.mrb[0].mxu0 %v1494
  %v1539 = vpop.f32.mrb[0].mxu0
  %v1540 = vadd.f32 0.0, %v1539
  %v1541 = vpop.f32.mrb[0].mxu0
  %v1542 = vadd.f32 0.0, %v1541
  %v1543 = vpop.f32.mrb[0].mxu0
  %v1544 = vpop.f32.mrb[0].mxu0
  %1545 = vdwg.mxu0
  %1546 = vmatprep.subr.bf16.mxu0 0
  %1547 = vmatpush1.bf16.msra.mxu0 %v1503
  %1548 = vmatprep.subr.bf16.mxu0 0
  %1549 = vmatpush1.bf16.msra.mxu0 0
  %1550 = vmatprep.subr.bf16.mxu0 0
  %1551 = vmatpush1.bf16.msra.mxu0 0
  %1552 = vmatprep.subr.bf16.mxu0 0
  %1553 = vmatpush1.bf16.msra.mxu0 0
  %1554 = vmatprep.subr.bf16.mxu0 0
  %1555 = vmatpush1.bf16.msra.mxu0 0
  %1556 = vmatprep.subr.bf16.mxu0 0
  %1557 = vmatpush1.bf16.msra.mxu0 0
  %1558 = vmatprep.subr.bf16.mxu0 0
  %1559 = vmatpush1.bf16.msra.mxu0 0
  %1560 = vmatprep.subr.bf16.mxu0 0
  %1561 = vmatpush1.bf16.msra.mxu0 0
  %1562 = vmatprep.subr.bf16.mxu0 0
  %1563 = vmatpush1.bf16.msra.mxu0 0
  %1564 = vmatprep.subr.bf16.mxu0 0
  %1565 = vmatpush1.bf16.msra.mxu0 0
  %1566 = vmatprep.subr.bf16.mxu0 0
  %1567 = vmatpush1.bf16.msra.mxu0 0
  %1568 = vmatprep.subr.bf16.mxu0 0
  %1569 = vmatpush1.bf16.msra.mxu0 0
  %1570 = vmatprep.subr.bf16.mxu0 0
  %1571 = vmatpush1.bf16.msra.mxu0 0
  %1572 = vmatprep.subr.bf16.mxu0 0
  %1573 = vmatpush1.bf16.msra.mxu0 0
  %1574 = vmatprep.subr.bf16.mxu0 0
  %1575 = vmatpush1.bf16.msra.mxu0 0
  %1576 = vmatprep.subr.bf16.mxu0 0
  %1577 = vmatpush1.bf16.msra.mxu0 0
  %1578 = vmatprep.mubr.bf16.mxu0 0
  %1579 = vmatmul.mubr.bf16.gmra.mrb[0].mxu0 %v1494
  %v1580 = vpop.f32.mrb[0].mxu0
  %v1581 = vadd.f32 0.0, %v1580
  %v1582 = vpop.f32.mrb[0].mxu0
  %v1583 = vpop.f32.mrb[0].mxu0
  %v1584 = vpop.f32.mrb[0].mxu0
  %1585 = vdwg.mxu0
  %v1586 = vadd.f32 %v1480, %v1540
  %v1587 = vadd.f32 %v1481, %v1542
  %v1588 = vadd.f32 %v1482, %v1581
  %s1589 = scalar_lea.vmem %s4, 20
  %v1590 = vld [vmem:[%s1589] sm:$0xf]
  %1591 = vrot.lane.b32.xlu0 %v1064, 108
  %v1592 = vpop.permute.xlu0 %1591
  %1593 = vrot.lane.b32.xlu0 %v1065, 108
  %v1594 = vpop.permute.xlu0 %1593
  %1595 = vrot.lane.b32.xlu0 %v1066, 108
  %v1596 = vpop.permute.xlu0 %1595
  %v1597 = vsel %vm580, %v1592, %v1594
  %v1598 = vsel %vm580, %v1594, %v1596
  %v1600 = vsel %vm1081, %v1590, 0
  %v1603 = vand.u32 %v1597, %v1087
  %v1606 = vand.u32 %v1598, %v1087
  %v1609 = vand.u32 %v1596, %v1087
  %1611 = vmatprep.subr.bf16.mxu0 %v1606
  %1612 = vmatpush1.bf16.msra.mxu0 %v1603
  %1613 = vmatprep.subr.bf16.mxu0 0
  %1614 = vmatpush1.bf16.msra.mxu0 0
  %1615 = vmatprep.subr.bf16.mxu0 0
  %1616 = vmatpush1.bf16.msra.mxu0 0
  %1617 = vmatprep.subr.bf16.mxu0 0
  %1618 = vmatpush1.bf16.msra.mxu0 0
  %1619 = vmatprep.subr.bf16.mxu0 0
  %1620 = vmatpush1.bf16.msra.mxu0 0
  %1621 = vmatprep.subr.bf16.mxu0 0
  %1622 = vmatpush1.bf16.msra.mxu0 0
  %1623 = vmatprep.subr.bf16.mxu0 0
  %1624 = vmatpush1.bf16.msra.mxu0 0
  %1625 = vmatprep.subr.bf16.mxu0 0
  %1626 = vmatpush1.bf16.msra.mxu0 0
  %1627 = vmatprep.subr.bf16.mxu0 0
  %1628 = vmatpush1.bf16.msra.mxu0 0
  %1629 = vmatprep.subr.bf16.mxu0 0
  %1630 = vmatpush1.bf16.msra.mxu0 0
  %1631 = vmatprep.subr.bf16.mxu0 0
  %1632 = vmatpush1.bf16.msra.mxu0 0
  %1633 = vmatprep.subr.bf16.mxu0 0
  %1634 = vmatpush1.bf16.msra.mxu0 0
  %1635 = vmatprep.subr.bf16.mxu0 0
  %1636 = vmatpush1.bf16.msra.mxu0 0
  %1637 = vmatprep.subr.bf16.mxu0 0
  %1638 = vmatpush1.bf16.msra.mxu0 0
  %1639 = vmatprep.subr.bf16.mxu0 0
  %1640 = vmatpush1.bf16.msra.mxu0 0
  %1641 = vmatprep.subr.bf16.mxu0 0
  %1642 = vmatpush1.bf16.msra.mxu0 0
  %1643 = vmatprep.mubr.bf16.mxu0 0
  %1644 = vmatmul.mubr.bf16.gmra.mrb[0].mxu0 %v1600
  %v1645 = vpop.f32.mrb[0].mxu0
  %v1646 = vadd.f32 0.0, %v1645
  %v1647 = vpop.f32.mrb[0].mxu0
  %v1648 = vadd.f32 0.0, %v1647
  %v1649 = vpop.f32.mrb[0].mxu0
  %v1650 = vpop.f32.mrb[0].mxu0
  %1651 = vdwg.mxu0
  %1652 = vmatprep.subr.bf16.mxu0 0
  %1653 = vmatpush1.bf16.msra.mxu0 %v1609
  %1654 = vmatprep.subr.bf16.mxu0 0
  %1655 = vmatpush1.bf16.msra.mxu0 0
  %1656 = vmatprep.subr.bf16.mxu0 0
  %1657 = vmatpush1.bf16.msra.mxu0 0
  %1658 = vmatprep.subr.bf16.mxu0 0
  %1659 = vmatpush1.bf16.msra.mxu0 0
  %1660 = vmatprep.subr.bf16.mxu0 0
  %1661 = vmatpush1.bf16.msra.mxu0 0
  %1662 = vmatprep.subr.bf16.mxu0 0
  %1663 = vmatpush1.bf16.msra.mxu0 0
  %1664 = vmatprep.subr.bf16.mxu0 0
  %1665 = vmatpush1.bf16.msra.mxu0 0
  %1666 = vmatprep.subr.bf16.mxu0 0
  %1667 = vmatpush1.bf16.msra.mxu0 0
  %1668 = vmatprep.subr.bf16.mxu0 0
  %1669 = vmatpush1.bf16.msra.mxu0 0
  %1670 = vmatprep.subr.bf16.mxu0 0
  %1671 = vmatpush1.bf16.msra.mxu0 0
  %1672 = vmatprep.subr.bf16.mxu0 0
  %1673 = vmatpush1.bf16.msra.mxu0 0
  %1674 = vmatprep.subr.bf16.mxu0 0
  %1675 = vmatpush1.bf16.msra.mxu0 0
  %1676 = vmatprep.subr.bf16.mxu0 0
  %1677 = vmatpush1.bf16.msra.mxu0 0
  %1678 = vmatprep.subr.bf16.mxu0 0
  %1679 = vmatpush1.bf16.msra.mxu0 0
  %1680 = vmatprep.subr.bf16.mxu0 0
  %1681 = vmatpush1.bf16.msra.mxu0 0
  %1682 = vmatprep.subr.bf16.mxu0 0
  %1683 = vmatpush1.bf16.msra.mxu0 0
  %1684 = vmatprep.mubr.bf16.mxu0 0
  %1685 = vmatmul.mubr.bf16.gmra.mrb[0].mxu0 %v1600
  %v1686 = vpop.f32.mrb[0].mxu0
  %v1687 = vadd.f32 0.0, %v1686
  %v1688 = vpop.f32.mrb[0].mxu0
  %v1689 = vpop.f32.mrb[0].mxu0
  %v1690 = vpop.f32.mrb[0].mxu0
  %1691 = vdwg.mxu0
  %v1692 = vadd.f32 %v1586, %v1646
  %v1693 = vadd.f32 %v1587, %v1648
  %v1694 = vadd.f32 %v1588, %v1687
  %s1695 = scalar_lea.vmem %s4, 24
  %v1696 = vld [vmem:[%s1695] sm:$0xf]
  %1697 = vrot.lane.b32.xlu0 %v1064, 92
  %v1698 = vpop.permute.xlu0 %1697
  %1699 = vrot.lane.b32.xlu0 %v1065, 92
  %v1700 = vpop.permute.xlu0 %1699
  %1701 = vrot.lane.b32.xlu0 %v1066, 92
  %v1702 = vpop.permute.xlu0 %1701
  %v1703 = vsel %vm687, %v1698, %v1700
  %v1704 = vsel %vm687, %v1700, %v1702
  %v1706 = vsel %vm1081, %v1696, 0
  %v1709 = vand.u32 %v1703, %v1087
  %v1712 = vand.u32 %v1704, %v1087
  %v1715 = vand.u32 %v1702, %v1087
  %1717 = vmatprep.subr.bf16.mxu0 %v1712
  %1718 = vmatpush1.bf16.msra.mxu0 %v1709
  %1719 = vmatprep.subr.bf16.mxu0 0
  %1720 = vmatpush1.bf16.msra.mxu0 0
  %1721 = vmatprep.subr.bf16.mxu0 0
  %1722 = vmatpush1.bf16.msra.mxu0 0
  %1723 = vmatprep.subr.bf16.mxu0 0
  %1724 = vmatpush1.bf16.msra.mxu0 0
  %1725 = vmatprep.subr.bf16.mxu0 0
  %1726 = vmatpush1.bf16.msra.mxu0 0
  %1727 = vmatprep.subr.bf16.mxu0 0
  %1728 = vmatpush1.bf16.msra.mxu0 0
  %1729 = vmatprep.subr.bf16.mxu0 0
  %1730 = vmatpush1.bf16.msra.mxu0 0
  %1731 = vmatprep.subr.bf16.mxu0 0
  %1732 = vmatpush1.bf16.msra.mxu0 0
  %1733 = vmatprep.subr.bf16.mxu0 0
  %1734 = vmatpush1.bf16.msra.mxu0 0
  %1735 = vmatprep.subr.bf16.mxu0 0
  %1736 = vmatpush1.bf16.msra.mxu0 0
  %1737 = vmatprep.subr.bf16.mxu0 0
  %1738 = vmatpush1.bf16.msra.mxu0 0
  %1739 = vmatprep.subr.bf16.mxu0 0
  %1740 = vmatpush1.bf16.msra.mxu0 0
  %1741 = vmatprep.subr.bf16.mxu0 0
  %1742 = vmatpush1.bf16.msra.mxu0 0
  %1743 = vmatprep.subr.bf16.mxu0 0
  %1744 = vmatpush1.bf16.msra.mxu0 0
  %1745 = vmatprep.subr.bf16.mxu0 0
  %1746 = vmatpush1.bf16.msra.mxu0 0
  %1747 = vmatprep.subr.bf16.mxu0 0
  %1748 = vmatpush1.bf16.msra.mxu0 0
  %1749 = vmatprep.mubr.bf16.mxu0 0
  %1750 = vmatmul.mubr.bf16.gmra.mrb[0].mxu0 %v1706
  %v1751 = vpop.f32.mrb[0].mxu0
  %v1752 = vadd.f32 0.0, %v1751
  %v1753 = vpop.f32.mrb[0].mxu0
  %v1754 = vadd.f32 0.0, %v1753
  %v1755 = vpop.f32.mrb[0].mxu0
  %v1756 = vpop.f32.mrb[0].mxu0
  %1757 = vdwg.mxu0
  %1758 = vmatprep.subr.bf16.mxu0 0
  %1759 = vmatpush1.bf16.msra.mxu0 %v1715
  %1760 = vmatprep.subr.bf16.mxu0 0
  %1761 = vmatpush1.bf16.msra.mxu0 0
  %1762 = vmatprep.subr.bf16.mxu0 0
  %1763 = vmatpush1.bf16.msra.mxu0 0
  %1764 = vmatprep.subr.bf16.mxu0 0
  %1765 = vmatpush1.bf16.msra.mxu0 0
  %1766 = vmatprep.subr.bf16.mxu0 0
  %1767 = vmatpush1.bf16.msra.mxu0 0
  %1768 = vmatprep.subr.bf16.mxu0 0
  %1769 = vmatpush1.bf16.msra.mxu0 0
  %1770 = vmatprep.subr.bf16.mxu0 0
  %1771 = vmatpush1.bf16.msra.mxu0 0
  %1772 = vmatprep.subr.bf16.mxu0 0
  %1773 = vmatpush1.bf16.msra.mxu0 0
  %1774 = vmatprep.subr.bf16.mxu0 0
  %1775 = vmatpush1.bf16.msra.mxu0 0
  %1776 = vmatprep.subr.bf16.mxu0 0
  %1777 = vmatpush1.bf16.msra.mxu0 0
  %1778 = vmatprep.subr.bf16.mxu0 0
  %1779 = vmatpush1.bf16.msra.mxu0 0
  %1780 = vmatprep.subr.bf16.mxu0 0
  %1781 = vmatpush1.bf16.msra.mxu0 0
  %1782 = vmatprep.subr.bf16.mxu0 0
  %1783 = vmatpush1.bf16.msra.mxu0 0
  %1784 = vmatprep.subr.bf16.mxu0 0
  %1785 = vmatpush1.bf16.msra.mxu0 0
  %1786 = vmatprep.subr.bf16.mxu0 0
  %1787 = vmatpush1.bf16.msra.mxu0 0
  %1788 = vmatprep.subr.bf16.mxu0 0
  %1789 = vmatpush1.bf16.msra.mxu0 0
  %1790 = vmatprep.mubr.bf16.mxu0 0
  %1791 = vmatmul.mubr.bf16.gmra.mrb[0].mxu0 %v1706
  %v1792 = vpop.f32.mrb[0].mxu0
  %v1793 = vadd.f32 0.0, %v1792
  %v1794 = vpop.f32.mrb[0].mxu0
  %v1795 = vpop.f32.mrb[0].mxu0
  %v1796 = vpop.f32.mrb[0].mxu0
  %1797 = vdwg.mxu0
  %v1798 = vadd.f32 %v1692, %v1752
  %v1799 = vadd.f32 %v1693, %v1754
  %v1800 = vadd.f32 %v1694, %v1793
  %s1801 = scalar_lea.vmem %s4, 28
  %v1802 = vld [vmem:[%s1801] sm:$0xf]
  %1803 = vrot.lane.b32.xlu0 %v1064, 91
  %v1804 = vpop.permute.xlu0 %1803
  %1805 = vrot.lane.b32.xlu0 %v1065, 91
  %v1806 = vpop.permute.xlu0 %1805
  %1807 = vrot.lane.b32.xlu0 %v1066, 91
  %v1808 = vpop.permute.xlu0 %1807
  %v1809 = vsel %vm794, %v1804, %v1806
  %v1810 = vsel %vm794, %v1806, %v1808
  %v1812 = vsel %vm1081, %v1802, 0
  %v1815 = vand.u32 %v1809, %v1087
  %v1818 = vand.u32 %v1810, %v1087
  %v1821 = vand.u32 %v1808, %v1087
  %1823 = vmatprep.subr.bf16.mxu0 %v1818
  %1824 = vmatpush1.bf16.msra.mxu0 %v1815
  %1825 = vmatprep.subr.bf16.mxu0 0
  %1826 = vmatpush1.bf16.msra.mxu0 0
  %1827 = vmatprep.subr.bf16.mxu0 0
  %1828 = vmatpush1.bf16.msra.mxu0 0
  %1829 = vmatprep.subr.bf16.mxu0 0
  %1830 = vmatpush1.bf16.msra.mxu0 0
  %1831 = vmatprep.subr.bf16.mxu0 0
  %1832 = vmatpush1.bf16.msra.mxu0 0
  %1833 = vmatprep.subr.bf16.mxu0 0
  %1834 = vmatpush1.bf16.msra.mxu0 0
  %1835 = vmatprep.subr.bf16.mxu0 0
  %1836 = vmatpush1.bf16.msra.mxu0 0
  %1837 = vmatprep.subr.bf16.mxu0 0
  %1838 = vmatpush1.bf16.msra.mxu0 0
  %1839 = vmatprep.subr.bf16.mxu0 0
  %1840 = vmatpush1.bf16.msra.mxu0 0
  %1841 = vmatprep.subr.bf16.mxu0 0
  %1842 = vmatpush1.bf16.msra.mxu0 0
  %1843 = vmatprep.subr.bf16.mxu0 0
  %1844 = vmatpush1.bf16.msra.mxu0 0
  %1845 = vmatprep.subr.bf16.mxu0 0
  %1846 = vmatpush1.bf16.msra.mxu0 0
  %1847 = vmatprep.subr.bf16.mxu0 0
  %1848 = vmatpush1.bf16.msra.mxu0 0
  %1849 = vmatprep.subr.bf16.mxu0 0
  %1850 = vmatpush1.bf16.msra.mxu0 0
  %1851 = vmatprep.subr.bf16.mxu0 0
  %1852 = vmatpush1.bf16.msra.mxu0 0
  %1853 = vmatprep.subr.bf16.mxu0 0
  %1854 = vmatpush1.bf16.msra.mxu0 0
  %1855 = vmatprep.mubr.bf16.mxu0 0
  %1856 = vmatmul.mubr.bf16.gmra.mrb[0].mxu0 %v1812
  %v1857 = vpop.f32.mrb[0].mxu0
  %v1858 = vadd.f32 0.0, %v1857
  %v1859 = vpop.f32.mrb[0].mxu0
  %v1860 = vadd.f32 0.0, %v1859
  %v1861 = vpop.f32.mrb[0].mxu0
  %v1862 = vpop.f32.mrb[0].mxu0
  %1863 = vdwg.mxu0
  %1864 = vmatprep.subr.bf16.mxu0 0
  %1865 = vmatpush1.bf16.msra.mxu0 %v1821
  %1866 = vmatprep.subr.bf16.mxu0 0
  %1867 = vmatpush1.bf16.msra.mxu0 0
  %1868 = vmatprep.subr.bf16.mxu0 0
  %1869 = vmatpush1.bf16.msra.mxu0 0
  %1870 = vmatprep.subr.bf16.mxu0 0
  %1871 = vmatpush1.bf16.msra.mxu0 0
  %1872 = vmatprep.subr.bf16.mxu0 0
  %1873 = vmatpush1.bf16.msra.mxu0 0
  %1874 = vmatprep.subr.bf16.mxu0 0
  %1875 = vmatpush1.bf16.msra.mxu0 0
  %1876 = vmatprep.subr.bf16.mxu0 0
  %1877 = vmatpush1.bf16.msra.mxu0 0
  %1878 = vmatprep.subr.bf16.mxu0 0
  %1879 = vmatpush1.bf16.msra.mxu0 0
  %1880 = vmatprep.subr.bf16.mxu0 0
  %1881 = vmatpush1.bf16.msra.mxu0 0
  %1882 = vmatprep.subr.bf16.mxu0 0
  %1883 = vmatpush1.bf16.msra.mxu0 0
  %1884 = vmatprep.subr.bf16.mxu0 0
  %1885 = vmatpush1.bf16.msra.mxu0 0
  %1886 = vmatprep.subr.bf16.mxu0 0
  %1887 = vmatpush1.bf16.msra.mxu0 0
  %1888 = vmatprep.subr.bf16.mxu0 0
  %1889 = vmatpush1.bf16.msra.mxu0 0
  %1890 = vmatprep.subr.bf16.mxu0 0
  %1891 = vmatpush1.bf16.msra.mxu0 0
  %1892 = vmatprep.subr.bf16.mxu0 0
  %1893 = vmatpush1.bf16.msra.mxu0 0
  %1894 = vmatprep.subr.bf16.mxu0 0
  %1895 = vmatpush1.bf16.msra.mxu0 0
  %1896 = vmatprep.mubr.bf16.mxu0 0
  %1897 = vmatmul.mubr.bf16.gmra.mrb[0].mxu0 %v1812
  %v1898 = vpop.f32.mrb[0].mxu0
  %v1899 = vadd.f32 0.0, %v1898
  %v1900 = vpop.f32.mrb[0].mxu0
  %v1901 = vpop.f32.mrb[0].mxu0
  %v1902 = vpop.f32.mrb[0].mxu0
  %1903 = vdwg.mxu0
  %v1904 = vadd.f32 %v1798, %v1858
  %v1905 = vadd.f32 %v1799, %v1860
  %v1906 = vadd.f32 %v1800, %v1899
  %s1907 = scalar_lea.vmem %s4, 32
  %v1908 = vld [vmem:[%s1907] sm:$0xf]
  %1909 = vrot.lane.b32.xlu0 %v1064, 90
  %v1910 = vpop.permute.xlu0 %1909
  %1911 = vrot.lane.b32.xlu0 %v1065, 90
  %v1912 = vpop.permute.xlu0 %1911
  %1913 = vrot.lane.b32.xlu0 %v1066, 90
  %v1914 = vpop.permute.xlu0 %1913
  %v1915 = vsel %vm901, %v1910, %v1912
  %v1916 = vsel %vm901, %v1912, %v1914
  %v1918 = vsel %vm1081, %v1908, 0
  %v1921 = vand.u32 %v1915, %v1087
  %v1924 = vand.u32 %v1916, %v1087
  %v1927 = vand.u32 %v1914, %v1087
  %1929 = vmatprep.subr.bf16.mxu0 %v1924
  %1930 = vmatpush1.bf16.msra.mxu0 %v1921
  %1931 = vmatprep.subr.bf16.mxu0 0
  %1932 = vmatpush1.bf16.msra.mxu0 0
  %1933 = vmatprep.subr.bf16.mxu0 0
  %1934 = vmatpush1.bf16.msra.mxu0 0
  %1935 = vmatprep.subr.bf16.mxu0 0
  %1936 = vmatpush1.bf16.msra.mxu0 0
  %1937 = vmatprep.subr.bf16.mxu0 0
  %1938 = vmatpush1.bf16.msra.mxu0 0
  %1939 = vmatprep.subr.bf16.mxu0 0
  %1940 = vmatpush1.bf16.msra.mxu0 0
  %1941 = vmatprep.subr.bf16.mxu0 0
  %1942 = vmatpush1.bf16.msra.mxu0 0
  %1943 = vmatprep.subr.bf16.mxu0 0
  %1944 = vmatpush1.bf16.msra.mxu0 0
  %1945 = vmatprep.subr.bf16.mxu0 0
  %1946 = vmatpush1.bf16.msra.mxu0 0
  %1947 = vmatprep.subr.bf16.mxu0 0
  %1948 = vmatpush1.bf16.msra.mxu0 0
  %1949 = vmatprep.subr.bf16.mxu0 0
  %1950 = vmatpush1.bf16.msra.mxu0 0
  %1951 = vmatprep.subr.bf16.mxu0 0
  %1952 = vmatpush1.bf16.msra.mxu0 0
  %1953 = vmatprep.subr.bf16.mxu0 0
  %1954 = vmatpush1.bf16.msra.mxu0 0
  %1955 = vmatprep.subr.bf16.mxu0 0
  %1956 = vmatpush1.bf16.msra.mxu0 0
  %1957 = vmatprep.subr.bf16.mxu0 0
  %1958 = vmatpush1.bf16.msra.mxu0 0
  %1959 = vmatprep.subr.bf16.mxu0 0
  %1960 = vmatpush1.bf16.msra.mxu0 0
  %1961 = vmatprep.mubr.bf16.mxu0 0
  %1962 = vmatmul.mubr.bf16.gmra.mrb[0].mxu0 %v1918
  %v1963 = vpop.f32.mrb[0].mxu0
  %v1964 = vadd.f32 0.0, %v1963
  %v1965 = vpop.f32.mrb[0].mxu0
  %v1966 = vadd.f32 0.0, %v1965
  %v1967 = vpop.f32.mrb[0].mxu0
  %v1968 = vpop.f32.mrb[0].mxu0
  %1969 = vdwg.mxu0
  %1970 = vmatprep.subr.bf16.mxu0 0
  %1971 = vmatpush1.bf16.msra.mxu0 %v1927
  %1972 = vmatprep.subr.bf16.mxu0 0
  %1973 = vmatpush1.bf16.msra.mxu0 0
  %1974 = vmatprep.subr.bf16.mxu0 0
  %1975 = vmatpush1.bf16.msra.mxu0 0
  %1976 = vmatprep.subr.bf16.mxu0 0
  %1977 = vmatpush1.bf16.msra.mxu0 0
  %1978 = vmatprep.subr.bf16.mxu0 0
  %1979 = vmatpush1.bf16.msra.mxu0 0
  %1980 = vmatprep.subr.bf16.mxu0 0
  %1981 = vmatpush1.bf16.msra.mxu0 0
  %1982 = vmatprep.subr.bf16.mxu0 0
  %1983 = vmatpush1.bf16.msra.mxu0 0
  %1984 = vmatprep.subr.bf16.mxu0 0
  %1985 = vmatpush1.bf16.msra.mxu0 0
  %1986 = vmatprep.subr.bf16.mxu0 0
  %1987 = vmatpush1.bf16.msra.mxu0 0
  %1988 = vmatprep.subr.bf16.mxu0 0
  %1989 = vmatpush1.bf16.msra.mxu0 0
  %1990 = vmatprep.subr.bf16.mxu0 0
  %1991 = vmatpush1.bf16.msra.mxu0 0
  %1992 = vmatprep.subr.bf16.mxu0 0
  %1993 = vmatpush1.bf16.msra.mxu0 0
  %1994 = vmatprep.subr.bf16.mxu0 0
  %1995 = vmatpush1.bf16.msra.mxu0 0
  %1996 = vmatprep.subr.bf16.mxu0 0
  %1997 = vmatpush1.bf16.msra.mxu0 0
  %1998 = vmatprep.subr.bf16.mxu0 0
  %1999 = vmatpush1.bf16.msra.mxu0 0
  %2000 = vmatprep.subr.bf16.mxu0 0
  %2001 = vmatpush1.bf16.msra.mxu0 0
  %2002 = vmatprep.mubr.bf16.mxu0 0
  %2003 = vmatmul.mubr.bf16.gmra.mrb[0].mxu0 %v1918
  %v2004 = vpop.f32.mrb[0].mxu0
  %v2005 = vadd.f32 0.0, %v2004
  %v2006 = vpop.f32.mrb[0].mxu0
  %v2007 = vpop.f32.mrb[0].mxu0
  %v2008 = vpop.f32.mrb[0].mxu0
  %2009 = vdwg.mxu0
  %v2010 = vadd.f32 %v1904, %v1964
  %v2011 = vadd.f32 %v1905, %v1966
  %v2012 = vadd.f32 %v1906, %v2005
  %v2013 = vld [vmem:[%s5] sm:$0x7f]
  %2015 = vset.pattern.permute.xlu0 0
  %2016 = vperm.xlu0 %2015, %v2013
  %v2017 = vpop.permute.xlu0 %2016
  %v2019 = vadd.f32 %v2010, %v2017
  %v2020 = vadd.f32 %v2011, %v2017
  %v2021 = vadd.f32 %v2012, %v2017
  %v2022 = vld [vmem:[%s6] sm:$0xf]
  %v2023 = vld [vmem:[%s7] sm:$0x7f]
  %2025 = vset.pattern.permute.xlu0 0
  %2026 = vperm.xlu0 %2025, %v2023
  %v2027 = vpop.permute.xlu0 %2026
  %v2030 = vsel %vm60, %v2022, 0
  %2032 = vmatprep.subr.bf16.mxu0 %v483
  %2033 = vmatpush1.bf16.msra.mxu0 %v480
  %2034 = vmatprep.subr.bf16.mxu0 0
  %2035 = vmatpush1.bf16.msra.mxu0 0
  %2036 = vmatprep.subr.bf16.mxu0 0
  %2037 = vmatpush1.bf16.msra.mxu0 0
  %2038 = vmatprep.subr.bf16.mxu0 0
  %2039 = vmatpush1.bf16.msra.mxu0 0
  %2040 = vmatprep.subr.bf16.mxu0 0
  %2041 = vmatpush1.bf16.msra.mxu0 0
  %2042 = vmatprep.subr.bf16.mxu0 0
  %2043 = vmatpush1.bf16.msra.mxu0 0
  %2044 = vmatprep.subr.bf16.mxu0 0
  %2045 = vmatpush1.bf16.msra.mxu0 0
  %2046 = vmatprep.subr.bf16.mxu0 0
  %2047 = vmatpush1.bf16.msra.mxu0 0
  %2048 = vmatprep.subr.bf16.mxu0 0
  %2049 = vmatpush1.bf16.msra.mxu0 0
  %2050 = vmatprep.subr.bf16.mxu0 0
  %2051 = vmatpush1.bf16.msra.mxu0 0
  %2052 = vmatprep.subr.bf16.mxu0 0
  %2053 = vmatpush1.bf16.msra.mxu0 0
  %2054 = vmatprep.subr.bf16.mxu0 0
  %2055 = vmatpush1.bf16.msra.mxu0 0
  %2056 = vmatprep.subr.bf16.mxu0 0
  %2057 = vmatpush1.bf16.msra.mxu0 0
  %2058 = vmatprep.subr.bf16.mxu0 0
  %2059 = vmatpush1.bf16.msra.mxu0 0
  %2060 = vmatprep.subr.bf16.mxu0 0
  %2061 = vmatpush1.bf16.msra.mxu0 0
  %2062 = vmatprep.subr.bf16.mxu0 0
  %2063 = vmatpush1.bf16.msra.mxu0 0
  %2064 = vmatprep.mubr.bf16.mxu0 0
  %2065 = vmatmul.mubr.bf16.gmra.mrb[0].mxu0 %v2030
  %v2066 = vpop.f32.mrb[0].mxu0
  %v2067 = vadd.f32 %v2027, %v2066
  %v2068 = vpop.f32.mrb[0].mxu0
  %v2069 = vadd.f32 %v2027, %v2068
  %v2070 = vpop.f32.mrb[0].mxu0
  %v2071 = vpop.f32.mrb[0].mxu0
  %2072 = vdwg.mxu0
  %2073 = vmatprep.subr.bf16.mxu0 0
  %2074 = vmatpush1.bf16.msra.mxu0 %v486
  %2075 = vmatprep.subr.bf16.mxu0 0
  %2076 = vmatpush1.bf16.msra.mxu0 0
  %2077 = vmatprep.subr.bf16.mxu0 0
  %2078 = vmatpush1.bf16.msra.mxu0 0
  %2079 = vmatprep.subr.bf16.mxu0 0
  %2080 = vmatpush1.bf16.msra.mxu0 0
  %2081 = vmatprep.subr.bf16.mxu0 0
  %2082 = vmatpush1.bf16.msra.mxu0 0
  %2083 = vmatprep.subr.bf16.mxu0 0
  %2084 = vmatpush1.bf16.msra.mxu0 0
  %2085 = vmatprep.subr.bf16.mxu0 0
  %2086 = vmatpush1.bf16.msra.mxu0 0
  %2087 = vmatprep.subr.bf16.mxu0 0
  %2088 = vmatpush1.bf16.msra.mxu0 0
  %2089 = vmatprep.subr.bf16.mxu0 0
  %2090 = vmatpush1.bf16.msra.mxu0 0
  %2091 = vmatprep.subr.bf16.mxu0 0
  %2092 = vmatpush1.bf16.msra.mxu0 0
  %2093 = vmatprep.subr.bf16.mxu0 0
  %2094 = vmatpush1.bf16.msra.mxu0 0
  %2095 = vmatprep.subr.bf16.mxu0 0
  %2096 = vmatpush1.bf16.msra.mxu0 0
  %2097 = vmatprep.subr.bf16.mxu0 0
  %2098 = vmatpush1.bf16.msra.mxu0 0
  %2099 = vmatprep.subr.bf16.mxu0 0
  %2100 = vmatpush1.bf16.msra.mxu0 0
  %2101 = vmatprep.subr.bf16.mxu0 0
  %2102 = vmatpush1.bf16.msra.mxu0 0
  %2103 = vmatprep.subr.bf16.mxu0 0
  %2104 = vmatpush1.bf16.msra.mxu0 0
  %2105 = vmatprep.mubr.bf16.mxu0 0
  %2106 = vmatmul.mubr.bf16.gmra.mrb[0].mxu0 %v2030
  %v2107 = vpop.f32.mrb[0].mxu0
  %v2108 = vadd.f32 %v2027, %v2107
  %v2109 = vpop.f32.mrb[0].mxu0
  %v2110 = vpop.f32.mrb[0].mxu0
  %v2111 = vpop.f32.mrb[0].mxu0
  %2112 = vdwg.mxu0
  %v2113 = vadd.f32 %v2019, %v2067
  %v2114 = vadd.f32 %v2020, %v2069
  %v2115 = vadd.f32 %v2021, %v2108
  %vm2116 = vcmp.gt.f32.partialorder %v2113, 0.0
  %vm2117 = vcmp.gt.f32.partialorder %v2114, 0.0
  %vm2118 = vcmp.gt.f32.partialorder %v2115, 0.0
  %v2119 = vmin.f32 %v2113, 0.0
  %v2120 = vmin.f32 %v2114, 0.0
  %v2121 = vmin.f32 %v2115, 0.0
  %v2122 = vmul.f32 %v2119, 1.442695
  %v2123 = vpow.pop %v2122
  %v2124 = vmul.f32 %v2120, 1.442695
  %v2125 = vpow.pop %v2124
  %v2126 = vmul.f32 %v2121, 1.442695
  %v2127 = vpow.pop %v2126
  %v2128 = vsub.f32 %v2123, 1.0
  %v2129 = vsub.f32 %v2125, 1.0
  %v2130 = vsub.f32 %v2127, 1.0
  %v2131 = vsel %vm2116, %v2113, %v2128
  %v2132 = vsel %vm2117, %v2114, %v2129
  %v2133 = vsel %vm2118, %v2115, %v2130
  %v2134 = vsel %vm1040, %v2131, 0.0
  %v2135 = vsel %vm1041, %v2132, 0.0
  %v2136 = vsel %vm1042, %v2133, 0.0
  %2140 = vrot.lane.b32.xlu0 %v2134, 19
  %v2141 = vpop.permute.xlu0 %2140
  %2142 = vrot.lane.b32.xlu0 %v2135, 19
  %v2143 = vpop.permute.xlu0 %2142
  %2144 = vrot.lane.b32.xlu0 %v2136, 19
  %v2145 = vpop.permute.xlu0 %2144
  %v2146 = vsel %vm1055, %v2141, %v2143
  %v2147 = vsel %vm1055, %v2143, %v2145
  %v2151 = vsel %vm1055, 0.0, %v2141
  %v2152 = vsel %vm1062, %v2147, 0.0
  %v2153 = vpack.c.bf16 %v2151, %v2151
  %v2154 = vpack.c.bf16 %v2146, %v2146
  %v2155 = vpack.c.bf16 %v2152, %v2152
  %v2156 = vld [vmem:[%s8] sm:$0xf]
  %s2157 = scalar_lea.vmem %s8, 4
  %v2158 = vld [vmem:[%s2157] sm:$0xf]
  %2162 = vrot.lane.b32.xlu0 %v2153, 127
  %v2163 = vpop.permute.xlu0 %2162
  %2164 = vrot.lane.b32.xlu0 %v2154, 127
  %v2165 = vpop.permute.xlu0 %2164
  %2166 = vrot.lane.b32.xlu0 %v2155, 127
  %v2167 = vpop.permute.xlu0 %2166
  %v2168 = vsel %vm57, %v2163, %v2165
  %v2169 = vsel %vm57, %v2165, %v2167
  %v2171 = vsel %vm1081, %v2158, 0
  %v2174 = vand.u32 %v2168, %v1087
  %v2177 = vand.u32 %v2169, %v1087
  %v2180 = vand.u32 %v2167, %v1087
  %2182 = vmatprep.subr.bf16.mxu0 %v2177
  %2183 = vmatpush1.bf16.msra.mxu0 %v2174
  %2184 = vmatprep.subr.bf16.mxu0 0
  %2185 = vmatpush1.bf16.msra.mxu0 0
  %2186 = vmatprep.subr.bf16.mxu0 0
  %2187 = vmatpush1.bf16.msra.mxu0 0
  %2188 = vmatprep.subr.bf16.mxu0 0
  %2189 = vmatpush1.bf16.msra.mxu0 0
  %2190 = vmatprep.subr.bf16.mxu0 0
  %2191 = vmatpush1.bf16.msra.mxu0 0
  %2192 = vmatprep.subr.bf16.mxu0 0
  %2193 = vmatpush1.bf16.msra.mxu0 0
  %2194 = vmatprep.subr.bf16.mxu0 0
  %2195 = vmatpush1.bf16.msra.mxu0 0
  %2196 = vmatprep.subr.bf16.mxu0 0
  %2197 = vmatpush1.bf16.msra.mxu0 0
  %2198 = vmatprep.subr.bf16.mxu0 0
  %2199 = vmatpush1.bf16.msra.mxu0 0
  %2200 = vmatprep.subr.bf16.mxu0 0
  %2201 = vmatpush1.bf16.msra.mxu0 0
  %2202 = vmatprep.subr.bf16.mxu0 0
  %2203 = vmatpush1.bf16.msra.mxu0 0
  %2204 = vmatprep.subr.bf16.mxu0 0
  %2205 = vmatpush1.bf16.msra.mxu0 0
  %2206 = vmatprep.subr.bf16.mxu0 0
  %2207 = vmatpush1.bf16.msra.mxu0 0
  %2208 = vmatprep.subr.bf16.mxu0 0
  %2209 = vmatpush1.bf16.msra.mxu0 0
  %2210 = vmatprep.subr.bf16.mxu0 0
  %2211 = vmatpush1.bf16.msra.mxu0 0
  %2212 = vmatprep.subr.bf16.mxu0 0
  %2213 = vmatpush1.bf16.msra.mxu0 0
  %2214 = vmatprep.mubr.bf16.mxu0 0
  %2215 = vmatmul.mubr.bf16.gmra.mrb[0].mxu0 %v2171
  %v2216 = vpop.f32.mrb[0].mxu0
  %v2217 = vadd.f32 0.0, %v2216
  %v2218 = vpop.f32.mrb[0].mxu0
  %v2219 = vadd.f32 0.0, %v2218
  %v2220 = vpop.f32.mrb[0].mxu0
  %v2221 = vpop.f32.mrb[0].mxu0
  %2222 = vdwg.mxu0
  %2223 = vmatprep.subr.bf16.mxu0 0
  %2224 = vmatpush1.bf16.msra.mxu0 %v2180
  %2225 = vmatprep.subr.bf16.mxu0 0
  %2226 = vmatpush1.bf16.msra.mxu0 0
  %2227 = vmatprep.subr.bf16.mxu0 0
  %2228 = vmatpush1.bf16.msra.mxu0 0
  %2229 = vmatprep.subr.bf16.mxu0 0
  %2230 = vmatpush1.bf16.msra.mxu0 0
  %2231 = vmatprep.subr.bf16.mxu0 0
  %2232 = vmatpush1.bf16.msra.mxu0 0
  %2233 = vmatprep.subr.bf16.mxu0 0
  %2234 = vmatpush1.bf16.msra.mxu0 0
  %2235 = vmatprep.subr.bf16.mxu0 0
  %2236 = vmatpush1.bf16.msra.mxu0 0
  %2237 = vmatprep.subr.bf16.mxu0 0
  %2238 = vmatpush1.bf16.msra.mxu0 0
  %2239 = vmatprep.subr.bf16.mxu0 0
  %2240 = vmatpush1.bf16.msra.mxu0 0
  %2241 = vmatprep.subr.bf16.mxu0 0
  %2242 = vmatpush1.bf16.msra.mxu0 0
  %2243 = vmatprep.subr.bf16.mxu0 0
  %2244 = vmatpush1.bf16.msra.mxu0 0
  %2245 = vmatprep.subr.bf16.mxu0 0
  %2246 = vmatpush1.bf16.msra.mxu0 0
  %2247 = vmatprep.subr.bf16.mxu0 0
  %2248 = vmatpush1.bf16.msra.mxu0 0
  %2249 = vmatprep.subr.bf16.mxu0 0
  %2250 = vmatpush1.bf16.msra.mxu0 0
  %2251 = vmatprep.subr.bf16.mxu0 0
  %2252 = vmatpush1.bf16.msra.mxu0 0
  %2253 = vmatprep.subr.bf16.mxu0 0
  %2254 = vmatpush1.bf16.msra.mxu0 0
  %2255 = vmatprep.mubr.bf16.mxu0 0
  %2256 = vmatmul.mubr.bf16.gmra.mrb[0].mxu0 %v2171
  %v2257 = vpop.f32.mrb[0].mxu0
  %v2258 = vadd.f32 0.0, %v2257
  %v2259 = vpop.f32.mrb[0].mxu0
  %v2260 = vpop.f32.mrb[0].mxu0
  %v2261 = vpop.f32.mrb[0].mxu0
  %2262 = vdwg.mxu0
  %v2264 = vsel %vm1081, %v2156, 0
  %v2267 = vand.u32 %v2153, %v1087
  %v2270 = vand.u32 %v2154, %v1087
  %v2273 = vand.u32 %v2155, %v1087
  %2275 = vmatprep.subr.bf16.mxu0 %v2270
  %2276 = vmatpush1.bf16.msra.mxu0 %v2267
  %2277 = vmatprep.subr.bf16.mxu0 0
  %2278 = vmatpush1.bf16.msra.mxu0 0
  %2279 = vmatprep.subr.bf16.mxu0 0
  %2280 = vmatpush1.bf16.msra.mxu0 0
  %2281 = vmatprep.subr.bf16.mxu0 0
  %2282 = vmatpush1.bf16.msra.mxu0 0
  %2283 = vmatprep.subr.bf16.mxu0 0
  %2284 = vmatpush1.bf16.msra.mxu0 0
  %2285 = vmatprep.subr.bf16.mxu0 0
  %2286 = vmatpush1.bf16.msra.mxu0 0
  %2287 = vmatprep.subr.bf16.mxu0 0
  %2288 = vmatpush1.bf16.msra.mxu0 0
  %2289 = vmatprep.subr.bf16.mxu0 0
  %2290 = vmatpush1.bf16.msra.mxu0 0
  %2291 = vmatprep.subr.bf16.mxu0 0
  %2292 = vmatpush1.bf16.msra.mxu0 0
  %2293 = vmatprep.subr.bf16.mxu0 0
  %2294 = vmatpush1.bf16.msra.mxu0 0
  %2295 = vmatprep.subr.bf16.mxu0 0
  %2296 = vmatpush1.bf16.msra.mxu0 0
  %2297 = vmatprep.subr.bf16.mxu0 0
  %2298 = vmatpush1.bf16.msra.mxu0 0
  %2299 = vmatprep.subr.bf16.mxu0 0
  %2300 = vmatpush1.bf16.msra.mxu0 0
  %2301 = vmatprep.subr.bf16.mxu0 0
  %2302 = vmatpush1.bf16.msra.mxu0 0
  %2303 = vmatprep.subr.bf16.mxu0 0
  %2304 = vmatpush1.bf16.msra.mxu0 0
  %2305 = vmatprep.subr.bf16.mxu0 0
  %2306 = vmatpush1.bf16.msra.mxu0 0
  %2307 = vmatprep.mubr.bf16.mxu0 0
  %2308 = vmatmul.mubr.bf16.gmra.mrb[0].mxu0 %v2264
  %v2309 = vpop.f32.mrb[0].mxu0
  %v2310 = vadd.f32 %v2217, %v2309
  %v2311 = vpop.f32.mrb[0].mxu0
  %v2312 = vadd.f32 %v2219, %v2311
  %v2313 = vpop.f32.mrb[0].mxu0
  %v2314 = vpop.f32.mrb[0].mxu0
  %2315 = vdwg.mxu0
  %2316 = vmatprep.subr.bf16.mxu0 0
  %2317 = vmatpush1.bf16.msra.mxu0 %v2273
  %2318 = vmatprep.subr.bf16.mxu0 0
  %2319 = vmatpush1.bf16.msra.mxu0 0
  %2320 = vmatprep.subr.bf16.mxu0 0
  %2321 = vmatpush1.bf16.msra.mxu0 0
  %2322 = vmatprep.subr.bf16.mxu0 0
  %2323 = vmatpush1.bf16.msra.mxu0 0
  %2324 = vmatprep.subr.bf16.mxu0 0
  %2325 = vmatpush1.bf16.msra.mxu0 0
  %2326 = vmatprep.subr.bf16.mxu0 0
  %2327 = vmatpush1.bf16.msra.mxu0 0
  %2328 = vmatprep.subr.bf16.mxu0 0
  %2329 = vmatpush1.bf16.msra.mxu0 0
  %2330 = vmatprep.subr.bf16.mxu0 0
  %2331 = vmatpush1.bf16.msra.mxu0 0
  %2332 = vmatprep.subr.bf16.mxu0 0
  %2333 = vmatpush1.bf16.msra.mxu0 0
  %2334 = vmatprep.subr.bf16.mxu0 0
  %2335 = vmatpush1.bf16.msra.mxu0 0
  %2336 = vmatprep.subr.bf16.mxu0 0
  %2337 = vmatpush1.bf16.msra.mxu0 0
  %2338 = vmatprep.subr.bf16.mxu0 0
  %2339 = vmatpush1.bf16.msra.mxu0 0
  %2340 = vmatprep.subr.bf16.mxu0 0
  %2341 = vmatpush1.bf16.msra.mxu0 0
  %2342 = vmatprep.subr.bf16.mxu0 0
  %2343 = vmatpush1.bf16.msra.mxu0 0
  %2344 = vmatprep.subr.bf16.mxu0 0
  %2345 = vmatpush1.bf16.msra.mxu0 0
  %2346 = vmatprep.subr.bf16.mxu0 0
  %2347 = vmatpush1.bf16.msra.mxu0 0
  %2348 = vmatprep.mubr.bf16.mxu0 0
  %2349 = vmatmul.mubr.bf16.gmra.mrb[0].mxu0 %v2264
  %v2350 = vpop.f32.mrb[0].mxu0
  %v2351 = vadd.f32 %v2258, %v2350
  %v2352 = vpop.f32.mrb[0].mxu0
  %v2353 = vpop.f32.mrb[0].mxu0
  %v2354 = vpop.f32.mrb[0].mxu0
  %2355 = vdwg.mxu0
  %s2356 = scalar_lea.vmem %s8, 8
  %v2357 = vld [vmem:[%s2356] sm:$0xf]
  %2358 = vrot.lane.b32.xlu0 %v2153, 126
  %v2359 = vpop.permute.xlu0 %2358
  %2360 = vrot.lane.b32.xlu0 %v2154, 126
  %v2361 = vpop.permute.xlu0 %2360
  %2362 = vrot.lane.b32.xlu0 %v2155, 126
  %v2363 = vpop.permute.xlu0 %2362
  %v2364 = vsel %vm259, %v2359, %v2361
  %v2365 = vsel %vm259, %v2361, %v2363
  %v2367 = vsel %vm1081, %v2357, 0
  %v2370 = vand.u32 %v2364, %v1087
  %v2373 = vand.u32 %v2365, %v1087
  %v2376 = vand.u32 %v2363, %v1087
  %2378 = vmatprep.subr.bf16.mxu0 %v2373
  %2379 = vmatpush1.bf16.msra.mxu0 %v2370
  %2380 = vmatprep.subr.bf16.mxu0 0
  %2381 = vmatpush1.bf16.msra.mxu0 0
  %2382 = vmatprep.subr.bf16.mxu0 0
  %2383 = vmatpush1.bf16.msra.mxu0 0
  %2384 = vmatprep.subr.bf16.mxu0 0
  %2385 = vmatpush1.bf16.msra.mxu0 0
  %2386 = vmatprep.subr.bf16.mxu0 0
  %2387 = vmatpush1.bf16.msra.mxu0 0
  %2388 = vmatprep.subr.bf16.mxu0 0
  %2389 = vmatpush1.bf16.msra.mxu0 0
  %2390 = vmatprep.subr.bf16.mxu0 0
  %2391 = vmatpush1.bf16.msra.mxu0 0
  %2392 = vmatprep.subr.bf16.mxu0 0
  %2393 = vmatpush1.bf16.msra.mxu0 0
  %2394 = vmatprep.subr.bf16.mxu0 0
  %2395 = vmatpush1.bf16.msra.mxu0 0
  %2396 = vmatprep.subr.bf16.mxu0 0
  %2397 = vmatpush1.bf16.msra.mxu0 0
  %2398 = vmatprep.subr.bf16.mxu0 0
  %2399 = vmatpush1.bf16.msra.mxu0 0
  %2400 = vmatprep.subr.bf16.mxu0 0
  %2401 = vmatpush1.bf16.msra.mxu0 0
  %2402 = vmatprep.subr.bf16.mxu0 0
  %2403 = vmatpush1.bf16.msra.mxu0 0
  %2404 = vmatprep.subr.bf16.mxu0 0
  %2405 = vmatpush1.bf16.msra.mxu0 0
  %2406 = vmatprep.subr.bf16.mxu0 0
  %2407 = vmatpush1.bf16.msra.mxu0 0
  %2408 = vmatprep.subr.bf16.mxu0 0
  %2409 = vmatpush1.bf16.msra.mxu0 0
  %2410 = vmatprep.mubr.bf16.mxu0 0
  %2411 = vmatmul.mubr.bf16.gmra.mrb[0].mxu0 %v2367
  %v2412 = vpop.f32.mrb[0].mxu0
  %v2413 = vadd.f32 0.0, %v2412
  %v2414 = vpop.f32.mrb[0].mxu0
  %v2415 = vadd.f32 0.0, %v2414
  %v2416 = vpop.f32.mrb[0].mxu0
  %v2417 = vpop.f32.mrb[0].mxu0
  %2418 = vdwg.mxu0
  %2419 = vmatprep.subr.bf16.mxu0 0
  %2420 = vmatpush1.bf16.msra.mxu0 %v2376
  %2421 = vmatprep.subr.bf16.mxu0 0
  %2422 = vmatpush1.bf16.msra.mxu0 0
  %2423 = vmatprep.subr.bf16.mxu0 0
  %2424 = vmatpush1.bf16.msra.mxu0 0
  %2425 = vmatprep.subr.bf16.mxu0 0
  %2426 = vmatpush1.bf16.msra.mxu0 0
  %2427 = vmatprep.subr.bf16.mxu0 0
  %2428 = vmatpush1.bf16.msra.mxu0 0
  %2429 = vmatprep.subr.bf16.mxu0 0
  %2430 = vmatpush1.bf16.msra.mxu0 0
  %2431 = vmatprep.subr.bf16.mxu0 0
  %2432 = vmatpush1.bf16.msra.mxu0 0
  %2433 = vmatprep.subr.bf16.mxu0 0
  %2434 = vmatpush1.bf16.msra.mxu0 0
  %2435 = vmatprep.subr.bf16.mxu0 0
  %2436 = vmatpush1.bf16.msra.mxu0 0
  %2437 = vmatprep.subr.bf16.mxu0 0
  %2438 = vmatpush1.bf16.msra.mxu0 0
  %2439 = vmatprep.subr.bf16.mxu0 0
  %2440 = vmatpush1.bf16.msra.mxu0 0
  %2441 = vmatprep.subr.bf16.mxu0 0
  %2442 = vmatpush1.bf16.msra.mxu0 0
  %2443 = vmatprep.subr.bf16.mxu0 0
  %2444 = vmatpush1.bf16.msra.mxu0 0
  %2445 = vmatprep.subr.bf16.mxu0 0
  %2446 = vmatpush1.bf16.msra.mxu0 0
  %2447 = vmatprep.subr.bf16.mxu0 0
  %2448 = vmatpush1.bf16.msra.mxu0 0
  %2449 = vmatprep.subr.bf16.mxu0 0
  %2450 = vmatpush1.bf16.msra.mxu0 0
  %2451 = vmatprep.mubr.bf16.mxu0 0
  %2452 = vmatmul.mubr.bf16.gmra.mrb[0].mxu0 %v2367
  %v2453 = vpop.f32.mrb[0].mxu0
  %v2454 = vadd.f32 0.0, %v2453
  %v2455 = vpop.f32.mrb[0].mxu0
  %v2456 = vpop.f32.mrb[0].mxu0
  %v2457 = vpop.f32.mrb[0].mxu0
  %2458 = vdwg.mxu0
  %v2459 = vadd.f32 %v2310, %v2413
  %v2460 = vadd.f32 %v2312, %v2415
  %v2461 = vadd.f32 %v2351, %v2454
  %s2462 = scalar_lea.vmem %s8, 12
  %v2463 = vld [vmem:[%s2462] sm:$0xf]
  %2464 = vrot.lane.b32.xlu0 %v2153, 110
  %v2465 = vpop.permute.xlu0 %2464
  %2466 = vrot.lane.b32.xlu0 %v2154, 110
  %v2467 = vpop.permute.xlu0 %2466
  %2468 = vrot.lane.b32.xlu0 %v2155, 110
  %v2469 = vpop.permute.xlu0 %2468
  %v2470 = vsel %vm366, %v2465, %v2467
  %v2471 = vsel %vm366, %v2467, %v2469
  %v2473 = vsel %vm1081, %v2463, 0
  %v2476 = vand.u32 %v2470, %v1087
  %v2479 = vand.u32 %v2471, %v1087
  %v2482 = vand.u32 %v2469, %v1087
  %2484 = vmatprep.subr.bf16.mxu0 %v2479
  %2485 = vmatpush1.bf16.msra.mxu0 %v2476
  %2486 = vmatprep.subr.bf16.mxu0 0
  %2487 = vmatpush1.bf16.msra.mxu0 0
  %2488 = vmatprep.subr.bf16.mxu0 0
  %2489 = vmatpush1.bf16.msra.mxu0 0
  %2490 = vmatprep.subr.bf16.mxu0 0
  %2491 = vmatpush1.bf16.msra.mxu0 0
  %2492 = vmatprep.subr.bf16.mxu0 0
  %2493 = vmatpush1.bf16.msra.mxu0 0
  %2494 = vmatprep.subr.bf16.mxu0 0
  %2495 = vmatpush1.bf16.msra.mxu0 0
  %2496 = vmatprep.subr.bf16.mxu0 0
  %2497 = vmatpush1.bf16.msra.mxu0 0
  %2498 = vmatprep.subr.bf16.mxu0 0
  %2499 = vmatpush1.bf16.msra.mxu0 0
  %2500 = vmatprep.subr.bf16.mxu0 0
  %2501 = vmatpush1.bf16.msra.mxu0 0
  %2502 = vmatprep.subr.bf16.mxu0 0
  %2503 = vmatpush1.bf16.msra.mxu0 0
  %2504 = vmatprep.subr.bf16.mxu0 0
  %2505 = vmatpush1.bf16.msra.mxu0 0
  %2506 = vmatprep.subr.bf16.mxu0 0
  %2507 = vmatpush1.bf16.msra.mxu0 0
  %2508 = vmatprep.subr.bf16.mxu0 0
  %2509 = vmatpush1.bf16.msra.mxu0 0
  %2510 = vmatprep.subr.bf16.mxu0 0
  %2511 = vmatpush1.bf16.msra.mxu0 0
  %2512 = vmatprep.subr.bf16.mxu0 0
  %2513 = vmatpush1.bf16.msra.mxu0 0
  %2514 = vmatprep.subr.bf16.mxu0 0
  %2515 = vmatpush1.bf16.msra.mxu0 0
  %2516 = vmatprep.mubr.bf16.mxu0 0
  %2517 = vmatmul.mubr.bf16.gmra.mrb[0].mxu0 %v2473
  %v2518 = vpop.f32.mrb[0].mxu0
  %v2519 = vadd.f32 0.0, %v2518
  %v2520 = vpop.f32.mrb[0].mxu0
  %v2521 = vadd.f32 0.0, %v2520
  %v2522 = vpop.f32.mrb[0].mxu0
  %v2523 = vpop.f32.mrb[0].mxu0
  %2524 = vdwg.mxu0
  %2525 = vmatprep.subr.bf16.mxu0 0
  %2526 = vmatpush1.bf16.msra.mxu0 %v2482
  %2527 = vmatprep.subr.bf16.mxu0 0
  %2528 = vmatpush1.bf16.msra.mxu0 0
  %2529 = vmatprep.subr.bf16.mxu0 0
  %2530 = vmatpush1.bf16.msra.mxu0 0
  %2531 = vmatprep.subr.bf16.mxu0 0
  %2532 = vmatpush1.bf16.msra.mxu0 0
  %2533 = vmatprep.subr.bf16.mxu0 0
  %2534 = vmatpush1.bf16.msra.mxu0 0
  %2535 = vmatprep.subr.bf16.mxu0 0
  %2536 = vmatpush1.bf16.msra.mxu0 0
  %2537 = vmatprep.subr.bf16.mxu0 0
  %2538 = vmatpush1.bf16.msra.mxu0 0
  %2539 = vmatprep.subr.bf16.mxu0 0
  %2540 = vmatpush1.bf16.msra.mxu0 0
  %2541 = vmatprep.subr.bf16.mxu0 0
  %2542 = vmatpush1.bf16.msra.mxu0 0
  %2543 = vmatprep.subr.bf16.mxu0 0
  %2544 = vmatpush1.bf16.msra.mxu0 0
  %2545 = vmatprep.subr.bf16.mxu0 0
  %2546 = vmatpush1.bf16.msra.mxu0 0
  %2547 = vmatprep.subr.bf16.mxu0 0
  %2548 = vmatpush1.bf16.msra.mxu0 0
  %2549 = vmatprep.subr.bf16.mxu0 0
  %2550 = vmatpush1.bf16.msra.mxu0 0
  %2551 = vmatprep.subr.bf16.mxu0 0
  %2552 = vmatpush1.bf16.msra.mxu0 0
  %2553 = vmatprep.subr.bf16.mxu0 0
  %2554 = vmatpush1.bf16.msra.mxu0 0
  %2555 = vmatprep.subr.bf16.mxu0 0
  %2556 = vmatpush1.bf16.msra.mxu0 0
  %2557 = vmatprep.mubr.bf16.mxu0 0
  %2558 = vmatmul.mubr.bf16.gmra.mrb[0].mxu0 %v2473
  %v2559 = vpop.f32.mrb[0].mxu0
  %v2560 = vadd.f32 0.0, %v2559
  %v2561 = vpop.f32.mrb[0].mxu0
  %v2562 = vpop.f32.mrb[0].mxu0
  %v2563 = vpop.f32.mrb[0].mxu0
  %2564 = vdwg.mxu0
  %v2565 = vadd.f32 %v2459, %v2519
  %v2566 = vadd.f32 %v2460, %v2521
  %v2567 = vadd.f32 %v2461, %v2560
  %s2568 = scalar_lea.vmem %s8, 16
  %v2569 = vld [vmem:[%s2568] sm:$0xf]
  %2570 = vrot.lane.b32.xlu0 %v2153, 109
  %v2571 = vpop.permute.xlu0 %2570
  %2572 = vrot.lane.b32.xlu0 %v2154, 109
  %v2573 = vpop.permute.xlu0 %2572
  %2574 = vrot.lane.b32.xlu0 %v2155, 109
  %v2575 = vpop.permute.xlu0 %2574
  %v2576 = vsel %vm473, %v2571, %v2573
  %v2577 = vsel %vm473, %v2573, %v2575
  %v2579 = vsel %vm1081, %v2569, 0
  %v2582 = vand.u32 %v2576, %v1087
  %v2585 = vand.u32 %v2577, %v1087
  %v2588 = vand.u32 %v2575, %v1087
  %2590 = vmatprep.subr.bf16.mxu0 %v2585
  %2591 = vmatpush1.bf16.msra.mxu0 %v2582
  %2592 = vmatprep.subr.bf16.mxu0 0
  %2593 = vmatpush1.bf16.msra.mxu0 0
  %2594 = vmatprep.subr.bf16.mxu0 0
  %2595 = vmatpush1.bf16.msra.mxu0 0
  %2596 = vmatprep.subr.bf16.mxu0 0
  %2597 = vmatpush1.bf16.msra.mxu0 0
  %2598 = vmatprep.subr.bf16.mxu0 0
  %2599 = vmatpush1.bf16.msra.mxu0 0
  %2600 = vmatprep.subr.bf16.mxu0 0
  %2601 = vmatpush1.bf16.msra.mxu0 0
  %2602 = vmatprep.subr.bf16.mxu0 0
  %2603 = vmatpush1.bf16.msra.mxu0 0
  %2604 = vmatprep.subr.bf16.mxu0 0
  %2605 = vmatpush1.bf16.msra.mxu0 0
  %2606 = vmatprep.subr.bf16.mxu0 0
  %2607 = vmatpush1.bf16.msra.mxu0 0
  %2608 = vmatprep.subr.bf16.mxu0 0
  %2609 = vmatpush1.bf16.msra.mxu0 0
  %2610 = vmatprep.subr.bf16.mxu0 0
  %2611 = vmatpush1.bf16.msra.mxu0 0
  %2612 = vmatprep.subr.bf16.mxu0 0
  %2613 = vmatpush1.bf16.msra.mxu0 0
  %2614 = vmatprep.subr.bf16.mxu0 0
  %2615 = vmatpush1.bf16.msra.mxu0 0
  %2616 = vmatprep.subr.bf16.mxu0 0
  %2617 = vmatpush1.bf16.msra.mxu0 0
  %2618 = vmatprep.subr.bf16.mxu0 0
  %2619 = vmatpush1.bf16.msra.mxu0 0
  %2620 = vmatprep.subr.bf16.mxu0 0
  %2621 = vmatpush1.bf16.msra.mxu0 0
  %2622 = vmatprep.mubr.bf16.mxu0 0
  %2623 = vmatmul.mubr.bf16.gmra.mrb[0].mxu0 %v2579
  %v2624 = vpop.f32.mrb[0].mxu0
  %v2625 = vadd.f32 0.0, %v2624
  %v2626 = vpop.f32.mrb[0].mxu0
  %v2627 = vadd.f32 0.0, %v2626
  %v2628 = vpop.f32.mrb[0].mxu0
  %v2629 = vpop.f32.mrb[0].mxu0
  %2630 = vdwg.mxu0
  %2631 = vmatprep.subr.bf16.mxu0 0
  %2632 = vmatpush1.bf16.msra.mxu0 %v2588
  %2633 = vmatprep.subr.bf16.mxu0 0
  %2634 = vmatpush1.bf16.msra.mxu0 0
  %2635 = vmatprep.subr.bf16.mxu0 0
  %2636 = vmatpush1.bf16.msra.mxu0 0
  %2637 = vmatprep.subr.bf16.mxu0 0
  %2638 = vmatpush1.bf16.msra.mxu0 0
  %2639 = vmatprep.subr.bf16.mxu0 0
  %2640 = vmatpush1.bf16.msra.mxu0 0
  %2641 = vmatprep.subr.bf16.mxu0 0
  %2642 = vmatpush1.bf16.msra.mxu0 0
  %2643 = vmatprep.subr.bf16.mxu0 0
  %2644 = vmatpush1.bf16.msra.mxu0 0
  %2645 = vmatprep.subr.bf16.mxu0 0
  %2646 = vmatpush1.bf16.msra.mxu0 0
  %2647 = vmatprep.subr.bf16.mxu0 0
  %2648 = vmatpush1.bf16.msra.mxu0 0
  %2649 = vmatprep.subr.bf16.mxu0 0
  %2650 = vmatpush1.bf16.msra.mxu0 0
  %2651 = vmatprep.subr.bf16.mxu0 0
  %2652 = vmatpush1.bf16.msra.mxu0 0
  %2653 = vmatprep.subr.bf16.mxu0 0
  %2654 = vmatpush1.bf16.msra.mxu0 0
  %2655 = vmatprep.subr.bf16.mxu0 0
  %2656 = vmatpush1.bf16.msra.mxu0 0
  %2657 = vmatprep.subr.bf16.mxu0 0
  %2658 = vmatpush1.bf16.msra.mxu0 0
  %2659 = vmatprep.subr.bf16.mxu0 0
  %2660 = vmatpush1.bf16.msra.mxu0 0
  %2661 = vmatprep.subr.bf16.mxu0 0
  %2662 = vmatpush1.bf16.msra.mxu0 0
  %2663 = vmatprep.mubr.bf16.mxu0 0
  %2664 = vmatmul.mubr.bf16.gmra.mrb[0].mxu0 %v2579
  %v2665 = vpop.f32.mrb[0].mxu0
  %v2666 = vadd.f32 0.0, %v2665
  %v2667 = vpop.f32.mrb[0].mxu0
  %v2668 = vpop.f32.mrb[0].mxu0
  %v2669 = vpop.f32.mrb[0].mxu0
  %2670 = vdwg.mxu0
  %v2671 = vadd.f32 %v2565, %v2625
  %v2672 = vadd.f32 %v2566, %v2627
  %v2673 = vadd.f32 %v2567, %v2666
  %s2674 = scalar_lea.vmem %s8, 20
  %v2675 = vld [vmem:[%s2674] sm:$0xf]
  %2676 = vrot.lane.b32.xlu0 %v2153, 108
  %v2677 = vpop.permute.xlu0 %2676
  %2678 = vrot.lane.b32.xlu0 %v2154, 108
  %v2679 = vpop.permute.xlu0 %2678
  %2680 = vrot.lane.b32.xlu0 %v2155, 108
  %v2681 = vpop.permute.xlu0 %2680
  %v2682 = vsel %vm580, %v2677, %v2679
  %v2683 = vsel %vm580, %v2679, %v2681
  %v2685 = vsel %vm1081, %v2675, 0
  %v2688 = vand.u32 %v2682, %v1087
  %v2691 = vand.u32 %v2683, %v1087
  %v2694 = vand.u32 %v2681, %v1087
  %2696 = vmatprep.subr.bf16.mxu0 %v2691
  %2697 = vmatpush1.bf16.msra.mxu0 %v2688
  %2698 = vmatprep.subr.bf16.mxu0 0
  %2699 = vmatpush1.bf16.msra.mxu0 0
  %2700 = vmatprep.subr.bf16.mxu0 0
  %2701 = vmatpush1.bf16.msra.mxu0 0
  %2702 = vmatprep.subr.bf16.mxu0 0
  %2703 = vmatpush1.bf16.msra.mxu0 0
  %2704 = vmatprep.subr.bf16.mxu0 0
  %2705 = vmatpush1.bf16.msra.mxu0 0
  %2706 = vmatprep.subr.bf16.mxu0 0
  %2707 = vmatpush1.bf16.msra.mxu0 0
  %2708 = vmatprep.subr.bf16.mxu0 0
  %2709 = vmatpush1.bf16.msra.mxu0 0
  %2710 = vmatprep.subr.bf16.mxu0 0
  %2711 = vmatpush1.bf16.msra.mxu0 0
  %2712 = vmatprep.subr.bf16.mxu0 0
  %2713 = vmatpush1.bf16.msra.mxu0 0
  %2714 = vmatprep.subr.bf16.mxu0 0
  %2715 = vmatpush1.bf16.msra.mxu0 0
  %2716 = vmatprep.subr.bf16.mxu0 0
  %2717 = vmatpush1.bf16.msra.mxu0 0
  %2718 = vmatprep.subr.bf16.mxu0 0
  %2719 = vmatpush1.bf16.msra.mxu0 0
  %2720 = vmatprep.subr.bf16.mxu0 0
  %2721 = vmatpush1.bf16.msra.mxu0 0
  %2722 = vmatprep.subr.bf16.mxu0 0
  %2723 = vmatpush1.bf16.msra.mxu0 0
  %2724 = vmatprep.subr.bf16.mxu0 0
  %2725 = vmatpush1.bf16.msra.mxu0 0
  %2726 = vmatprep.subr.bf16.mxu0 0
  %2727 = vmatpush1.bf16.msra.mxu0 0
  %2728 = vmatprep.mubr.bf16.mxu0 0
  %2729 = vmatmul.mubr.bf16.gmra.mrb[0].mxu0 %v2685
  %v2730 = vpop.f32.mrb[0].mxu0
  %v2731 = vadd.f32 0.0, %v2730
  %v2732 = vpop.f32.mrb[0].mxu0
  %v2733 = vadd.f32 0.0, %v2732
  %v2734 = vpop.f32.mrb[0].mxu0
  %v2735 = vpop.f32.mrb[0].mxu0
  %2736 = vdwg.mxu0
  %2737 = vmatprep.subr.bf16.mxu0 0
  %2738 = vmatpush1.bf16.msra.mxu0 %v2694
  %2739 = vmatprep.subr.bf16.mxu0 0
  %2740 = vmatpush1.bf16.msra.mxu0 0
  %2741 = vmatprep.subr.bf16.mxu0 0
  %2742 = vmatpush1.bf16.msra.mxu0 0
  %2743 = vmatprep.subr.bf16.mxu0 0
  %2744 = vmatpush1.bf16.msra.mxu0 0
  %2745 = vmatprep.subr.bf16.mxu0 0
  %2746 = vmatpush1.bf16.msra.mxu0 0
  %2747 = vmatprep.subr.bf16.mxu0 0
  %2748 = vmatpush1.bf16.msra.mxu0 0
  %2749 = vmatprep.subr.bf16.mxu0 0
  %2750 = vmatpush1.bf16.msra.mxu0 0
  %2751 = vmatprep.subr.bf16.mxu0 0
  %2752 = vmatpush1.bf16.msra.mxu0 0
  %2753 = vmatprep.subr.bf16.mxu0 0
  %2754 = vmatpush1.bf16.msra.mxu0 0
  %2755 = vmatprep.subr.bf16.mxu0 0
  %2756 = vmatpush1.bf16.msra.mxu0 0
  %2757 = vmatprep.subr.bf16.mxu0 0
  %2758 = vmatpush1.bf16.msra.mxu0 0
  %2759 = vmatprep.subr.bf16.mxu0 0
  %2760 = vmatpush1.bf16.msra.mxu0 0
  %2761 = vmatprep.subr.bf16.mxu0 0
  %2762 = vmatpush1.bf16.msra.mxu0 0
  %2763 = vmatprep.subr.bf16.mxu0 0
  %2764 = vmatpush1.bf16.msra.mxu0 0
  %2765 = vmatprep.subr.bf16.mxu0 0
  %2766 = vmatpush1.bf16.msra.mxu0 0
  %2767 = vmatprep.subr.bf16.mxu0 0
  %2768 = vmatpush1.bf16.msra.mxu0 0
  %2769 = vmatprep.mubr.bf16.mxu0 0
  %2770 = vmatmul.mubr.bf16.gmra.mrb[0].mxu0 %v2685
  %v2771 = vpop.f32.mrb[0].mxu0
  %v2772 = vadd.f32 0.0, %v2771
  %v2773 = vpop.f32.mrb[0].mxu0
  %v2774 = vpop.f32.mrb[0].mxu0
  %v2775 = vpop.f32.mrb[0].mxu0
  %2776 = vdwg.mxu0
  %v2777 = vadd.f32 %v2671, %v2731
  %v2778 = vadd.f32 %v2672, %v2733
  %v2779 = vadd.f32 %v2673, %v2772
  %s2780 = scalar_lea.vmem %s8, 24
  %v2781 = vld [vmem:[%s2780] sm:$0xf]
  %2782 = vrot.lane.b32.xlu0 %v2153, 92
  %v2783 = vpop.permute.xlu0 %2782
  %2784 = vrot.lane.b32.xlu0 %v2154, 92
  %v2785 = vpop.permute.xlu0 %2784
  %2786 = vrot.lane.b32.xlu0 %v2155, 92
  %v2787 = vpop.permute.xlu0 %2786
  %v2788 = vsel %vm687, %v2783, %v2785
  %v2789 = vsel %vm687, %v2785, %v2787
  %v2791 = vsel %vm1081, %v2781, 0
  %v2794 = vand.u32 %v2788, %v1087
  %v2797 = vand.u32 %v2789, %v1087
  %v2800 = vand.u32 %v2787, %v1087
  %2802 = vmatprep.subr.bf16.mxu0 %v2797
  %2803 = vmatpush1.bf16.msra.mxu0 %v2794
  %2804 = vmatprep.subr.bf16.mxu0 0
  %2805 = vmatpush1.bf16.msra.mxu0 0
  %2806 = vmatprep.subr.bf16.mxu0 0
  %2807 = vmatpush1.bf16.msra.mxu0 0
  %2808 = vmatprep.subr.bf16.mxu0 0
  %2809 = vmatpush1.bf16.msra.mxu0 0
  %2810 = vmatprep.subr.bf16.mxu0 0
  %2811 = vmatpush1.bf16.msra.mxu0 0
  %2812 = vmatprep.subr.bf16.mxu0 0
  %2813 = vmatpush1.bf16.msra.mxu0 0
  %2814 = vmatprep.subr.bf16.mxu0 0
  %2815 = vmatpush1.bf16.msra.mxu0 0
  %2816 = vmatprep.subr.bf16.mxu0 0
  %2817 = vmatpush1.bf16.msra.mxu0 0
  %2818 = vmatprep.subr.bf16.mxu0 0
  %2819 = vmatpush1.bf16.msra.mxu0 0
  %2820 = vmatprep.subr.bf16.mxu0 0
  %2821 = vmatpush1.bf16.msra.mxu0 0
  %2822 = vmatprep.subr.bf16.mxu0 0
  %2823 = vmatpush1.bf16.msra.mxu0 0
  %2824 = vmatprep.subr.bf16.mxu0 0
  %2825 = vmatpush1.bf16.msra.mxu0 0
  %2826 = vmatprep.subr.bf16.mxu0 0
  %2827 = vmatpush1.bf16.msra.mxu0 0
  %2828 = vmatprep.subr.bf16.mxu0 0
  %2829 = vmatpush1.bf16.msra.mxu0 0
  %2830 = vmatprep.subr.bf16.mxu0 0
  %2831 = vmatpush1.bf16.msra.mxu0 0
  %2832 = vmatprep.subr.bf16.mxu0 0
  %2833 = vmatpush1.bf16.msra.mxu0 0
  %2834 = vmatprep.mubr.bf16.mxu0 0
  %2835 = vmatmul.mubr.bf16.gmra.mrb[0].mxu0 %v2791
  %v2836 = vpop.f32.mrb[0].mxu0
  %v2837 = vadd.f32 0.0, %v2836
  %v2838 = vpop.f32.mrb[0].mxu0
  %v2839 = vadd.f32 0.0, %v2838
  %v2840 = vpop.f32.mrb[0].mxu0
  %v2841 = vpop.f32.mrb[0].mxu0
  %2842 = vdwg.mxu0
  %2843 = vmatprep.subr.bf16.mxu0 0
  %2844 = vmatpush1.bf16.msra.mxu0 %v2800
  %2845 = vmatprep.subr.bf16.mxu0 0
  %2846 = vmatpush1.bf16.msra.mxu0 0
  %2847 = vmatprep.subr.bf16.mxu0 0
  %2848 = vmatpush1.bf16.msra.mxu0 0
  %2849 = vmatprep.subr.bf16.mxu0 0
  %2850 = vmatpush1.bf16.msra.mxu0 0
  %2851 = vmatprep.subr.bf16.mxu0 0
  %2852 = vmatpush1.bf16.msra.mxu0 0
  %2853 = vmatprep.subr.bf16.mxu0 0
  %2854 = vmatpush1.bf16.msra.mxu0 0
  %2855 = vmatprep.subr.bf16.mxu0 0
  %2856 = vmatpush1.bf16.msra.mxu0 0
  %2857 = vmatprep.subr.bf16.mxu0 0
  %2858 = vmatpush1.bf16.msra.mxu0 0
  %2859 = vmatprep.subr.bf16.mxu0 0
  %2860 = vmatpush1.bf16.msra.mxu0 0
  %2861 = vmatprep.subr.bf16.mxu0 0
  %2862 = vmatpush1.bf16.msra.mxu0 0
  %2863 = vmatprep.subr.bf16.mxu0 0
  %2864 = vmatpush1.bf16.msra.mxu0 0
  %2865 = vmatprep.subr.bf16.mxu0 0
  %2866 = vmatpush1.bf16.msra.mxu0 0
  %2867 = vmatprep.subr.bf16.mxu0 0
  %2868 = vmatpush1.bf16.msra.mxu0 0
  %2869 = vmatprep.subr.bf16.mxu0 0
  %2870 = vmatpush1.bf16.msra.mxu0 0
  %2871 = vmatprep.subr.bf16.mxu0 0
  %2872 = vmatpush1.bf16.msra.mxu0 0
  %2873 = vmatprep.subr.bf16.mxu0 0
  %2874 = vmatpush1.bf16.msra.mxu0 0
  %2875 = vmatprep.mubr.bf16.mxu0 0
  %2876 = vmatmul.mubr.bf16.gmra.mrb[0].mxu0 %v2791
  %v2877 = vpop.f32.mrb[0].mxu0
  %v2878 = vadd.f32 0.0, %v2877
  %v2879 = vpop.f32.mrb[0].mxu0
  %v2880 = vpop.f32.mrb[0].mxu0
  %v2881 = vpop.f32.mrb[0].mxu0
  %2882 = vdwg.mxu0
  %v2883 = vadd.f32 %v2777, %v2837
  %v2884 = vadd.f32 %v2778, %v2839
  %v2885 = vadd.f32 %v2779, %v2878
  %s2886 = scalar_lea.vmem %s8, 28
  %v2887 = vld [vmem:[%s2886] sm:$0xf]
  %2888 = vrot.lane.b32.xlu0 %v2153, 91
  %v2889 = vpop.permute.xlu0 %2888
  %2890 = vrot.lane.b32.xlu0 %v2154, 91
  %v2891 = vpop.permute.xlu0 %2890
  %2892 = vrot.lane.b32.xlu0 %v2155, 91
  %v2893 = vpop.permute.xlu0 %2892
  %v2894 = vsel %vm794, %v2889, %v2891
  %v2895 = vsel %vm794, %v2891, %v2893
  %v2897 = vsel %vm1081, %v2887, 0
  %v2900 = vand.u32 %v2894, %v1087
  %v2903 = vand.u32 %v2895, %v1087
  %v2906 = vand.u32 %v2893, %v1087
  %2908 = vmatprep.subr.bf16.mxu0 %v2903
  %2909 = vmatpush1.bf16.msra.mxu0 %v2900
  %2910 = vmatprep.subr.bf16.mxu0 0
  %2911 = vmatpush1.bf16.msra.mxu0 0
  %2912 = vmatprep.subr.bf16.mxu0 0
  %2913 = vmatpush1.bf16.msra.mxu0 0
  %2914 = vmatprep.subr.bf16.mxu0 0
  %2915 = vmatpush1.bf16.msra.mxu0 0
  %2916 = vmatprep.subr.bf16.mxu0 0
  %2917 = vmatpush1.bf16.msra.mxu0 0
  %2918 = vmatprep.subr.bf16.mxu0 0
  %2919 = vmatpush1.bf16.msra.mxu0 0
  %2920 = vmatprep.subr.bf16.mxu0 0
  %2921 = vmatpush1.bf16.msra.mxu0 0
  %2922 = vmatprep.subr.bf16.mxu0 0
  %2923 = vmatpush1.bf16.msra.mxu0 0
  %2924 = vmatprep.subr.bf16.mxu0 0
  %2925 = vmatpush1.bf16.msra.mxu0 0
  %2926 = vmatprep.subr.bf16.mxu0 0
  %2927 = vmatpush1.bf16.msra.mxu0 0
  %2928 = vmatprep.subr.bf16.mxu0 0
  %2929 = vmatpush1.bf16.msra.mxu0 0
  %2930 = vmatprep.subr.bf16.mxu0 0
  %2931 = vmatpush1.bf16.msra.mxu0 0
  %2932 = vmatprep.subr.bf16.mxu0 0
  %2933 = vmatpush1.bf16.msra.mxu0 0
  %2934 = vmatprep.subr.bf16.mxu0 0
  %2935 = vmatpush1.bf16.msra.mxu0 0
  %2936 = vmatprep.subr.bf16.mxu0 0
  %2937 = vmatpush1.bf16.msra.mxu0 0
  %2938 = vmatprep.subr.bf16.mxu0 0
  %2939 = vmatpush1.bf16.msra.mxu0 0
  %2940 = vmatprep.mubr.bf16.mxu0 0
  %2941 = vmatmul.mubr.bf16.gmra.mrb[0].mxu0 %v2897
  %v2942 = vpop.f32.mrb[0].mxu0
  %v2943 = vadd.f32 0.0, %v2942
  %v2944 = vpop.f32.mrb[0].mxu0
  %v2945 = vadd.f32 0.0, %v2944
  %v2946 = vpop.f32.mrb[0].mxu0
  %v2947 = vpop.f32.mrb[0].mxu0
  %2948 = vdwg.mxu0
  %2949 = vmatprep.subr.bf16.mxu0 0
  %2950 = vmatpush1.bf16.msra.mxu0 %v2906
  %2951 = vmatprep.subr.bf16.mxu0 0
  %2952 = vmatpush1.bf16.msra.mxu0 0
  %2953 = vmatprep.subr.bf16.mxu0 0
  %2954 = vmatpush1.bf16.msra.mxu0 0
  %2955 = vmatprep.subr.bf16.mxu0 0
  %2956 = vmatpush1.bf16.msra.mxu0 0
  %2957 = vmatprep.subr.bf16.mxu0 0
  %2958 = vmatpush1.bf16.msra.mxu0 0
  %2959 = vmatprep.subr.bf16.mxu0 0
  %2960 = vmatpush1.bf16.msra.mxu0 0
  %2961 = vmatprep.subr.bf16.mxu0 0
  %2962 = vmatpush1.bf16.msra.mxu0 0
  %2963 = vmatprep.subr.bf16.mxu0 0
  %2964 = vmatpush1.bf16.msra.mxu0 0
  %2965 = vmatprep.subr.bf16.mxu0 0
  %2966 = vmatpush1.bf16.msra.mxu0 0
  %2967 = vmatprep.subr.bf16.mxu0 0
  %2968 = vmatpush1.bf16.msra.mxu0 0
  %2969 = vmatprep.subr.bf16.mxu0 0
  %2970 = vmatpush1.bf16.msra.mxu0 0
  %2971 = vmatprep.subr.bf16.mxu0 0
  %2972 = vmatpush1.bf16.msra.mxu0 0
  %2973 = vmatprep.subr.bf16.mxu0 0
  %2974 = vmatpush1.bf16.msra.mxu0 0
  %2975 = vmatprep.subr.bf16.mxu0 0
  %2976 = vmatpush1.bf16.msra.mxu0 0
  %2977 = vmatprep.subr.bf16.mxu0 0
  %2978 = vmatpush1.bf16.msra.mxu0 0
  %2979 = vmatprep.subr.bf16.mxu0 0
  %2980 = vmatpush1.bf16.msra.mxu0 0
  %2981 = vmatprep.mubr.bf16.mxu0 0
  %2982 = vmatmul.mubr.bf16.gmra.mrb[0].mxu0 %v2897
  %v2983 = vpop.f32.mrb[0].mxu0
  %v2984 = vadd.f32 0.0, %v2983
  %v2985 = vpop.f32.mrb[0].mxu0
  %v2986 = vpop.f32.mrb[0].mxu0
  %v2987 = vpop.f32.mrb[0].mxu0
  %2988 = vdwg.mxu0
  %v2989 = vadd.f32 %v2883, %v2943
  %v2990 = vadd.f32 %v2884, %v2945
  %v2991 = vadd.f32 %v2885, %v2984
  %s2992 = scalar_lea.vmem %s8, 32
  %v2993 = vld [vmem:[%s2992] sm:$0xf]
  %2994 = vrot.lane.b32.xlu0 %v2153, 90
  %v2995 = vpop.permute.xlu0 %2994
  %2996 = vrot.lane.b32.xlu0 %v2154, 90
  %v2997 = vpop.permute.xlu0 %2996
  %2998 = vrot.lane.b32.xlu0 %v2155, 90
  %v2999 = vpop.permute.xlu0 %2998
  %v3000 = vsel %vm901, %v2995, %v2997
  %v3001 = vsel %vm901, %v2997, %v2999
  %v3003 = vsel %vm1081, %v2993, 0
  %v3006 = vand.u32 %v3000, %v1087
  %v3009 = vand.u32 %v3001, %v1087
  %v3012 = vand.u32 %v2999, %v1087
  %3014 = vmatprep.subr.bf16.mxu0 %v3009
  %3015 = vmatpush1.bf16.msra.mxu0 %v3006
  %3016 = vmatprep.subr.bf16.mxu0 0
  %3017 = vmatpush1.bf16.msra.mxu0 0
  %3018 = vmatprep.subr.bf16.mxu0 0
  %3019 = vmatpush1.bf16.msra.mxu0 0
  %3020 = vmatprep.subr.bf16.mxu0 0
  %3021 = vmatpush1.bf16.msra.mxu0 0
  %3022 = vmatprep.subr.bf16.mxu0 0
  %3023 = vmatpush1.bf16.msra.mxu0 0
  %3024 = vmatprep.subr.bf16.mxu0 0
  %3025 = vmatpush1.bf16.msra.mxu0 0
  %3026 = vmatprep.subr.bf16.mxu0 0
  %3027 = vmatpush1.bf16.msra.mxu0 0
  %3028 = vmatprep.subr.bf16.mxu0 0
  %3029 = vmatpush1.bf16.msra.mxu0 0
  %3030 = vmatprep.subr.bf16.mxu0 0
  %3031 = vmatpush1.bf16.msra.mxu0 0
  %3032 = vmatprep.subr.bf16.mxu0 0
  %3033 = vmatpush1.bf16.msra.mxu0 0
  %3034 = vmatprep.subr.bf16.mxu0 0
  %3035 = vmatpush1.bf16.msra.mxu0 0
  %3036 = vmatprep.subr.bf16.mxu0 0
  %3037 = vmatpush1.bf16.msra.mxu0 0
  %3038 = vmatprep.subr.bf16.mxu0 0
  %3039 = vmatpush1.bf16.msra.mxu0 0
  %3040 = vmatprep.subr.bf16.mxu0 0
  %3041 = vmatpush1.bf16.msra.mxu0 0
  %3042 = vmatprep.subr.bf16.mxu0 0
  %3043 = vmatpush1.bf16.msra.mxu0 0
  %3044 = vmatprep.subr.bf16.mxu0 0
  %3045 = vmatpush1.bf16.msra.mxu0 0
  %3046 = vmatprep.mubr.bf16.mxu0 0
  %3047 = vmatmul.mubr.bf16.gmra.mrb[0].mxu0 %v3003
  %v3048 = vpop.f32.mrb[0].mxu0
  %v3049 = vadd.f32 0.0, %v3048
  %v3050 = vpop.f32.mrb[0].mxu0
  %v3051 = vadd.f32 0.0, %v3050
  %v3052 = vpop.f32.mrb[0].mxu0
  %v3053 = vpop.f32.mrb[0].mxu0
  %3054 = vdwg.mxu0
  %3055 = vmatprep.subr.bf16.mxu0 0
  %3056 = vmatpush1.bf16.msra.mxu0 %v3012
  %3057 = vmatprep.subr.bf16.mxu0 0
  %3058 = vmatpush1.bf16.msra.mxu0 0
  %3059 = vmatprep.subr.bf16.mxu0 0
  %3060 = vmatpush1.bf16.msra.mxu0 0
  %3061 = vmatprep.subr.bf16.mxu0 0
  %3062 = vmatpush1.bf16.msra.mxu0 0
  %3063 = vmatprep.subr.bf16.mxu0 0
  %3064 = vmatpush1.bf16.msra.mxu0 0
  %3065 = vmatprep.subr.bf16.mxu0 0
  %3066 = vmatpush1.bf16.msra.mxu0 0
  %3067 = vmatprep.subr.bf16.mxu0 0
  %3068 = vmatpush1.bf16.msra.mxu0 0
  %3069 = vmatprep.subr.bf16.mxu0 0
  %3070 = vmatpush1.bf16.msra.mxu0 0
  %3071 = vmatprep.subr.bf16.mxu0 0
  %3072 = vmatpush1.bf16.msra.mxu0 0
  %3073 = vmatprep.subr.bf16.mxu0 0
  %3074 = vmatpush1.bf16.msra.mxu0 0
  %3075 = vmatprep.subr.bf16.mxu0 0
  %3076 = vmatpush1.bf16.msra.mxu0 0
  %3077 = vmatprep.subr.bf16.mxu0 0
  %3078 = vmatpush1.bf16.msra.mxu0 0
  %3079 = vmatprep.subr.bf16.mxu0 0
  %3080 = vmatpush1.bf16.msra.mxu0 0
  %3081 = vmatprep.subr.bf16.mxu0 0
  %3082 = vmatpush1.bf16.msra.mxu0 0
  %3083 = vmatprep.subr.bf16.mxu0 0
  %3084 = vmatpush1.bf16.msra.mxu0 0
  %3085 = vmatprep.subr.bf16.mxu0 0
  %3086 = vmatpush1.bf16.msra.mxu0 0
  %3087 = vmatprep.mubr.bf16.mxu0 0
  %3088 = vmatmul.mubr.bf16.gmra.mrb[0].mxu0 %v3003
  %v3089 = vpop.f32.mrb[0].mxu0
  %v3090 = vadd.f32 0.0, %v3089
  %v3091 = vpop.f32.mrb[0].mxu0
  %v3092 = vpop.f32.mrb[0].mxu0
  %v3093 = vpop.f32.mrb[0].mxu0
  %3094 = vdwg.mxu0
  %v3095 = vadd.f32 %v2989, %v3049
  %v3096 = vadd.f32 %v2990, %v3051
  %v3097 = vadd.f32 %v2991, %v3090
  %v3098 = vld [vmem:[%s9] sm:$0x7f]
  %3100 = vset.pattern.permute.xlu0 0
  %3101 = vperm.xlu0 %3100, %v3098
  %v3102 = vpop.permute.xlu0 %3101
  %v3104 = vadd.f32 %v3095, %v3102
  %v3105 = vadd.f32 %v3096, %v3102
  %v3106 = vadd.f32 %v3097, %v3102
  %vm3107 = vcmp.gt.f32.partialorder %v3104, 0.0
  %vm3108 = vcmp.gt.f32.partialorder %v3105, 0.0
  %vm3109 = vcmp.gt.f32.partialorder %v3106, 0.0
  %v3110 = vmin.f32 %v3104, 0.0
  %v3111 = vmin.f32 %v3105, 0.0
  %v3112 = vmin.f32 %v3106, 0.0
  %v3113 = vmul.f32 %v3110, 1.442695
  %v3114 = vpow.pop %v3113
  %v3115 = vmul.f32 %v3111, 1.442695
  %v3116 = vpow.pop %v3115
  %v3117 = vmul.f32 %v3112, 1.442695
  %v3118 = vpow.pop %v3117
  %v3119 = vsub.f32 %v3114, 1.0
  %v3120 = vsub.f32 %v3116, 1.0
  %v3121 = vsub.f32 %v3118, 1.0
  %v3122 = vsel %vm3107, %v3104, %v3119
  %v3123 = vsel %vm3108, %v3105, %v3120
  %v3124 = vsel %vm3109, %v3106, %v3121
  %v3125 = vsel %vm1040, %v3122, 0.0
  %v3126 = vsel %vm1041, %v3123, 0.0
  %v3127 = vsel %vm1042, %v3124, 0.0
  %v3128 = vpack.c.bf16 %v3125, %v3125
  %v3129 = vpack.c.bf16 %v3126, %v3126
  %v3130 = vpack.c.bf16 %v3127, %v3127
  %v3134 = vunpack.c.l.b16 %v3128
  %v3135 = vunpack.c.l.b16 %v3129
  %v3136 = vunpack.c.l.b16 %v3130
  %v3137 = vpack.c.b16 %v3135, %v3134
  %v3138 = vpack.c.b16 %v3136, %v3136
  %vm3141 = vcmask 1043456
  %vm3142 = vsmask.f32 3328
  %vm3143 = vmand %vm3141, %vm3142
  %vm3144 = vcmask 1047556
  %vm3145 = vsmask.f32 7424
  %vm3146 = vmand %vm3144, %vm3145
  %vm3147 = vmor %vm3146, %vm3143
  %v3148 = vld [vmem:[%s10] sm:$0xff]
  %v3149 = vsel %vm3147, %v3137, %v3148
  %3150 = vst [vmem:[%s10] sm:$0xff] %v3149
  %vm3151 = vcmask 551936
  %vm3152 = vmand %vm3151, %vm3142
  %v3153 = vld [vmem:[%s10 + $0x8] sm:$0xf]
  %v3154 = vsel %vm3152, %v3138, %v3153
  %3155 = vst [vmem:[%s10 + $0x8] sm:$0xf] %v3154
  // Predicated region
  $region42: #{convnet_forward.5} parent=0 // pred_check
    _
  $region43: #{convnet_forward.5} parent=0 // pred_check_branch
    %3157 = sbr.rel (0) target = $region45
  $region44: #{convnet_forward.5} parent=0 // pred_region
    _
  $region45: #{convnet_forward.5} parent=0 // pred_fallthru
    _
  // Predicated region
  $region46: #{convnet_forward.5} parent=0 // pred_check
    _
  $region47: #{convnet_forward.5} parent=0 // pred_check_branch
    %3159 = sbr.rel (0) target = $region49
  $region48: #{convnet_forward.5} parent=0 // pred_region
    _
  $region49: #{convnet_forward.5} parent=0 // pred_fallthru
    _

// kernel: eq.29
$region0: #{eq.29}
  %s0 = inlined_call_operand.vmem [shape: s32[1,1,16,16], index: 0, kind: input, shape index: {}]
  %s1 = inlined_call_operand.vmem [shape: s32[256], index: 1, kind: output, shape index: {}]
  $region1: #{eq.29} parent=0
    #allocation0 [shape = 'u8[4096]{0}', space=vmem, size = 0x1000, scoped, tag = 'scoped mem for output reshape']
    %s2 = smov 3
    %v3 = vld [vmem:[%s0] ss:$8 sm:%s2]
    %vm4 = vcmask 130048
    %5 = vst.msk [vmem:[#allocation0] sm:$0x3] %vm4, %v3
    %s6 = scalar_lea.vmem %s0, 7
    %s7 = smov 3
    %v8 = vld [vmem:[%s6] ss:$8 sm:%s7]
    %9 = vrot.lane.b32.xlu0 %v8, 112
    %v10 = vpop.permute.xlu0 %9
    %vm11 = vcmask 1048448
    %12 = vst.msk [vmem:[#allocation0] sm:$0x3] %vm11, %v10
    %s13 = scalar_lea.vmem %s0, 6
    %s14 = smov 3
    %v15 = vld [vmem:[%s13] ss:$8 sm:%s14]
    %16 = vrot.lane.b32.xlu0 %v15, 96
    %v17 = vpop.permute.xlu0 %16
    %vm18 = vcmask 917248
    %19 = vst.msk [vmem:[#allocation0] sm:$0x3] %vm18, %v17
    %s20 = scalar_lea.vmem %s0, 5
    %s21 = smov 3
    %v22 = vld [vmem:[%s20] ss:$8 sm:%s21]
    %23 = vrot.lane.b32.xlu0 %v22, 80
    %v24 = vpop.permute.xlu0 %23
    %vm25 = vcmask 786048
    %26 = vst.msk [vmem:[#allocation0] sm:$0x3] %vm25, %v24
    %s27 = scalar_lea.vmem %s0, 4
    %s28 = smov 3
    %v29 = vld [vmem:[%s27] ss:$8 sm:%s28]
    %30 = vrot.lane.b32.xlu0 %v29, 64
    %v31 = vpop.permute.xlu0 %30
    %vm32 = vcmask 654848
    %33 = vst.msk [vmem:[#allocation0] sm:$0x3] %vm32, %v31
    %s34 = scalar_lea.vmem %s0, 3
    %s35 = smov 3
    %v36 = vld [vmem:[%s34] ss:$8 sm:%s35]
    %37 = vrot.lane.b32.xlu0 %v36, 48
    %v38 = vpop.permute.xlu0 %37
    %vm39 = vcmask 523648
    %40 = vst.msk [vmem:[#allocation0] sm:$0x3] %vm39, %v38
    %s41 = scalar_lea.vmem %s0, 2
    %s42 = smov 3
    %v43 = vld [vmem:[%s41] ss:$8 sm:%s42]
    %44 = vrot.lane.b32.xlu0 %v43, 32
    %v45 = vpop.permute.xlu0 %44
    %vm46 = vcmask 392448
    %47 = vst.msk [vmem:[#allocation0] sm:$0x3] %vm46, %v45
    %s48 = scalar_lea.vmem %s0, 1
    %s49 = smov 3
    %v50 = vld [vmem:[%s48] ss:$8 sm:%s49]
    %51 = vrot.lane.b32.xlu0 %v50, 16
    %v52 = vpop.permute.xlu0 %51
    %vm53 = vcmask 261248
    %54 = vst.msk [vmem:[#allocation0] sm:$0x3] %vm53, %v52
    %s56 = sshllo.u32 0, 2
    %v58 = vld [vmem:[#allocation0] sm:%s56]
    %s59 = sshllo.u32 0, 2
    %60 = vst [vmem:[%s1] sm:%s59] %v58

// kernel: convnet_forward.7
$region0: #{convnet_forward.7}
  #allocation0 [shape = 'u32[]', space=smem, size = 0x4, offset = 0x4, fixed_abs, tag = 'smem constant byte address 0x4 - core index']
  #allocation1 [shape = 'u32[144,128]{1,0:T(1,128)}', space=vmem, size = 0x12000, scoped, tag = 'internal scratch']
  %s0 = inlined_call_operand.vmem [shape: bf16[28,122], index: 0, kind: input, shape index: {}]
  %s1 = inlined_call_operand.vmem [shape: bf16[14,122], index: 1, kind: input, shape index: {}]
  %s2 = inlined_call_operand.vmem [shape: f32[1,100], index: 2, kind: input, shape index: {}]
  %s3 = inlined_call_operand.vmem [shape: bf16[9,14,28], index: 3, kind: input, shape index: {}]
  %s4 = inlined_call_operand.vmem [shape: bf16[9,14,14], index: 4, kind: input, shape index: {}]
  %s5 = inlined_call_operand.vmem [shape: f32[14,1], index: 5, kind: input, shape index: {}]
  %s6 = inlined_call_operand.vmem [shape: bf16[14,100], index: 6, kind: output, shape index: {}]
  %s7 = sld [smem:[#allocation0]]
  $region34: #{convnet_forward.7} parent=0
    _
  %s9 = ssub.s32 1, %s7
  %s10 = scalar_select 0, %s9, %s7
  // Predicated region
  $region2: #{convnet_forward.7} parent=0 // pred_check
    _
  $region3: #{convnet_forward.7} parent=0 // pred_check_branch
    %12 = sbr.rel (0) target = $region5
  $region4: #{convnet_forward.7} parent=0 // pred_region
    _
  $region5: #{convnet_forward.7} parent=0 // pred_fallthru
    _
  // Predicated region
  $region6: #{convnet_forward.7} parent=0 // pred_check
    _
  $region7: #{convnet_forward.7} parent=0 // pred_check_branch
    %14 = sbr.rel (0) target = $region9
  $region8: #{convnet_forward.7} parent=0 // pred_region
    _
  $region9: #{convnet_forward.7} parent=0 // pred_fallthru
    _
  // Predicated region
  $region10: #{convnet_forward.7} parent=0 // pred_check
    _
  $region11: #{convnet_forward.7} parent=0 // pred_check_branch
    %16 = sbr.rel (0) target = $region13
  $region12: #{convnet_forward.7} parent=0 // pred_region
    _
  $region13: #{convnet_forward.7} parent=0 // pred_fallthru
    _
  // Predicated region
  $region14: #{convnet_forward.7} parent=0 // pred_check
    _
  $region15: #{convnet_forward.7} parent=0 // pred_check_branch
    %18 = sbr.rel (0) target = $region17
  $region16: #{convnet_forward.7} parent=0 // pred_region
    _
  $region17: #{convnet_forward.7} parent=0 // pred_fallthru
    _
  // Predicated region
  $region18: #{convnet_forward.7} parent=0 // pred_check
    _
  $region19: #{convnet_forward.7} parent=0 // pred_check_branch
    %20 = sbr.rel (0) target = $region21
  $region20: #{convnet_forward.7} parent=0 // pred_region
    _
  $region21: #{convnet_forward.7} parent=0 // pred_fallthru
    _
  // Predicated region
  $region22: #{convnet_forward.7} parent=0 // pred_check
    _
  $region23: #{convnet_forward.7} parent=0 // pred_check_branch
    %22 = sbr.rel (0) target = $region25
  $region24: #{convnet_forward.7} parent=0 // pred_region
    _
  $region25: #{convnet_forward.7} parent=0 // pred_fallthru
    _
  %v24 = vld [vmem:[%s2] sm:$0x1]
  %vm25 = vcmp.gt.f32.partialorder %v24, 0.5
  %v26 = vld [vmem:[%s0] sm:$0xf]
  %v27 = vld [vmem:[%s0 + $0x4] sm:$0xf]
  %v28 = vld [vmem:[%s0 + $0x8] sm:$0xf]
  %v29 = vld [vmem:[%s0 + $0xc] sm:$0x3]
  %v30 = vld [vmem:[%s3] sm:$0xf]
  %v31 = vld [vmem:[%s3 + $0x4] sm:$0x7]
  %s32 = scalar_lea.vmem %s3, 8
  %v33 = vld [vmem:[%s32] sm:$0xf]
  %v34 = vld [vmem:[%s32 + $0x4] sm:$0x7]
  %v37 = vunpack.c.l.b16 %v33
  %v38 = vunpack.c.l.b16 %v34
  %v39 = vpack.c.b16 %v38, %v37
  %v44 = vunpack.c.l.b16 %v26
  %v45 = vunpack.c.l.b16 %v27
  %v46 = vunpack.c.l.b16 %v28
  %v47 = vunpack.c.l.b16 %v29
  %v48 = vpack.c.b16 %v45, %v44
  %v49 = vpack.c.b16 %v47, %v46
  %50 = vrot.lane.b32.xlu0 %v48, 127
  %v51 = vpop.permute.xlu0 %50
  %52 = vrot.lane.b32.xlu0 %v49, 127
  %v53 = vpop.permute.xlu0 %52
  %vm55 = vcmask 228352
  %v57 = vsel %vm55, %v39, 0
  %vm59 = vcmask 1045504
  %v61 = vsel %vm59, %v53, 0
  %63 = vmatprep.subr.bf16.mxu0 0
  %64 = vmatpush1.bf16.msra.mxu0 %v51
  %65 = vmatprep.subr.bf16.mxu0 0
  %66 = vmatpush1.bf16.msra.mxu0 %v61
  %67 = vmatprep.subr.bf16.mxu0 0
  %68 = vmatpush1.bf16.msra.mxu0 0
  %69 = vmatprep.subr.bf16.mxu0 0
  %70 = vmatpush1.bf16.msra.mxu0 0
  %71 = vmatprep.subr.bf16.mxu0 0
  %72 = vmatpush1.bf16.msra.mxu0 0
  %73 = vmatprep.subr.bf16.mxu0 0
  %74 = vmatpush1.bf16.msra.mxu0 0
  %75 = vmatprep.subr.bf16.mxu0 0
  %76 = vmatpush1.bf16.msra.mxu0 0
  %77 = vmatprep.subr.bf16.mxu0 0
  %78 = vmatpush1.bf16.msra.mxu0 0
  %79 = vmatprep.subr.bf16.mxu0 0
  %80 = vmatpush1.bf16.msra.mxu0 0
  %81 = vmatprep.subr.bf16.mxu0 0
  %82 = vmatpush1.bf16.msra.mxu0 0
  %83 = vmatprep.subr.bf16.mxu0 0
  %84 = vmatpush1.bf16.msra.mxu0 0
  %85 = vmatprep.subr.bf16.mxu0 0
  %86 = vmatpush1.bf16.msra.mxu0 0
  %87 = vmatprep.subr.bf16.mxu0 0
  %88 = vmatpush1.bf16.msra.mxu0 0
  %89 = vmatprep.subr.bf16.mxu0 0
  %90 = vmatpush1.bf16.msra.mxu0 0
  %91 = vmatprep.subr.bf16.mxu0 0
  %92 = vmatpush1.bf16.msra.mxu0 0
  %93 = vmatprep.subr.bf16.mxu0 0
  %94 = vmatpush1.bf16.msra.mxu0 0
  %95 = vmatprep.mubr.bf16.mxu0 0
  %96 = vmatmul.mubr.bf16.gmra.mrb[0].mxu0 %v57
  %v97 = vpop.f32.mrb[0].mxu0
  %v98 = vadd.f32 0.0, %v97
  %v99 = vpop.f32.mrb[0].mxu0
  %v100 = vpop.f32.mrb[0].mxu0
  %v101 = vadd.f32 0.0, %v100
  %v102 = vpop.f32.mrb[0].mxu0
  %103 = vdwg.mxu0
  %v106 = vunpack.c.l.b16 %v30
  %v107 = vunpack.c.l.b16 %v31
  %v108 = vpack.c.b16 %v107, %v106
  %v111 = vsel %vm55, %v108, 0
  %v114 = vsel %vm59, %v49, 0
  %116 = vmatprep.subr.bf16.mxu0 0
  %117 = vmatpush1.bf16.msra.mxu0 %v48
  %118 = vmatprep.subr.bf16.mxu0 0
  %119 = vmatpush1.bf16.msra.mxu0 %v114
  %120 = vmatprep.subr.bf16.mxu0 0
  %121 = vmatpush1.bf16.msra.mxu0 0
  %122 = vmatprep.subr.bf16.mxu0 0
  %123 = vmatpush1.bf16.msra.mxu0 0
  %124 = vmatprep.subr.bf16.mxu0 0
  %125 = vmatpush1.bf16.msra.mxu0 0
  %126 = vmatprep.subr.bf16.mxu0 0
  %127 = vmatpush1.bf16.msra.mxu0 0
  %128 = vmatprep.subr.bf16.mxu0 0
  %129 = vmatpush1.bf16.msra.mxu0 0
  %130 = vmatprep.subr.bf16.mxu0 0
  %131 = vmatpush1.bf16.msra.mxu0 0
  %132 = vmatprep.subr.bf16.mxu0 0
  %133 = vmatpush1.bf16.msra.mxu0 0
  %134 = vmatprep.subr.bf16.mxu0 0
  %135 = vmatpush1.bf16.msra.mxu0 0
  %136 = vmatprep.subr.bf16.mxu0 0
  %137 = vmatpush1.bf16.msra.mxu0 0
  %138 = vmatprep.subr.bf16.mxu0 0
  %139 = vmatpush1.bf16.msra.mxu0 0
  %140 = vmatprep.subr.bf16.mxu0 0
  %141 = vmatpush1.bf16.msra.mxu0 0
  %142 = vmatprep.subr.bf16.mxu0 0
  %143 = vmatpush1.bf16.msra.mxu0 0
  %144 = vmatprep.subr.bf16.mxu0 0
  %145 = vmatpush1.bf16.msra.mxu0 0
  %146 = vmatprep.subr.bf16.mxu0 0
  %147 = vmatpush1.bf16.msra.mxu0 0
  %148 = vmatprep.mubr.bf16.mxu0 0
  %149 = vmatmul.mubr.bf16.gmra.mrb[0].mxu0 %v111
  %v150 = vpop.f32.mrb[0].mxu0
  %v151 = vadd.f32 %v98, %v150
  %v152 = vpop.f32.mrb[0].mxu0
  %v153 = vpop.f32.mrb[0].mxu0
  %v154 = vadd.f32 %v101, %v153
  %v155 = vpop.f32.mrb[0].mxu0
  %156 = vdwg.mxu0
  %s157 = scalar_lea.vmem %s3, 16
  %v158 = vld [vmem:[%s157] sm:$0xf]
  %v159 = vld [vmem:[%s157 + $0x4] sm:$0x7]
  %v162 = vunpack.c.l.b16 %v158
  %v163 = vunpack.c.l.b16 %v159
  %v164 = vpack.c.b16 %v163, %v162
  %165 = vrot.lane.b32.xlu0 %v48, 126
  %v166 = vpop.permute.xlu0 %165
  %167 = vrot.lane.b32.xlu0 %v49, 126
  %v168 = vpop.permute.xlu0 %167
  %v171 = vsel %vm55, %v164, 0
  %v174 = vsel %vm59, %v168, 0
  %176 = vmatprep.subr.bf16.mxu0 0
  %177 = vmatpush1.bf16.msra.mxu0 %v166
  %178 = vmatprep.subr.bf16.mxu0 0
  %179 = vmatpush1.bf16.msra.mxu0 %v174
  %180 = vmatprep.subr.bf16.mxu0 0
  %181 = vmatpush1.bf16.msra.mxu0 0
  %182 = vmatprep.subr.bf16.mxu0 0
  %183 = vmatpush1.bf16.msra.mxu0 0
  %184 = vmatprep.subr.bf16.mxu0 0
  %185 = vmatpush1.bf16.msra.mxu0 0
  %186 = vmatprep.subr.bf16.mxu0 0
  %187 = vmatpush1.bf16.msra.mxu0 0
  %188 = vmatprep.subr.bf16.mxu0 0
  %189 = vmatpush1.bf16.msra.mxu0 0
  %190 = vmatprep.subr.bf16.mxu0 0
  %191 = vmatpush1.bf16.msra.mxu0 0
  %192 = vmatprep.subr.bf16.mxu0 0
  %193 = vmatpush1.bf16.msra.mxu0 0
  %194 = vmatprep.subr.bf16.mxu0 0
  %195 = vmatpush1.bf16.msra.mxu0 0
  %196 = vmatprep.subr.bf16.mxu0 0
  %197 = vmatpush1.bf16.msra.mxu0 0
  %198 = vmatprep.subr.bf16.mxu0 0
  %199 = vmatpush1.bf16.msra.mxu0 0
  %200 = vmatprep.subr.bf16.mxu0 0
  %201 = vmatpush1.bf16.msra.mxu0 0
  %202 = vmatprep.subr.bf16.mxu0 0
  %203 = vmatpush1.bf16.msra.mxu0 0
  %204 = vmatprep.subr.bf16.mxu0 0
  %205 = vmatpush1.bf16.msra.mxu0 0
  %206 = vmatprep.subr.bf16.mxu0 0
  %207 = vmatpush1.bf16.msra.mxu0 0
  %208 = vmatprep.mubr.bf16.mxu0 0
  %209 = vmatmul.mubr.bf16.gmra.mrb[0].mxu0 %v171
  %v210 = vpop.f32.mrb[0].mxu0
  %v211 = vadd.f32 0.0, %v210
  %v212 = vpop.f32.mrb[0].mxu0
  %v213 = vpop.f32.mrb[0].mxu0
  %v214 = vadd.f32 0.0, %v213
  %v215 = vpop.f32.mrb[0].mxu0
  %216 = vdwg.mxu0
  %v217 = vadd.f32 %v151, %v211
  %v218 = vadd.f32 %v154, %v214
  %s219 = scalar_lea.vmem %s3, 24
  %v220 = vld [vmem:[%s219] sm:$0xf]
  %v221 = vld [vmem:[%s219 + $0x4] sm:$0x7]
  %v224 = vunpack.c.l.b16 %v220
  %v225 = vunpack.c.l.b16 %v221
  %v226 = vpack.c.b16 %v225, %v224
  %227 = vrot.lane.b32.xlu0 %v48, 118
  %v228 = vpop.permute.xlu0 %227
  %229 = vrot.lane.b32.xlu0 %v49, 118
  %v230 = vpop.permute.xlu0 %229
  %v233 = vsel %vm55, %v226, 0
  %v236 = vsel %vm59, %v230, 0
  %238 = vmatprep.subr.bf16.mxu0 0
  %239 = vmatpush1.bf16.msra.mxu0 %v228
  %240 = vmatprep.subr.bf16.mxu0 0
  %241 = vmatpush1.bf16.msra.mxu0 %v236
  %242 = vmatprep.subr.bf16.mxu0 0
  %243 = vmatpush1.bf16.msra.mxu0 0
  %244 = vmatprep.subr.bf16.mxu0 0
  %245 = vmatpush1.bf16.msra.mxu0 0
  %246 = vmatprep.subr.bf16.mxu0 0
  %247 = vmatpush1.bf16.msra.mxu0 0
  %248 = vmatprep.subr.bf16.mxu0 0
  %249 = vmatpush1.bf16.msra.mxu0 0
  %250 = vmatprep.subr.bf16.mxu0 0
  %251 = vmatpush1.bf16.msra.mxu0 0
  %252 = vmatprep.subr.bf16.mxu0 0
  %253 = vmatpush1.bf16.msra.mxu0 0
  %254 = vmatprep.subr.bf16.mxu0 0
  %255 = vmatpush1.bf16.msra.mxu0 0
  %256 = vmatprep.subr.bf16.mxu0 0
  %257 = vmatpush1.bf16.msra.mxu0 0
  %258 = vmatprep.subr.bf16.mxu0 0
  %259 = vmatpush1.bf16.msra.mxu0 0
  %260 = vmatprep.subr.bf16.mxu0 0
  %261 = vmatpush1.bf16.msra.mxu0 0
  %262 = vmatprep.subr.bf16.mxu0 0
  %263 = vmatpush1.bf16.msra.mxu0 0
  %264 = vmatprep.subr.bf16.mxu0 0
  %265 = vmatpush1.bf16.msra.mxu0 0
  %266 = vmatprep.subr.bf16.mxu0 0
  %267 = vmatpush1.bf16.msra.mxu0 0
  %268 = vmatprep.subr.bf16.mxu0 0
  %269 = vmatpush1.bf16.msra.mxu0 0
  %270 = vmatprep.mubr.bf16.mxu0 0
  %271 = vmatmul.mubr.bf16.gmra.mrb[0].mxu0 %v233
  %v272 = vpop.f32.mrb[0].mxu0
  %v273 = vadd.f32 0.0, %v272
  %v274 = vpop.f32.mrb[0].mxu0
  %v275 = vpop.f32.mrb[0].mxu0
  %v276 = vadd.f32 0.0, %v275
  %v277 = vpop.f32.mrb[0].mxu0
  %278 = vdwg.mxu0
  %v279 = vadd.f32 %v217, %v273
  %v280 = vadd.f32 %v218, %v276
  %s281 = scalar_lea.vmem %s3, 32
  %v282 = vld [vmem:[%s281] sm:$0xf]
  %v283 = vld [vmem:[%s281 + $0x4] sm:$0x7]
  %v286 = vunpack.c.l.b16 %v282
  %v287 = vunpack.c.l.b16 %v283
  %v288 = vpack.c.b16 %v287, %v286
  %289 = vrot.lane.b32.xlu0 %v48, 117
  %v290 = vpop.permute.xlu0 %289
  %291 = vrot.lane.b32.xlu0 %v49, 117
  %v292 = vpop.permute.xlu0 %291
  %v295 = vsel %vm55, %v288, 0
  %v298 = vsel %vm59, %v292, 0
  %300 = vmatprep.subr.bf16.mxu0 0
  %301 = vmatpush1.bf16.msra.mxu0 %v290
  %302 = vmatprep.subr.bf16.mxu0 0
  %303 = vmatpush1.bf16.msra.mxu0 %v298
  %304 = vmatprep.subr.bf16.mxu0 0
  %305 = vmatpush1.bf16.msra.mxu0 0
  %306 = vmatprep.subr.bf16.mxu0 0
  %307 = vmatpush1.bf16.msra.mxu0 0
  %308 = vmatprep.subr.bf16.mxu0 0
  %309 = vmatpush1.bf16.msra.mxu0 0
  %310 = vmatprep.subr.bf16.mxu0 0
  %311 = vmatpush1.bf16.msra.mxu0 0
  %312 = vmatprep.subr.bf16.mxu0 0
  %313 = vmatpush1.bf16.msra.mxu0 0
  %314 = vmatprep.subr.bf16.mxu0 0
  %315 = vmatpush1.bf16.msra.mxu0 0
  %316 = vmatprep.subr.bf16.mxu0 0
  %317 = vmatpush1.bf16.msra.mxu0 0
  %318 = vmatprep.subr.bf16.mxu0 0
  %319 = vmatpush1.bf16.msra.mxu0 0
  %320 = vmatprep.subr.bf16.mxu0 0
  %321 = vmatpush1.bf16.msra.mxu0 0
  %322 = vmatprep.subr.bf16.mxu0 0
  %323 = vmatpush1.bf16.msra.mxu0 0
  %324 = vmatprep.subr.bf16.mxu0 0
  %325 = vmatpush1.bf16.msra.mxu0 0
  %326 = vmatprep.subr.bf16.mxu0 0
  %327 = vmatpush1.bf16.msra.mxu0 0
  %328 = vmatprep.subr.bf16.mxu0 0
  %329 = vmatpush1.bf16.msra.mxu0 0
  %330 = vmatprep.subr.bf16.mxu0 0
  %331 = vmatpush1.bf16.msra.mxu0 0
  %332 = vmatprep.mubr.bf16.mxu0 0
  %333 = vmatmul.mubr.bf16.gmra.mrb[0].mxu0 %v295
  %v334 = vpop.f32.mrb[0].mxu0
  %v335 = vadd.f32 0.0, %v334
  %v336 = vpop.f32.mrb[0].mxu0
  %v337 = vpop.f32.mrb[0].mxu0
  %v338 = vadd.f32 0.0, %v337
  %v339 = vpop.f32.mrb[0].mxu0
  %340 = vdwg.mxu0
  %v341 = vadd.f32 %v279, %v335
  %v342 = vadd.f32 %v280, %v338
  %s343 = scalar_lea.vmem %s3, 40
  %v344 = vld [vmem:[%s343] sm:$0xf]
  %v345 = vld [vmem:[%s343 + $0x4] sm:$0x7]
  %v348 = vunpack.c.l.b16 %v344
  %v349 = vunpack.c.l.b16 %v345
  %v350 = vpack.c.b16 %v349, %v348
  %351 = vrot.lane.b32.xlu0 %v48, 116
  %v352 = vpop.permute.xlu0 %351
  %353 = vrot.lane.b32.xlu0 %v49, 116
  %v354 = vpop.permute.xlu0 %353
  %v357 = vsel %vm55, %v350, 0
  %v360 = vsel %vm59, %v354, 0
  %362 = vmatprep.subr.bf16.mxu0 0
  %363 = vmatpush1.bf16.msra.mxu0 %v352
  %364 = vmatprep.subr.bf16.mxu0 0
  %365 = vmatpush1.bf16.msra.mxu0 %v360
  %366 = vmatprep.subr.bf16.mxu0 0
  %367 = vmatpush1.bf16.msra.mxu0 0
  %368 = vmatprep.subr.bf16.mxu0 0
  %369 = vmatpush1.bf16.msra.mxu0 0
  %370 = vmatprep.subr.bf16.mxu0 0
  %371 = vmatpush1.bf16.msra.mxu0 0
  %372 = vmatprep.subr.bf16.mxu0 0
  %373 = vmatpush1.bf16.msra.mxu0 0
  %374 = vmatprep.subr.bf16.mxu0 0
  %375 = vmatpush1.bf16.msra.mxu0 0
  %376 = vmatprep.subr.bf16.mxu0 0
  %377 = vmatpush1.bf16.msra.mxu0 0
  %378 = vmatprep.subr.bf16.mxu0 0
  %379 = vmatpush1.bf16.msra.mxu0 0
  %380 = vmatprep.subr.bf16.mxu0 0
  %381 = vmatpush1.bf16.msra.mxu0 0
  %382 = vmatprep.subr.bf16.mxu0 0
  %383 = vmatpush1.bf16.msra.mxu0 0
  %384 = vmatprep.subr.bf16.mxu0 0
  %385 = vmatpush1.bf16.msra.mxu0 0
  %386 = vmatprep.subr.bf16.mxu0 0
  %387 = vmatpush1.bf16.msra.mxu0 0
  %388 = vmatprep.subr.bf16.mxu0 0
  %389 = vmatpush1.bf16.msra.mxu0 0
  %390 = vmatprep.subr.bf16.mxu0 0
  %391 = vmatpush1.bf16.msra.mxu0 0
  %392 = vmatprep.subr.bf16.mxu0 0
  %393 = vmatpush1.bf16.msra.mxu0 0
  %394 = vmatprep.mubr.bf16.mxu0 0
  %395 = vmatmul.mubr.bf16.gmra.mrb[0].mxu0 %v357
  %v396 = vpop.f32.mrb[0].mxu0
  %v397 = vadd.f32 0.0, %v396
  %v398 = vpop.f32.mrb[0].mxu0
  %v399 = vpop.f32.mrb[0].mxu0
  %v400 = vadd.f32 0.0, %v399
  %v401 = vpop.f32.mrb[0].mxu0
  %402 = vdwg.mxu0
  %v403 = vadd.f32 %v341, %v397
  %v404 = vadd.f32 %v342, %v400
  %s405 = scalar_lea.vmem %s3, 48
  %v406 = vld [vmem:[%s405] sm:$0xf]
  %v407 = vld [vmem:[%s405 + $0x4] sm:$0x7]
  %v410 = vunpack.c.l.b16 %v406
  %v411 = vunpack.c.l.b16 %v407
  %v412 = vpack.c.b16 %v411, %v410
  %413 = vrot.lane.b32.xlu0 %v48, 108
  %v414 = vpop.permute.xlu0 %413
  %415 = vrot.lane.b32.xlu0 %v49, 108
  %v416 = vpop.permute.xlu0 %415
  %v419 = vsel %vm55, %v412, 0
  %v422 = vsel %vm59, %v416, 0
  %424 = vmatprep.subr.bf16.mxu0 0
  %425 = vmatpush1.bf16.msra.mxu0 %v414
  %426 = vmatprep.subr.bf16.mxu0 0
  %427 = vmatpush1.bf16.msra.mxu0 %v422
  %428 = vmatprep.subr.bf16.mxu0 0
  %429 = vmatpush1.bf16.msra.mxu0 0
  %430 = vmatprep.subr.bf16.mxu0 0
  %431 = vmatpush1.bf16.msra.mxu0 0
  %432 = vmatprep.subr.bf16.mxu0 0
  %433 = vmatpush1.bf16.msra.mxu0 0
  %434 = vmatprep.subr.bf16.mxu0 0
  %435 = vmatpush1.bf16.msra.mxu0 0
  %436 = vmatprep.subr.bf16.mxu0 0
  %437 = vmatpush1.bf16.msra.mxu0 0
  %438 = vmatprep.subr.bf16.mxu0 0
  %439 = vmatpush1.bf16.msra.mxu0 0
  %440 = vmatprep.subr.bf16.mxu0 0
  %441 = vmatpush1.bf16.msra.mxu0 0
  %442 = vmatprep.subr.bf16.mxu0 0
  %443 = vmatpush1.bf16.msra.mxu0 0
  %444 = vmatprep.subr.bf16.mxu0 0
  %445 = vmatpush1.bf16.msra.mxu0 0
  %446 = vmatprep.subr.bf16.mxu0 0
  %447 = vmatpush1.bf16.msra.mxu0 0
  %448 = vmatprep.subr.bf16.mxu0 0
  %449 = vmatpush1.bf16.msra.mxu0 0
  %450 = vmatprep.subr.bf16.mxu0 0
  %451 = vmatpush1.bf16.msra.mxu0 0
  %452 = vmatprep.subr.bf16.mxu0 0
  %453 = vmatpush1.bf16.msra.mxu0 0
  %454 = vmatprep.subr.bf16.mxu0 0
  %455 = vmatpush1.bf16.msra.mxu0 0
  %456 = vmatprep.mubr.bf16.mxu0 0
  %457 = vmatmul.mubr.bf16.gmra.mrb[0].mxu0 %v419
  %v458 = vpop.f32.mrb[0].mxu0
  %v459 = vadd.f32 0.0, %v458
  %v460 = vpop.f32.mrb[0].mxu0
  %v461 = vpop.f32.mrb[0].mxu0
  %v462 = vadd.f32 0.0, %v461
  %v463 = vpop.f32.mrb[0].mxu0
  %464 = vdwg.mxu0
  %v465 = vadd.f32 %v403, %v459
  %v466 = vadd.f32 %v404, %v462
  %s467 = scalar_lea.vmem %s3, 56
  %v468 = vld [vmem:[%s467] sm:$0xf]
  %v469 = vld [vmem:[%s467 + $0x4] sm:$0x7]
  %v472 = vunpack.c.l.b16 %v468
  %v473 = vunpack.c.l.b16 %v469
  %v474 = vpack.c.b16 %v473, %v472
  %475 = vrot.lane.b32.xlu0 %v48, 107
  %v476 = vpop.permute.xlu0 %475
  %477 = vrot.lane.b32.xlu0 %v49, 107
  %v478 = vpop.permute.xlu0 %477
  %v481 = vsel %vm55, %v474, 0
  %v484 = vsel %vm59, %v478, 0
  %486 = vmatprep.subr.bf16.mxu0 0
  %487 = vmatpush1.bf16.msra.mxu0 %v476
  %488 = vmatprep.subr.bf16.mxu0 0
  %489 = vmatpush1.bf16.msra.mxu0 %v484
  %490 = vmatprep.subr.bf16.mxu0 0
  %491 = vmatpush1.bf16.msra.mxu0 0
  %492 = vmatprep.subr.bf16.mxu0 0
  %493 = vmatpush1.bf16.msra.mxu0 0
  %494 = vmatprep.subr.bf16.mxu0 0
  %495 = vmatpush1.bf16.msra.mxu0 0
  %496 = vmatprep.subr.bf16.mxu0 0
  %497 = vmatpush1.bf16.msra.mxu0 0
  %498 = vmatprep.subr.bf16.mxu0 0
  %499 = vmatpush1.bf16.msra.mxu0 0
  %500 = vmatprep.subr.bf16.mxu0 0
  %501 = vmatpush1.bf16.msra.mxu0 0
  %502 = vmatprep.subr.bf16.mxu0 0
  %503 = vmatpush1.bf16.msra.mxu0 0
  %504 = vmatprep.subr.bf16.mxu0 0
  %505 = vmatpush1.bf16.msra.mxu0 0
  %506 = vmatprep.subr.bf16.mxu0 0
  %507 = vmatpush1.bf16.msra.mxu0 0
  %508 = vmatprep.subr.bf16.mxu0 0
  %509 = vmatpush1.bf16.msra.mxu0 0
  %510 = vmatprep.subr.bf16.mxu0 0
  %511 = vmatpush1.bf16.msra.mxu0 0
  %512 = vmatprep.subr.bf16.mxu0 0
  %513 = vmatpush1.bf16.msra.mxu0 0
  %514 = vmatprep.subr.bf16.mxu0 0
  %515 = vmatpush1.bf16.msra.mxu0 0
  %516 = vmatprep.subr.bf16.mxu0 0
  %517 = vmatpush1.bf16.msra.mxu0 0
  %518 = vmatprep.mubr.bf16.mxu0 0
  %519 = vmatmul.mubr.bf16.gmra.mrb[0].mxu0 %v481
  %v520 = vpop.f32.mrb[0].mxu0
  %v521 = vadd.f32 0.0, %v520
  %v522 = vpop.f32.mrb[0].mxu0
  %v523 = vpop.f32.mrb[0].mxu0
  %v524 = vadd.f32 0.0, %v523
  %v525 = vpop.f32.mrb[0].mxu0
  %526 = vdwg.mxu0
  %v527 = vadd.f32 %v465, %v521
  %v528 = vadd.f32 %v466, %v524
  %s529 = scalar_lea.vmem %s3, 64
  %v530 = vld [vmem:[%s529] sm:$0xf]
  %v531 = vld [vmem:[%s529 + $0x4] sm:$0x7]
  %v534 = vunpack.c.l.b16 %v530
  %v535 = vunpack.c.l.b16 %v531
  %v536 = vpack.c.b16 %v535, %v534
  %537 = vrot.lane.b32.xlu0 %v48, 106
  %v538 = vpop.permute.xlu0 %537
  %539 = vrot.lane.b32.xlu0 %v49, 106
  %v540 = vpop.permute.xlu0 %539
  %v543 = vsel %vm55, %v536, 0
  %v546 = vsel %vm59, %v540, 0
  %548 = vmatprep.subr.bf16.mxu0 0
  %549 = vmatpush1.bf16.msra.mxu0 %v538
  %550 = vmatprep.subr.bf16.mxu0 0
  %551 = vmatpush1.bf16.msra.mxu0 %v546
  %552 = vmatprep.subr.bf16.mxu0 0
  %553 = vmatpush1.bf16.msra.mxu0 0
  %554 = vmatprep.subr.bf16.mxu0 0
  %555 = vmatpush1.bf16.msra.mxu0 0
  %556 = vmatprep.subr.bf16.mxu0 0
  %557 = vmatpush1.bf16.msra.mxu0 0
  %558 = vmatprep.subr.bf16.mxu0 0
  %559 = vmatpush1.bf16.msra.mxu0 0
  %560 = vmatprep.subr.bf16.mxu0 0
  %561 = vmatpush1.bf16.msra.mxu0 0
  %562 = vmatprep.subr.bf16.mxu0 0
  %563 = vmatpush1.bf16.msra.mxu0 0
  %564 = vmatprep.subr.bf16.mxu0 0
  %565 = vmatpush1.bf16.msra.mxu0 0
  %566 = vmatprep.subr.bf16.mxu0 0
  %567 = vmatpush1.bf16.msra.mxu0 0
  %568 = vmatprep.subr.bf16.mxu0 0
  %569 = vmatpush1.bf16.msra.mxu0 0
  %570 = vmatprep.subr.bf16.mxu0 0
  %571 = vmatpush1.bf16.msra.mxu0 0
  %572 = vmatprep.subr.bf16.mxu0 0
  %573 = vmatpush1.bf16.msra.mxu0 0
  %574 = vmatprep.subr.bf16.mxu0 0
  %575 = vmatpush1.bf16.msra.mxu0 0
  %576 = vmatprep.subr.bf16.mxu0 0
  %577 = vmatpush1.bf16.msra.mxu0 0
  %578 = vmatprep.subr.bf16.mxu0 0
  %579 = vmatpush1.bf16.msra.mxu0 0
  %580 = vmatprep.mubr.bf16.mxu0 0
  %581 = vmatmul.mubr.bf16.gmra.mrb[0].mxu0 %v543
  %v582 = vpop.f32.mrb[0].mxu0
  %v583 = vadd.f32 0.0, %v582
  %v584 = vpop.f32.mrb[0].mxu0
  %v585 = vpop.f32.mrb[0].mxu0
  %v586 = vadd.f32 0.0, %v585
  %v587 = vpop.f32.mrb[0].mxu0
  %588 = vdwg.mxu0
  %v589 = vadd.f32 %v527, %v583
  %v590 = vadd.f32 %v528, %v586
  %v591 = vld [vmem:[%s1] sm:$0xf]
  %v592 = vld [vmem:[%s1 + $0x4] sm:$0x7]
  %v593 = vld [vmem:[%s4] sm:$0xf]
  %v594 = vld [vmem:[%s4 + $0x4] sm:$0x7]
  %s595 = scalar_lea.vmem %s4, 8
  %v596 = vld [vmem:[%s595] sm:$0xf]
  %v597 = vld [vmem:[%s595 + $0x4] sm:$0x7]
  %v600 = vunpack.c.l.b16 %v596
  %v601 = vunpack.c.l.b16 %v597
  %v602 = vpack.c.b16 %v601, %v600
  %v605 = vunpack.c.l.b16 %v591
  %v606 = vunpack.c.l.b16 %v592
  %v607 = vpack.c.b16 %v606, %v605
  %608 = vrot.lane.b32.xlu0 %v607, 127
  %v609 = vpop.permute.xlu0 %608
  %vm610 = vcmask 113664
  %v612 = vsel %vm610, %v602, 0
  %vm614 = vcmask 1046528
  %v616 = vsel %vm614, %v609, 0
  %618 = vmatprep.subr.bf16.mxu0 0
  %619 = vmatpush1.bf16.msra.mxu0 %v616
  %620 = vmatprep.subr.bf16.mxu0 0
  %621 = vmatpush1.bf16.msra.mxu0 0
  %622 = vmatprep.subr.bf16.mxu0 0
  %623 = vmatpush1.bf16.msra.mxu0 0
  %624 = vmatprep.subr.bf16.mxu0 0
  %625 = vmatpush1.bf16.msra.mxu0 0
  %626 = vmatprep.subr.bf16.mxu0 0
  %627 = vmatpush1.bf16.msra.mxu0 0
  %628 = vmatprep.subr.bf16.mxu0 0
  %629 = vmatpush1.bf16.msra.mxu0 0
  %630 = vmatprep.subr.bf16.mxu0 0
  %631 = vmatpush1.bf16.msra.mxu0 0
  %632 = vmatprep.subr.bf16.mxu0 0
  %633 = vmatpush1.bf16.msra.mxu0 0
  %634 = vmatprep.subr.bf16.mxu0 0
  %635 = vmatpush1.bf16.msra.mxu0 0
  %636 = vmatprep.subr.bf16.mxu0 0
  %637 = vmatpush1.bf16.msra.mxu0 0
  %638 = vmatprep.subr.bf16.mxu0 0
  %639 = vmatpush1.bf16.msra.mxu0 0
  %640 = vmatprep.subr.bf16.mxu0 0
  %641 = vmatpush1.bf16.msra.mxu0 0
  %642 = vmatprep.subr.bf16.mxu0 0
  %643 = vmatpush1.bf16.msra.mxu0 0
  %644 = vmatprep.subr.bf16.mxu0 0
  %645 = vmatpush1.bf16.msra.mxu0 0
  %646 = vmatprep.subr.bf16.mxu0 0
  %647 = vmatpush1.bf16.msra.mxu0 0
  %648 = vmatprep.subr.bf16.mxu0 0
  %649 = vmatpush1.bf16.msra.mxu0 0
  %650 = vmatprep.mubr.bf16.mxu0 0
  %651 = vmatmul.mubr.bf16.gmra.mrb[0].mxu0 %v612
  %v652 = vpop.f32.mrb[0].mxu0
  %v653 = vadd.f32 0.0, %v652
  %v654 = vpop.f32.mrb[0].mxu0
  %v655 = vpop.f32.mrb[0].mxu0
  %v656 = vadd.f32 0.0, %v655
  %v657 = vpop.f32.mrb[0].mxu0
  %658 = vdwg.mxu0
  %v661 = vunpack.c.l.b16 %v593
  %v662 = vunpack.c.l.b16 %v594
  %v663 = vpack.c.b16 %v662, %v661
  %v665 = vsel %vm610, %v663, 0
  %v668 = vsel %vm614, %v607, 0
  %670 = vmatprep.subr.bf16.mxu0 0
  %671 = vmatpush1.bf16.msra.mxu0 %v668
  %672 = vmatprep.subr.bf16.mxu0 0
  %673 = vmatpush1.bf16.msra.mxu0 0
  %674 = vmatprep.subr.bf16.mxu0 0
  %675 = vmatpush1.bf16.msra.mxu0 0
  %676 = vmatprep.subr.bf16.mxu0 0
  %677 = vmatpush1.bf16.msra.mxu0 0
  %678 = vmatprep.subr.bf16.mxu0 0
  %679 = vmatpush1.bf16.msra.mxu0 0
  %680 = vmatprep.subr.bf16.mxu0 0
  %681 = vmatpush1.bf16.msra.mxu0 0
  %682 = vmatprep.subr.bf16.mxu0 0
  %683 = vmatpush1.bf16.msra.mxu0 0
  %684 = vmatprep.subr.bf16.mxu0 0
  %685 = vmatpush1.bf16.msra.mxu0 0
  %686 = vmatprep.subr.bf16.mxu0 0
  %687 = vmatpush1.bf16.msra.mxu0 0
  %688 = vmatprep.subr.bf16.mxu0 0
  %689 = vmatpush1.bf16.msra.mxu0 0
  %690 = vmatprep.subr.bf16.mxu0 0
  %691 = vmatpush1.bf16.msra.mxu0 0
  %692 = vmatprep.subr.bf16.mxu0 0
  %693 = vmatpush1.bf16.msra.mxu0 0
  %694 = vmatprep.subr.bf16.mxu0 0
  %695 = vmatpush1.bf16.msra.mxu0 0
  %696 = vmatprep.subr.bf16.mxu0 0
  %697 = vmatpush1.bf16.msra.mxu0 0
  %698 = vmatprep.subr.bf16.mxu0 0
  %699 = vmatpush1.bf16.msra.mxu0 0
  %700 = vmatprep.subr.bf16.mxu0 0
  %701 = vmatpush1.bf16.msra.mxu0 0
  %702 = vmatprep.mubr.bf16.mxu0 0
  %703 = vmatmul.mubr.bf16.gmra.mrb[0].mxu0 %v665
  %v704 = vpop.f32.mrb[0].mxu0
  %v705 = vadd.f32 %v653, %v704
  %v706 = vpop.f32.mrb[0].mxu0
  %v707 = vpop.f32.mrb[0].mxu0
  %v708 = vadd.f32 %v656, %v707
  %v709 = vpop.f32.mrb[0].mxu0
  %710 = vdwg.mxu0
  %s711 = scalar_lea.vmem %s4, 16
  %v712 = vld [vmem:[%s711] sm:$0xf]
  %v713 = vld [vmem:[%s711 + $0x4] sm:$0x7]
  %v716 = vunpack.c.l.b16 %v712
  %v717 = vunpack.c.l.b16 %v713
  %v718 = vpack.c.b16 %v717, %v716
  %719 = vrot.lane.b32.xlu0 %v607, 126
  %v720 = vpop.permute.xlu0 %719
  %v722 = vsel %vm610, %v718, 0
  %v725 = vsel %vm614, %v720, 0
  %727 = vmatprep.subr.bf16.mxu0 0
  %728 = vmatpush1.bf16.msra.mxu0 %v725
  %729 = vmatprep.subr.bf16.mxu0 0
  %730 = vmatpush1.bf16.msra.mxu0 0
  %731 = vmatprep.subr.bf16.mxu0 0
  %732 = vmatpush1.bf16.msra.mxu0 0
  %733 = vmatprep.subr.bf16.mxu0 0
  %734 = vmatpush1.bf16.msra.mxu0 0
  %735 = vmatprep.subr.bf16.mxu0 0
  %736 = vmatpush1.bf16.msra.mxu0 0
  %737 = vmatprep.subr.bf16.mxu0 0
  %738 = vmatpush1.bf16.msra.mxu0 0
  %739 = vmatprep.subr.bf16.mxu0 0
  %740 = vmatpush1.bf16.msra.mxu0 0
  %741 = vmatprep.subr.bf16.mxu0 0
  %742 = vmatpush1.bf16.msra.mxu0 0
  %743 = vmatprep.subr.bf16.mxu0 0
  %744 = vmatpush1.bf16.msra.mxu0 0
  %745 = vmatprep.subr.bf16.mxu0 0
  %746 = vmatpush1.bf16.msra.mxu0 0
  %747 = vmatprep.subr.bf16.mxu0 0
  %748 = vmatpush1.bf16.msra.mxu0 0
  %749 = vmatprep.subr.bf16.mxu0 0
  %750 = vmatpush1.bf16.msra.mxu0 0
  %751 = vmatprep.subr.bf16.mxu0 0
  %752 = vmatpush1.bf16.msra.mxu0 0
  %753 = vmatprep.subr.bf16.mxu0 0
  %754 = vmatpush1.bf16.msra.mxu0 0
  %755 = vmatprep.subr.bf16.mxu0 0
  %756 = vmatpush1.bf16.msra.mxu0 0
  %757 = vmatprep.subr.bf16.mxu0 0
  %758 = vmatpush1.bf16.msra.mxu0 0
  %759 = vmatprep.mubr.bf16.mxu0 0
  %760 = vmatmul.mubr.bf16.gmra.mrb[0].mxu0 %v722
  %v761 = vpop.f32.mrb[0].mxu0
  %v762 = vadd.f32 0.0, %v761
  %v763 = vpop.f32.mrb[0].mxu0
  %v764 = vpop.f32.mrb[0].mxu0
  %v765 = vadd.f32 0.0, %v764
  %v766 = vpop.f32.mrb[0].mxu0
  %767 = vdwg.mxu0
  %v768 = vadd.f32 %v705, %v762
  %v769 = vadd.f32 %v708, %v765
  %s770 = scalar_lea.vmem %s4, 24
  %v771 = vld [vmem:[%s770] sm:$0xf]
  %v772 = vld [vmem:[%s770 + $0x4] sm:$0x7]
  %v775 = vunpack.c.l.b16 %v771
  %v776 = vunpack.c.l.b16 %v772
  %v777 = vpack.c.b16 %v776, %v775
  %778 = vrot.lane.b32.xlu0 %v607, 118
  %v779 = vpop.permute.xlu0 %778
  %v781 = vsel %vm610, %v777, 0
  %v784 = vsel %vm614, %v779, 0
  %786 = vmatprep.subr.bf16.mxu0 0
  %787 = vmatpush1.bf16.msra.mxu0 %v784
  %788 = vmatprep.subr.bf16.mxu0 0
  %789 = vmatpush1.bf16.msra.mxu0 0
  %790 = vmatprep.subr.bf16.mxu0 0
  %791 = vmatpush1.bf16.msra.mxu0 0
  %792 = vmatprep.subr.bf16.mxu0 0
  %793 = vmatpush1.bf16.msra.mxu0 0
  %794 = vmatprep.subr.bf16.mxu0 0
  %795 = vmatpush1.bf16.msra.mxu0 0
  %796 = vmatprep.subr.bf16.mxu0 0
  %797 = vmatpush1.bf16.msra.mxu0 0
  %798 = vmatprep.subr.bf16.mxu0 0
  %799 = vmatpush1.bf16.msra.mxu0 0
  %800 = vmatprep.subr.bf16.mxu0 0
  %801 = vmatpush1.bf16.msra.mxu0 0
  %802 = vmatprep.subr.bf16.mxu0 0
  %803 = vmatpush1.bf16.msra.mxu0 0
  %804 = vmatprep.subr.bf16.mxu0 0
  %805 = vmatpush1.bf16.msra.mxu0 0
  %806 = vmatprep.subr.bf16.mxu0 0
  %807 = vmatpush1.bf16.msra.mxu0 0
  %808 = vmatprep.subr.bf16.mxu0 0
  %809 = vmatpush1.bf16.msra.mxu0 0
  %810 = vmatprep.subr.bf16.mxu0 0
  %811 = vmatpush1.bf16.msra.mxu0 0
  %812 = vmatprep.subr.bf16.mxu0 0
  %813 = vmatpush1.bf16.msra.mxu0 0
  %814 = vmatprep.subr.bf16.mxu0 0
  %815 = vmatpush1.bf16.msra.mxu0 0
  %816 = vmatprep.subr.bf16.mxu0 0
  %817 = vmatpush1.bf16.msra.mxu0 0
  %818 = vmatprep.mubr.bf16.mxu0 0
  %819 = vmatmul.mubr.bf16.gmra.mrb[0].mxu0 %v781
  %v820 = vpop.f32.mrb[0].mxu0
  %v821 = vadd.f32 0.0, %v820
  %v822 = vpop.f32.mrb[0].mxu0
  %v823 = vpop.f32.mrb[0].mxu0
  %v824 = vadd.f32 0.0, %v823
  %v825 = vpop.f32.mrb[0].mxu0
  %826 = vdwg.mxu0
  %v827 = vadd.f32 %v768, %v821
  %v828 = vadd.f32 %v769, %v824
  %s829 = scalar_lea.vmem %s4, 32
  %v830 = vld [vmem:[%s829] sm:$0xf]
  %v831 = vld [vmem:[%s829 + $0x4] sm:$0x7]
  %v834 = vunpack.c.l.b16 %v830
  %v835 = vunpack.c.l.b16 %v831
  %v836 = vpack.c.b16 %v835, %v834
  %837 = vrot.lane.b32.xlu0 %v607, 117
  %v838 = vpop.permute.xlu0 %837
  %v840 = vsel %vm610, %v836, 0
  %v843 = vsel %vm614, %v838, 0
  %845 = vmatprep.subr.bf16.mxu0 0
  %846 = vmatpush1.bf16.msra.mxu0 %v843
  %847 = vmatprep.subr.bf16.mxu0 0
  %848 = vmatpush1.bf16.msra.mxu0 0
  %849 = vmatprep.subr.bf16.mxu0 0
  %850 = vmatpush1.bf16.msra.mxu0 0
  %851 = vmatprep.subr.bf16.mxu0 0
  %852 = vmatpush1.bf16.msra.mxu0 0
  %853 = vmatprep.subr.bf16.mxu0 0
  %854 = vmatpush1.bf16.msra.mxu0 0
  %855 = vmatprep.subr.bf16.mxu0 0
  %856 = vmatpush1.bf16.msra.mxu0 0
  %857 = vmatprep.subr.bf16.mxu0 0
  %858 = vmatpush1.bf16.msra.mxu0 0
  %859 = vmatprep.subr.bf16.mxu0 0
  %860 = vmatpush1.bf16.msra.mxu0 0
  %861 = vmatprep.subr.bf16.mxu0 0
  %862 = vmatpush1.bf16.msra.mxu0 0
  %863 = vmatprep.subr.bf16.mxu0 0
  %864 = vmatpush1.bf16.msra.mxu0 0
  %865 = vmatprep.subr.bf16.mxu0 0
  %866 = vmatpush1.bf16.msra.mxu0 0
  %867 = vmatprep.subr.bf16.mxu0 0
  %868 = vmatpush1.bf16.msra.mxu0 0
  %869 = vmatprep.subr.bf16.mxu0 0
  %870 = vmatpush1.bf16.msra.mxu0 0
  %871 = vmatprep.subr.bf16.mxu0 0
  %872 = vmatpush1.bf16.msra.mxu0 0
  %873 = vmatprep.subr.bf16.mxu0 0
  %874 = vmatpush1.bf16.msra.mxu0 0
  %875 = vmatprep.subr.bf16.mxu0 0
  %876 = vmatpush1.bf16.msra.mxu0 0
  %877 = vmatprep.mubr.bf16.mxu0 0
  %878 = vmatmul.mubr.bf16.gmra.mrb[0].mxu0 %v840
  %v879 = vpop.f32.mrb[0].mxu0
  %v880 = vadd.f32 0.0, %v879
  %v881 = vpop.f32.mrb[0].mxu0
  %v882 = vpop.f32.mrb[0].mxu0
  %v883 = vadd.f32 0.0, %v882
  %v884 = vpop.f32.mrb[0].mxu0
  %885 = vdwg.mxu0
  %v886 = vadd.f32 %v827, %v880
  %v887 = vadd.f32 %v828, %v883
  %s888 = scalar_lea.vmem %s4, 40
  %v889 = vld [vmem:[%s888] sm:$0xf]
  %v890 = vld [vmem:[%s888 + $0x4] sm:$0x7]
  %v893 = vunpack.c.l.b16 %v889
  %v894 = vunpack.c.l.b16 %v890
  %v895 = vpack.c.b16 %v894, %v893
  %896 = vrot.lane.b32.xlu0 %v607, 116
  %v897 = vpop.permute.xlu0 %896
  %v899 = vsel %vm610, %v895, 0
  %v902 = vsel %vm614, %v897, 0
  %904 = vmatprep.subr.bf16.mxu0 0
  %905 = vmatpush1.bf16.msra.mxu0 %v902
  %906 = vmatprep.subr.bf16.mxu0 0
  %907 = vmatpush1.bf16.msra.mxu0 0
  %908 = vmatprep.subr.bf16.mxu0 0
  %909 = vmatpush1.bf16.msra.mxu0 0
  %910 = vmatprep.subr.bf16.mxu0 0
  %911 = vmatpush1.bf16.msra.mxu0 0
  %912 = vmatprep.subr.bf16.mxu0 0
  %913 = vmatpush1.bf16.msra.mxu0 0
  %914 = vmatprep.subr.bf16.mxu0 0
  %915 = vmatpush1.bf16.msra.mxu0 0
  %916 = vmatprep.subr.bf16.mxu0 0
  %917 = vmatpush1.bf16.msra.mxu0 0
  %918 = vmatprep.subr.bf16.mxu0 0
  %919 = vmatpush1.bf16.msra.mxu0 0
  %920 = vmatprep.subr.bf16.mxu0 0
  %921 = vmatpush1.bf16.msra.mxu0 0
  %922 = vmatprep.subr.bf16.mxu0 0
  %923 = vmatpush1.bf16.msra.mxu0 0
  %924 = vmatprep.subr.bf16.mxu0 0
  %925 = vmatpush1.bf16.msra.mxu0 0
  %926 = vmatprep.subr.bf16.mxu0 0
  %927 = vmatpush1.bf16.msra.mxu0 0
  %928 = vmatprep.subr.bf16.mxu0 0
  %929 = vmatpush1.bf16.msra.mxu0 0
  %930 = vmatprep.subr.bf16.mxu0 0
  %931 = vmatpush1.bf16.msra.mxu0 0
  %932 = vmatprep.subr.bf16.mxu0 0
  %933 = vmatpush1.bf16.msra.mxu0 0
  %934 = vmatprep.subr.bf16.mxu0 0
  %935 = vmatpush1.bf16.msra.mxu0 0
  %936 = vmatprep.mubr.bf16.mxu0 0
  %937 = vmatmul.mubr.bf16.gmra.mrb[0].mxu0 %v899
  %v938 = vpop.f32.mrb[0].mxu0
  %v939 = vadd.f32 0.0, %v938
  %v940 = vpop.f32.mrb[0].mxu0
  %v941 = vpop.f32.mrb[0].mxu0
  %v942 = vadd.f32 0.0, %v941
  %v943 = vpop.f32.mrb[0].mxu0
  %944 = vdwg.mxu0
  %v945 = vadd.f32 %v886, %v939
  %v946 = vadd.f32 %v887, %v942
  %s947 = scalar_lea.vmem %s4, 48
  %v948 = vld [vmem:[%s947] sm:$0xf]
  %v949 = vld [vmem:[%s947 + $0x4] sm:$0x7]
  %v952 = vunpack.c.l.b16 %v948
  %v953 = vunpack.c.l.b16 %v949
  %v954 = vpack.c.b16 %v953, %v952
  %955 = vrot.lane.b32.xlu0 %v607, 108
  %v956 = vpop.permute.xlu0 %955
  %v958 = vsel %vm610, %v954, 0
  %v961 = vsel %vm614, %v956, 0
  %963 = vmatprep.subr.bf16.mxu0 0
  %964 = vmatpush1.bf16.msra.mxu0 %v961
  %965 = vmatprep.subr.bf16.mxu0 0
  %966 = vmatpush1.bf16.msra.mxu0 0
  %967 = vmatprep.subr.bf16.mxu0 0
  %968 = vmatpush1.bf16.msra.mxu0 0
  %969 = vmatprep.subr.bf16.mxu0 0
  %970 = vmatpush1.bf16.msra.mxu0 0
  %971 = vmatprep.subr.bf16.mxu0 0
  %972 = vmatpush1.bf16.msra.mxu0 0
  %973 = vmatprep.subr.bf16.mxu0 0
  %974 = vmatpush1.bf16.msra.mxu0 0
  %975 = vmatprep.subr.bf16.mxu0 0
  %976 = vmatpush1.bf16.msra.mxu0 0
  %977 = vmatprep.subr.bf16.mxu0 0
  %978 = vmatpush1.bf16.msra.mxu0 0
  %979 = vmatprep.subr.bf16.mxu0 0
  %980 = vmatpush1.bf16.msra.mxu0 0
  %981 = vmatprep.subr.bf16.mxu0 0
  %982 = vmatpush1.bf16.msra.mxu0 0
  %983 = vmatprep.subr.bf16.mxu0 0
  %984 = vmatpush1.bf16.msra.mxu0 0
  %985 = vmatprep.subr.bf16.mxu0 0
  %986 = vmatpush1.bf16.msra.mxu0 0
  %987 = vmatprep.subr.bf16.mxu0 0
  %988 = vmatpush1.bf16.msra.mxu0 0
  %989 = vmatprep.subr.bf16.mxu0 0
  %990 = vmatpush1.bf16.msra.mxu0 0
  %991 = vmatprep.subr.bf16.mxu0 0
  %992 = vmatpush1.bf16.msra.mxu0 0
  %993 = vmatprep.subr.bf16.mxu0 0
  %994 = vmatpush1.bf16.msra.mxu0 0
  %995 = vmatprep.mubr.bf16.mxu0 0
  %996 = vmatmul.mubr.bf16.gmra.mrb[0].mxu0 %v958
  %v997 = vpop.f32.mrb[0].mxu0
  %v998 = vadd.f32 0.0, %v997
  %v999 = vpop.f32.mrb[0].mxu0
  %v1000 = vpop.f32.mrb[0].mxu0
  %v1001 = vadd.f32 0.0, %v1000
  %v1002 = vpop.f32.mrb[0].mxu0
  %1003 = vdwg.mxu0
  %v1004 = vadd.f32 %v945, %v998
  %v1005 = vadd.f32 %v946, %v1001
  %s1006 = scalar_lea.vmem %s4, 56
  %v1007 = vld [vmem:[%s1006] sm:$0xf]
  %v1008 = vld [vmem:[%s1006 + $0x4] sm:$0x7]
  %v1011 = vunpack.c.l.b16 %v1007
  %v1012 = vunpack.c.l.b16 %v1008
  %v1013 = vpack.c.b16 %v1012, %v1011
  %1014 = vrot.lane.b32.xlu0 %v607, 107
  %v1015 = vpop.permute.xlu0 %1014
  %v1017 = vsel %vm610, %v1013, 0
  %v1020 = vsel %vm614, %v1015, 0
  %1022 = vmatprep.subr.bf16.mxu0 0
  %1023 = vmatpush1.bf16.msra.mxu0 %v1020
  %1024 = vmatprep.subr.bf16.mxu0 0
  %1025 = vmatpush1.bf16.msra.mxu0 0
  %1026 = vmatprep.subr.bf16.mxu0 0
  %1027 = vmatpush1.bf16.msra.mxu0 0
  %1028 = vmatprep.subr.bf16.mxu0 0
  %1029 = vmatpush1.bf16.msra.mxu0 0
  %1030 = vmatprep.subr.bf16.mxu0 0
  %1031 = vmatpush1.bf16.msra.mxu0 0
  %1032 = vmatprep.subr.bf16.mxu0 0
  %1033 = vmatpush1.bf16.msra.mxu0 0
  %1034 = vmatprep.subr.bf16.mxu0 0
  %1035 = vmatpush1.bf16.msra.mxu0 0
  %1036 = vmatprep.subr.bf16.mxu0 0
  %1037 = vmatpush1.bf16.msra.mxu0 0
  %1038 = vmatprep.subr.bf16.mxu0 0
  %1039 = vmatpush1.bf16.msra.mxu0 0
  %1040 = vmatprep.subr.bf16.mxu0 0
  %1041 = vmatpush1.bf16.msra.mxu0 0
  %1042 = vmatprep.subr.bf16.mxu0 0
  %1043 = vmatpush1.bf16.msra.mxu0 0
  %1044 = vmatprep.subr.bf16.mxu0 0
  %1045 = vmatpush1.bf16.msra.mxu0 0
  %1046 = vmatprep.subr.bf16.mxu0 0
  %1047 = vmatpush1.bf16.msra.mxu0 0
  %1048 = vmatprep.subr.bf16.mxu0 0
  %1049 = vmatpush1.bf16.msra.mxu0 0
  %1050 = vmatprep.subr.bf16.mxu0 0
  %1051 = vmatpush1.bf16.msra.mxu0 0
  %1052 = vmatprep.subr.bf16.mxu0 0
  %1053 = vmatpush1.bf16.msra.mxu0 0
  %1054 = vmatprep.mubr.bf16.mxu0 0
  %1055 = vmatmul.mubr.bf16.gmra.mrb[0].mxu0 %v1017
  %v1056 = vpop.f32.mrb[0].mxu0
  %v1057 = vadd.f32 0.0, %v1056
  %v1058 = vpop.f32.mrb[0].mxu0
  %v1059 = vpop.f32.mrb[0].mxu0
  %v1060 = vadd.f32 0.0, %v1059
  %v1061 = vpop.f32.mrb[0].mxu0
  %1062 = vdwg.mxu0
  %v1063 = vadd.f32 %v1004, %v1057
  %v1064 = vadd.f32 %v1005, %v1060
  %s1065 = scalar_lea.vmem %s4, 64
  %v1066 = vld [vmem:[%s1065] sm:$0xf]
  %v1067 = vld [vmem:[%s1065 + $0x4] sm:$0x7]
  %v1070 = vunpack.c.l.b16 %v1066
  %v1071 = vunpack.c.l.b16 %v1067
  %v1072 = vpack.c.b16 %v1071, %v1070
  %1073 = vrot.lane.b32.xlu0 %v607, 106
  %v1074 = vpop.permute.xlu0 %1073
  %v1076 = vsel %vm610, %v1072, 0
  %v1079 = vsel %vm614, %v1074, 0
  %1081 = vmatprep.subr.bf16.mxu0 0
  %1082 = vmatpush1.bf16.msra.mxu0 %v1079
  %1083 = vmatprep.subr.bf16.mxu0 0
  %1084 = vmatpush1.bf16.msra.mxu0 0
  %1085 = vmatprep.subr.bf16.mxu0 0
  %1086 = vmatpush1.bf16.msra.mxu0 0
  %1087 = vmatprep.subr.bf16.mxu0 0
  %1088 = vmatpush1.bf16.msra.mxu0 0
  %1089 = vmatprep.subr.bf16.mxu0 0
  %1090 = vmatpush1.bf16.msra.mxu0 0
  %1091 = vmatprep.subr.bf16.mxu0 0
  %1092 = vmatpush1.bf16.msra.mxu0 0
  %1093 = vmatprep.subr.bf16.mxu0 0
  %1094 = vmatpush1.bf16.msra.mxu0 0
  %1095 = vmatprep.subr.bf16.mxu0 0
  %1096 = vmatpush1.bf16.msra.mxu0 0
  %1097 = vmatprep.subr.bf16.mxu0 0
  %1098 = vmatpush1.bf16.msra.mxu0 0
  %1099 = vmatprep.subr.bf16.mxu0 0
  %1100 = vmatpush1.bf16.msra.mxu0 0
  %1101 = vmatprep.subr.bf16.mxu0 0
  %1102 = vmatpush1.bf16.msra.mxu0 0
  %1103 = vmatprep.subr.bf16.mxu0 0
  %1104 = vmatpush1.bf16.msra.mxu0 0
  %1105 = vmatprep.subr.bf16.mxu0 0
  %1106 = vmatpush1.bf16.msra.mxu0 0
  %1107 = vmatprep.subr.bf16.mxu0 0
  %1108 = vmatpush1.bf16.msra.mxu0 0
  %1109 = vmatprep.subr.bf16.mxu0 0
  %1110 = vmatpush1.bf16.msra.mxu0 0
  %1111 = vmatprep.subr.bf16.mxu0 0
  %1112 = vmatpush1.bf16.msra.mxu0 0
  %1113 = vmatprep.mubr.bf16.mxu0 0
  %1114 = vmatmul.mubr.bf16.gmra.mrb[0].mxu0 %v1076
  %v1115 = vpop.f32.mrb[0].mxu0
  %v1116 = vadd.f32 0.0, %v1115
  %v1117 = vpop.f32.mrb[0].mxu0
  %v1118 = vpop.f32.mrb[0].mxu0
  %v1119 = vadd.f32 0.0, %v1118
  %v1120 = vpop.f32.mrb[0].mxu0
  %1121 = vdwg.mxu0
  %v1122 = vadd.f32 %v1063, %v1116
  %v1123 = vadd.f32 %v1064, %v1119
  %v1124 = vadd.f32 %v589, %v1122
  %v1125 = vadd.f32 %v590, %v1123
  %v1126 = vld [vmem:[%s5] sm:$0xff]
  %v1127 = vld [vmem:[%s5 + $0x8] sm:$0x3f]
  %1129 = vset.pattern.permute.xlu0 0
  %1130 = vperm.xlu0 %1129, %v1126
  %v1131 = vpop.permute.xlu0 %1130
  %1134 = vset.pattern.permute.xlu0 0
  %1135 = vperm.xlu0 %1134, %v1127
  %v1136 = vpop.permute.xlu0 %1135
  %v1138 = vadd.f32 %v1124, %v1131
  %v1139 = vadd.f32 %v1125, %v1136
  %vm1140 = vcmp.gt.f32.partialorder %v1138, 0.0
  %vm1141 = vcmp.gt.f32.partialorder %v1139, 0.0
  %v1142 = vmin.f32 %v1138, 0.0
  %v1143 = vmin.f32 %v1139, 0.0
  %v1144 = vmul.f32 %v1142, 1.442695
  %v1145 = vpow.pop %v1144
  %v1146 = vmul.f32 %v1143, 1.442695
  %v1147 = vpow.pop %v1146
  %v1148 = vsub.f32 %v1145, 1.0
  %v1149 = vsub.f32 %v1147, 1.0
  %v1150 = vsel %vm1140, %v1138, %v1148
  %v1151 = vsel %vm1141, %v1139, %v1149
  %v1152 = vsel %vm25, 1, 0
  %v1153 = vlaneseq
  %v1154 = vshrl.u32 %v1153, 7
  %v1155 = vsub.s32 0, %v1154
  %v1156 = vrot.slane %v1152, %v1155
  %vm1157 = vcmp.eq.s32.totalorder %v1156, 1
  %v1158 = vsel %vm1157, %v1150, 0.0
  %v1159 = vsel %vm1157, %v1151, 0.0
  %v1160 = vpack.c.bf16 %v1159, %v1158
  %v1162 = vunpack.c.l.b16 %v1160
  %v1163 = vunpack.c.h.b16 %v1160
  %v1164 = vpack.c.b16 %v1162, %v1162
  %v1165 = vpack.c.b16 %v1163, %v1163
  %vm1168 = vcmask 814080
  %1169 = vst.msk [vmem:[%s6] sm:$0xf] %vm1168, %v1164
  %vm1170 = vcmask 813056
  %1171 = vst.msk [vmem:[%s6 + $0x4] sm:$0x7] %vm1170, %v1165
  // Predicated region
  $region26: #{convnet_forward.7} parent=0 // pred_check
    _
  $region27: #{convnet_forward.7} parent=0 // pred_check_branch
    %1173 = sbr.rel (0) target = $region29
  $region28: #{convnet_forward.7} parent=0 // pred_region
    _
  $region29: #{convnet_forward.7} parent=0 // pred_fallthru
    _
  // Predicated region
  $region30: #{convnet_forward.7} parent=0 // pred_check
    _
  $region31: #{convnet_forward.7} parent=0 // pred_check_branch
    %1175 = sbr.rel (0) target = $region33
  $region32: #{convnet_forward.7} parent=0 // pred_region
    _
  $region33: #{convnet_forward.7} parent=0 // pred_fallthru
    _

// kernel: convnet_forward.8
$region0: #{convnet_forward.8}
  #allocation0 [shape = 'u32[]', space=smem, size = 0x4, offset = 0x4, fixed_abs, tag = 'smem constant byte address 0x4 - core index']
  #allocation1 [shape = 'u32[144,128]{1,0:T(1,128)}', space=vmem, size = 0x12000, scoped, tag = 'internal scratch']
  %s0 = inlined_call_operand.vmem [shape: bf16[14,362], index: 0, kind: input, shape index: {}]
  %s1 = inlined_call_operand.vmem [shape: bf16[7,362], index: 1, kind: input, shape index: {}]
  %s2 = inlined_call_operand.vmem [shape: f32[1,324], index: 2, kind: input, shape index: {}]
  %s3 = inlined_call_operand.vmem [shape: bf16[9,7,14], index: 3, kind: input, shape index: {}]
  %s4 = inlined_call_operand.vmem [shape: bf16[9,7,7], index: 4, kind: input, shape index: {}]
  %s5 = inlined_call_operand.vmem [shape: f32[7,1], index: 5, kind: input, shape index: {}]
  %s6 = inlined_call_operand.vmem [shape: bf16[7,324], index: 6, kind: output, shape index: {}]
  %s7 = sld [smem:[#allocation0]]
  $region34: #{convnet_forward.8} parent=0
    _
  %s9 = ssub.s32 1, %s7
  %s10 = scalar_select 0, %s9, %s7
  // Predicated region
  $region2: #{convnet_forward.8} parent=0 // pred_check
    _
  $region3: #{convnet_forward.8} parent=0 // pred_check_branch
    %12 = sbr.rel (0) target = $region5
  $region4: #{convnet_forward.8} parent=0 // pred_region
    _
  $region5: #{convnet_forward.8} parent=0 // pred_fallthru
    _
  // Predicated region
  $region6: #{convnet_forward.8} parent=0 // pred_check
    _
  $region7: #{convnet_forward.8} parent=0 // pred_check_branch
    %14 = sbr.rel (0) target = $region9
  $region8: #{convnet_forward.8} parent=0 // pred_region
    _
  $region9: #{convnet_forward.8} parent=0 // pred_fallthru
    _
  // Predicated region
  $region10: #{convnet_forward.8} parent=0 // pred_check
    _
  $region11: #{convnet_forward.8} parent=0 // pred_check_branch
    %16 = sbr.rel (0) target = $region13
  $region12: #{convnet_forward.8} parent=0 // pred_region
    _
  $region13: #{convnet_forward.8} parent=0 // pred_fallthru
    _
  // Predicated region
  $region14: #{convnet_forward.8} parent=0 // pred_check
    _
  $region15: #{convnet_forward.8} parent=0 // pred_check_branch
    %18 = sbr.rel (0) target = $region17
  $region16: #{convnet_forward.8} parent=0 // pred_region
    _
  $region17: #{convnet_forward.8} parent=0 // pred_fallthru
    _
  // Predicated region
  $region18: #{convnet_forward.8} parent=0 // pred_check
    _
  $region19: #{convnet_forward.8} parent=0 // pred_check_branch
    %20 = sbr.rel (0) target = $region21
  $region20: #{convnet_forward.8} parent=0 // pred_region
    _
  $region21: #{convnet_forward.8} parent=0 // pred_fallthru
    _
  // Predicated region
  $region22: #{convnet_forward.8} parent=0 // pred_check
    _
  $region23: #{convnet_forward.8} parent=0 // pred_check_branch
    %22 = sbr.rel (0) target = $region25
  $region24: #{convnet_forward.8} parent=0 // pred_region
    _
  $region25: #{convnet_forward.8} parent=0 // pred_fallthru
    _
  %v24 = vld [vmem:[%s2] sm:$0x7]
  %vm25 = vcmp.gt.f32.partialorder %v24, 0.5
  %v26 = vld [vmem:[%s0] sm:$0xff]
  %v27 = vld [vmem:[%s0 + $0x8] sm:$0xf]
  %v28 = vld [vmem:[%s0 + $0xc] sm:$0x77]
  %v29 = vld [vmem:[%s0 + $0x14] sm:$0x7]
  %v30 = vld [vmem:[%s3] sm:$0xf]
  %s31 = scalar_lea.vmem %s3, 4
  %v32 = vld [vmem:[%s31] sm:$0xf]
  %v37 = vunpack.c.l.b16 %v26
  %v38 = vunpack.c.h.b16 %v26
  %v39 = vunpack.c.l.b16 %v27
  %v40 = vunpack.c.l.b16 %v28
  %v41 = vunpack.c.h.b16 %v28
  %v42 = vunpack.c.l.b16 %v29
  %v43 = vpack.c.b16 %v40, %v37
  %v44 = vpack.c.b16 %v41, %v38
  %v45 = vpack.c.b16 %v42, %v39
  %46 = vrot.lane.b32.xlu0 %v43, 127
  %v47 = vpop.permute.xlu0 %46
  %48 = vrot.lane.b32.xlu0 %v44, 127
  %v49 = vpop.permute.xlu0 %48
  %50 = vrot.lane.b32.xlu0 %v45, 127
  %v51 = vpop.permute.xlu0 %50
  %vm52 = vcmask 1039360
  %v53 = vsel %vm52, %v47, %v49
  %v54 = vsel %vm52, %v49, %v51
  %vm55 = vcmask 113664
  %v57 = vsel %vm55, %v32, 0
  %vm59 = vcmask 1046528
  %v61 = vsel %vm59, %v53, 0
  %v64 = vsel %vm59, %v54, 0
  %v67 = vsel %vm59, %v51, 0
  %69 = vmatprep.subr.bf16.mxu0 %v64
  %70 = vmatpush1.bf16.msra.mxu0 %v61
  %71 = vmatprep.subr.bf16.mxu0 0
  %72 = vmatpush1.bf16.msra.mxu0 0
  %73 = vmatprep.subr.bf16.mxu0 0
  %74 = vmatpush1.bf16.msra.mxu0 0
  %75 = vmatprep.subr.bf16.mxu0 0
  %76 = vmatpush1.bf16.msra.mxu0 0
  %77 = vmatprep.subr.bf16.mxu0 0
  %78 = vmatpush1.bf16.msra.mxu0 0
  %79 = vmatprep.subr.bf16.mxu0 0
  %80 = vmatpush1.bf16.msra.mxu0 0
  %81 = vmatprep.subr.bf16.mxu0 0
  %82 = vmatpush1.bf16.msra.mxu0 0
  %83 = vmatprep.subr.bf16.mxu0 0
  %84 = vmatpush1.bf16.msra.mxu0 0
  %85 = vmatprep.subr.bf16.mxu0 0
  %86 = vmatpush1.bf16.msra.mxu0 0
  %87 = vmatprep.subr.bf16.mxu0 0
  %88 = vmatpush1.bf16.msra.mxu0 0
  %89 = vmatprep.subr.bf16.mxu0 0
  %90 = vmatpush1.bf16.msra.mxu0 0
  %91 = vmatprep.subr.bf16.mxu0 0
  %92 = vmatpush1.bf16.msra.mxu0 0
  %93 = vmatprep.subr.bf16.mxu0 0
  %94 = vmatpush1.bf16.msra.mxu0 0
  %95 = vmatprep.subr.bf16.mxu0 0
  %96 = vmatpush1.bf16.msra.mxu0 0
  %97 = vmatprep.subr.bf16.mxu0 0
  %98 = vmatpush1.bf16.msra.mxu0 0
  %99 = vmatprep.subr.bf16.mxu0 0
  %100 = vmatpush1.bf16.msra.mxu0 0
  %101 = vmatprep.mubr.bf16.mxu0 0
  %102 = vmatmul.mubr.bf16.gmra.mrb[0].mxu0 %v57
  %v103 = vpop.f32.mrb[0].mxu0
  %v104 = vadd.f32 0.0, %v103
  %v105 = vpop.f32.mrb[0].mxu0
  %v106 = vadd.f32 0.0, %v105
  %v107 = vpop.f32.mrb[0].mxu0
  %v108 = vpop.f32.mrb[0].mxu0
  %109 = vdwg.mxu0
  %110 = vmatprep.subr.bf16.mxu0 0
  %111 = vmatpush1.bf16.msra.mxu0 %v67
  %112 = vmatprep.subr.bf16.mxu0 0
  %113 = vmatpush1.bf16.msra.mxu0 0
  %114 = vmatprep.subr.bf16.mxu0 0
  %115 = vmatpush1.bf16.msra.mxu0 0
  %116 = vmatprep.subr.bf16.mxu0 0
  %117 = vmatpush1.bf16.msra.mxu0 0
  %118 = vmatprep.subr.bf16.mxu0 0
  %119 = vmatpush1.bf16.msra.mxu0 0
  %120 = vmatprep.subr.bf16.mxu0 0
  %121 = vmatpush1.bf16.msra.mxu0 0
  %122 = vmatprep.subr.bf16.mxu0 0
  %123 = vmatpush1.bf16.msra.mxu0 0
  %124 = vmatprep.subr.bf16.mxu0 0
  %125 = vmatpush1.bf16.msra.mxu0 0
  %126 = vmatprep.subr.bf16.mxu0 0
  %127 = vmatpush1.bf16.msra.mxu0 0
  %128 = vmatprep.subr.bf16.mxu0 0
  %129 = vmatpush1.bf16.msra.mxu0 0
  %130 = vmatprep.subr.bf16.mxu0 0
  %131 = vmatpush1.bf16.msra.mxu0 0
  %132 = vmatprep.subr.bf16.mxu0 0
  %133 = vmatpush1.bf16.msra.mxu0 0
  %134 = vmatprep.subr.bf16.mxu0 0
  %135 = vmatpush1.bf16.msra.mxu0 0
  %136 = vmatprep.subr.bf16.mxu0 0
  %137 = vmatpush1.bf16.msra.mxu0 0
  %138 = vmatprep.subr.bf16.mxu0 0
  %139 = vmatpush1.bf16.msra.mxu0 0
  %140 = vmatprep.subr.bf16.mxu0 0
  %141 = vmatpush1.bf16.msra.mxu0 0
  %142 = vmatprep.mubr.bf16.mxu0 0
  %143 = vmatmul.mubr.bf16.gmra.mrb[0].mxu0 %v57
  %v144 = vpop.f32.mrb[0].mxu0
  %v145 = vadd.f32 0.0, %v144
  %v146 = vpop.f32.mrb[0].mxu0
  %v147 = vpop.f32.mrb[0].mxu0
  %v148 = vpop.f32.mrb[0].mxu0
  %149 = vdwg.mxu0
  %v151 = vsel %vm55, %v30, 0
  %v154 = vsel %vm59, %v43, 0
  %v157 = vsel %vm59, %v44, 0
  %v160 = vsel %vm59, %v45, 0
  %162 = vmatprep.subr.bf16.mxu0 %v157
  %163 = vmatpush1.bf16.msra.mxu0 %v154
  %164 = vmatprep.subr.bf16.mxu0 0
  %165 = vmatpush1.bf16.msra.mxu0 0
  %166 = vmatprep.subr.bf16.mxu0 0
  %167 = vmatpush1.bf16.msra.mxu0 0
  %168 = vmatprep.subr.bf16.mxu0 0
  %169 = vmatpush1.bf16.msra.mxu0 0
  %170 = vmatprep.subr.bf16.mxu0 0
  %171 = vmatpush1.bf16.msra.mxu0 0
  %172 = vmatprep.subr.bf16.mxu0 0
  %173 = vmatpush1.bf16.msra.mxu0 0
  %174 = vmatprep.subr.bf16.mxu0 0
  %175 = vmatpush1.bf16.msra.mxu0 0
  %176 = vmatprep.subr.bf16.mxu0 0
  %177 = vmatpush1.bf16.msra.mxu0 0
  %178 = vmatprep.subr.bf16.mxu0 0
  %179 = vmatpush1.bf16.msra.mxu0 0
  %180 = vmatprep.subr.bf16.mxu0 0
  %181 = vmatpush1.bf16.msra.mxu0 0
  %182 = vmatprep.subr.bf16.mxu0 0
  %183 = vmatpush1.bf16.msra.mxu0 0
  %184 = vmatprep.subr.bf16.mxu0 0
  %185 = vmatpush1.bf16.msra.mxu0 0
  %186 = vmatprep.subr.bf16.mxu0 0
  %187 = vmatpush1.bf16.msra.mxu0 0
  %188 = vmatprep.subr.bf16.mxu0 0
  %189 = vmatpush1.bf16.msra.mxu0 0
  %190 = vmatprep.subr.bf16.mxu0 0
  %191 = vmatpush1.bf16.msra.mxu0 0
  %192 = vmatprep.subr.bf16.mxu0 0
  %193 = vmatpush1.bf16.msra.mxu0 0
  %194 = vmatprep.mubr.bf16.mxu0 0
  %195 = vmatmul.mubr.bf16.gmra.mrb[0].mxu0 %v151
  %v196 = vpop.f32.mrb[0].mxu0
  %v197 = vadd.f32 %v104, %v196
  %v198 = vpop.f32.mrb[0].mxu0
  %v199 = vadd.f32 %v106, %v198
  %v200 = vpop.f32.mrb[0].mxu0
  %v201 = vpop.f32.mrb[0].mxu0
  %202 = vdwg.mxu0
  %203 = vmatprep.subr.bf16.mxu0 0
  %204 = vmatpush1.bf16.msra.mxu0 %v160
  %205 = vmatprep.subr.bf16.mxu0 0
  %206 = vmatpush1.bf16.msra.mxu0 0
  %207 = vmatprep.subr.bf16.mxu0 0
  %208 = vmatpush1.bf16.msra.mxu0 0
  %209 = vmatprep.subr.bf16.mxu0 0
  %210 = vmatpush1.bf16.msra.mxu0 0
  %211 = vmatprep.subr.bf16.mxu0 0
  %212 = vmatpush1.bf16.msra.mxu0 0
  %213 = vmatprep.subr.bf16.mxu0 0
  %214 = vmatpush1.bf16.msra.mxu0 0
  %215 = vmatprep.subr.bf16.mxu0 0
  %216 = vmatpush1.bf16.msra.mxu0 0
  %217 = vmatprep.subr.bf16.mxu0 0
  %218 = vmatpush1.bf16.msra.mxu0 0
  %219 = vmatprep.subr.bf16.mxu0 0
  %220 = vmatpush1.bf16.msra.mxu0 0
  %221 = vmatprep.subr.bf16.mxu0 0
  %222 = vmatpush1.bf16.msra.mxu0 0
  %223 = vmatprep.subr.bf16.mxu0 0
  %224 = vmatpush1.bf16.msra.mxu0 0
  %225 = vmatprep.subr.bf16.mxu0 0
  %226 = vmatpush1.bf16.msra.mxu0 0
  %227 = vmatprep.subr.bf16.mxu0 0
  %228 = vmatpush1.bf16.msra.mxu0 0
  %229 = vmatprep.subr.bf16.mxu0 0
  %230 = vmatpush1.bf16.msra.mxu0 0
  %231 = vmatprep.subr.bf16.mxu0 0
  %232 = vmatpush1.bf16.msra.mxu0 0
  %233 = vmatprep.subr.bf16.mxu0 0
  %234 = vmatpush1.bf16.msra.mxu0 0
  %235 = vmatprep.mubr.bf16.mxu0 0
  %236 = vmatmul.mubr.bf16.gmra.mrb[0].mxu0 %v151
  %v237 = vpop.f32.mrb[0].mxu0
  %v238 = vadd.f32 %v145, %v237
  %v239 = vpop.f32.mrb[0].mxu0
  %v240 = vpop.f32.mrb[0].mxu0
  %v241 = vpop.f32.mrb[0].mxu0
  %242 = vdwg.mxu0
  %s243 = scalar_lea.vmem %s3, 8
  %v244 = vld [vmem:[%s243] sm:$0xf]
  %245 = vrot.lane.b32.xlu0 %v43, 126
  %v246 = vpop.permute.xlu0 %245
  %247 = vrot.lane.b32.xlu0 %v44, 126
  %v248 = vpop.permute.xlu0 %247
  %249 = vrot.lane.b32.xlu0 %v45, 126
  %v250 = vpop.permute.xlu0 %249
  %vm251 = vcmask 1031168
  %v252 = vsel %vm251, %v246, %v248
  %v253 = vsel %vm251, %v248, %v250
  %v255 = vsel %vm55, %v244, 0
  %v258 = vsel %vm59, %v252, 0
  %v261 = vsel %vm59, %v253, 0
  %v264 = vsel %vm59, %v250, 0
  %266 = vmatprep.subr.bf16.mxu0 %v261
  %267 = vmatpush1.bf16.msra.mxu0 %v258
  %268 = vmatprep.subr.bf16.mxu0 0
  %269 = vmatpush1.bf16.msra.mxu0 0
  %270 = vmatprep.subr.bf16.mxu0 0
  %271 = vmatpush1.bf16.msra.mxu0 0
  %272 = vmatprep.subr.bf16.mxu0 0
  %273 = vmatpush1.bf16.msra.mxu0 0
  %274 = vmatprep.subr.bf16.mxu0 0
  %275 = vmatpush1.bf16.msra.mxu0 0
  %276 = vmatprep.subr.bf16.mxu0 0
  %277 = vmatpush1.bf16.msra.mxu0 0
  %278 = vmatprep.subr.bf16.mxu0 0
  %279 = vmatpush1.bf16.msra.mxu0 0
  %280 = vmatprep.subr.bf16.mxu0 0
  %281 = vmatpush1.bf16.msra.mxu0 0
  %282 = vmatprep.subr.bf16.mxu0 0
  %283 = vmatpush1.bf16.msra.mxu0 0
  %284 = vmatprep.subr.bf16.mxu0 0
  %285 = vmatpush1.bf16.msra.mxu0 0
  %286 = vmatprep.subr.bf16.mxu0 0
  %287 = vmatpush1.bf16.msra.mxu0 0
  %288 = vmatprep.subr.bf16.mxu0 0
  %289 = vmatpush1.bf16.msra.mxu0 0
  %290 = vmatprep.subr.bf16.mxu0 0
  %291 = vmatpush1.bf16.msra.mxu0 0
  %292 = vmatprep.subr.bf16.mxu0 0
  %293 = vmatpush1.bf16.msra.mxu0 0
  %294 = vmatprep.subr.bf16.mxu0 0
  %295 = vmatpush1.bf16.msra.mxu0 0
  %296 = vmatprep.subr.bf16.mxu0 0
  %297 = vmatpush1.bf16.msra.mxu0 0
  %298 = vmatprep.mubr.bf16.mxu0 0
  %299 = vmatmul.mubr.bf16.gmra.mrb[0].mxu0 %v255
  %v300 = vpop.f32.mrb[0].mxu0
  %v301 = vadd.f32 0.0, %v300
  %v302 = vpop.f32.mrb[0].mxu0
  %v303 = vadd.f32 0.0, %v302
  %v304 = vpop.f32.mrb[0].mxu0
  %v305 = vpop.f32.mrb[0].mxu0
  %306 = vdwg.mxu0
  %307 = vmatprep.subr.bf16.mxu0 0
  %308 = vmatpush1.bf16.msra.mxu0 %v264
  %309 = vmatprep.subr.bf16.mxu0 0
  %310 = vmatpush1.bf16.msra.mxu0 0
  %311 = vmatprep.subr.bf16.mxu0 0
  %312 = vmatpush1.bf16.msra.mxu0 0
  %313 = vmatprep.subr.bf16.mxu0 0
  %314 = vmatpush1.bf16.msra.mxu0 0
  %315 = vmatprep.subr.bf16.mxu0 0
  %316 = vmatpush1.bf16.msra.mxu0 0
  %317 = vmatprep.subr.bf16.mxu0 0
  %318 = vmatpush1.bf16.msra.mxu0 0
  %319 = vmatprep.subr.bf16.mxu0 0
  %320 = vmatpush1.bf16.msra.mxu0 0
  %321 = vmatprep.subr.bf16.mxu0 0
  %322 = vmatpush1.bf16.msra.mxu0 0
  %323 = vmatprep.subr.bf16.mxu0 0
  %324 = vmatpush1.bf16.msra.mxu0 0
  %325 = vmatprep.subr.bf16.mxu0 0
  %326 = vmatpush1.bf16.msra.mxu0 0
  %327 = vmatprep.subr.bf16.mxu0 0
  %328 = vmatpush1.bf16.msra.mxu0 0
  %329 = vmatprep.subr.bf16.mxu0 0
  %330 = vmatpush1.bf16.msra.mxu0 0
  %331 = vmatprep.subr.bf16.mxu0 0
  %332 = vmatpush1.bf16.msra.mxu0 0
  %333 = vmatprep.subr.bf16.mxu0 0
  %334 = vmatpush1.bf16.msra.mxu0 0
  %335 = vmatprep.subr.bf16.mxu0 0
  %336 = vmatpush1.bf16.msra.mxu0 0
  %337 = vmatprep.subr.bf16.mxu0 0
  %338 = vmatpush1.bf16.msra.mxu0 0
  %339 = vmatprep.mubr.bf16.mxu0 0
  %340 = vmatmul.mubr.bf16.gmra.mrb[0].mxu0 %v255
  %v341 = vpop.f32.mrb[0].mxu0
  %v342 = vadd.f32 0.0, %v341
  %v343 = vpop.f32.mrb[0].mxu0
  %v344 = vpop.f32.mrb[0].mxu0
  %v345 = vpop.f32.mrb[0].mxu0
  %346 = vdwg.mxu0
  %v347 = vadd.f32 %v197, %v301
  %v348 = vadd.f32 %v199, %v303
  %v349 = vadd.f32 %v238, %v342
  %s350 = scalar_lea.vmem %s3, 12
  %v351 = vld [vmem:[%s350] sm:$0xf]
  %352 = vrot.lane.b32.xlu0 %v43, 110
  %v353 = vpop.permute.xlu0 %352
  %354 = vrot.lane.b32.xlu0 %v44, 110
  %v355 = vpop.permute.xlu0 %354
  %356 = vrot.lane.b32.xlu0 %v45, 110
  %v357 = vpop.permute.xlu0 %356
  %vm358 = vcmask 900096
  %v359 = vsel %vm358, %v353, %v355
  %v360 = vsel %vm358, %v355, %v357
  %v362 = vsel %vm55, %v351, 0
  %v365 = vsel %vm59, %v359, 0
  %v368 = vsel %vm59, %v360, 0
  %v371 = vsel %vm59, %v357, 0
  %373 = vmatprep.subr.bf16.mxu0 %v368
  %374 = vmatpush1.bf16.msra.mxu0 %v365
  %375 = vmatprep.subr.bf16.mxu0 0
  %376 = vmatpush1.bf16.msra.mxu0 0
  %377 = vmatprep.subr.bf16.mxu0 0
  %378 = vmatpush1.bf16.msra.mxu0 0
  %379 = vmatprep.subr.bf16.mxu0 0
  %380 = vmatpush1.bf16.msra.mxu0 0
  %381 = vmatprep.subr.bf16.mxu0 0
  %382 = vmatpush1.bf16.msra.mxu0 0
  %383 = vmatprep.subr.bf16.mxu0 0
  %384 = vmatpush1.bf16.msra.mxu0 0
  %385 = vmatprep.subr.bf16.mxu0 0
  %386 = vmatpush1.bf16.msra.mxu0 0
  %387 = vmatprep.subr.bf16.mxu0 0
  %388 = vmatpush1.bf16.msra.mxu0 0
  %389 = vmatprep.subr.bf16.mxu0 0
  %390 = vmatpush1.bf16.msra.mxu0 0
  %391 = vmatprep.subr.bf16.mxu0 0
  %392 = vmatpush1.bf16.msra.mxu0 0
  %393 = vmatprep.subr.bf16.mxu0 0
  %394 = vmatpush1.bf16.msra.mxu0 0
  %395 = vmatprep.subr.bf16.mxu0 0
  %396 = vmatpush1.bf16.msra.mxu0 0
  %397 = vmatprep.subr.bf16.mxu0 0
  %398 = vmatpush1.bf16.msra.mxu0 0
  %399 = vmatprep.subr.bf16.mxu0 0
  %400 = vmatpush1.bf16.msra.mxu0 0
  %401 = vmatprep.subr.bf16.mxu0 0
  %402 = vmatpush1.bf16.msra.mxu0 0
  %403 = vmatprep.subr.bf16.mxu0 0
  %404 = vmatpush1.bf16.msra.mxu0 0
  %405 = vmatprep.mubr.bf16.mxu0 0
  %406 = vmatmul.mubr.bf16.gmra.mrb[0].mxu0 %v362
  %v407 = vpop.f32.mrb[0].mxu0
  %v408 = vadd.f32 0.0, %v407
  %v409 = vpop.f32.mrb[0].mxu0
  %v410 = vadd.f32 0.0, %v409
  %v411 = vpop.f32.mrb[0].mxu0
  %v412 = vpop.f32.mrb[0].mxu0
  %413 = vdwg.mxu0
  %414 = vmatprep.subr.bf16.mxu0 0
  %415 = vmatpush1.bf16.msra.mxu0 %v371
  %416 = vmatprep.subr.bf16.mxu0 0
  %417 = vmatpush1.bf16.msra.mxu0 0
  %418 = vmatprep.subr.bf16.mxu0 0
  %419 = vmatpush1.bf16.msra.mxu0 0
  %420 = vmatprep.subr.bf16.mxu0 0
  %421 = vmatpush1.bf16.msra.mxu0 0
  %422 = vmatprep.subr.bf16.mxu0 0
  %423 = vmatpush1.bf16.msra.mxu0 0
  %424 = vmatprep.subr.bf16.mxu0 0
  %425 = vmatpush1.bf16.msra.mxu0 0
  %426 = vmatprep.subr.bf16.mxu0 0
  %427 = vmatpush1.bf16.msra.mxu0 0
  %428 = vmatprep.subr.bf16.mxu0 0
  %429 = vmatpush1.bf16.msra.mxu0 0
  %430 = vmatprep.subr.bf16.mxu0 0
  %431 = vmatpush1.bf16.msra.mxu0 0
  %432 = vmatprep.subr.bf16.mxu0 0
  %433 = vmatpush1.bf16.msra.mxu0 0
  %434 = vmatprep.subr.bf16.mxu0 0
  %435 = vmatpush1.bf16.msra.mxu0 0
  %436 = vmatprep.subr.bf16.mxu0 0
  %437 = vmatpush1.bf16.msra.mxu0 0
  %438 = vmatprep.subr.bf16.mxu0 0
  %439 = vmatpush1.bf16.msra.mxu0 0
  %440 = vmatprep.subr.bf16.mxu0 0
  %441 = vmatpush1.bf16.msra.mxu0 0
  %442 = vmatprep.subr.bf16.mxu0 0
  %443 = vmatpush1.bf16.msra.mxu0 0
  %444 = vmatprep.subr.bf16.mxu0 0
  %445 = vmatpush1.bf16.msra.mxu0 0
  %446 = vmatprep.mubr.bf16.mxu0 0
  %447 = vmatmul.mubr.bf16.gmra.mrb[0].mxu0 %v362
  %v448 = vpop.f32.mrb[0].mxu0
  %v449 = vadd.f32 0.0, %v448
  %v450 = vpop.f32.mrb[0].mxu0
  %v451 = vpop.f32.mrb[0].mxu0
  %v452 = vpop.f32.mrb[0].mxu0
  %453 = vdwg.mxu0
  %v454 = vadd.f32 %v347, %v408
  %v455 = vadd.f32 %v348, %v410
  %v456 = vadd.f32 %v349, %v449
  %s457 = scalar_lea.vmem %s3, 16
  %v458 = vld [vmem:[%s457] sm:$0xf]
  %459 = vrot.lane.b32.xlu0 %v43, 109
  %v460 = vpop.permute.xlu0 %459
  %461 = vrot.lane.b32.xlu0 %v44, 109
  %v462 = vpop.permute.xlu0 %461
  %463 = vrot.lane.b32.xlu0 %v45, 109
  %v464 = vpop.permute.xlu0 %463
  %vm465 = vcmask 891904
  %v466 = vsel %vm465, %v460, %v462
  %v467 = vsel %vm465, %v462, %v464
  %v469 = vsel %vm55, %v458, 0
  %v472 = vsel %vm59, %v466, 0
  %v475 = vsel %vm59, %v467, 0
  %v478 = vsel %vm59, %v464, 0
  %480 = vmatprep.subr.bf16.mxu0 %v475
  %481 = vmatpush1.bf16.msra.mxu0 %v472
  %482 = vmatprep.subr.bf16.mxu0 0
  %483 = vmatpush1.bf16.msra.mxu0 0
  %484 = vmatprep.subr.bf16.mxu0 0
  %485 = vmatpush1.bf16.msra.mxu0 0
  %486 = vmatprep.subr.bf16.mxu0 0
  %487 = vmatpush1.bf16.msra.mxu0 0
  %488 = vmatprep.subr.bf16.mxu0 0
  %489 = vmatpush1.bf16.msra.mxu0 0
  %490 = vmatprep.subr.bf16.mxu0 0
  %491 = vmatpush1.bf16.msra.mxu0 0
  %492 = vmatprep.subr.bf16.mxu0 0
  %493 = vmatpush1.bf16.msra.mxu0 0
  %494 = vmatprep.subr.bf16.mxu0 0
  %495 = vmatpush1.bf16.msra.mxu0 0
  %496 = vmatprep.subr.bf16.mxu0 0
  %497 = vmatpush1.bf16.msra.mxu0 0
  %498 = vmatprep.subr.bf16.mxu0 0
  %499 = vmatpush1.bf16.msra.mxu0 0
  %500 = vmatprep.subr.bf16.mxu0 0
  %501 = vmatpush1.bf16.msra.mxu0 0
  %502 = vmatprep.subr.bf16.mxu0 0
  %503 = vmatpush1.bf16.msra.mxu0 0
  %504 = vmatprep.subr.bf16.mxu0 0
  %505 = vmatpush1.bf16.msra.mxu0 0
  %506 = vmatprep.subr.bf16.mxu0 0
  %507 = vmatpush1.bf16.msra.mxu0 0
  %508 = vmatprep.subr.bf16.mxu0 0
  %509 = vmatpush1.bf16.msra.mxu0 0
  %510 = vmatprep.subr.bf16.mxu0 0
  %511 = vmatpush1.bf16.msra.mxu0 0
  %512 = vmatprep.mubr.bf16.mxu0 0
  %513 = vmatmul.mubr.bf16.gmra.mrb[0].mxu0 %v469
  %v514 = vpop.f32.mrb[0].mxu0
  %v515 = vadd.f32 0.0, %v514
  %v516 = vpop.f32.mrb[0].mxu0
  %v517 = vadd.f32 0.0, %v516
  %v518 = vpop.f32.mrb[0].mxu0
  %v519 = vpop.f32.mrb[0].mxu0
  %520 = vdwg.mxu0
  %521 = vmatprep.subr.bf16.mxu0 0
  %522 = vmatpush1.bf16.msra.mxu0 %v478
  %523 = vmatprep.subr.bf16.mxu0 0
  %524 = vmatpush1.bf16.msra.mxu0 0
  %525 = vmatprep.subr.bf16.mxu0 0
  %526 = vmatpush1.bf16.msra.mxu0 0
  %527 = vmatprep.subr.bf16.mxu0 0
  %528 = vmatpush1.bf16.msra.mxu0 0
  %529 = vmatprep.subr.bf16.mxu0 0
  %530 = vmatpush1.bf16.msra.mxu0 0
  %531 = vmatprep.subr.bf16.mxu0 0
  %532 = vmatpush1.bf16.msra.mxu0 0
  %533 = vmatprep.subr.bf16.mxu0 0
  %534 = vmatpush1.bf16.msra.mxu0 0
  %535 = vmatprep.subr.bf16.mxu0 0
  %536 = vmatpush1.bf16.msra.mxu0 0
  %537 = vmatprep.subr.bf16.mxu0 0
  %538 = vmatpush1.bf16.msra.mxu0 0
  %539 = vmatprep.subr.bf16.mxu0 0
  %540 = vmatpush1.bf16.msra.mxu0 0
  %541 = vmatprep.subr.bf16.mxu0 0
  %542 = vmatpush1.bf16.msra.mxu0 0
  %543 = vmatprep.subr.bf16.mxu0 0
  %544 = vmatpush1.bf16.msra.mxu0 0
  %545 = vmatprep.subr.bf16.mxu0 0
  %546 = vmatpush1.bf16.msra.mxu0 0
  %547 = vmatprep.subr.bf16.mxu0 0
  %548 = vmatpush1.bf16.msra.mxu0 0
  %549 = vmatprep.subr.bf16.mxu0 0
  %550 = vmatpush1.bf16.msra.mxu0 0
  %551 = vmatprep.subr.bf16.mxu0 0
  %552 = vmatpush1.bf16.msra.mxu0 0
  %553 = vmatprep.mubr.bf16.mxu0 0
  %554 = vmatmul.mubr.bf16.gmra.mrb[0].mxu0 %v469
  %v555 = vpop.f32.mrb[0].mxu0
  %v556 = vadd.f32 0.0, %v555
  %v557 = vpop.f32.mrb[0].mxu0
  %v558 = vpop.f32.mrb[0].mxu0
  %v559 = vpop.f32.mrb[0].mxu0
  %560 = vdwg.mxu0
  %v561 = vadd.f32 %v454, %v515
  %v562 = vadd.f32 %v455, %v517
  %v563 = vadd.f32 %v456, %v556
  %s564 = scalar_lea.vmem %s3, 20
  %v565 = vld [vmem:[%s564] sm:$0xf]
  %566 = vrot.lane.b32.xlu0 %v43, 108
  %v567 = vpop.permute.xlu0 %566
  %568 = vrot.lane.b32.xlu0 %v44, 108
  %v569 = vpop.permute.xlu0 %568
  %570 = vrot.lane.b32.xlu0 %v45, 108
  %v571 = vpop.permute.xlu0 %570
  %vm572 = vcmask 883712
  %v573 = vsel %vm572, %v567, %v569
  %v574 = vsel %vm572, %v569, %v571
  %v576 = vsel %vm55, %v565, 0
  %v579 = vsel %vm59, %v573, 0
  %v582 = vsel %vm59, %v574, 0
  %v585 = vsel %vm59, %v571, 0
  %587 = vmatprep.subr.bf16.mxu0 %v582
  %588 = vmatpush1.bf16.msra.mxu0 %v579
  %589 = vmatprep.subr.bf16.mxu0 0
  %590 = vmatpush1.bf16.msra.mxu0 0
  %591 = vmatprep.subr.bf16.mxu0 0
  %592 = vmatpush1.bf16.msra.mxu0 0
  %593 = vmatprep.subr.bf16.mxu0 0
  %594 = vmatpush1.bf16.msra.mxu0 0
  %595 = vmatprep.subr.bf16.mxu0 0
  %596 = vmatpush1.bf16.msra.mxu0 0
  %597 = vmatprep.subr.bf16.mxu0 0
  %598 = vmatpush1.bf16.msra.mxu0 0
  %599 = vmatprep.subr.bf16.mxu0 0
  %600 = vmatpush1.bf16.msra.mxu0 0
  %601 = vmatprep.subr.bf16.mxu0 0
  %602 = vmatpush1.bf16.msra.mxu0 0
  %603 = vmatprep.subr.bf16.mxu0 0
  %604 = vmatpush1.bf16.msra.mxu0 0
  %605 = vmatprep.subr.bf16.mxu0 0
  %606 = vmatpush1.bf16.msra.mxu0 0
  %607 = vmatprep.subr.bf16.mxu0 0
  %608 = vmatpush1.bf16.msra.mxu0 0
  %609 = vmatprep.subr.bf16.mxu0 0
  %610 = vmatpush1.bf16.msra.mxu0 0
  %611 = vmatprep.subr.bf16.mxu0 0
  %612 = vmatpush1.bf16.msra.mxu0 0
  %613 = vmatprep.subr.bf16.mxu0 0
  %614 = vmatpush1.bf16.msra.mxu0 0
  %615 = vmatprep.subr.bf16.mxu0 0
  %616 = vmatpush1.bf16.msra.mxu0 0
  %617 = vmatprep.subr.bf16.mxu0 0
  %618 = vmatpush1.bf16.msra.mxu0 0
  %619 = vmatprep.mubr.bf16.mxu0 0
  %620 = vmatmul.mubr.bf16.gmra.mrb[0].mxu0 %v576
  %v621 = vpop.f32.mrb[0].mxu0
  %v622 = vadd.f32 0.0, %v621
  %v623 = vpop.f32.mrb[0].mxu0
  %v624 = vadd.f32 0.0, %v623
  %v625 = vpop.f32.mrb[0].mxu0
  %v626 = vpop.f32.mrb[0].mxu0
  %627 = vdwg.mxu0
  %628 = vmatprep.subr.bf16.mxu0 0
  %629 = vmatpush1.bf16.msra.mxu0 %v585
  %630 = vmatprep.subr.bf16.mxu0 0
  %631 = vmatpush1.bf16.msra.mxu0 0
  %632 = vmatprep.subr.bf16.mxu0 0
  %633 = vmatpush1.bf16.msra.mxu0 0
  %634 = vmatprep.subr.bf16.mxu0 0
  %635 = vmatpush1.bf16.msra.mxu0 0
  %636 = vmatprep.subr.bf16.mxu0 0
  %637 = vmatpush1.bf16.msra.mxu0 0
  %638 = vmatprep.subr.bf16.mxu0 0
  %639 = vmatpush1.bf16.msra.mxu0 0
  %640 = vmatprep.subr.bf16.mxu0 0
  %641 = vmatpush1.bf16.msra.mxu0 0
  %642 = vmatprep.subr.bf16.mxu0 0
  %643 = vmatpush1.bf16.msra.mxu0 0
  %644 = vmatprep.subr.bf16.mxu0 0
  %645 = vmatpush1.bf16.msra.mxu0 0
  %646 = vmatprep.subr.bf16.mxu0 0
  %647 = vmatpush1.bf16.msra.mxu0 0
  %648 = vmatprep.subr.bf16.mxu0 0
  %649 = vmatpush1.bf16.msra.mxu0 0
  %650 = vmatprep.subr.bf16.mxu0 0
  %651 = vmatpush1.bf16.msra.mxu0 0
  %652 = vmatprep.subr.bf16.mxu0 0
  %653 = vmatpush1.bf16.msra.mxu0 0
  %654 = vmatprep.subr.bf16.mxu0 0
  %655 = vmatpush1.bf16.msra.mxu0 0
  %656 = vmatprep.subr.bf16.mxu0 0
  %657 = vmatpush1.bf16.msra.mxu0 0
  %658 = vmatprep.subr.bf16.mxu0 0
  %659 = vmatpush1.bf16.msra.mxu0 0
  %660 = vmatprep.mubr.bf16.mxu0 0
  %661 = vmatmul.mubr.bf16.gmra.mrb[0].mxu0 %v576
  %v662 = vpop.f32.mrb[0].mxu0
  %v663 = vadd.f32 0.0, %v662
  %v664 = vpop.f32.mrb[0].mxu0
  %v665 = vpop.f32.mrb[0].mxu0
  %v666 = vpop.f32.mrb[0].mxu0
  %667 = vdwg.mxu0
  %v668 = vadd.f32 %v561, %v622
  %v669 = vadd.f32 %v562, %v624
  %v670 = vadd.f32 %v563, %v663
  %s671 = scalar_lea.vmem %s3, 24
  %v672 = vld [vmem:[%s671] sm:$0xf]
  %673 = vrot.lane.b32.xlu0 %v43, 92
  %v674 = vpop.permute.xlu0 %673
  %675 = vrot.lane.b32.xlu0 %v44, 92
  %v676 = vpop.permute.xlu0 %675
  %677 = vrot.lane.b32.xlu0 %v45, 92
  %v678 = vpop.permute.xlu0 %677
  %vm679 = vcmask 752640
  %v680 = vsel %vm679, %v674, %v676
  %v681 = vsel %vm679, %v676, %v678
  %v683 = vsel %vm55, %v672, 0
  %v686 = vsel %vm59, %v680, 0
  %v689 = vsel %vm59, %v681, 0
  %v692 = vsel %vm59, %v678, 0
  %694 = vmatprep.subr.bf16.mxu0 %v689
  %695 = vmatpush1.bf16.msra.mxu0 %v686
  %696 = vmatprep.subr.bf16.mxu0 0
  %697 = vmatpush1.bf16.msra.mxu0 0
  %698 = vmatprep.subr.bf16.mxu0 0
  %699 = vmatpush1.bf16.msra.mxu0 0
  %700 = vmatprep.subr.bf16.mxu0 0
  %701 = vmatpush1.bf16.msra.mxu0 0
  %702 = vmatprep.subr.bf16.mxu0 0
  %703 = vmatpush1.bf16.msra.mxu0 0
  %704 = vmatprep.subr.bf16.mxu0 0
  %705 = vmatpush1.bf16.msra.mxu0 0
  %706 = vmatprep.subr.bf16.mxu0 0
  %707 = vmatpush1.bf16.msra.mxu0 0
  %708 = vmatprep.subr.bf16.mxu0 0
  %709 = vmatpush1.bf16.msra.mxu0 0
  %710 = vmatprep.subr.bf16.mxu0 0
  %711 = vmatpush1.bf16.msra.mxu0 0
  %712 = vmatprep.subr.bf16.mxu0 0
  %713 = vmatpush1.bf16.msra.mxu0 0
  %714 = vmatprep.subr.bf16.mxu0 0
  %715 = vmatpush1.bf16.msra.mxu0 0
  %716 = vmatprep.subr.bf16.mxu0 0
  %717 = vmatpush1.bf16.msra.mxu0 0
  %718 = vmatprep.subr.bf16.mxu0 0
  %719 = vmatpush1.bf16.msra.mxu0 0
  %720 = vmatprep.subr.bf16.mxu0 0
  %721 = vmatpush1.bf16.msra.mxu0 0
  %722 = vmatprep.subr.bf16.mxu0 0
  %723 = vmatpush1.bf16.msra.mxu0 0
  %724 = vmatprep.subr.bf16.mxu0 0
  %725 = vmatpush1.bf16.msra.mxu0 0
  %726 = vmatprep.mubr.bf16.mxu0 0
  %727 = vmatmul.mubr.bf16.gmra.mrb[0].mxu0 %v683
  %v728 = vpop.f32.mrb[0].mxu0
  %v729 = vadd.f32 0.0, %v728
  %v730 = vpop.f32.mrb[0].mxu0
  %v731 = vadd.f32 0.0, %v730
  %v732 = vpop.f32.mrb[0].mxu0
  %v733 = vpop.f32.mrb[0].mxu0
  %734 = vdwg.mxu0
  %735 = vmatprep.subr.bf16.mxu0 0
  %736 = vmatpush1.bf16.msra.mxu0 %v692
  %737 = vmatprep.subr.bf16.mxu0 0
  %738 = vmatpush1.bf16.msra.mxu0 0
  %739 = vmatprep.subr.bf16.mxu0 0
  %740 = vmatpush1.bf16.msra.mxu0 0
  %741 = vmatprep.subr.bf16.mxu0 0
  %742 = vmatpush1.bf16.msra.mxu0 0
  %743 = vmatprep.subr.bf16.mxu0 0
  %744 = vmatpush1.bf16.msra.mxu0 0
  %745 = vmatprep.subr.bf16.mxu0 0
  %746 = vmatpush1.bf16.msra.mxu0 0
  %747 = vmatprep.subr.bf16.mxu0 0
  %748 = vmatpush1.bf16.msra.mxu0 0
  %749 = vmatprep.subr.bf16.mxu0 0
  %750 = vmatpush1.bf16.msra.mxu0 0
  %751 = vmatprep.subr.bf16.mxu0 0
  %752 = vmatpush1.bf16.msra.mxu0 0
  %753 = vmatprep.subr.bf16.mxu0 0
  %754 = vmatpush1.bf16.msra.mxu0 0
  %755 = vmatprep.subr.bf16.mxu0 0
  %756 = vmatpush1.bf16.msra.mxu0 0
  %757 = vmatprep.subr.bf16.mxu0 0
  %758 = vmatpush1.bf16.msra.mxu0 0
  %759 = vmatprep.subr.bf16.mxu0 0
  %760 = vmatpush1.bf16.msra.mxu0 0
  %761 = vmatprep.subr.bf16.mxu0 0
  %762 = vmatpush1.bf16.msra.mxu0 0
  %763 = vmatprep.subr.bf16.mxu0 0
  %764 = vmatpush1.bf16.msra.mxu0 0
  %765 = vmatprep.subr.bf16.mxu0 0
  %766 = vmatpush1.bf16.msra.mxu0 0
  %767 = vmatprep.mubr.bf16.mxu0 0
  %768 = vmatmul.mubr.bf16.gmra.mrb[0].mxu0 %v683
  %v769 = vpop.f32.mrb[0].mxu0
  %v770 = vadd.f32 0.0, %v769
  %v771 = vpop.f32.mrb[0].mxu0
  %v772 = vpop.f32.mrb[0].mxu0
  %v773 = vpop.f32.mrb[0].mxu0
  %774 = vdwg.mxu0
  %v775 = vadd.f32 %v668, %v729
  %v776 = vadd.f32 %v669, %v731
  %v777 = vadd.f32 %v670, %v770
  %s778 = scalar_lea.vmem %s3, 28
  %v779 = vld [vmem:[%s778] sm:$0xf]
  %780 = vrot.lane.b32.xlu0 %v43, 91
  %v781 = vpop.permute.xlu0 %780
  %782 = vrot.lane.b32.xlu0 %v44, 91
  %v783 = vpop.permute.xlu0 %782
  %784 = vrot.lane.b32.xlu0 %v45, 91
  %v785 = vpop.permute.xlu0 %784
  %vm786 = vcmask 744448
  %v787 = vsel %vm786, %v781, %v783
  %v788 = vsel %vm786, %v783, %v785
  %v790 = vsel %vm55, %v779, 0
  %v793 = vsel %vm59, %v787, 0
  %v796 = vsel %vm59, %v788, 0
  %v799 = vsel %vm59, %v785, 0
  %801 = vmatprep.subr.bf16.mxu0 %v796
  %802 = vmatpush1.bf16.msra.mxu0 %v793
  %803 = vmatprep.subr.bf16.mxu0 0
  %804 = vmatpush1.bf16.msra.mxu0 0
  %805 = vmatprep.subr.bf16.mxu0 0
  %806 = vmatpush1.bf16.msra.mxu0 0
  %807 = vmatprep.subr.bf16.mxu0 0
  %808 = vmatpush1.bf16.msra.mxu0 0
  %809 = vmatprep.subr.bf16.mxu0 0
  %810 = vmatpush1.bf16.msra.mxu0 0
  %811 = vmatprep.subr.bf16.mxu0 0
  %812 = vmatpush1.bf16.msra.mxu0 0
  %813 = vmatprep.subr.bf16.mxu0 0
  %814 = vmatpush1.bf16.msra.mxu0 0
  %815 = vmatprep.subr.bf16.mxu0 0
  %816 = vmatpush1.bf16.msra.mxu0 0
  %817 = vmatprep.subr.bf16.mxu0 0
  %818 = vmatpush1.bf16.msra.mxu0 0
  %819 = vmatprep.subr.bf16.mxu0 0
  %820 = vmatpush1.bf16.msra.mxu0 0
  %821 = vmatprep.subr.bf16.mxu0 0
  %822 = vmatpush1.bf16.msra.mxu0 0
  %823 = vmatprep.subr.bf16.mxu0 0
  %824 = vmatpush1.bf16.msra.mxu0 0
  %825 = vmatprep.subr.bf16.mxu0 0
  %826 = vmatpush1.bf16.msra.mxu0 0
  %827 = vmatprep.subr.bf16.mxu0 0
  %828 = vmatpush1.bf16.msra.mxu0 0
  %829 = vmatprep.subr.bf16.mxu0 0
  %830 = vmatpush1.bf16.msra.mxu0 0
  %831 = vmatprep.subr.bf16.mxu0 0
  %832 = vmatpush1.bf16.msra.mxu0 0
  %833 = vmatprep.mubr.bf16.mxu0 0
  %834 = vmatmul.mubr.bf16.gmra.mrb[0].mxu0 %v790
  %v835 = vpop.f32.mrb[0].mxu0
  %v836 = vadd.f32 0.0, %v835
  %v837 = vpop.f32.mrb[0].mxu0
  %v838 = vadd.f32 0.0, %v837
  %v839 = vpop.f32.mrb[0].mxu0
  %v840 = vpop.f32.mrb[0].mxu0
  %841 = vdwg.mxu0
  %842 = vmatprep.subr.bf16.mxu0 0
  %843 = vmatpush1.bf16.msra.mxu0 %v799
  %844 = vmatprep.subr.bf16.mxu0 0
  %845 = vmatpush1.bf16.msra.mxu0 0
  %846 = vmatprep.subr.bf16.mxu0 0
  %847 = vmatpush1.bf16.msra.mxu0 0
  %848 = vmatprep.subr.bf16.mxu0 0
  %849 = vmatpush1.bf16.msra.mxu0 0
  %850 = vmatprep.subr.bf16.mxu0 0
  %851 = vmatpush1.bf16.msra.mxu0 0
  %852 = vmatprep.subr.bf16.mxu0 0
  %853 = vmatpush1.bf16.msra.mxu0 0
  %854 = vmatprep.subr.bf16.mxu0 0
  %855 = vmatpush1.bf16.msra.mxu0 0
  %856 = vmatprep.subr.bf16.mxu0 0
  %857 = vmatpush1.bf16.msra.mxu0 0
  %858 = vmatprep.subr.bf16.mxu0 0
  %859 = vmatpush1.bf16.msra.mxu0 0
  %860 = vmatprep.subr.bf16.mxu0 0
  %861 = vmatpush1.bf16.msra.mxu0 0
  %862 = vmatprep.subr.bf16.mxu0 0
  %863 = vmatpush1.bf16.msra.mxu0 0
  %864 = vmatprep.subr.bf16.mxu0 0
  %865 = vmatpush1.bf16.msra.mxu0 0
  %866 = vmatprep.subr.bf16.mxu0 0
  %867 = vmatpush1.bf16.msra.mxu0 0
  %868 = vmatprep.subr.bf16.mxu0 0
  %869 = vmatpush1.bf16.msra.mxu0 0
  %870 = vmatprep.subr.bf16.mxu0 0
  %871 = vmatpush1.bf16.msra.mxu0 0
  %872 = vmatprep.subr.bf16.mxu0 0
  %873 = vmatpush1.bf16.msra.mxu0 0
  %874 = vmatprep.mubr.bf16.mxu0 0
  %875 = vmatmul.mubr.bf16.gmra.mrb[0].mxu0 %v790
  %v876 = vpop.f32.mrb[0].mxu0
  %v877 = vadd.f32 0.0, %v876
  %v878 = vpop.f32.mrb[0].mxu0
  %v879 = vpop.f32.mrb[0].mxu0
  %v880 = vpop.f32.mrb[0].mxu0
  %881 = vdwg.mxu0
  %v882 = vadd.f32 %v775, %v836
  %v883 = vadd.f32 %v776, %v838
  %v884 = vadd.f32 %v777, %v877
  %s885 = scalar_lea.vmem %s3, 32
  %v886 = vld [vmem:[%s885] sm:$0xf]
  %887 = vrot.lane.b32.xlu0 %v43, 90
  %v888 = vpop.permute.xlu0 %887
  %889 = vrot.lane.b32.xlu0 %v44, 90
  %v890 = vpop.permute.xlu0 %889
  %891 = vrot.lane.b32.xlu0 %v45, 90
  %v892 = vpop.permute.xlu0 %891
  %vm893 = vcmask 736256
  %v894 = vsel %vm893, %v888, %v890
  %v895 = vsel %vm893, %v890, %v892
  %v897 = vsel %vm55, %v886, 0
  %v900 = vsel %vm59, %v894, 0
  %v903 = vsel %vm59, %v895, 0
  %v906 = vsel %vm59, %v892, 0
  %908 = vmatprep.subr.bf16.mxu0 %v903
  %909 = vmatpush1.bf16.msra.mxu0 %v900
  %910 = vmatprep.subr.bf16.mxu0 0
  %911 = vmatpush1.bf16.msra.mxu0 0
  %912 = vmatprep.subr.bf16.mxu0 0
  %913 = vmatpush1.bf16.msra.mxu0 0
  %914 = vmatprep.subr.bf16.mxu0 0
  %915 = vmatpush1.bf16.msra.mxu0 0
  %916 = vmatprep.subr.bf16.mxu0 0
  %917 = vmatpush1.bf16.msra.mxu0 0
  %918 = vmatprep.subr.bf16.mxu0 0
  %919 = vmatpush1.bf16.msra.mxu0 0
  %920 = vmatprep.subr.bf16.mxu0 0
  %921 = vmatpush1.bf16.msra.mxu0 0
  %922 = vmatprep.subr.bf16.mxu0 0
  %923 = vmatpush1.bf16.msra.mxu0 0
  %924 = vmatprep.subr.bf16.mxu0 0
  %925 = vmatpush1.bf16.msra.mxu0 0
  %926 = vmatprep.subr.bf16.mxu0 0
  %927 = vmatpush1.bf16.msra.mxu0 0
  %928 = vmatprep.subr.bf16.mxu0 0
  %929 = vmatpush1.bf16.msra.mxu0 0
  %930 = vmatprep.subr.bf16.mxu0 0
  %931 = vmatpush1.bf16.msra.mxu0 0
  %932 = vmatprep.subr.bf16.mxu0 0
  %933 = vmatpush1.bf16.msra.mxu0 0
  %934 = vmatprep.subr.bf16.mxu0 0
  %935 = vmatpush1.bf16.msra.mxu0 0
  %936 = vmatprep.subr.bf16.mxu0 0
  %937 = vmatpush1.bf16.msra.mxu0 0
  %938 = vmatprep.subr.bf16.mxu0 0
  %939 = vmatpush1.bf16.msra.mxu0 0
  %940 = vmatprep.mubr.bf16.mxu0 0
  %941 = vmatmul.mubr.bf16.gmra.mrb[0].mxu0 %v897
  %v942 = vpop.f32.mrb[0].mxu0
  %v943 = vadd.f32 0.0, %v942
  %v944 = vpop.f32.mrb[0].mxu0
  %v945 = vadd.f32 0.0, %v944
  %v946 = vpop.f32.mrb[0].mxu0
  %v947 = vpop.f32.mrb[0].mxu0
  %948 = vdwg.mxu0
  %949 = vmatprep.subr.bf16.mxu0 0
  %950 = vmatpush1.bf16.msra.mxu0 %v906
  %951 = vmatprep.subr.bf16.mxu0 0
  %952 = vmatpush1.bf16.msra.mxu0 0
  %953 = vmatprep.subr.bf16.mxu0 0
  %954 = vmatpush1.bf16.msra.mxu0 0
  %955 = vmatprep.subr.bf16.mxu0 0
  %956 = vmatpush1.bf16.msra.mxu0 0
  %957 = vmatprep.subr.bf16.mxu0 0
  %958 = vmatpush1.bf16.msra.mxu0 0
  %959 = vmatprep.subr.bf16.mxu0 0
  %960 = vmatpush1.bf16.msra.mxu0 0
  %961 = vmatprep.subr.bf16.mxu0 0
  %962 = vmatpush1.bf16.msra.mxu0 0
  %963 = vmatprep.subr.bf16.mxu0 0
  %964 = vmatpush1.bf16.msra.mxu0 0
  %965 = vmatprep.subr.bf16.mxu0 0
  %966 = vmatpush1.bf16.msra.mxu0 0
  %967 = vmatprep.subr.bf16.mxu0 0
  %968 = vmatpush1.bf16.msra.mxu0 0
  %969 = vmatprep.subr.bf16.mxu0 0
  %970 = vmatpush1.bf16.msra.mxu0 0
  %971 = vmatprep.subr.bf16.mxu0 0
  %972 = vmatpush1.bf16.msra.mxu0 0
  %973 = vmatprep.subr.bf16.mxu0 0
  %974 = vmatpush1.bf16.msra.mxu0 0
  %975 = vmatprep.subr.bf16.mxu0 0
  %976 = vmatpush1.bf16.msra.mxu0 0
  %977 = vmatprep.subr.bf16.mxu0 0
  %978 = vmatpush1.bf16.msra.mxu0 0
  %979 = vmatprep.subr.bf16.mxu0 0
  %980 = vmatpush1.bf16.msra.mxu0 0
  %981 = vmatprep.mubr.bf16.mxu0 0
  %982 = vmatmul.mubr.bf16.gmra.mrb[0].mxu0 %v897
  %v983 = vpop.f32.mrb[0].mxu0
  %v984 = vadd.f32 0.0, %v983
  %v985 = vpop.f32.mrb[0].mxu0
  %v986 = vpop.f32.mrb[0].mxu0
  %v987 = vpop.f32.mrb[0].mxu0
  %988 = vdwg.mxu0
  %v989 = vadd.f32 %v882, %v943
  %v990 = vadd.f32 %v883, %v945
  %v991 = vadd.f32 %v884, %v984
  %v992 = vld [vmem:[%s1] sm:$0xff]
  %v993 = vld [vmem:[%s1 + $0x8] sm:$0xf]
  %v994 = vld [vmem:[%s4] sm:$0xf]
  %s995 = scalar_lea.vmem %s4, 4
  %v996 = vld [vmem:[%s995] sm:$0xf]
  %v999 = vunpack.c.l.b16 %v992
  %v1000 = vunpack.c.h.b16 %v992
  %v1001 = vunpack.c.l.b16 %v993
  %v1002 = vpack.c.b16 %v999, %v999
  %v1003 = vpack.c.b16 %v1000, %v1000
  %v1004 = vpack.c.b16 %v1001, %v1001
  %1005 = vrot.lane.b32.xlu0 %v1002, 127
  %v1006 = vpop.permute.xlu0 %1005
  %1007 = vrot.lane.b32.xlu0 %v1003, 127
  %v1008 = vpop.permute.xlu0 %1007
  %1009 = vrot.lane.b32.xlu0 %v1004, 127
  %v1010 = vpop.permute.xlu0 %1009
  %v1011 = vsel %vm52, %v1006, %v1008
  %v1012 = vsel %vm52, %v1008, %v1010
  %vm1013 = vcmask 56320
  %v1015 = vsel %vm1013, %v996, 0
  %vm1017 = vcmask 1042432
  %vm1018 = vcmask 1043456
  %v1019 = vsel %vm1017, 4294967295, 65535
  %v1020 = vsel %vm1018, %v1019, 0
  %v1022 = vand.u32 %v1011, %v1020
  %v1025 = vand.u32 %v1012, %v1020
  %v1028 = vand.u32 %v1010, %v1020
  %1030 = vmatprep.subr.bf16.mxu0 %v1025
  %1031 = vmatpush1.bf16.msra.mxu0 %v1022
  %1032 = vmatprep.subr.bf16.mxu0 0
  %1033 = vmatpush1.bf16.msra.mxu0 0
  %1034 = vmatprep.subr.bf16.mxu0 0
  %1035 = vmatpush1.bf16.msra.mxu0 0
  %1036 = vmatprep.subr.bf16.mxu0 0
  %1037 = vmatpush1.bf16.msra.mxu0 0
  %1038 = vmatprep.subr.bf16.mxu0 0
  %1039 = vmatpush1.bf16.msra.mxu0 0
  %1040 = vmatprep.subr.bf16.mxu0 0
  %1041 = vmatpush1.bf16.msra.mxu0 0
  %1042 = vmatprep.subr.bf16.mxu0 0
  %1043 = vmatpush1.bf16.msra.mxu0 0
  %1044 = vmatprep.subr.bf16.mxu0 0
  %1045 = vmatpush1.bf16.msra.mxu0 0
  %1046 = vmatprep.subr.bf16.mxu0 0
  %1047 = vmatpush1.bf16.msra.mxu0 0
  %1048 = vmatprep.subr.bf16.mxu0 0
  %1049 = vmatpush1.bf16.msra.mxu0 0
  %1050 = vmatprep.subr.bf16.mxu0 0
  %1051 = vmatpush1.bf16.msra.mxu0 0
  %1052 = vmatprep.subr.bf16.mxu0 0
  %1053 = vmatpush1.bf16.msra.mxu0 0
  %1054 = vmatprep.subr.bf16.mxu0 0
  %1055 = vmatpush1.bf16.msra.mxu0 0
  %1056 = vmatprep.subr.bf16.mxu0 0
  %1057 = vmatpush1.bf16.msra.mxu0 0
  %1058 = vmatprep.subr.bf16.mxu0 0
  %1059 = vmatpush1.bf16.msra.mxu0 0
  %1060 = vmatprep.subr.bf16.mxu0 0
  %1061 = vmatpush1.bf16.msra.mxu0 0
  %1062 = vmatprep.mubr.bf16.mxu0 0
  %1063 = vmatmul.mubr.bf16.gmra.mrb[0].mxu0 %v1015
  %v1064 = vpop.f32.mrb[0].mxu0
  %v1065 = vadd.f32 0.0, %v1064
  %v1066 = vpop.f32.mrb[0].mxu0
  %v1067 = vadd.f32 0.0, %v1066
  %v1068 = vpop.f32.mrb[0].mxu0
  %v1069 = vpop.f32.mrb[0].mxu0
  %1070 = vdwg.mxu0
  %1071 = vmatprep.subr.bf16.mxu0 0
  %1072 = vmatpush1.bf16.msra.mxu0 %v1028
  %1073 = vmatprep.subr.bf16.mxu0 0
  %1074 = vmatpush1.bf16.msra.mxu0 0
  %1075 = vmatprep.subr.bf16.mxu0 0
  %1076 = vmatpush1.bf16.msra.mxu0 0
  %1077 = vmatprep.subr.bf16.mxu0 0
  %1078 = vmatpush1.bf16.msra.mxu0 0
  %1079 = vmatprep.subr.bf16.mxu0 0
  %1080 = vmatpush1.bf16.msra.mxu0 0
  %1081 = vmatprep.subr.bf16.mxu0 0
  %1082 = vmatpush1.bf16.msra.mxu0 0
  %1083 = vmatprep.subr.bf16.mxu0 0
  %1084 = vmatpush1.bf16.msra.mxu0 0
  %1085 = vmatprep.subr.bf16.mxu0 0
  %1086 = vmatpush1.bf16.msra.mxu0 0
  %1087 = vmatprep.subr.bf16.mxu0 0
  %1088 = vmatpush1.bf16.msra.mxu0 0
  %1089 = vmatprep.subr.bf16.mxu0 0
  %1090 = vmatpush1.bf16.msra.mxu0 0
  %1091 = vmatprep.subr.bf16.mxu0 0
  %1092 = vmatpush1.bf16.msra.mxu0 0
  %1093 = vmatprep.subr.bf16.mxu0 0
  %1094 = vmatpush1.bf16.msra.mxu0 0
  %1095 = vmatprep.subr.bf16.mxu0 0
  %1096 = vmatpush1.bf16.msra.mxu0 0
  %1097 = vmatprep.subr.bf16.mxu0 0
  %1098 = vmatpush1.bf16.msra.mxu0 0
  %1099 = vmatprep.subr.bf16.mxu0 0
  %1100 = vmatpush1.bf16.msra.mxu0 0
  %1101 = vmatprep.subr.bf16.mxu0 0
  %1102 = vmatpush1.bf16.msra.mxu0 0
  %1103 = vmatprep.mubr.bf16.mxu0 0
  %1104 = vmatmul.mubr.bf16.gmra.mrb[0].mxu0 %v1015
  %v1105 = vpop.f32.mrb[0].mxu0
  %v1106 = vadd.f32 0.0, %v1105
  %v1107 = vpop.f32.mrb[0].mxu0
  %v1108 = vpop.f32.mrb[0].mxu0
  %v1109 = vpop.f32.mrb[0].mxu0
  %1110 = vdwg.mxu0
  %v1112 = vsel %vm1013, %v994, 0
  %v1115 = vand.u32 %v1002, %v1020
  %v1118 = vand.u32 %v1003, %v1020
  %v1121 = vand.u32 %v1004, %v1020
  %1123 = vmatprep.subr.bf16.mxu0 %v1118
  %1124 = vmatpush1.bf16.msra.mxu0 %v1115
  %1125 = vmatprep.subr.bf16.mxu0 0
  %1126 = vmatpush1.bf16.msra.mxu0 0
  %1127 = vmatprep.subr.bf16.mxu0 0
  %1128 = vmatpush1.bf16.msra.mxu0 0
  %1129 = vmatprep.subr.bf16.mxu0 0
  %1130 = vmatpush1.bf16.msra.mxu0 0
  %1131 = vmatprep.subr.bf16.mxu0 0
  %1132 = vmatpush1.bf16.msra.mxu0 0
  %1133 = vmatprep.subr.bf16.mxu0 0
  %1134 = vmatpush1.bf16.msra.mxu0 0
  %1135 = vmatprep.subr.bf16.mxu0 0
  %1136 = vmatpush1.bf16.msra.mxu0 0
  %1137 = vmatprep.subr.bf16.mxu0 0
  %1138 = vmatpush1.bf16.msra.mxu0 0
  %1139 = vmatprep.subr.bf16.mxu0 0
  %1140 = vmatpush1.bf16.msra.mxu0 0
  %1141 = vmatprep.subr.bf16.mxu0 0
  %1142 = vmatpush1.bf16.msra.mxu0 0
  %1143 = vmatprep.subr.bf16.mxu0 0
  %1144 = vmatpush1.bf16.msra.mxu0 0
  %1145 = vmatprep.subr.bf16.mxu0 0
  %1146 = vmatpush1.bf16.msra.mxu0 0
  %1147 = vmatprep.subr.bf16.mxu0 0
  %1148 = vmatpush1.bf16.msra.mxu0 0
  %1149 = vmatprep.subr.bf16.mxu0 0
  %1150 = vmatpush1.bf16.msra.mxu0 0
  %1151 = vmatprep.subr.bf16.mxu0 0
  %1152 = vmatpush1.bf16.msra.mxu0 0
  %1153 = vmatprep.subr.bf16.mxu0 0
  %1154 = vmatpush1.bf16.msra.mxu0 0
  %1155 = vmatprep.mubr.bf16.mxu0 0
  %1156 = vmatmul.mubr.bf16.gmra.mrb[0].mxu0 %v1112
  %v1157 = vpop.f32.mrb[0].mxu0
  %v1158 = vadd.f32 %v1065, %v1157
  %v1159 = vpop.f32.mrb[0].mxu0
  %v1160 = vadd.f32 %v1067, %v1159
  %v1161 = vpop.f32.mrb[0].mxu0
  %v1162 = vpop.f32.mrb[0].mxu0
  %1163 = vdwg.mxu0
  %1164 = vmatprep.subr.bf16.mxu0 0
  %1165 = vmatpush1.bf16.msra.mxu0 %v1121
  %1166 = vmatprep.subr.bf16.mxu0 0
  %1167 = vmatpush1.bf16.msra.mxu0 0
  %1168 = vmatprep.subr.bf16.mxu0 0
  %1169 = vmatpush1.bf16.msra.mxu0 0
  %1170 = vmatprep.subr.bf16.mxu0 0
  %1171 = vmatpush1.bf16.msra.mxu0 0
  %1172 = vmatprep.subr.bf16.mxu0 0
  %1173 = vmatpush1.bf16.msra.mxu0 0
  %1174 = vmatprep.subr.bf16.mxu0 0
  %1175 = vmatpush1.bf16.msra.mxu0 0
  %1176 = vmatprep.subr.bf16.mxu0 0
  %1177 = vmatpush1.bf16.msra.mxu0 0
  %1178 = vmatprep.subr.bf16.mxu0 0
  %1179 = vmatpush1.bf16.msra.mxu0 0
  %1180 = vmatprep.subr.bf16.mxu0 0
  %1181 = vmatpush1.bf16.msra.mxu0 0
  %1182 = vmatprep.subr.bf16.mxu0 0
  %1183 = vmatpush1.bf16.msra.mxu0 0
  %1184 = vmatprep.subr.bf16.mxu0 0
  %1185 = vmatpush1.bf16.msra.mxu0 0
  %1186 = vmatprep.subr.bf16.mxu0 0
  %1187 = vmatpush1.bf16.msra.mxu0 0
  %1188 = vmatprep.subr.bf16.mxu0 0
  %1189 = vmatpush1.bf16.msra.mxu0 0
  %1190 = vmatprep.subr.bf16.mxu0 0
  %1191 = vmatpush1.bf16.msra.mxu0 0
  %1192 = vmatprep.subr.bf16.mxu0 0
  %1193 = vmatpush1.bf16.msra.mxu0 0
  %1194 = vmatprep.subr.bf16.mxu0 0
  %1195 = vmatpush1.bf16.msra.mxu0 0
  %1196 = vmatprep.mubr.bf16.mxu0 0
  %1197 = vmatmul.mubr.bf16.gmra.mrb[0].mxu0 %v1112
  %v1198 = vpop.f32.mrb[0].mxu0
  %v1199 = vadd.f32 %v1106, %v1198
  %v1200 = vpop.f32.mrb[0].mxu0
  %v1201 = vpop.f32.mrb[0].mxu0
  %v1202 = vpop.f32.mrb[0].mxu0
  %1203 = vdwg.mxu0
  %s1204 = scalar_lea.vmem %s4, 8
  %v1205 = vld [vmem:[%s1204] sm:$0xf]
  %1206 = vrot.lane.b32.xlu0 %v1002, 126
  %v1207 = vpop.permute.xlu0 %1206
  %1208 = vrot.lane.b32.xlu0 %v1003, 126
  %v1209 = vpop.permute.xlu0 %1208
  %1210 = vrot.lane.b32.xlu0 %v1004, 126
  %v1211 = vpop.permute.xlu0 %1210
  %v1212 = vsel %vm251, %v1207, %v1209
  %v1213 = vsel %vm251, %v1209, %v1211
  %v1215 = vsel %vm1013, %v1205, 0
  %v1218 = vand.u32 %v1212, %v1020
  %v1221 = vand.u32 %v1213, %v1020
  %v1224 = vand.u32 %v1211, %v1020
  %1226 = vmatprep.subr.bf16.mxu0 %v1221
  %1227 = vmatpush1.bf16.msra.mxu0 %v1218
  %1228 = vmatprep.subr.bf16.mxu0 0
  %1229 = vmatpush1.bf16.msra.mxu0 0
  %1230 = vmatprep.subr.bf16.mxu0 0
  %1231 = vmatpush1.bf16.msra.mxu0 0
  %1232 = vmatprep.subr.bf16.mxu0 0
  %1233 = vmatpush1.bf16.msra.mxu0 0
  %1234 = vmatprep.subr.bf16.mxu0 0
  %1235 = vmatpush1.bf16.msra.mxu0 0
  %1236 = vmatprep.subr.bf16.mxu0 0
  %1237 = vmatpush1.bf16.msra.mxu0 0
  %1238 = vmatprep.subr.bf16.mxu0 0
  %1239 = vmatpush1.bf16.msra.mxu0 0
  %1240 = vmatprep.subr.bf16.mxu0 0
  %1241 = vmatpush1.bf16.msra.mxu0 0
  %1242 = vmatprep.subr.bf16.mxu0 0
  %1243 = vmatpush1.bf16.msra.mxu0 0
  %1244 = vmatprep.subr.bf16.mxu0 0
  %1245 = vmatpush1.bf16.msra.mxu0 0
  %1246 = vmatprep.subr.bf16.mxu0 0
  %1247 = vmatpush1.bf16.msra.mxu0 0
  %1248 = vmatprep.subr.bf16.mxu0 0
  %1249 = vmatpush1.bf16.msra.mxu0 0
  %1250 = vmatprep.subr.bf16.mxu0 0
  %1251 = vmatpush1.bf16.msra.mxu0 0
  %1252 = vmatprep.subr.bf16.mxu0 0
  %1253 = vmatpush1.bf16.msra.mxu0 0
  %1254 = vmatprep.subr.bf16.mxu0 0
  %1255 = vmatpush1.bf16.msra.mxu0 0
  %1256 = vmatprep.subr.bf16.mxu0 0
  %1257 = vmatpush1.bf16.msra.mxu0 0
  %1258 = vmatprep.mubr.bf16.mxu0 0
  %1259 = vmatmul.mubr.bf16.gmra.mrb[0].mxu0 %v1215
  %v1260 = vpop.f32.mrb[0].mxu0
  %v1261 = vadd.f32 0.0, %v1260
  %v1262 = vpop.f32.mrb[0].mxu0
  %v1263 = vadd.f32 0.0, %v1262
  %v1264 = vpop.f32.mrb[0].mxu0
  %v1265 = vpop.f32.mrb[0].mxu0
  %1266 = vdwg.mxu0
  %1267 = vmatprep.subr.bf16.mxu0 0
  %1268 = vmatpush1.bf16.msra.mxu0 %v1224
  %1269 = vmatprep.subr.bf16.mxu0 0
  %1270 = vmatpush1.bf16.msra.mxu0 0
  %1271 = vmatprep.subr.bf16.mxu0 0
  %1272 = vmatpush1.bf16.msra.mxu0 0
  %1273 = vmatprep.subr.bf16.mxu0 0
  %1274 = vmatpush1.bf16.msra.mxu0 0
  %1275 = vmatprep.subr.bf16.mxu0 0
  %1276 = vmatpush1.bf16.msra.mxu0 0
  %1277 = vmatprep.subr.bf16.mxu0 0
  %1278 = vmatpush1.bf16.msra.mxu0 0
  %1279 = vmatprep.subr.bf16.mxu0 0
  %1280 = vmatpush1.bf16.msra.mxu0 0
  %1281 = vmatprep.subr.bf16.mxu0 0
  %1282 = vmatpush1.bf16.msra.mxu0 0
  %1283 = vmatprep.subr.bf16.mxu0 0
  %1284 = vmatpush1.bf16.msra.mxu0 0
  %1285 = vmatprep.subr.bf16.mxu0 0
  %1286 = vmatpush1.bf16.msra.mxu0 0
  %1287 = vmatprep.subr.bf16.mxu0 0
  %1288 = vmatpush1.bf16.msra.mxu0 0
  %1289 = vmatprep.subr.bf16.mxu0 0
  %1290 = vmatpush1.bf16.msra.mxu0 0
  %1291 = vmatprep.subr.bf16.mxu0 0
  %1292 = vmatpush1.bf16.msra.mxu0 0
  %1293 = vmatprep.subr.bf16.mxu0 0
  %1294 = vmatpush1.bf16.msra.mxu0 0
  %1295 = vmatprep.subr.bf16.mxu0 0
  %1296 = vmatpush1.bf16.msra.mxu0 0
  %1297 = vmatprep.subr.bf16.mxu0 0
  %1298 = vmatpush1.bf16.msra.mxu0 0
  %1299 = vmatprep.mubr.bf16.mxu0 0
  %1300 = vmatmul.mubr.bf16.gmra.mrb[0].mxu0 %v1215
  %v1301 = vpop.f32.mrb[0].mxu0
  %v1302 = vadd.f32 0.0, %v1301
  %v1303 = vpop.f32.mrb[0].mxu0
  %v1304 = vpop.f32.mrb[0].mxu0
  %v1305 = vpop.f32.mrb[0].mxu0
  %1306 = vdwg.mxu0
  %v1307 = vadd.f32 %v1158, %v1261
  %v1308 = vadd.f32 %v1160, %v1263
  %v1309 = vadd.f32 %v1199, %v1302
  %s1310 = scalar_lea.vmem %s4, 12
  %v1311 = vld [vmem:[%s1310] sm:$0xf]
  %1312 = vrot.lane.b32.xlu0 %v1002, 110
  %v1313 = vpop.permute.xlu0 %1312
  %1314 = vrot.lane.b32.xlu0 %v1003, 110
  %v1315 = vpop.permute.xlu0 %1314
  %1316 = vrot.lane.b32.xlu0 %v1004, 110
  %v1317 = vpop.permute.xlu0 %1316
  %v1318 = vsel %vm358, %v1313, %v1315
  %v1319 = vsel %vm358, %v1315, %v1317
  %v1321 = vsel %vm1013, %v1311, 0
  %v1324 = vand.u32 %v1318, %v1020
  %v1327 = vand.u32 %v1319, %v1020
  %v1330 = vand.u32 %v1317, %v1020
  %1332 = vmatprep.subr.bf16.mxu0 %v1327
  %1333 = vmatpush1.bf16.msra.mxu0 %v1324
  %1334 = vmatprep.subr.bf16.mxu0 0
  %1335 = vmatpush1.bf16.msra.mxu0 0
  %1336 = vmatprep.subr.bf16.mxu0 0
  %1337 = vmatpush1.bf16.msra.mxu0 0
  %1338 = vmatprep.subr.bf16.mxu0 0
  %1339 = vmatpush1.bf16.msra.mxu0 0
  %1340 = vmatprep.subr.bf16.mxu0 0
  %1341 = vmatpush1.bf16.msra.mxu0 0
  %1342 = vmatprep.subr.bf16.mxu0 0
  %1343 = vmatpush1.bf16.msra.mxu0 0
  %1344 = vmatprep.subr.bf16.mxu0 0
  %1345 = vmatpush1.bf16.msra.mxu0 0
  %1346 = vmatprep.subr.bf16.mxu0 0
  %1347 = vmatpush1.bf16.msra.mxu0 0
  %1348 = vmatprep.subr.bf16.mxu0 0
  %1349 = vmatpush1.bf16.msra.mxu0 0
  %1350 = vmatprep.subr.bf16.mxu0 0
  %1351 = vmatpush1.bf16.msra.mxu0 0
  %1352 = vmatprep.subr.bf16.mxu0 0
  %1353 = vmatpush1.bf16.msra.mxu0 0
  %1354 = vmatprep.subr.bf16.mxu0 0
  %1355 = vmatpush1.bf16.msra.mxu0 0
  %1356 = vmatprep.subr.bf16.mxu0 0
  %1357 = vmatpush1.bf16.msra.mxu0 0
  %1358 = vmatprep.subr.bf16.mxu0 0
  %1359 = vmatpush1.bf16.msra.mxu0 0
  %1360 = vmatprep.subr.bf16.mxu0 0
  %1361 = vmatpush1.bf16.msra.mxu0 0
  %1362 = vmatprep.subr.bf16.mxu0 0
  %1363 = vmatpush1.bf16.msra.mxu0 0
  %1364 = vmatprep.mubr.bf16.mxu0 0
  %1365 = vmatmul.mubr.bf16.gmra.mrb[0].mxu0 %v1321
  %v1366 = vpop.f32.mrb[0].mxu0
  %v1367 = vadd.f32 0.0, %v1366
  %v1368 = vpop.f32.mrb[0].mxu0
  %v1369 = vadd.f32 0.0, %v1368
  %v1370 = vpop.f32.mrb[0].mxu0
  %v1371 = vpop.f32.mrb[0].mxu0
  %1372 = vdwg.mxu0
  %1373 = vmatprep.subr.bf16.mxu0 0
  %1374 = vmatpush1.bf16.msra.mxu0 %v1330
  %1375 = vmatprep.subr.bf16.mxu0 0
  %1376 = vmatpush1.bf16.msra.mxu0 0
  %1377 = vmatprep.subr.bf16.mxu0 0
  %1378 = vmatpush1.bf16.msra.mxu0 0
  %1379 = vmatprep.subr.bf16.mxu0 0
  %1380 = vmatpush1.bf16.msra.mxu0 0
  %1381 = vmatprep.subr.bf16.mxu0 0
  %1382 = vmatpush1.bf16.msra.mxu0 0
  %1383 = vmatprep.subr.bf16.mxu0 0
  %1384 = vmatpush1.bf16.msra.mxu0 0
  %1385 = vmatprep.subr.bf16.mxu0 0
  %1386 = vmatpush1.bf16.msra.mxu0 0
  %1387 = vmatprep.subr.bf16.mxu0 0
  %1388 = vmatpush1.bf16.msra.mxu0 0
  %1389 = vmatprep.subr.bf16.mxu0 0
  %1390 = vmatpush1.bf16.msra.mxu0 0
  %1391 = vmatprep.subr.bf16.mxu0 0
  %1392 = vmatpush1.bf16.msra.mxu0 0
  %1393 = vmatprep.subr.bf16.mxu0 0
  %1394 = vmatpush1.bf16.msra.mxu0 0
  %1395 = vmatprep.subr.bf16.mxu0 0
  %1396 = vmatpush1.bf16.msra.mxu0 0
  %1397 = vmatprep.subr.bf16.mxu0 0
  %1398 = vmatpush1.bf16.msra.mxu0 0
  %1399 = vmatprep.subr.bf16.mxu0 0
  %1400 = vmatpush1.bf16.msra.mxu0 0
  %1401 = vmatprep.subr.bf16.mxu0 0
  %1402 = vmatpush1.bf16.msra.mxu0 0
  %1403 = vmatprep.subr.bf16.mxu0 0
  %1404 = vmatpush1.bf16.msra.mxu0 0
  %1405 = vmatprep.mubr.bf16.mxu0 0
  %1406 = vmatmul.mubr.bf16.gmra.mrb[0].mxu0 %v1321
  %v1407 = vpop.f32.mrb[0].mxu0
  %v1408 = vadd.f32 0.0, %v1407
  %v1409 = vpop.f32.mrb[0].mxu0
  %v1410 = vpop.f32.mrb[0].mxu0
  %v1411 = vpop.f32.mrb[0].mxu0
  %1412 = vdwg.mxu0
  %v1413 = vadd.f32 %v1307, %v1367
  %v1414 = vadd.f32 %v1308, %v1369
  %v1415 = vadd.f32 %v1309, %v1408
  %s1416 = scalar_lea.vmem %s4, 16
  %v1417 = vld [vmem:[%s1416] sm:$0xf]
  %1418 = vrot.lane.b32.xlu0 %v1002, 109
  %v1419 = vpop.permute.xlu0 %1418
  %1420 = vrot.lane.b32.xlu0 %v1003, 109
  %v1421 = vpop.permute.xlu0 %1420
  %1422 = vrot.lane.b32.xlu0 %v1004, 109
  %v1423 = vpop.permute.xlu0 %1422
  %v1424 = vsel %vm465, %v1419, %v1421
  %v1425 = vsel %vm465, %v1421, %v1423
  %v1427 = vsel %vm1013, %v1417, 0
  %v1430 = vand.u32 %v1424, %v1020
  %v1433 = vand.u32 %v1425, %v1020
  %v1436 = vand.u32 %v1423, %v1020
  %1438 = vmatprep.subr.bf16.mxu0 %v1433
  %1439 = vmatpush1.bf16.msra.mxu0 %v1430
  %1440 = vmatprep.subr.bf16.mxu0 0
  %1441 = vmatpush1.bf16.msra.mxu0 0
  %1442 = vmatprep.subr.bf16.mxu0 0
  %1443 = vmatpush1.bf16.msra.mxu0 0
  %1444 = vmatprep.subr.bf16.mxu0 0
  %1445 = vmatpush1.bf16.msra.mxu0 0
  %1446 = vmatprep.subr.bf16.mxu0 0
  %1447 = vmatpush1.bf16.msra.mxu0 0
  %1448 = vmatprep.subr.bf16.mxu0 0
  %1449 = vmatpush1.bf16.msra.mxu0 0
  %1450 = vmatprep.subr.bf16.mxu0 0
  %1451 = vmatpush1.bf16.msra.mxu0 0
  %1452 = vmatprep.subr.bf16.mxu0 0
  %1453 = vmatpush1.bf16.msra.mxu0 0
  %1454 = vmatprep.subr.bf16.mxu0 0
  %1455 = vmatpush1.bf16.msra.mxu0 0
  %1456 = vmatprep.subr.bf16.mxu0 0
  %1457 = vmatpush1.bf16.msra.mxu0 0
  %1458 = vmatprep.subr.bf16.mxu0 0
  %1459 = vmatpush1.bf16.msra.mxu0 0
  %1460 = vmatprep.subr.bf16.mxu0 0
  %1461 = vmatpush1.bf16.msra.mxu0 0
  %1462 = vmatprep.subr.bf16.mxu0 0
  %1463 = vmatpush1.bf16.msra.mxu0 0
  %1464 = vmatprep.subr.bf16.mxu0 0
  %1465 = vmatpush1.bf16.msra.mxu0 0
  %1466 = vmatprep.subr.bf16.mxu0 0
  %1467 = vmatpush1.bf16.msra.mxu0 0
  %1468 = vmatprep.subr.bf16.mxu0 0
  %1469 = vmatpush1.bf16.msra.mxu0 0
  %1470 = vmatprep.mubr.bf16.mxu0 0
  %1471 = vmatmul.mubr.bf16.gmra.mrb[0].mxu0 %v1427
  %v1472 = vpop.f32.mrb[0].mxu0
  %v1473 = vadd.f32 0.0, %v1472
  %v1474 = vpop.f32.mrb[0].mxu0
  %v1475 = vadd.f32 0.0, %v1474
  %v1476 = vpop.f32.mrb[0].mxu0
  %v1477 = vpop.f32.mrb[0].mxu0
  %1478 = vdwg.mxu0
  %1479 = vmatprep.subr.bf16.mxu0 0
  %1480 = vmatpush1.bf16.msra.mxu0 %v1436
  %1481 = vmatprep.subr.bf16.mxu0 0
  %1482 = vmatpush1.bf16.msra.mxu0 0
  %1483 = vmatprep.subr.bf16.mxu0 0
  %1484 = vmatpush1.bf16.msra.mxu0 0
  %1485 = vmatprep.subr.bf16.mxu0 0
  %1486 = vmatpush1.bf16.msra.mxu0 0
  %1487 = vmatprep.subr.bf16.mxu0 0
  %1488 = vmatpush1.bf16.msra.mxu0 0
  %1489 = vmatprep.subr.bf16.mxu0 0
  %1490 = vmatpush1.bf16.msra.mxu0 0
  %1491 = vmatprep.subr.bf16.mxu0 0
  %1492 = vmatpush1.bf16.msra.mxu0 0
  %1493 = vmatprep.subr.bf16.mxu0 0
  %1494 = vmatpush1.bf16.msra.mxu0 0
  %1495 = vmatprep.subr.bf16.mxu0 0
  %1496 = vmatpush1.bf16.msra.mxu0 0
  %1497 = vmatprep.subr.bf16.mxu0 0
  %1498 = vmatpush1.bf16.msra.mxu0 0
  %1499 = vmatprep.subr.bf16.mxu0 0
  %1500 = vmatpush1.bf16.msra.mxu0 0
  %1501 = vmatprep.subr.bf16.mxu0 0
  %1502 = vmatpush1.bf16.msra.mxu0 0
  %1503 = vmatprep.subr.bf16.mxu0 0
  %1504 = vmatpush1.bf16.msra.mxu0 0
  %1505 = vmatprep.subr.bf16.mxu0 0
  %1506 = vmatpush1.bf16.msra.mxu0 0
  %1507 = vmatprep.subr.bf16.mxu0 0
  %1508 = vmatpush1.bf16.msra.mxu0 0
  %1509 = vmatprep.subr.bf16.mxu0 0
  %1510 = vmatpush1.bf16.msra.mxu0 0
  %1511 = vmatprep.mubr.bf16.mxu0 0
  %1512 = vmatmul.mubr.bf16.gmra.mrb[0].mxu0 %v1427
  %v1513 = vpop.f32.mrb[0].mxu0
  %v1514 = vadd.f32 0.0, %v1513
  %v1515 = vpop.f32.mrb[0].mxu0
  %v1516 = vpop.f32.mrb[0].mxu0
  %v1517 = vpop.f32.mrb[0].mxu0
  %1518 = vdwg.mxu0
  %v1519 = vadd.f32 %v1413, %v1473
  %v1520 = vadd.f32 %v1414, %v1475
  %v1521 = vadd.f32 %v1415, %v1514
  %s1522 = scalar_lea.vmem %s4, 20
  %v1523 = vld [vmem:[%s1522] sm:$0xf]
  %1524 = vrot.lane.b32.xlu0 %v1002, 108
  %v1525 = vpop.permute.xlu0 %1524
  %1526 = vrot.lane.b32.xlu0 %v1003, 108
  %v1527 = vpop.permute.xlu0 %1526
  %1528 = vrot.lane.b32.xlu0 %v1004, 108
  %v1529 = vpop.permute.xlu0 %1528
  %v1530 = vsel %vm572, %v1525, %v1527
  %v1531 = vsel %vm572, %v1527, %v1529
  %v1533 = vsel %vm1013, %v1523, 0
  %v1536 = vand.u32 %v1530, %v1020
  %v1539 = vand.u32 %v1531, %v1020
  %v1542 = vand.u32 %v1529, %v1020
  %1544 = vmatprep.subr.bf16.mxu0 %v1539
  %1545 = vmatpush1.bf16.msra.mxu0 %v1536
  %1546 = vmatprep.subr.bf16.mxu0 0
  %1547 = vmatpush1.bf16.msra.mxu0 0
  %1548 = vmatprep.subr.bf16.mxu0 0
  %1549 = vmatpush1.bf16.msra.mxu0 0
  %1550 = vmatprep.subr.bf16.mxu0 0
  %1551 = vmatpush1.bf16.msra.mxu0 0
  %1552 = vmatprep.subr.bf16.mxu0 0
  %1553 = vmatpush1.bf16.msra.mxu0 0
  %1554 = vmatprep.subr.bf16.mxu0 0
  %1555 = vmatpush1.bf16.msra.mxu0 0
  %1556 = vmatprep.subr.bf16.mxu0 0
  %1557 = vmatpush1.bf16.msra.mxu0 0
  %1558 = vmatprep.subr.bf16.mxu0 0
  %1559 = vmatpush1.bf16.msra.mxu0 0
  %1560 = vmatprep.subr.bf16.mxu0 0
  %1561 = vmatpush1.bf16.msra.mxu0 0
  %1562 = vmatprep.subr.bf16.mxu0 0
  %1563 = vmatpush1.bf16.msra.mxu0 0
  %1564 = vmatprep.subr.bf16.mxu0 0
  %1565 = vmatpush1.bf16.msra.mxu0 0
  %1566 = vmatprep.subr.bf16.mxu0 0
  %1567 = vmatpush1.bf16.msra.mxu0 0
  %1568 = vmatprep.subr.bf16.mxu0 0
  %1569 = vmatpush1.bf16.msra.mxu0 0
  %1570 = vmatprep.subr.bf16.mxu0 0
  %1571 = vmatpush1.bf16.msra.mxu0 0
  %1572 = vmatprep.subr.bf16.mxu0 0
  %1573 = vmatpush1.bf16.msra.mxu0 0
  %1574 = vmatprep.subr.bf16.mxu0 0
  %1575 = vmatpush1.bf16.msra.mxu0 0
  %1576 = vmatprep.mubr.bf16.mxu0 0
  %1577 = vmatmul.mubr.bf16.gmra.mrb[0].mxu0 %v1533
  %v1578 = vpop.f32.mrb[0].mxu0
  %v1579 = vadd.f32 0.0, %v1578
  %v1580 = vpop.f32.mrb[0].mxu0
  %v1581 = vadd.f32 0.0, %v1580
  %v1582 = vpop.f32.mrb[0].mxu0
  %v1583 = vpop.f32.mrb[0].mxu0
  %1584 = vdwg.mxu0
  %1585 = vmatprep.subr.bf16.mxu0 0
  %1586 = vmatpush1.bf16.msra.mxu0 %v1542
  %1587 = vmatprep.subr.bf16.mxu0 0
  %1588 = vmatpush1.bf16.msra.mxu0 0
  %1589 = vmatprep.subr.bf16.mxu0 0
  %1590 = vmatpush1.bf16.msra.mxu0 0
  %1591 = vmatprep.subr.bf16.mxu0 0
  %1592 = vmatpush1.bf16.msra.mxu0 0
  %1593 = vmatprep.subr.bf16.mxu0 0
  %1594 = vmatpush1.bf16.msra.mxu0 0
  %1595 = vmatprep.subr.bf16.mxu0 0
  %1596 = vmatpush1.bf16.msra.mxu0 0
  %1597 = vmatprep.subr.bf16.mxu0 0
  %1598 = vmatpush1.bf16.msra.mxu0 0
  %1599 = vmatprep.subr.bf16.mxu0 0
  %1600 = vmatpush1.bf16.msra.mxu0 0
  %1601 = vmatprep.subr.bf16.mxu0 0
  %1602 = vmatpush1.bf16.msra.mxu0 0
  %1603 = vmatprep.subr.bf16.mxu0 0
  %1604 = vmatpush1.bf16.msra.mxu0 0
  %1605 = vmatprep.subr.bf16.mxu0 0
  %1606 = vmatpush1.bf16.msra.mxu0 0
  %1607 = vmatprep.subr.bf16.mxu0 0
  %1608 = vmatpush1.bf16.msra.mxu0 0
  %1609 = vmatprep.subr.bf16.mxu0 0
  %1610 = vmatpush1.bf16.msra.mxu0 0
  %1611 = vmatprep.subr.bf16.mxu0 0
  %1612 = vmatpush1.bf16.msra.mxu0 0
  %1613 = vmatprep.subr.bf16.mxu0 0
  %1614 = vmatpush1.bf16.msra.mxu0 0
  %1615 = vmatprep.subr.bf16.mxu0 0
  %1616 = vmatpush1.bf16.msra.mxu0 0
  %1617 = vmatprep.mubr.bf16.mxu0 0
  %1618 = vmatmul.mubr.bf16.gmra.mrb[0].mxu0 %v1533
  %v1619 = vpop.f32.mrb[0].mxu0
  %v1620 = vadd.f32 0.0, %v1619
  %v1621 = vpop.f32.mrb[0].mxu0
  %v1622 = vpop.f32.mrb[0].mxu0
  %v1623 = vpop.f32.mrb[0].mxu0
  %1624 = vdwg.mxu0
  %v1625 = vadd.f32 %v1519, %v1579
  %v1626 = vadd.f32 %v1520, %v1581
  %v1627 = vadd.f32 %v1521, %v1620
  %s1628 = scalar_lea.vmem %s4, 24
  %v1629 = vld [vmem:[%s1628] sm:$0xf]
  %1630 = vrot.lane.b32.xlu0 %v1002, 92
  %v1631 = vpop.permute.xlu0 %1630
  %1632 = vrot.lane.b32.xlu0 %v1003, 92
  %v1633 = vpop.permute.xlu0 %1632
  %1634 = vrot.lane.b32.xlu0 %v1004, 92
  %v1635 = vpop.permute.xlu0 %1634
  %v1636 = vsel %vm679, %v1631, %v1633
  %v1637 = vsel %vm679, %v1633, %v1635
  %v1639 = vsel %vm1013, %v1629, 0
  %v1642 = vand.u32 %v1636, %v1020
  %v1645 = vand.u32 %v1637, %v1020
  %v1648 = vand.u32 %v1635, %v1020
  %1650 = vmatprep.subr.bf16.mxu0 %v1645
  %1651 = vmatpush1.bf16.msra.mxu0 %v1642
  %1652 = vmatprep.subr.bf16.mxu0 0
  %1653 = vmatpush1.bf16.msra.mxu0 0
  %1654 = vmatprep.subr.bf16.mxu0 0
  %1655 = vmatpush1.bf16.msra.mxu0 0
  %1656 = vmatprep.subr.bf16.mxu0 0
  %1657 = vmatpush1.bf16.msra.mxu0 0
  %1658 = vmatprep.subr.bf16.mxu0 0
  %1659 = vmatpush1.bf16.msra.mxu0 0
  %1660 = vmatprep.subr.bf16.mxu0 0
  %1661 = vmatpush1.bf16.msra.mxu0 0
  %1662 = vmatprep.subr.bf16.mxu0 0
  %1663 = vmatpush1.bf16.msra.mxu0 0
  %1664 = vmatprep.subr.bf16.mxu0 0
  %1665 = vmatpush1.bf16.msra.mxu0 0
  %1666 = vmatprep.subr.bf16.mxu0 0
  %1667 = vmatpush1.bf16.msra.mxu0 0
  %1668 = vmatprep.subr.bf16.mxu0 0
  %1669 = vmatpush1.bf16.msra.mxu0 0
  %1670 = vmatprep.subr.bf16.mxu0 0
  %1671 = vmatpush1.bf16.msra.mxu0 0
  %1672 = vmatprep.subr.bf16.mxu0 0
  %1673 = vmatpush1.bf16.msra.mxu0 0
  %1674 = vmatprep.subr.bf16.mxu0 0
  %1675 = vmatpush1.bf16.msra.mxu0 0
  %1676 = vmatprep.subr.bf16.mxu0 0
  %1677 = vmatpush1.bf16.msra.mxu0 0
  %1678 = vmatprep.subr.bf16.mxu0 0
  %1679 = vmatpush1.bf16.msra.mxu0 0
  %1680 = vmatprep.subr.bf16.mxu0 0
  %1681 = vmatpush1.bf16.msra.mxu0 0
  %1682 = vmatprep.mubr.bf16.mxu0 0
  %1683 = vmatmul.mubr.bf16.gmra.mrb[0].mxu0 %v1639
  %v1684 = vpop.f32.mrb[0].mxu0
  %v1685 = vadd.f32 0.0, %v1684
  %v1686 = vpop.f32.mrb[0].mxu0
  %v1687 = vadd.f32 0.0, %v1686
  %v1688 = vpop.f32.mrb[0].mxu0
  %v1689 = vpop.f32.mrb[0].mxu0
  %1690 = vdwg.mxu0
  %1691 = vmatprep.subr.bf16.mxu0 0
  %1692 = vmatpush1.bf16.msra.mxu0 %v1648
  %1693 = vmatprep.subr.bf16.mxu0 0
  %1694 = vmatpush1.bf16.msra.mxu0 0
  %1695 = vmatprep.subr.bf16.mxu0 0
  %1696 = vmatpush1.bf16.msra.mxu0 0
  %1697 = vmatprep.subr.bf16.mxu0 0
  %1698 = vmatpush1.bf16.msra.mxu0 0
  %1699 = vmatprep.subr.bf16.mxu0 0
  %1700 = vmatpush1.bf16.msra.mxu0 0
  %1701 = vmatprep.subr.bf16.mxu0 0
  %1702 = vmatpush1.bf16.msra.mxu0 0
  %1703 = vmatprep.subr.bf16.mxu0 0
  %1704 = vmatpush1.bf16.msra.mxu0 0
  %1705 = vmatprep.subr.bf16.mxu0 0
  %1706 = vmatpush1.bf16.msra.mxu0 0
  %1707 = vmatprep.subr.bf16.mxu0 0
  %1708 = vmatpush1.bf16.msra.mxu0 0
  %1709 = vmatprep.subr.bf16.mxu0 0
  %1710 = vmatpush1.bf16.msra.mxu0 0
  %1711 = vmatprep.subr.bf16.mxu0 0
  %1712 = vmatpush1.bf16.msra.mxu0 0
  %1713 = vmatprep.subr.bf16.mxu0 0
  %1714 = vmatpush1.bf16.msra.mxu0 0
  %1715 = vmatprep.subr.bf16.mxu0 0
  %1716 = vmatpush1.bf16.msra.mxu0 0
  %1717 = vmatprep.subr.bf16.mxu0 0
  %1718 = vmatpush1.bf16.msra.mxu0 0
  %1719 = vmatprep.subr.bf16.mxu0 0
  %1720 = vmatpush1.bf16.msra.mxu0 0
  %1721 = vmatprep.subr.bf16.mxu0 0
  %1722 = vmatpush1.bf16.msra.mxu0 0
  %1723 = vmatprep.mubr.bf16.mxu0 0
  %1724 = vmatmul.mubr.bf16.gmra.mrb[0].mxu0 %v1639
  %v1725 = vpop.f32.mrb[0].mxu0
  %v1726 = vadd.f32 0.0, %v1725
  %v1727 = vpop.f32.mrb[0].mxu0
  %v1728 = vpop.f32.mrb[0].mxu0
  %v1729 = vpop.f32.mrb[0].mxu0
  %1730 = vdwg.mxu0
  %v1731 = vadd.f32 %v1625, %v1685
  %v1732 = vadd.f32 %v1626, %v1687
  %v1733 = vadd.f32 %v1627, %v1726
  %s1734 = scalar_lea.vmem %s4, 28
  %v1735 = vld [vmem:[%s1734] sm:$0xf]
  %1736 = vrot.lane.b32.xlu0 %v1002, 91
  %v1737 = vpop.permute.xlu0 %1736
  %1738 = vrot.lane.b32.xlu0 %v1003, 91
  %v1739 = vpop.permute.xlu0 %1738
  %1740 = vrot.lane.b32.xlu0 %v1004, 91
  %v1741 = vpop.permute.xlu0 %1740
  %v1742 = vsel %vm786, %v1737, %v1739
  %v1743 = vsel %vm786, %v1739, %v1741
  %v1745 = vsel %vm1013, %v1735, 0
  %v1748 = vand.u32 %v1742, %v1020
  %v1751 = vand.u32 %v1743, %v1020
  %v1754 = vand.u32 %v1741, %v1020
  %1756 = vmatprep.subr.bf16.mxu0 %v1751
  %1757 = vmatpush1.bf16.msra.mxu0 %v1748
  %1758 = vmatprep.subr.bf16.mxu0 0
  %1759 = vmatpush1.bf16.msra.mxu0 0
  %1760 = vmatprep.subr.bf16.mxu0 0
  %1761 = vmatpush1.bf16.msra.mxu0 0
  %1762 = vmatprep.subr.bf16.mxu0 0
  %1763 = vmatpush1.bf16.msra.mxu0 0
  %1764 = vmatprep.subr.bf16.mxu0 0
  %1765 = vmatpush1.bf16.msra.mxu0 0
  %1766 = vmatprep.subr.bf16.mxu0 0
  %1767 = vmatpush1.bf16.msra.mxu0 0
  %1768 = vmatprep.subr.bf16.mxu0 0
  %1769 = vmatpush1.bf16.msra.mxu0 0
  %1770 = vmatprep.subr.bf16.mxu0 0
  %1771 = vmatpush1.bf16.msra.mxu0 0
  %1772 = vmatprep.subr.bf16.mxu0 0
  %1773 = vmatpush1.bf16.msra.mxu0 0
  %1774 = vmatprep.subr.bf16.mxu0 0
  %1775 = vmatpush1.bf16.msra.mxu0 0
  %1776 = vmatprep.subr.bf16.mxu0 0
  %1777 = vmatpush1.bf16.msra.mxu0 0
  %1778 = vmatprep.subr.bf16.mxu0 0
  %1779 = vmatpush1.bf16.msra.mxu0 0
  %1780 = vmatprep.subr.bf16.mxu0 0
  %1781 = vmatpush1.bf16.msra.mxu0 0
  %1782 = vmatprep.subr.bf16.mxu0 0
  %1783 = vmatpush1.bf16.msra.mxu0 0
  %1784 = vmatprep.subr.bf16.mxu0 0
  %1785 = vmatpush1.bf16.msra.mxu0 0
  %1786 = vmatprep.subr.bf16.mxu0 0
  %1787 = vmatpush1.bf16.msra.mxu0 0
  %1788 = vmatprep.mubr.bf16.mxu0 0
  %1789 = vmatmul.mubr.bf16.gmra.mrb[0].mxu0 %v1745
  %v1790 = vpop.f32.mrb[0].mxu0
  %v1791 = vadd.f32 0.0, %v1790
  %v1792 = vpop.f32.mrb[0].mxu0
  %v1793 = vadd.f32 0.0, %v1792
  %v1794 = vpop.f32.mrb[0].mxu0
  %v1795 = vpop.f32.mrb[0].mxu0
  %1796 = vdwg.mxu0
  %1797 = vmatprep.subr.bf16.mxu0 0
  %1798 = vmatpush1.bf16.msra.mxu0 %v1754
  %1799 = vmatprep.subr.bf16.mxu0 0
  %1800 = vmatpush1.bf16.msra.mxu0 0
  %1801 = vmatprep.subr.bf16.mxu0 0
  %1802 = vmatpush1.bf16.msra.mxu0 0
  %1803 = vmatprep.subr.bf16.mxu0 0
  %1804 = vmatpush1.bf16.msra.mxu0 0
  %1805 = vmatprep.subr.bf16.mxu0 0
  %1806 = vmatpush1.bf16.msra.mxu0 0
  %1807 = vmatprep.subr.bf16.mxu0 0
  %1808 = vmatpush1.bf16.msra.mxu0 0
  %1809 = vmatprep.subr.bf16.mxu0 0
  %1810 = vmatpush1.bf16.msra.mxu0 0
  %1811 = vmatprep.subr.bf16.mxu0 0
  %1812 = vmatpush1.bf16.msra.mxu0 0
  %1813 = vmatprep.subr.bf16.mxu0 0
  %1814 = vmatpush1.bf16.msra.mxu0 0
  %1815 = vmatprep.subr.bf16.mxu0 0
  %1816 = vmatpush1.bf16.msra.mxu0 0
  %1817 = vmatprep.subr.bf16.mxu0 0
  %1818 = vmatpush1.bf16.msra.mxu0 0
  %1819 = vmatprep.subr.bf16.mxu0 0
  %1820 = vmatpush1.bf16.msra.mxu0 0
  %1821 = vmatprep.subr.bf16.mxu0 0
  %1822 = vmatpush1.bf16.msra.mxu0 0
  %1823 = vmatprep.subr.bf16.mxu0 0
  %1824 = vmatpush1.bf16.msra.mxu0 0
  %1825 = vmatprep.subr.bf16.mxu0 0
  %1826 = vmatpush1.bf16.msra.mxu0 0
  %1827 = vmatprep.subr.bf16.mxu0 0
  %1828 = vmatpush1.bf16.msra.mxu0 0
  %1829 = vmatprep.mubr.bf16.mxu0 0
  %1830 = vmatmul.mubr.bf16.gmra.mrb[0].mxu0 %v1745
  %v1831 = vpop.f32.mrb[0].mxu0
  %v1832 = vadd.f32 0.0, %v1831
  %v1833 = vpop.f32.mrb[0].mxu0
  %v1834 = vpop.f32.mrb[0].mxu0
  %v1835 = vpop.f32.mrb[0].mxu0
  %1836 = vdwg.mxu0
  %v1837 = vadd.f32 %v1731, %v1791
  %v1838 = vadd.f32 %v1732, %v1793
  %v1839 = vadd.f32 %v1733, %v1832
  %s1840 = scalar_lea.vmem %s4, 32
  %v1841 = vld [vmem:[%s1840] sm:$0xf]
  %1842 = vrot.lane.b32.xlu0 %v1002, 90
  %v1843 = vpop.permute.xlu0 %1842
  %1844 = vrot.lane.b32.xlu0 %v1003, 90
  %v1845 = vpop.permute.xlu0 %1844
  %1846 = vrot.lane.b32.xlu0 %v1004, 90
  %v1847 = vpop.permute.xlu0 %1846
  %v1848 = vsel %vm893, %v1843, %v1845
  %v1849 = vsel %vm893, %v1845, %v1847
  %v1851 = vsel %vm1013, %v1841, 0
  %v1854 = vand.u32 %v1848, %v1020
  %v1857 = vand.u32 %v1849, %v1020
  %v1860 = vand.u32 %v1847, %v1020
  %1862 = vmatprep.subr.bf16.mxu0 %v1857
  %1863 = vmatpush1.bf16.msra.mxu0 %v1854
  %1864 = vmatprep.subr.bf16.mxu0 0
  %1865 = vmatpush1.bf16.msra.mxu0 0
  %1866 = vmatprep.subr.bf16.mxu0 0
  %1867 = vmatpush1.bf16.msra.mxu0 0
  %1868 = vmatprep.subr.bf16.mxu0 0
  %1869 = vmatpush1.bf16.msra.mxu0 0
  %1870 = vmatprep.subr.bf16.mxu0 0
  %1871 = vmatpush1.bf16.msra.mxu0 0
  %1872 = vmatprep.subr.bf16.mxu0 0
  %1873 = vmatpush1.bf16.msra.mxu0 0
  %1874 = vmatprep.subr.bf16.mxu0 0
  %1875 = vmatpush1.bf16.msra.mxu0 0
  %1876 = vmatprep.subr.bf16.mxu0 0
  %1877 = vmatpush1.bf16.msra.mxu0 0
  %1878 = vmatprep.subr.bf16.mxu0 0
  %1879 = vmatpush1.bf16.msra.mxu0 0
  %1880 = vmatprep.subr.bf16.mxu0 0
  %1881 = vmatpush1.bf16.msra.mxu0 0
  %1882 = vmatprep.subr.bf16.mxu0 0
  %1883 = vmatpush1.bf16.msra.mxu0 0
  %1884 = vmatprep.subr.bf16.mxu0 0
  %1885 = vmatpush1.bf16.msra.mxu0 0
  %1886 = vmatprep.subr.bf16.mxu0 0
  %1887 = vmatpush1.bf16.msra.mxu0 0
  %1888 = vmatprep.subr.bf16.mxu0 0
  %1889 = vmatpush1.bf16.msra.mxu0 0
  %1890 = vmatprep.subr.bf16.mxu0 0
  %1891 = vmatpush1.bf16.msra.mxu0 0
  %1892 = vmatprep.subr.bf16.mxu0 0
  %1893 = vmatpush1.bf16.msra.mxu0 0
  %1894 = vmatprep.mubr.bf16.mxu0 0
  %1895 = vmatmul.mubr.bf16.gmra.mrb[0].mxu0 %v1851
  %v1896 = vpop.f32.mrb[0].mxu0
  %v1897 = vadd.f32 0.0, %v1896
  %v1898 = vpop.f32.mrb[0].mxu0
  %v1899 = vadd.f32 0.0, %v1898
  %v1900 = vpop.f32.mrb[0].mxu0
  %v1901 = vpop.f32.mrb[0].mxu0
  %1902 = vdwg.mxu0
  %1903 = vmatprep.subr.bf16.mxu0 0
  %1904 = vmatpush1.bf16.msra.mxu0 %v1860
  %1905 = vmatprep.subr.bf16.mxu0 0
  %1906 = vmatpush1.bf16.msra.mxu0 0
  %1907 = vmatprep.subr.bf16.mxu0 0
  %1908 = vmatpush1.bf16.msra.mxu0 0
  %1909 = vmatprep.subr.bf16.mxu0 0
  %1910 = vmatpush1.bf16.msra.mxu0 0
  %1911 = vmatprep.subr.bf16.mxu0 0
  %1912 = vmatpush1.bf16.msra.mxu0 0
  %1913 = vmatprep.subr.bf16.mxu0 0
  %1914 = vmatpush1.bf16.msra.mxu0 0
  %1915 = vmatprep.subr.bf16.mxu0 0
  %1916 = vmatpush1.bf16.msra.mxu0 0
  %1917 = vmatprep.subr.bf16.mxu0 0
  %1918 = vmatpush1.bf16.msra.mxu0 0
  %1919 = vmatprep.subr.bf16.mxu0 0
  %1920 = vmatpush1.bf16.msra.mxu0 0
  %1921 = vmatprep.subr.bf16.mxu0 0
  %1922 = vmatpush1.bf16.msra.mxu0 0
  %1923 = vmatprep.subr.bf16.mxu0 0
  %1924 = vmatpush1.bf16.msra.mxu0 0
  %1925 = vmatprep.subr.bf16.mxu0 0
  %1926 = vmatpush1.bf16.msra.mxu0 0
  %1927 = vmatprep.subr.bf16.mxu0 0
  %1928 = vmatpush1.bf16.msra.mxu0 0
  %1929 = vmatprep.subr.bf16.mxu0 0
  %1930 = vmatpush1.bf16.msra.mxu0 0
  %1931 = vmatprep.subr.bf16.mxu0 0
  %1932 = vmatpush1.bf16.msra.mxu0 0
  %1933 = vmatprep.subr.bf16.mxu0 0
  %1934 = vmatpush1.bf16.msra.mxu0 0
  %1935 = vmatprep.mubr.bf16.mxu0 0
  %1936 = vmatmul.mubr.bf16.gmra.mrb[0].mxu0 %v1851
  %v1937 = vpop.f32.mrb[0].mxu0
  %v1938 = vadd.f32 0.0, %v1937
  %v1939 = vpop.f32.mrb[0].mxu0
  %v1940 = vpop.f32.mrb[0].mxu0
  %v1941 = vpop.f32.mrb[0].mxu0
  %1942 = vdwg.mxu0
  %v1943 = vadd.f32 %v1837, %v1897
  %v1944 = vadd.f32 %v1838, %v1899
  %v1945 = vadd.f32 %v1839, %v1938
  %v1946 = vadd.f32 %v989, %v1943
  %v1947 = vadd.f32 %v990, %v1944
  %v1948 = vadd.f32 %v991, %v1945
  %v1949 = vld [vmem:[%s5] sm:$0x7f]
  %1951 = vset.pattern.permute.xlu0 0
  %1952 = vperm.xlu0 %1951, %v1949
  %v1953 = vpop.permute.xlu0 %1952
  %v1955 = vadd.f32 %v1946, %v1953
  %v1956 = vadd.f32 %v1947, %v1953
  %v1957 = vadd.f32 %v1948, %v1953
  %vm1958 = vcmp.gt.f32.partialorder %v1955, 0.0
  %vm1959 = vcmp.gt.f32.partialorder %v1956, 0.0
  %vm1960 = vcmp.gt.f32.partialorder %v1957, 0.0
  %v1961 = vmin.f32 %v1955, 0.0
  %v1962 = vmin.f32 %v1956, 0.0
  %v1963 = vmin.f32 %v1957, 0.0
  %v1964 = vmul.f32 %v1961, 1.442695
  %v1965 = vpow.pop %v1964
  %v1966 = vmul.f32 %v1962, 1.442695
  %v1967 = vpow.pop %v1966
  %v1968 = vmul.f32 %v1963, 1.442695
  %v1969 = vpow.pop %v1968
  %v1970 = vsub.f32 %v1965, 1.0
  %v1971 = vsub.f32 %v1967, 1.0
  %v1972 = vsub.f32 %v1969, 1.0
  %v1973 = vsel %vm1958, %v1955, %v1970
  %v1974 = vsel %vm1959, %v1956, %v1971
  %v1975 = vsel %vm1960, %v1957, %v1972
  %v1976 = vsel %vm25, 1, 0
  %v1977 = vlaneseq
  %v1978 = vshrl.u32 %v1977, 7
  %v1979 = vsub.s32 0, %v1978
  %v1980 = vrot.slane %v1976, %v1979
  %v1981 = vlaneseq
  %v1982 = vshrl.u32 %v1981, 7
  %v1983 = vsub.s32 1, %v1982
  %v1984 = vrot.slane %v1976, %v1983
  %v1985 = vlaneseq
  %v1986 = vshrl.u32 %v1985, 7
  %v1987 = vsub.s32 2, %v1986
  %v1988 = vrot.slane %v1976, %v1987
  %vm1989 = vcmp.eq.s32.totalorder %v1980, 1
  %vm1990 = vcmp.eq.s32.totalorder %v1984, 1
  %vm1991 = vcmp.eq.s32.totalorder %v1988, 1
  %v1992 = vsel %vm1989, %v1973, 0.0
  %v1993 = vsel %vm1990, %v1974, 0.0
  %v1994 = vsel %vm1991, %v1975, 0.0
  %v1995 = vpack.c.bf16 %v1992, %v1992
  %v1996 = vpack.c.bf16 %v1993, %v1993
  %v1997 = vpack.c.bf16 %v1994, %v1994
  %v2001 = vunpack.c.l.b16 %v1995
  %v2002 = vunpack.c.l.b16 %v1996
  %v2003 = vunpack.c.l.b16 %v1997
  %v2004 = vpack.c.b16 %v2002, %v2001
  %v2005 = vpack.c.b16 %v2003, %v2003
  %vm2008 = vcmask 1043456
  %vm2009 = vsmask.f32 3328
  %vm2010 = vmand %vm2008, %vm2009
  %vm2011 = vcmask 1047556
  %vm2012 = vsmask.f32 7424
  %vm2013 = vmand %vm2011, %vm2012
  %vm2014 = vmor %vm2013, %vm2010
  %v2015 = vld [vmem:[%s6] sm:$0xff]
  %v2016 = vsel %vm2014, %v2004, %v2015
  %2017 = vst [vmem:[%s6] sm:$0xff] %v2016
  %vm2018 = vcmask 551936
  %vm2019 = vmand %vm2018, %vm2009
  %v2020 = vld [vmem:[%s6 + $0x8] sm:$0xf]
  %v2021 = vsel %vm2019, %v2005, %v2020
  %2022 = vst [vmem:[%s6 + $0x8] sm:$0xf] %v2021
  // Predicated region
  $region26: #{convnet_forward.8} parent=0 // pred_check
    _
  $region27: #{convnet_forward.8} parent=0 // pred_check_branch
    %2024 = sbr.rel (0) target = $region29
  $region28: #{convnet_forward.8} parent=0 // pred_region
    _
  $region29: #{convnet_forward.8} parent=0 // pred_fallthru
    _
  // Predicated region
  $region30: #{convnet_forward.8} parent=0 // pred_check
    _
  $region31: #{convnet_forward.8} parent=0 // pred_check_branch
    %2026 = sbr.rel (0) target = $region33
  $region32: #{convnet_forward.8} parent=0 // pred_region
    _
  $region33: #{convnet_forward.8} parent=0 // pred_fallthru
    _

// kernel: convnet_forward.9
$region0: #{convnet_forward.9}
  #allocation0 [shape = 'u32[]', space=smem, size = 0x4, offset = 0x4, fixed_abs, tag = 'smem constant byte address 0x4 - core index']
  #allocation1 [shape = 'u32[144,128]{1,0:T(1,128)}', space=vmem, size = 0x12000, scoped, tag = 'internal scratch']
  %s0 = inlined_call_operand.vmem [shape: bf16[256,7], index: 0, kind: input, shape index: {}]
  %s1 = inlined_call_operand.vmem [shape: bf16[4,256], index: 1, kind: input, shape index: {}]
  %s2 = inlined_call_operand.vmem [shape: f32[4,1], index: 2, kind: input, shape index: {}]
  %s3 = inlined_call_operand.vmem [shape: bf16[4,256], index: 3, kind: input, shape index: {}]
  %s4 = inlined_call_operand.vmem [shape: f32[4,1], index: 4, kind: input, shape index: {}]
  %s5 = inlined_call_operand.vmem [shape: bf16[14,28], index: 5, kind: input, shape index: {}]
  %s6 = inlined_call_operand.vmem [shape: f32[1,28], index: 6, kind: input, shape index: {}]
  %s7 = inlined_call_operand.vmem [shape: bf16[28,14], index: 7, kind: input, shape index: {}]
  %s8 = inlined_call_operand.vmem [shape: f32[1,14], index: 8, kind: input, shape index: {}]
  %s9 = inlined_call_operand.vmem [shape: bf16[14,28], index: 9, kind: input, shape index: {}]
  %s10 = inlined_call_operand.vmem [shape: f32[1,28], index: 10, kind: input, shape index: {}]
  %s11 = inlined_call_operand.vmem [shape: bf16[28,14], index: 11, kind: input, shape index: {}]
  %s12 = inlined_call_operand.vmem [shape: f32[1,14], index: 12, kind: input, shape index: {}]
  %s13 = inlined_call_operand.vmem [shape: bf16[4,4], index: 13, kind: input, shape index: {}]
  %s14 = inlined_call_operand.vmem [shape: bf16[4,4], index: 14, kind: input, shape index: {}]
  %s15 = inlined_call_operand.vmem [shape: bf16[14,84], index: 15, kind: input, shape index: {}]
  %s16 = inlined_call_operand.vmem [shape: bf16[14,168], index: 16, kind: input, shape index: {}]
  %s17 = inlined_call_operand.vmem [shape: f32[1,84], index: 17, kind: input, shape index: {}]
  %s18 = inlined_call_operand.vmem [shape: bf16[84,84], index: 18, kind: input, shape index: {}]
  %s19 = inlined_call_operand.vmem [shape: f32[1,84], index: 19, kind: input, shape index: {}]
  %s20 = inlined_call_operand.vmem [shape: bf16[84,2], index: 20, kind: input, shape index: {}]
  %s21 = inlined_call_operand.vmem [shape: f32[1,2], index: 21, kind: input, shape index: {}]
  %s22 = inlined_call_operand.vmem [shape: f32[4,2], index: 22, kind: output, shape index: {}]
  %s23 = sld [smem:[#allocation0]]
  $region98: #{convnet_forward.9} parent=0
    _
  %s25 = ssub.s32 1, %s23
  %s26 = scalar_select 0, %s25, %s23
  // Predicated region
  $region2: #{convnet_forward.9} parent=0 // pred_check
    _
  $region3: #{convnet_forward.9} parent=0 // pred_check_branch
    %28 = sbr.rel (0) target = $region5
  $region4: #{convnet_forward.9} parent=0 // pred_region
    _
  $region5: #{convnet_forward.9} parent=0 // pred_fallthru
    _
  // Predicated region
  $region6: #{convnet_forward.9} parent=0 // pred_check
    _
  $region7: #{convnet_forward.9} parent=0 // pred_check_branch
    %30 = sbr.rel (0) target = $region9
  $region8: #{convnet_forward.9} parent=0 // pred_region
    _
  $region9: #{convnet_forward.9} parent=0 // pred_fallthru
    _
  // Predicated region
  $region10: #{convnet_forward.9} parent=0 // pred_check
    _
  $region11: #{convnet_forward.9} parent=0 // pred_check_branch
    %32 = sbr.rel (0) target = $region13
  $region12: #{convnet_forward.9} parent=0 // pred_region
    _
  $region13: #{convnet_forward.9} parent=0 // pred_fallthru
    _
  // Predicated region
  $region14: #{convnet_forward.9} parent=0 // pred_check
    _
  $region15: #{convnet_forward.9} parent=0 // pred_check_branch
    %34 = sbr.rel (0) target = $region17
  $region16: #{convnet_forward.9} parent=0 // pred_region
    _
  $region17: #{convnet_forward.9} parent=0 // pred_fallthru
    _
  // Predicated region
  $region18: #{convnet_forward.9} parent=0 // pred_check
    _
  $region19: #{convnet_forward.9} parent=0 // pred_check_branch
    %36 = sbr.rel (0) target = $region21
  $region20: #{convnet_forward.9} parent=0 // pred_region
    _
  $region21: #{convnet_forward.9} parent=0 // pred_fallthru
    _
  // Predicated region
  $region22: #{convnet_forward.9} parent=0 // pred_check
    _
  $region23: #{convnet_forward.9} parent=0 // pred_check_branch
    %38 = sbr.rel (0) target = $region25
  $region24: #{convnet_forward.9} parent=0 // pred_region
    _
  $region25: #{convnet_forward.9} parent=0 // pred_fallthru
    _
  // Predicated region
  $region26: #{convnet_forward.9} parent=0 // pred_check
    _
  $region27: #{convnet_forward.9} parent=0 // pred_check_branch
    %40 = sbr.rel (0) target = $region29
  $region28: #{convnet_forward.9} parent=0 // pred_region
    _
  $region29: #{convnet_forward.9} parent=0 // pred_fallthru
    _
  // Predicated region
  $region30: #{convnet_forward.9} parent=0 // pred_check
    _
  $region31: #{convnet_forward.9} parent=0 // pred_check_branch
    %42 = sbr.rel (0) target = $region33
  $region32: #{convnet_forward.9} parent=0 // pred_region
    _
  $region33: #{convnet_forward.9} parent=0 // pred_fallthru
    _
  // Predicated region
  $region34: #{convnet_forward.9} parent=0 // pred_check
    _
  $region35: #{convnet_forward.9} parent=0 // pred_check_branch
    %44 = sbr.rel (0) target = $region37
  $region36: #{convnet_forward.9} parent=0 // pred_region
    _
  $region37: #{convnet_forward.9} parent=0 // pred_fallthru
    _
  // Predicated region
  $region38: #{convnet_forward.9} parent=0 // pred_check
    _
  $region39: #{convnet_forward.9} parent=0 // pred_check_branch
    %46 = sbr.rel (0) target = $region41
  $region40: #{convnet_forward.9} parent=0 // pred_region
    _
  $region41: #{convnet_forward.9} parent=0 // pred_fallthru
    _
  // Predicated region
  $region42: #{convnet_forward.9} parent=0 // pred_check
    _
  $region43: #{convnet_forward.9} parent=0 // pred_check_branch
    %48 = sbr.rel (0) target = $region45
  $region44: #{convnet_forward.9} parent=0 // pred_region
    _
  $region45: #{convnet_forward.9} parent=0 // pred_fallthru
    _
  // Predicated region
  $region46: #{convnet_forward.9} parent=0 // pred_check
    _
  $region47: #{convnet_forward.9} parent=0 // pred_check_branch
    %50 = sbr.rel (0) target = $region49
  $region48: #{convnet_forward.9} parent=0 // pred_region
    _
  $region49: #{convnet_forward.9} parent=0 // pred_fallthru
    _
  // Predicated region
  $region50: #{convnet_forward.9} parent=0 // pred_check
    _
  $region51: #{convnet_forward.9} parent=0 // pred_check_branch
    %52 = sbr.rel (0) target = $region53
  $region52: #{convnet_forward.9} parent=0 // pred_region
    _
  $region53: #{convnet_forward.9} parent=0 // pred_fallthru
    _
  // Predicated region
  $region54: #{convnet_forward.9} parent=0 // pred_check
    _
  $region55: #{convnet_forward.9} parent=0 // pred_check_branch
    %54 = sbr.rel (0) target = $region57
  $region56: #{convnet_forward.9} parent=0 // pred_region
    _
  $region57: #{convnet_forward.9} parent=0 // pred_fallthru
    _
  // Predicated region
  $region58: #{convnet_forward.9} parent=0 // pred_check
    _
  $region59: #{convnet_forward.9} parent=0 // pred_check_branch
    %56 = sbr.rel (0) target = $region61
  $region60: #{convnet_forward.9} parent=0 // pred_region
    _
  $region61: #{convnet_forward.9} parent=0 // pred_fallthru
    _
  // Predicated region
  $region62: #{convnet_forward.9} parent=0 // pred_check
    _
  $region63: #{convnet_forward.9} parent=0 // pred_check_branch
    %58 = sbr.rel (0) target = $region65
  $region64: #{convnet_forward.9} parent=0 // pred_region
    _
  $region65: #{convnet_forward.9} parent=0 // pred_fallthru
    _
  // Predicated region
  $region66: #{convnet_forward.9} parent=0 // pred_check
    _
  $region67: #{convnet_forward.9} parent=0 // pred_check_branch
    %60 = sbr.rel (0) target = $region69
  $region68: #{convnet_forward.9} parent=0 // pred_region
    _
  $region69: #{convnet_forward.9} parent=0 // pred_fallthru
    _
  // Predicated region
  $region70: #{convnet_forward.9} parent=0 // pred_check
    _
  $region71: #{convnet_forward.9} parent=0 // pred_check_branch
    %62 = sbr.rel (0) target = $region73
  $region72: #{convnet_forward.9} parent=0 // pred_region
    _
  $region73: #{convnet_forward.9} parent=0 // pred_fallthru
    _
  // Predicated region
  $region74: #{convnet_forward.9} parent=0 // pred_check
    _
  $region75: #{convnet_forward.9} parent=0 // pred_check_branch
    %64 = sbr.rel (0) target = $region77
  $region76: #{convnet_forward.9} parent=0 // pred_region
    _
  $region77: #{convnet_forward.9} parent=0 // pred_fallthru
    _
  // Predicated region
  $region78: #{convnet_forward.9} parent=0 // pred_check
    _
  $region79: #{convnet_forward.9} parent=0 // pred_check_branch
    %66 = sbr.rel (0) target = $region81
  $region80: #{convnet_forward.9} parent=0 // pred_region
    _
  $region81: #{convnet_forward.9} parent=0 // pred_fallthru
    _
  // Predicated region
  $region82: #{convnet_forward.9} parent=0 // pred_check
    _
  $region83: #{convnet_forward.9} parent=0 // pred_check_branch
    %68 = sbr.rel (0) target = $region85
  $region84: #{convnet_forward.9} parent=0 // pred_region
    _
  $region85: #{convnet_forward.9} parent=0 // pred_fallthru
    _
  // Predicated region
  $region86: #{convnet_forward.9} parent=0 // pred_check
    _
  $region87: #{convnet_forward.9} parent=0 // pred_check_branch
    %70 = sbr.rel (0) target = $region89
  $region88: #{convnet_forward.9} parent=0 // pred_region
    _
  $region89: #{convnet_forward.9} parent=0 // pred_fallthru
    _
  %v72 = vld [vmem:[%s0] sm:$0xf]
  %v73 = vld [vmem:[%s0 + $0x4] sm:$0xf]
  %v74 = vld [vmem:[%s0 + $0x8] sm:$0xf]
  %v75 = vld [vmem:[%s0 + $0xc] sm:$0xf]
  %v76 = vld [vmem:[%s0 + $0x10] sm:$0xf]
  %v77 = vld [vmem:[%s0 + $0x14] sm:$0xf]
  %v78 = vld [vmem:[%s0 + $0x18] sm:$0xf]
  %v79 = vld [vmem:[%s0 + $0x1c] sm:$0xf]
  %v80 = vld [vmem:[%s0 + $0x20] sm:$0xf]
  %v81 = vld [vmem:[%s0 + $0x24] sm:$0xf]
  %v82 = vld [vmem:[%s0 + $0x28] sm:$0xf]
  %v83 = vld [vmem:[%s0 + $0x2c] sm:$0xf]
  %v84 = vld [vmem:[%s0 + $0x30] sm:$0xf]
  %v85 = vld [vmem:[%s0 + $0x34] sm:$0xf]
  %v86 = vld [vmem:[%s0 + $0x38] sm:$0xf]
  %v87 = vld [vmem:[%s0 + $0x3c] sm:$0xf]
  %v88 = vld [vmem:[%s0 + $0x40] sm:$0xf]
  %v89 = vld [vmem:[%s0 + $0x44] sm:$0xf]
  %v90 = vld [vmem:[%s0 + $0x48] sm:$0xf]
  %v91 = vld [vmem:[%s0 + $0x4c] sm:$0xf]
  %v92 = vld [vmem:[%s0 + $0x50] sm:$0xf]
  %v93 = vld [vmem:[%s0 + $0x54] sm:$0xf]
  %v94 = vld [vmem:[%s0 + $0x58] sm:$0xf]
  %v95 = vld [vmem:[%s0 + $0x5c] sm:$0xf]
  %v96 = vld [vmem:[%s0 + $0x60] sm:$0xf]
  %v97 = vld [vmem:[%s0 + $0x64] sm:$0xf]
  %v98 = vld [vmem:[%s0 + $0x68] sm:$0xf]
  %v99 = vld [vmem:[%s0 + $0x6c] sm:$0xf]
  %v100 = vld [vmem:[%s0 + $0x70] sm:$0xf]
  %v101 = vld [vmem:[%s0 + $0x74] sm:$0xf]
  %v102 = vld [vmem:[%s0 + $0x78] sm:$0xf]
  %v103 = vld [vmem:[%s0 + $0x7c] sm:$0xf]
  %v104 = vld [vmem:[%s1] sm:$0xf]
  %v107 = vunpack.c.l.s4 1983009808
  %v108 = vunpack.c.0.s8 %v107
  %v109 = vlaneseq
  %v110 = vshrl.u32 %v109, 7
  %v111 = vsub.s32 %v108, %v110
  %v112 = vrot.slane %v104, %v111
  %v113 = vcombine.high %v112, %v112
  %v148 = vunpack.c.l.b16 %v72
  %v149 = vunpack.c.l.b16 %v73
  %v150 = vunpack.c.l.b16 %v74
  %v151 = vunpack.c.l.b16 %v75
  %v152 = vunpack.c.l.b16 %v76
  %v153 = vunpack.c.l.b16 %v77
  %v154 = vunpack.c.l.b16 %v78
  %v155 = vunpack.c.l.b16 %v79
  %v156 = vunpack.c.l.b16 %v80
  %v157 = vunpack.c.l.b16 %v81
  %v158 = vunpack.c.l.b16 %v82
  %v159 = vunpack.c.l.b16 %v83
  %v160 = vunpack.c.l.b16 %v84
  %v161 = vunpack.c.l.b16 %v85
  %v162 = vunpack.c.l.b16 %v86
  %v163 = vunpack.c.l.b16 %v87
  %v164 = vunpack.c.l.b16 %v88
  %v165 = vunpack.c.l.b16 %v89
  %v166 = vunpack.c.l.b16 %v90
  %v167 = vunpack.c.l.b16 %v91
  %v168 = vunpack.c.l.b16 %v92
  %v169 = vunpack.c.l.b16 %v93
  %v170 = vunpack.c.l.b16 %v94
  %v171 = vunpack.c.l.b16 %v95
  %v172 = vunpack.c.l.b16 %v96
  %v173 = vunpack.c.l.b16 %v97
  %v174 = vunpack.c.l.b16 %v98
  %v175 = vunpack.c.l.b16 %v99
  %v176 = vunpack.c.l.b16 %v100
  %v177 = vunpack.c.l.b16 %v101
  %v178 = vunpack.c.l.b16 %v102
  %v179 = vunpack.c.l.b16 %v103
  %v180 = vpack.c.b16 %v149, %v148
  %v181 = vpack.c.b16 %v151, %v150
  %v182 = vpack.c.b16 %v153, %v152
  %v183 = vpack.c.b16 %v155, %v154
  %v184 = vpack.c.b16 %v157, %v156
  %v185 = vpack.c.b16 %v159, %v158
  %v186 = vpack.c.b16 %v161, %v160
  %v187 = vpack.c.b16 %v163, %v162
  %v188 = vpack.c.b16 %v165, %v164
  %v189 = vpack.c.b16 %v167, %v166
  %v190 = vpack.c.b16 %v169, %v168
  %v191 = vpack.c.b16 %v171, %v170
  %v192 = vpack.c.b16 %v173, %v172
  %v193 = vpack.c.b16 %v175, %v174
  %v194 = vpack.c.b16 %v177, %v176
  %v195 = vpack.c.b16 %v179, %v178
  %212 = vmatprep.subr.bf16.mxu0 0
  %213 = vmatpush1.bf16.msra.mxu0 %v180
  %214 = vmatprep.subr.bf16.mxu0 0
  %215 = vmatpush1.bf16.msra.mxu0 %v181
  %216 = vmatprep.subr.bf16.mxu0 0
  %217 = vmatpush1.bf16.msra.mxu0 %v182
  %218 = vmatprep.subr.bf16.mxu0 0
  %219 = vmatpush1.bf16.msra.mxu0 %v183
  %220 = vmatprep.subr.bf16.mxu0 0
  %221 = vmatpush1.bf16.msra.mxu0 %v184
  %222 = vmatprep.subr.bf16.mxu0 0
  %223 = vmatpush1.bf16.msra.mxu0 %v185
  %224 = vmatprep.subr.bf16.mxu0 0
  %225 = vmatpush1.bf16.msra.mxu0 %v186
  %226 = vmatprep.subr.bf16.mxu0 0
  %227 = vmatpush1.bf16.msra.mxu0 %v187
  %228 = vmatprep.subr.bf16.mxu0 0
  %229 = vmatpush1.bf16.msra.mxu0 %v188
  %230 = vmatprep.subr.bf16.mxu0 0
  %231 = vmatpush1.bf16.msra.mxu0 %v189
  %232 = vmatprep.subr.bf16.mxu0 0
  %233 = vmatpush1.bf16.msra.mxu0 %v190
  %234 = vmatprep.subr.bf16.mxu0 0
  %235 = vmatpush1.bf16.msra.mxu0 %v191
  %236 = vmatprep.subr.bf16.mxu0 0
  %237 = vmatpush1.bf16.msra.mxu0 %v192
  %238 = vmatprep.subr.bf16.mxu0 0
  %239 = vmatpush1.bf16.msra.mxu0 %v193
  %240 = vmatprep.subr.bf16.mxu0 0
  %241 = vmatpush1.bf16.msra.mxu0 %v194
  %242 = vmatprep.subr.bf16.mxu0 0
  %243 = vmatpush1.bf16.msra.mxu0 %v195
  %244 = vmatprep.mubr.bf16.mxu0 %v113
  %245 = vmatmul.mubr.bf16.gmra.mrb[0].mxu0 %v112
  %v246 = vpop.f32.mrb[0].mxu0
  %v247 = vadd.f32 0.0, %v246
  %v248 = vpop.f32.mrb[0].mxu0
  %v249 = vpop.f32.mrb[0].mxu0
  %v250 = vpop.f32.mrb[0].mxu0
  %251 = vdwg.mxu0
  %v252 = vld [vmem:[%s2] sm:$0xf]
  %254 = vset.pattern.permute.xlu0 0
  %255 = vperm.xlu0 %254, %v252
  %v256 = vpop.permute.xlu0 %255
  %v258 = vmul.f32 %v247, %v256
  %260 = vrot.lane.b32.xlu0 %v258, 7
  %v261 = vpop.permute.xlu0 %260
  %vm263 = vcmask 56320
  %v264 = vsel %vm263, %v247, %v261
  %v265 = vpack.c.bf16 %v264, %v264
  %v266 = vld [vmem:[%s5] sm:$0xf]
  %v267 = vld [vmem:[%s5 + $0x4] sm:$0x7]
  %v268 = vld [vmem:[%s6] sm:$0x1]
  %v270 = vlaneseq
  %v271 = vshrl.u32 %v270, 7
  %v272 = vsub.s32 0, %v271
  %v273 = vrot.slane %v268, %v272
  %v277 = vunpack.c.l.b16 %v266
  %v278 = vunpack.c.l.b16 %v267
  %v279 = vpack.c.b16 %v278, %v277
  %vm280 = vcmask 113664
  %v282 = vsel %vm280, %v265, 0
  %vm284 = vcmask 1046528
  %v286 = vsel %vm284, %v279, 0
  %288 = vmatprep.subr.bf16.mxu0 0
  %289 = vmatpush1.bf16.msra.mxu0 %v286
  %290 = vmatprep.subr.bf16.mxu0 0
  %291 = vmatpush1.bf16.msra.mxu0 0
  %292 = vmatprep.subr.bf16.mxu0 0
  %293 = vmatpush1.bf16.msra.mxu0 0
  %294 = vmatprep.subr.bf16.mxu0 0
  %295 = vmatpush1.bf16.msra.mxu0 0
  %296 = vmatprep.subr.bf16.mxu0 0
  %297 = vmatpush1.bf16.msra.mxu0 0
  %298 = vmatprep.subr.bf16.mxu0 0
  %299 = vmatpush1.bf16.msra.mxu0 0
  %300 = vmatprep.subr.bf16.mxu0 0
  %301 = vmatpush1.bf16.msra.mxu0 0
  %302 = vmatprep.subr.bf16.mxu0 0
  %303 = vmatpush1.bf16.msra.mxu0 0
  %304 = vmatprep.subr.bf16.mxu0 0
  %305 = vmatpush1.bf16.msra.mxu0 0
  %306 = vmatprep.subr.bf16.mxu0 0
  %307 = vmatpush1.bf16.msra.mxu0 0
  %308 = vmatprep.subr.bf16.mxu0 0
  %309 = vmatpush1.bf16.msra.mxu0 0
  %310 = vmatprep.subr.bf16.mxu0 0
  %311 = vmatpush1.bf16.msra.mxu0 0
  %312 = vmatprep.subr.bf16.mxu0 0
  %313 = vmatpush1.bf16.msra.mxu0 0
  %314 = vmatprep.subr.bf16.mxu0 0
  %315 = vmatpush1.bf16.msra.mxu0 0
  %316 = vmatprep.subr.bf16.mxu0 0
  %317 = vmatpush1.bf16.msra.mxu0 0
  %318 = vmatprep.subr.bf16.mxu0 0
  %319 = vmatpush1.bf16.msra.mxu0 0
  %320 = vmatprep.mubr.bf16.mxu0 0
  %321 = vmatmul.mubr.bf16.gmra.mrb[0].mxu0 %v282
  %v322 = vpop.f32.mrb[0].mxu0
  %v323 = vadd.f32 %v273, %v322
  %v324 = vpop.f32.mrb[0].mxu0
  %v325 = vpop.f32.mrb[0].mxu0
  %v326 = vpop.f32.mrb[0].mxu0
  %327 = vdwg.mxu0
  %vm328 = vcmp.gt.f32.partialorder %v323, 0.0
  %v329 = vmin.f32 %v323, 0.0
  %v330 = vmul.f32 %v329, 1.442695
  %v331 = vpow.pop %v330
  %v332 = vsub.f32 %v331, 1.0
  %v333 = vsel %vm328, %v323, %v332
  %v334 = vpack.c.bf16 %v333, %v333
  %v335 = vld [vmem:[%s7] sm:$0xf]
  %v336 = vld [vmem:[%s7 + $0x4] sm:$0xf]
  %v337 = vld [vmem:[%s7 + $0x8] sm:$0xf]
  %v338 = vld [vmem:[%s7 + $0xc] sm:$0x3]
  %v339 = vld [vmem:[%s8] sm:$0x1]
  %v341 = vlaneseq
  %v342 = vshrl.u32 %v341, 7
  %v343 = vsub.s32 0, %v342
  %v344 = vrot.slane %v339, %v343
  %v350 = vunpack.c.l.b16 %v335
  %v351 = vunpack.c.l.b16 %v336
  %v352 = vunpack.c.l.b16 %v337
  %v353 = vunpack.c.l.b16 %v338
  %v354 = vpack.c.b16 %v351, %v350
  %v355 = vpack.c.b16 %v353, %v352
  %vm357 = vcmask 228352
  %v359 = vsel %vm357, %v334, 0
  %vm361 = vcmask 1045504
  %v363 = vsel %vm361, %v355, 0
  %365 = vmatprep.subr.bf16.mxu0 0
  %366 = vmatpush1.bf16.msra.mxu0 %v354
  %367 = vmatprep.subr.bf16.mxu0 0
  %368 = vmatpush1.bf16.msra.mxu0 %v363
  %369 = vmatprep.subr.bf16.mxu0 0
  %370 = vmatpush1.bf16.msra.mxu0 0
  %371 = vmatprep.subr.bf16.mxu0 0
  %372 = vmatpush1.bf16.msra.mxu0 0
  %373 = vmatprep.subr.bf16.mxu0 0
  %374 = vmatpush1.bf16.msra.mxu0 0
  %375 = vmatprep.subr.bf16.mxu0 0
  %376 = vmatpush1.bf16.msra.mxu0 0
  %377 = vmatprep.subr.bf16.mxu0 0
  %378 = vmatpush1.bf16.msra.mxu0 0
  %379 = vmatprep.subr.bf16.mxu0 0
  %380 = vmatpush1.bf16.msra.mxu0 0
  %381 = vmatprep.subr.bf16.mxu0 0
  %382 = vmatpush1.bf16.msra.mxu0 0
  %383 = vmatprep.subr.bf16.mxu0 0
  %384 = vmatpush1.bf16.msra.mxu0 0
  %385 = vmatprep.subr.bf16.mxu0 0
  %386 = vmatpush1.bf16.msra.mxu0 0
  %387 = vmatprep.subr.bf16.mxu0 0
  %388 = vmatpush1.bf16.msra.mxu0 0
  %389 = vmatprep.subr.bf16.mxu0 0
  %390 = vmatpush1.bf16.msra.mxu0 0
  %391 = vmatprep.subr.bf16.mxu0 0
  %392 = vmatpush1.bf16.msra.mxu0 0
  %393 = vmatprep.subr.bf16.mxu0 0
  %394 = vmatpush1.bf16.msra.mxu0 0
  %395 = vmatprep.subr.bf16.mxu0 0
  %396 = vmatpush1.bf16.msra.mxu0 0
  %397 = vmatprep.mubr.bf16.mxu0 0
  %398 = vmatmul.mubr.bf16.gmra.mrb[0].mxu0 %v359
  %v399 = vpop.f32.mrb[0].mxu0
  %v400 = vadd.f32 %v344, %v399
  %v401 = vpop.f32.mrb[0].mxu0
  %v402 = vpop.f32.mrb[0].mxu0
  %v403 = vpop.f32.mrb[0].mxu0
  %404 = vdwg.mxu0
  %vm405 = vcmp.gt.f32.partialorder %v400, 0.0
  %v406 = vmin.f32 %v400, 0.0
  %v407 = vmul.f32 %v406, 1.442695
  %v408 = vpow.pop %v407
  %v409 = vsub.f32 %v408, 1.0
  %v410 = vsel %vm405, %v400, %v409
  %v411 = vadd.f32 %v410, %v264
  %v412 = vld [vmem:[%s3] sm:$0xf]
  %v415 = vunpack.c.l.s4 1983009808
  %v416 = vunpack.c.0.s8 %v415
  %v417 = vlaneseq
  %v418 = vshrl.u32 %v417, 7
  %v419 = vsub.s32 %v416, %v418
  %v420 = vrot.slane %v412, %v419
  %v421 = vcombine.high %v420, %v420
  %424 = vmatprep.subr.bf16.mxu0 0
  %425 = vmatpush1.bf16.msra.mxu0 %v180
  %426 = vmatprep.subr.bf16.mxu0 0
  %427 = vmatpush1.bf16.msra.mxu0 %v181
  %428 = vmatprep.subr.bf16.mxu0 0
  %429 = vmatpush1.bf16.msra.mxu0 %v182
  %430 = vmatprep.subr.bf16.mxu0 0
  %431 = vmatpush1.bf16.msra.mxu0 %v183
  %432 = vmatprep.subr.bf16.mxu0 0
  %433 = vmatpush1.bf16.msra.mxu0 %v184
  %434 = vmatprep.subr.bf16.mxu0 0
  %435 = vmatpush1.bf16.msra.mxu0 %v185
  %436 = vmatprep.subr.bf16.mxu0 0
  %437 = vmatpush1.bf16.msra.mxu0 %v186
  %438 = vmatprep.subr.bf16.mxu0 0
  %439 = vmatpush1.bf16.msra.mxu0 %v187
  %440 = vmatprep.subr.bf16.mxu0 0
  %441 = vmatpush1.bf16.msra.mxu0 %v188
  %442 = vmatprep.subr.bf16.mxu0 0
  %443 = vmatpush1.bf16.msra.mxu0 %v189
  %444 = vmatprep.subr.bf16.mxu0 0
  %445 = vmatpush1.bf16.msra.mxu0 %v190
  %446 = vmatprep.subr.bf16.mxu0 0
  %447 = vmatpush1.bf16.msra.mxu0 %v191
  %448 = vmatprep.subr.bf16.mxu0 0
  %449 = vmatpush1.bf16.msra.mxu0 %v192
  %450 = vmatprep.subr.bf16.mxu0 0
  %451 = vmatpush1.bf16.msra.mxu0 %v193
  %452 = vmatprep.subr.bf16.mxu0 0
  %453 = vmatpush1.bf16.msra.mxu0 %v194
  %454 = vmatprep.subr.bf16.mxu0 0
  %455 = vmatpush1.bf16.msra.mxu0 %v195
  %456 = vmatprep.mubr.bf16.mxu0 %v421
  %457 = vmatmul.mubr.bf16.gmra.mrb[0].mxu0 %v420
  %v458 = vpop.f32.mrb[0].mxu0
  %v459 = vadd.f32 0.0, %v458
  %v460 = vpop.f32.mrb[0].mxu0
  %v461 = vpop.f32.mrb[0].mxu0
  %v462 = vpop.f32.mrb[0].mxu0
  %463 = vdwg.mxu0
  %v464 = vld [vmem:[%s4] sm:$0xf]
  %466 = vset.pattern.permute.xlu0 0
  %467 = vperm.xlu0 %466, %v464
  %v468 = vpop.permute.xlu0 %467
  %v470 = vmul.f32 %v459, %v468
  %472 = vrot.lane.b32.xlu0 %v470, 7
  %v473 = vpop.permute.xlu0 %472
  %v475 = vsel %vm263, %v459, %v473
  %v476 = vpack.c.bf16 %v475, %v475
  %v477 = vld [vmem:[%s9] sm:$0xf]
  %v478 = vld [vmem:[%s9 + $0x4] sm:$0x7]
  %v479 = vld [vmem:[%s10] sm:$0x1]
  %v481 = vlaneseq
  %v482 = vshrl.u32 %v481, 7
  %v483 = vsub.s32 0, %v482
  %v484 = vrot.slane %v479, %v483
  %v488 = vunpack.c.l.b16 %v477
  %v489 = vunpack.c.l.b16 %v478
  %v490 = vpack.c.b16 %v489, %v488
  %v492 = vsel %vm280, %v476, 0
  %v495 = vsel %vm284, %v490, 0
  %497 = vmatprep.subr.bf16.mxu0 0
  %498 = vmatpush1.bf16.msra.mxu0 %v495
  %499 = vmatprep.subr.bf16.mxu0 0
  %500 = vmatpush1.bf16.msra.mxu0 0
  %501 = vmatprep.subr.bf16.mxu0 0
  %502 = vmatpush1.bf16.msra.mxu0 0
  %503 = vmatprep.subr.bf16.mxu0 0
  %504 = vmatpush1.bf16.msra.mxu0 0
  %505 = vmatprep.subr.bf16.mxu0 0
  %506 = vmatpush1.bf16.msra.mxu0 0
  %507 = vmatprep.subr.bf16.mxu0 0
  %508 = vmatpush1.bf16.msra.mxu0 0
  %509 = vmatprep.subr.bf16.mxu0 0
  %510 = vmatpush1.bf16.msra.mxu0 0
  %511 = vmatprep.subr.bf16.mxu0 0
  %512 = vmatpush1.bf16.msra.mxu0 0
  %513 = vmatprep.subr.bf16.mxu0 0
  %514 = vmatpush1.bf16.msra.mxu0 0
  %515 = vmatprep.subr.bf16.mxu0 0
  %516 = vmatpush1.bf16.msra.mxu0 0
  %517 = vmatprep.subr.bf16.mxu0 0
  %518 = vmatpush1.bf16.msra.mxu0 0
  %519 = vmatprep.subr.bf16.mxu0 0
  %520 = vmatpush1.bf16.msra.mxu0 0
  %521 = vmatprep.subr.bf16.mxu0 0
  %522 = vmatpush1.bf16.msra.mxu0 0
  %523 = vmatprep.subr.bf16.mxu0 0
  %524 = vmatpush1.bf16.msra.mxu0 0
  %525 = vmatprep.subr.bf16.mxu0 0
  %526 = vmatpush1.bf16.msra.mxu0 0
  %527 = vmatprep.subr.bf16.mxu0 0
  %528 = vmatpush1.bf16.msra.mxu0 0
  %529 = vmatprep.mubr.bf16.mxu0 0
  %530 = vmatmul.mubr.bf16.gmra.mrb[0].mxu0 %v492
  %v531 = vpop.f32.mrb[0].mxu0
  %v532 = vadd.f32 %v484, %v531
  %v533 = vpop.f32.mrb[0].mxu0
  %v534 = vpop.f32.mrb[0].mxu0
  %v535 = vpop.f32.mrb[0].mxu0
  %536 = vdwg.mxu0
  %vm537 = vcmp.gt.f32.partialorder %v532, 0.0
  %v538 = vmin.f32 %v532, 0.0
  %v539 = vmul.f32 %v538, 1.442695
  %v540 = vpow.pop %v539
  %v541 = vsub.f32 %v540, 1.0
  %v542 = vsel %vm537, %v532, %v541
  %v543 = vpack.c.bf16 %v542, %v542
  %v544 = vld [vmem:[%s11] sm:$0xf]
  %v545 = vld [vmem:[%s11 + $0x4] sm:$0xf]
  %v546 = vld [vmem:[%s11 + $0x8] sm:$0xf]
  %v547 = vld [vmem:[%s11 + $0xc] sm:$0x3]
  %v548 = vld [vmem:[%s12] sm:$0x1]
  %v550 = vlaneseq
  %v551 = vshrl.u32 %v550, 7
  %v552 = vsub.s32 0, %v551
  %v553 = vrot.slane %v548, %v552
  %v559 = vunpack.c.l.b16 %v544
  %v560 = vunpack.c.l.b16 %v545
  %v561 = vunpack.c.l.b16 %v546
  %v562 = vunpack.c.l.b16 %v547
  %v563 = vpack.c.b16 %v560, %v559
  %v564 = vpack.c.b16 %v562, %v561
  %v567 = vsel %vm357, %v543, 0
  %v570 = vsel %vm361, %v564, 0
  %572 = vmatprep.subr.bf16.mxu0 0
  %573 = vmatpush1.bf16.msra.mxu0 %v563
  %574 = vmatprep.subr.bf16.mxu0 0
  %575 = vmatpush1.bf16.msra.mxu0 %v570
  %576 = vmatprep.subr.bf16.mxu0 0
  %577 = vmatpush1.bf16.msra.mxu0 0
  %578 = vmatprep.subr.bf16.mxu0 0
  %579 = vmatpush1.bf16.msra.mxu0 0
  %580 = vmatprep.subr.bf16.mxu0 0
  %581 = vmatpush1.bf16.msra.mxu0 0
  %582 = vmatprep.subr.bf16.mxu0 0
  %583 = vmatpush1.bf16.msra.mxu0 0
  %584 = vmatprep.subr.bf16.mxu0 0
  %585 = vmatpush1.bf16.msra.mxu0 0
  %586 = vmatprep.subr.bf16.mxu0 0
  %587 = vmatpush1.bf16.msra.mxu0 0
  %588 = vmatprep.subr.bf16.mxu0 0
  %589 = vmatpush1.bf16.msra.mxu0 0
  %590 = vmatprep.subr.bf16.mxu0 0
  %591 = vmatpush1.bf16.msra.mxu0 0
  %592 = vmatprep.subr.bf16.mxu0 0
  %593 = vmatpush1.bf16.msra.mxu0 0
  %594 = vmatprep.subr.bf16.mxu0 0
  %595 = vmatpush1.bf16.msra.mxu0 0
  %596 = vmatprep.subr.bf16.mxu0 0
  %597 = vmatpush1.bf16.msra.mxu0 0
  %598 = vmatprep.subr.bf16.mxu0 0
  %599 = vmatpush1.bf16.msra.mxu0 0
  %600 = vmatprep.subr.bf16.mxu0 0
  %601 = vmatpush1.bf16.msra.mxu0 0
  %602 = vmatprep.subr.bf16.mxu0 0
  %603 = vmatpush1.bf16.msra.mxu0 0
  %604 = vmatprep.mubr.bf16.mxu0 0
  %605 = vmatmul.mubr.bf16.gmra.mrb[0].mxu0 %v567
  %v606 = vpop.f32.mrb[0].mxu0
  %v607 = vadd.f32 %v553, %v606
  %v608 = vpop.f32.mrb[0].mxu0
  %v609 = vpop.f32.mrb[0].mxu0
  %v610 = vpop.f32.mrb[0].mxu0
  %611 = vdwg.mxu0
  %vm612 = vcmp.gt.f32.partialorder %v607, 0.0
  %v613 = vmin.f32 %v607, 0.0
  %v614 = vmul.f32 %v613, 1.442695
  %v615 = vpow.pop %v614
  %v616 = vsub.f32 %v615, 1.0
  %v617 = vsel %vm612, %v607, %v616
  %v618 = vadd.f32 %v617, %v475
  %v619 = vpack.c.bf16 %v618, %v618
  %v620 = vld [vmem:[%s13] sm:$0x3]
  %vm621 = vcmask 31744
  %v623 = vsel %vm621, %v620, 0
  %vm625 = vcmask 1041408
  %v627 = vsel %vm625, %v619, 0
  %629 = vmatprep.subr.bf16.mxu0 0
  %630 = vmatpush1.bf16.msra.mxu0 %v627
  %631 = vmatprep.subr.bf16.mxu0 0
  %632 = vmatpush1.bf16.msra.mxu0 0
  %633 = vmatprep.subr.bf16.mxu0 0
  %634 = vmatpush1.bf16.msra.mxu0 0
  %635 = vmatprep.subr.bf16.mxu0 0
  %636 = vmatpush1.bf16.msra.mxu0 0
  %637 = vmatprep.subr.bf16.mxu0 0
  %638 = vmatpush1.bf16.msra.mxu0 0
  %639 = vmatprep.subr.bf16.mxu0 0
  %640 = vmatpush1.bf16.msra.mxu0 0
  %641 = vmatprep.subr.bf16.mxu0 0
  %642 = vmatpush1.bf16.msra.mxu0 0
  %643 = vmatprep.subr.bf16.mxu0 0
  %644 = vmatpush1.bf16.msra.mxu0 0
  %645 = vmatprep.subr.bf16.mxu0 0
  %646 = vmatpush1.bf16.msra.mxu0 0
  %647 = vmatprep.subr.bf16.mxu0 0
  %648 = vmatpush1.bf16.msra.mxu0 0
  %649 = vmatprep.subr.bf16.mxu0 0
  %650 = vmatpush1.bf16.msra.mxu0 0
  %651 = vmatprep.subr.bf16.mxu0 0
  %652 = vmatpush1.bf16.msra.mxu0 0
  %653 = vmatprep.subr.bf16.mxu0 0
  %654 = vmatpush1.bf16.msra.mxu0 0
  %655 = vmatprep.subr.bf16.mxu0 0
  %656 = vmatpush1.bf16.msra.mxu0 0
  %657 = vmatprep.subr.bf16.mxu0 0
  %658 = vmatpush1.bf16.msra.mxu0 0
  %659 = vmatprep.subr.bf16.mxu0 0
  %660 = vmatpush1.bf16.msra.mxu0 0
  %661 = vmatprep.mubr.bf16.mxu0 0
  %662 = vmatmul.mubr.bf16.gmra.mrb[0].mxu0 %v623
  %v663 = vpop.f32.mrb[0].mxu0
  %v664 = vadd.f32 0.0, %v663
  %v665 = vpop.f32.mrb[0].mxu0
  %v666 = vpop.f32.mrb[0].mxu0
  %v667 = vpop.f32.mrb[0].mxu0
  %668 = vdwg.mxu0
  %v669 = vld [vmem:[%s14] sm:$0x3]
  %v671 = vsel %vm621, %v669, 0
  %673 = vmatprep.subr.bf16.mxu0 0
  %674 = vmatpush1.bf16.msra.mxu0 %v627
  %675 = vmatprep.subr.bf16.mxu0 0
  %676 = vmatpush1.bf16.msra.mxu0 0
  %677 = vmatprep.subr.bf16.mxu0 0
  %678 = vmatpush1.bf16.msra.mxu0 0
  %679 = vmatprep.subr.bf16.mxu0 0
  %680 = vmatpush1.bf16.msra.mxu0 0
  %681 = vmatprep.subr.bf16.mxu0 0
  %682 = vmatpush1.bf16.msra.mxu0 0
  %683 = vmatprep.subr.bf16.mxu0 0
  %684 = vmatpush1.bf16.msra.mxu0 0
  %685 = vmatprep.subr.bf16.mxu0 0
  %686 = vmatpush1.bf16.msra.mxu0 0
  %687 = vmatprep.subr.bf16.mxu0 0
  %688 = vmatpush1.bf16.msra.mxu0 0
  %689 = vmatprep.subr.bf16.mxu0 0
  %690 = vmatpush1.bf16.msra.mxu0 0
  %691 = vmatprep.subr.bf16.mxu0 0
  %692 = vmatpush1.bf16.msra.mxu0 0
  %693 = vmatprep.subr.bf16.mxu0 0
  %694 = vmatpush1.bf16.msra.mxu0 0
  %695 = vmatprep.subr.bf16.mxu0 0
  %696 = vmatpush1.bf16.msra.mxu0 0
  %697 = vmatprep.subr.bf16.mxu0 0
  %698 = vmatpush1.bf16.msra.mxu0 0
  %699 = vmatprep.subr.bf16.mxu0 0
  %700 = vmatpush1.bf16.msra.mxu0 0
  %701 = vmatprep.subr.bf16.mxu0 0
  %702 = vmatpush1.bf16.msra.mxu0 0
  %703 = vmatprep.subr.bf16.mxu0 0
  %704 = vmatpush1.bf16.msra.mxu0 0
  %705 = vmatprep.mubr.bf16.mxu0 0
  %706 = vmatmul.mubr.bf16.gmra.mrb[0].mxu0 %v671
  %v707 = vpop.f32.mrb[0].mxu0
  %v708 = vadd.f32 0.0, %v707
  %v709 = vpop.f32.mrb[0].mxu0
  %v710 = vpop.f32.mrb[0].mxu0
  %v711 = vpop.f32.mrb[0].mxu0
  %712 = vdwg.mxu0
  %v713 = vpack.c.bf16 %v411, %v411
  %v714 = vld [vmem:[%s15] sm:$0xf]
  %v715 = vld [vmem:[%s15 + $0x4] sm:$0x7]
  %v716 = vld [vmem:[%s17] sm:$0x1]
  %v718 = vlaneseq
  %v719 = vshrl.u32 %v718, 7
  %v720 = vsub.s32 0, %v719
  %v721 = vrot.slane %v716, %v720
  %v725 = vunpack.c.l.b16 %v714
  %v726 = vunpack.c.l.b16 %v715
  %v727 = vpack.c.b16 %v726, %v725
  %v729 = vsel %vm280, %v713, 0
  %v732 = vsel %vm284, %v727, 0
  %734 = vmatprep.subr.bf16.mxu0 0
  %735 = vmatpush1.bf16.msra.mxu0 %v732
  %736 = vmatprep.subr.bf16.mxu0 0
  %737 = vmatpush1.bf16.msra.mxu0 0
  %738 = vmatprep.subr.bf16.mxu0 0
  %739 = vmatpush1.bf16.msra.mxu0 0
  %740 = vmatprep.subr.bf16.mxu0 0
  %741 = vmatpush1.bf16.msra.mxu0 0
  %742 = vmatprep.subr.bf16.mxu0 0
  %743 = vmatpush1.bf16.msra.mxu0 0
  %744 = vmatprep.subr.bf16.mxu0 0
  %745 = vmatpush1.bf16.msra.mxu0 0
  %746 = vmatprep.subr.bf16.mxu0 0
  %747 = vmatpush1.bf16.msra.mxu0 0
  %748 = vmatprep.subr.bf16.mxu0 0
  %749 = vmatpush1.bf16.msra.mxu0 0
  %750 = vmatprep.subr.bf16.mxu0 0
  %751 = vmatpush1.bf16.msra.mxu0 0
  %752 = vmatprep.subr.bf16.mxu0 0
  %753 = vmatpush1.bf16.msra.mxu0 0
  %754 = vmatprep.subr.bf16.mxu0 0
  %755 = vmatpush1.bf16.msra.mxu0 0
  %756 = vmatprep.subr.bf16.mxu0 0
  %757 = vmatpush1.bf16.msra.mxu0 0
  %758 = vmatprep.subr.bf16.mxu0 0
  %759 = vmatpush1.bf16.msra.mxu0 0
  %760 = vmatprep.subr.bf16.mxu0 0
  %761 = vmatpush1.bf16.msra.mxu0 0
  %762 = vmatprep.subr.bf16.mxu0 0
  %763 = vmatpush1.bf16.msra.mxu0 0
  %764 = vmatprep.subr.bf16.mxu0 0
  %765 = vmatpush1.bf16.msra.mxu0 0
  %766 = vmatprep.mubr.bf16.mxu0 0
  %767 = vmatmul.mubr.bf16.gmra.mrb[0].mxu0 %v729
  %v768 = vpop.f32.mrb[0].mxu0
  %v769 = vadd.f32 %v721, %v768
  %v770 = vpop.f32.mrb[0].mxu0
  %v771 = vpop.f32.mrb[0].mxu0
  %v772 = vpop.f32.mrb[0].mxu0
  %773 = vdwg.mxu0
  %v774 = vpack.c.bf16 %v664, %v664
  %v775 = vld [vmem:[%s16] sm:$0xff]
  %v776 = vld [vmem:[%s16 + $0x8] sm:$0x77]
  %v779 = vunpack.c.l.b16 %v775
  %v780 = vunpack.c.h.b16 %v775
  %v781 = vunpack.c.l.b16 %v776
  %v782 = vunpack.c.h.b16 %v776
  %v783 = vpack.c.b16 %v781, %v779
  %v784 = vpack.c.b16 %v782, %v780
  %v786 = vsel %vm280, %v774, 0
  %v789 = vsel %vm284, %v783, 0
  %v792 = vsel %vm284, %v784, 0
  %794 = vmatprep.subr.bf16.mxu0 %v792
  %795 = vmatpush1.bf16.msra.mxu0 %v789
  %796 = vmatprep.subr.bf16.mxu0 0
  %797 = vmatpush1.bf16.msra.mxu0 0
  %798 = vmatprep.subr.bf16.mxu0 0
  %799 = vmatpush1.bf16.msra.mxu0 0
  %800 = vmatprep.subr.bf16.mxu0 0
  %801 = vmatpush1.bf16.msra.mxu0 0
  %802 = vmatprep.subr.bf16.mxu0 0
  %803 = vmatpush1.bf16.msra.mxu0 0
  %804 = vmatprep.subr.bf16.mxu0 0
  %805 = vmatpush1.bf16.msra.mxu0 0
  %806 = vmatprep.subr.bf16.mxu0 0
  %807 = vmatpush1.bf16.msra.mxu0 0
  %808 = vmatprep.subr.bf16.mxu0 0
  %809 = vmatpush1.bf16.msra.mxu0 0
  %810 = vmatprep.subr.bf16.mxu0 0
  %811 = vmatpush1.bf16.msra.mxu0 0
  %812 = vmatprep.subr.bf16.mxu0 0
  %813 = vmatpush1.bf16.msra.mxu0 0
  %814 = vmatprep.subr.bf16.mxu0 0
  %815 = vmatpush1.bf16.msra.mxu0 0
  %816 = vmatprep.subr.bf16.mxu0 0
  %817 = vmatpush1.bf16.msra.mxu0 0
  %818 = vmatprep.subr.bf16.mxu0 0
  %819 = vmatpush1.bf16.msra.mxu0 0
  %820 = vmatprep.subr.bf16.mxu0 0
  %821 = vmatpush1.bf16.msra.mxu0 0
  %822 = vmatprep.subr.bf16.mxu0 0
  %823 = vmatpush1.bf16.msra.mxu0 0
  %824 = vmatprep.subr.bf16.mxu0 0
  %825 = vmatpush1.bf16.msra.mxu0 0
  %826 = vmatprep.mubr.bf16.mxu0 0
  %827 = vmatmul.mubr.bf16.gmra.mrb[0].mxu0 %v786
  %v828 = vpop.f32.mrb[0].mxu0
  %v829 = vadd.f32 0.0, %v828
  %v830 = vpop.f32.mrb[0].mxu0
  %v831 = vadd.f32 0.0, %v830
  %v832 = vpop.f32.mrb[0].mxu0
  %v833 = vpop.f32.mrb[0].mxu0
  %834 = vdwg.mxu0
  %v835 = vpack.c.bf16 %v708, %v708
  %v837 = vsel %vm280, %v835, 0
  %839 = vmatprep.subr.bf16.mxu0 %v792
  %840 = vmatpush1.bf16.msra.mxu0 %v789
  %841 = vmatprep.subr.bf16.mxu0 0
  %842 = vmatpush1.bf16.msra.mxu0 0
  %843 = vmatprep.subr.bf16.mxu0 0
  %844 = vmatpush1.bf16.msra.mxu0 0
  %845 = vmatprep.subr.bf16.mxu0 0
  %846 = vmatpush1.bf16.msra.mxu0 0
  %847 = vmatprep.subr.bf16.mxu0 0
  %848 = vmatpush1.bf16.msra.mxu0 0
  %849 = vmatprep.subr.bf16.mxu0 0
  %850 = vmatpush1.bf16.msra.mxu0 0
  %851 = vmatprep.subr.bf16.mxu0 0
  %852 = vmatpush1.bf16.msra.mxu0 0
  %853 = vmatprep.subr.bf16.mxu0 0
  %854 = vmatpush1.bf16.msra.mxu0 0
  %855 = vmatprep.subr.bf16.mxu0 0
  %856 = vmatpush1.bf16.msra.mxu0 0
  %857 = vmatprep.subr.bf16.mxu0 0
  %858 = vmatpush1.bf16.msra.mxu0 0
  %859 = vmatprep.subr.bf16.mxu0 0
  %860 = vmatpush1.bf16.msra.mxu0 0
  %861 = vmatprep.subr.bf16.mxu0 0
  %862 = vmatpush1.bf16.msra.mxu0 0
  %863 = vmatprep.subr.bf16.mxu0 0
  %864 = vmatpush1.bf16.msra.mxu0 0
  %865 = vmatprep.subr.bf16.mxu0 0
  %866 = vmatpush1.bf16.msra.mxu0 0
  %867 = vmatprep.subr.bf16.mxu0 0
  %868 = vmatpush1.bf16.msra.mxu0 0
  %869 = vmatprep.subr.bf16.mxu0 0
  %870 = vmatpush1.bf16.msra.mxu0 0
  %871 = vmatprep.mubr.bf16.mxu0 0
  %872 = vmatmul.mubr.bf16.gmra.mrb[0].mxu0 %v837
  %v873 = vpop.f32.mrb[0].mxu0
  %v874 = vadd.f32 0.0, %v873
  %v875 = vpop.f32.mrb[0].mxu0
  %v876 = vadd.f32 0.0, %v875
  %v877 = vpop.f32.mrb[0].mxu0
  %v878 = vpop.f32.mrb[0].mxu0
  %879 = vdwg.mxu0
  %v880 = vadd.f32 %v769, %v829
  %883 = vrot.lane.b32.xlu0 %v874, 44
  %v884 = vpop.permute.xlu0 %883
  %885 = vrot.lane.b32.xlu0 %v876, 44
  %v886 = vpop.permute.xlu0 %885
  %vm887 = vcmask 359424
  %v888 = vsel %vm887, %v884, %v886
  %v890 = vadd.f32 %v880, %v888
  %vm891 = vcmp.gt.f32.partialorder %v890, 0.0
  %v892 = vmin.f32 %v890, 0.0
  %v893 = vmul.f32 %v892, 1.442695
  %v894 = vpow.pop %v893
  %v895 = vsub.f32 %v894, 1.0
  %v896 = vsel %vm891, %v890, %v895
  %v897 = vadd.f32 %v769, %v874
  %900 = vrot.lane.b32.xlu0 %v829, 44
  %v901 = vpop.permute.xlu0 %900
  %902 = vrot.lane.b32.xlu0 %v831, 44
  %v903 = vpop.permute.xlu0 %902
  %v904 = vsel %vm887, %v901, %v903
  %v906 = vadd.f32 %v897, %v904
  %vm907 = vcmp.gt.f32.partialorder %v906, 0.0
  %v908 = vmin.f32 %v906, 0.0
  %v909 = vmul.f32 %v908, 1.442695
  %v910 = vpow.pop %v909
  %v911 = vsub.f32 %v910, 1.0
  %v912 = vsel %vm907, %v906, %v911
  %v913 = vpack.c.bf16 %v896, %v896
  %v914 = vld [vmem:[%s18] sm:$0xf]
  %v915 = vld [vmem:[%s18 + $0x4] sm:$0xf]
  %v916 = vld [vmem:[%s18 + $0x8] sm:$0xf]
  %v917 = vld [vmem:[%s18 + $0xc] sm:$0xf]
  %v918 = vld [vmem:[%s18 + $0x10] sm:$0xf]
  %v919 = vld [vmem:[%s18 + $0x14] sm:$0xf]
  %v920 = vld [vmem:[%s18 + $0x18] sm:$0xf]
  %v921 = vld [vmem:[%s18 + $0x1c] sm:$0xf]
  %v922 = vld [vmem:[%s18 + $0x20] sm:$0xf]
  %v923 = vld [vmem:[%s18 + $0x24] sm:$0xf]
  %v924 = vld [vmem:[%s18 + $0x28] sm:$0x3]
  %v925 = vld [vmem:[%s19] sm:$0x1]
  %v927 = vlaneseq
  %v928 = vshrl.u32 %v927, 7
  %v929 = vsub.s32 0, %v928
  %v930 = vrot.slane %v925, %v929
  %v943 = vunpack.c.l.b16 %v914
  %v944 = vunpack.c.l.b16 %v915
  %v945 = vunpack.c.l.b16 %v916
  %v946 = vunpack.c.l.b16 %v917
  %v947 = vunpack.c.l.b16 %v918
  %v948 = vunpack.c.l.b16 %v919
  %v949 = vunpack.c.l.b16 %v920
  %v950 = vunpack.c.l.b16 %v921
  %v951 = vunpack.c.l.b16 %v922
  %v952 = vunpack.c.l.b16 %v923
  %v953 = vunpack.c.l.b16 %v924
  %v954 = vpack.c.b16 %v944, %v943
  %v955 = vpack.c.b16 %v946, %v945
  %v956 = vpack.c.b16 %v948, %v947
  %v957 = vpack.c.b16 %v950, %v949
  %v958 = vpack.c.b16 %v952, %v951
  %v959 = vpack.c.b16 %v953, %v953
  %vm965 = vcmask 687104
  %v967 = vsel %vm965, %v913, 0
  %v970 = vsel %vm625, %v959, 0
  %972 = vmatprep.subr.bf16.mxu0 0
  %973 = vmatpush1.bf16.msra.mxu0 %v954
  %974 = vmatprep.subr.bf16.mxu0 0
  %975 = vmatpush1.bf16.msra.mxu0 %v955
  %976 = vmatprep.subr.bf16.mxu0 0
  %977 = vmatpush1.bf16.msra.mxu0 %v956
  %978 = vmatprep.subr.bf16.mxu0 0
  %979 = vmatpush1.bf16.msra.mxu0 %v957
  %980 = vmatprep.subr.bf16.mxu0 0
  %981 = vmatpush1.bf16.msra.mxu0 %v958
  %982 = vmatprep.subr.bf16.mxu0 0
  %983 = vmatpush1.bf16.msra.mxu0 %v970
  %984 = vmatprep.subr.bf16.mxu0 0
  %985 = vmatpush1.bf16.msra.mxu0 0
  %986 = vmatprep.subr.bf16.mxu0 0
  %987 = vmatpush1.bf16.msra.mxu0 0
  %988 = vmatprep.subr.bf16.mxu0 0
  %989 = vmatpush1.bf16.msra.mxu0 0
  %990 = vmatprep.subr.bf16.mxu0 0
  %991 = vmatpush1.bf16.msra.mxu0 0
  %992 = vmatprep.subr.bf16.mxu0 0
  %993 = vmatpush1.bf16.msra.mxu0 0
  %994 = vmatprep.subr.bf16.mxu0 0
  %995 = vmatpush1.bf16.msra.mxu0 0
  %996 = vmatprep.subr.bf16.mxu0 0
  %997 = vmatpush1.bf16.msra.mxu0 0
  %998 = vmatprep.subr.bf16.mxu0 0
  %999 = vmatpush1.bf16.msra.mxu0 0
  %1000 = vmatprep.subr.bf16.mxu0 0
  %1001 = vmatpush1.bf16.msra.mxu0 0
  %1002 = vmatprep.subr.bf16.mxu0 0
  %1003 = vmatpush1.bf16.msra.mxu0 0
  %1004 = vmatprep.mubr.bf16.mxu0 0
  %1005 = vmatmul.mubr.bf16.gmra.mrb[0].mxu0 %v967
  %v1006 = vpop.f32.mrb[0].mxu0
  %v1007 = vadd.f32 %v930, %v1006
  %v1008 = vpop.f32.mrb[0].mxu0
  %v1009 = vpop.f32.mrb[0].mxu0
  %v1010 = vpop.f32.mrb[0].mxu0
  %1011 = vdwg.mxu0
  %vm1012 = vcmp.gt.f32.partialorder %v1007, 0.0
  %v1013 = vmin.f32 %v1007, 0.0
  %v1014 = vmul.f32 %v1013, 1.442695
  %v1015 = vpow.pop %v1014
  %v1016 = vsub.f32 %v1015, 1.0
  %v1017 = vsel %vm1012, %v1007, %v1016
  %v1018 = vpack.c.bf16 %v912, %v912
  %v1020 = vsel %vm965, %v1018, 0
  %1022 = vmatprep.subr.bf16.mxu0 0
  %1023 = vmatpush1.bf16.msra.mxu0 %v954
  %1024 = vmatprep.subr.bf16.mxu0 0
  %1025 = vmatpush1.bf16.msra.mxu0 %v955
  %1026 = vmatprep.subr.bf16.mxu0 0
  %1027 = vmatpush1.bf16.msra.mxu0 %v956
  %1028 = vmatprep.subr.bf16.mxu0 0
  %1029 = vmatpush1.bf16.msra.mxu0 %v957
  %1030 = vmatprep.subr.bf16.mxu0 0
  %1031 = vmatpush1.bf16.msra.mxu0 %v958
  %1032 = vmatprep.subr.bf16.mxu0 0
  %1033 = vmatpush1.bf16.msra.mxu0 %v970
  %1034 = vmatprep.subr.bf16.mxu0 0
  %1035 = vmatpush1.bf16.msra.mxu0 0
  %1036 = vmatprep.subr.bf16.mxu0 0
  %1037 = vmatpush1.bf16.msra.mxu0 0
  %1038 = vmatprep.subr.bf16.mxu0 0
  %1039 = vmatpush1.bf16.msra.mxu0 0
  %1040 = vmatprep.subr.bf16.mxu0 0
  %1041 = vmatpush1.bf16.msra.mxu0 0
  %1042 = vmatprep.subr.bf16.mxu0 0
  %1043 = vmatpush1.bf16.msra.mxu0 0
  %1044 = vmatprep.subr.bf16.mxu0 0
  %1045 = vmatpush1.bf16.msra.mxu0 0
  %1046 = vmatprep.subr.bf16.mxu0 0
  %1047 = vmatpush1.bf16.msra.mxu0 0
  %1048 = vmatprep.subr.bf16.mxu0 0
  %1049 = vmatpush1.bf16.msra.mxu0 0
  %1050 = vmatprep.subr.bf16.mxu0 0
  %1051 = vmatpush1.bf16.msra.mxu0 0
  %1052 = vmatprep.subr.bf16.mxu0 0
  %1053 = vmatpush1.bf16.msra.mxu0 0
  %1054 = vmatprep.mubr.bf16.mxu0 0
  %1055 = vmatmul.mubr.bf16.gmra.mrb[0].mxu0 %v1020
  %v1056 = vpop.f32.mrb[0].mxu0
  %v1057 = vadd.f32 %v930, %v1056
  %v1058 = vpop.f32.mrb[0].mxu0
  %v1059 = vpop.f32.mrb[0].mxu0
  %v1060 = vpop.f32.mrb[0].mxu0
  %1061 = vdwg.mxu0
  %vm1062 = vcmp.gt.f32.partialorder %v1057, 0.0
  %v1063 = vmin.f32 %v1057, 0.0
  %v1064 = vmul.f32 %v1063, 1.442695
  %v1065 = vpow.pop %v1064
  %v1066 = vsub.f32 %v1065, 1.0
  %v1067 = vsel %vm1062, %v1057, %v1066
  %v1068 = vadd.f32 %v1017, %v1067
  %v1069 = vpack.c.bf16 %v1068, %v1068
  %v1070 = vld [vmem:[%s20] sm:$0xf]
  %v1071 = vld [vmem:[%s20 + $0x4] sm:$0xf]
  %v1072 = vld [vmem:[%s20 + $0x8] sm:$0xf]
  %v1073 = vld [vmem:[%s20 + $0xc] sm:$0xf]
  %v1074 = vld [vmem:[%s20 + $0x10] sm:$0xf]
  %v1075 = vld [vmem:[%s20 + $0x14] sm:$0xf]
  %v1076 = vld [vmem:[%s20 + $0x18] sm:$0xf]
  %v1077 = vld [vmem:[%s20 + $0x1c] sm:$0xf]
  %v1078 = vld [vmem:[%s20 + $0x20] sm:$0xf]
  %v1079 = vld [vmem:[%s20 + $0x24] sm:$0xf]
  %v1080 = vld [vmem:[%s20 + $0x28] sm:$0x3]
  %v1081 = vld [vmem:[%s21] sm:$0x1]
  %v1083 = vlaneseq
  %v1084 = vshrl.u32 %v1083, 7
  %v1085 = vsub.s32 0, %v1084
  %v1086 = vrot.slane %v1081, %v1085
  %v1099 = vunpack.c.l.b16 %v1070
  %v1100 = vunpack.c.l.b16 %v1071
  %v1101 = vunpack.c.l.b16 %v1072
  %v1102 = vunpack.c.l.b16 %v1073
  %v1103 = vunpack.c.l.b16 %v1074
  %v1104 = vunpack.c.l.b16 %v1075
  %v1105 = vunpack.c.l.b16 %v1076
  %v1106 = vunpack.c.l.b16 %v1077
  %v1107 = vunpack.c.l.b16 %v1078
  %v1108 = vunpack.c.l.b16 %v1079
  %v1109 = vunpack.c.l.b16 %v1080
  %v1110 = vpack.c.b16 %v1100, %v1099
  %v1111 = vpack.c.b16 %v1102, %v1101
  %v1112 = vpack.c.b16 %v1104, %v1103
  %v1113 = vpack.c.b16 %v1106, %v1105
  %v1114 = vpack.c.b16 %v1108, %v1107
  %v1115 = vpack.c.b16 %v1109, %v1109
  %v1122 = vsel %vm965, %v1069, 0
  %v1125 = vsel %vm625, %v1115, 0
  %1127 = vmatprep.subr.bf16.mxu0 0
  %1128 = vmatpush1.bf16.msra.mxu0 %v1110
  %1129 = vmatprep.subr.bf16.mxu0 0
  %1130 = vmatpush1.bf16.msra.mxu0 %v1111
  %1131 = vmatprep.subr.bf16.mxu0 0
  %1132 = vmatpush1.bf16.msra.mxu0 %v1112
  %1133 = vmatprep.subr.bf16.mxu0 0
  %1134 = vmatpush1.bf16.msra.mxu0 %v1113
  %1135 = vmatprep.subr.bf16.mxu0 0
  %1136 = vmatpush1.bf16.msra.mxu0 %v1114
  %1137 = vmatprep.subr.bf16.mxu0 0
  %1138 = vmatpush1.bf16.msra.mxu0 %v1125
  %1139 = vmatprep.subr.bf16.mxu0 0
  %1140 = vmatpush1.bf16.msra.mxu0 0
  %1141 = vmatprep.subr.bf16.mxu0 0
  %1142 = vmatpush1.bf16.msra.mxu0 0
  %1143 = vmatprep.subr.bf16.mxu0 0
  %1144 = vmatpush1.bf16.msra.mxu0 0
  %1145 = vmatprep.subr.bf16.mxu0 0
  %1146 = vmatpush1.bf16.msra.mxu0 0
  %1147 = vmatprep.subr.bf16.mxu0 0
  %1148 = vmatpush1.bf16.msra.mxu0 0
  %1149 = vmatprep.subr.bf16.mxu0 0
  %1150 = vmatpush1.bf16.msra.mxu0 0
  %1151 = vmatprep.subr.bf16.mxu0 0
  %1152 = vmatpush1.bf16.msra.mxu0 0
  %1153 = vmatprep.subr.bf16.mxu0 0
  %1154 = vmatpush1.bf16.msra.mxu0 0
  %1155 = vmatprep.subr.bf16.mxu0 0
  %1156 = vmatpush1.bf16.msra.mxu0 0
  %1157 = vmatprep.subr.bf16.mxu0 0
  %1158 = vmatpush1.bf16.msra.mxu0 0
  %1159 = vmatprep.mubr.bf16.mxu0 0
  %1160 = vmatmul.mubr.bf16.gmra.mrb[0].mxu0 %v1122
  %v1161 = vpop.f32.mrb[0].mxu0
  %v1162 = vadd.f32 %v1086, %v1161
  %v1163 = vpop.f32.mrb[0].mxu0
  %v1164 = vpop.f32.mrb[0].mxu0
  %v1165 = vpop.f32.mrb[0].mxu0
  %1166 = vdwg.mxu0
  %vm1167 = vcmask 11264
  %1168 = vst.msk [vmem:[%s22] sm:$0xf] %vm1167, %v1162
  // Predicated region
  $region90: #{convnet_forward.9} parent=0 // pred_check
    _
  $region91: #{convnet_forward.9} parent=0 // pred_check_branch
    %1170 = sbr.rel (0) target = $region93
  $region92: #{convnet_forward.9} parent=0 // pred_region
    _
  $region93: #{convnet_forward.9} parent=0 // pred_fallthru
    _
  // Predicated region
  $region94: #{convnet_forward.9} parent=0 // pred_check
    _
  $region95: #{convnet_forward.9} parent=0 // pred_check_branch
    %1172 = sbr.rel (0) target = $region97
  $region96: #{convnet_forward.9} parent=0 // pred_region
    _
  $region97: #{convnet_forward.9} parent=0 // pred_fallthru
    _

</llo_original>
